<compile_context>
chip_gen: v7x
topology: tpu7x:2x2x1
jax: 0.10.0
libtpu: 0.0.40
codegen_flags: <defaults>
</compile_context>

<pallas_src>
import math

import jax
import jax.numpy as jnp
from jax import lax
from jax.experimental import pallas as pl
from jax.experimental.pallas import tpu as pltpu

PAD = 8  # left zero-pad of the W axis in staged scratches -> aligned interior store


def _stage_padded(dst_ref, val):
    """Write `val` (NB,H,W,C) into the interior of a (NB,H+2,W+PAD+1,C) scratch
    and zero exactly the halo strips that the 3x3 taps read."""
    NB, H, W, C = val.shape
    zrow = jnp.zeros((NB, 1, W + 2, C), val.dtype)
    zcol = jnp.zeros((NB, H, 1, C), val.dtype)
    dst_ref[:, 0:1, PAD - 1:PAD + W + 1, :] = zrow          # top halo row
    dst_ref[:, H + 1:H + 2, PAD - 1:PAD + W + 1, :] = zrow  # bottom halo row
    dst_ref[:, 1:H + 1, PAD - 1:PAD, :] = zcol              # left halo column
    dst_ref[:, 1:H + 1, PAD + W:PAD + W + 1, :] = zcol      # right halo column
    dst_ref[:, 1:H + 1, PAD:PAD + W, :] = val               # interior (sublane-aligned)


def _taps_3x3(src_ref):
    """Return the 9 shifted (NB,H,W,C) taps of a staged padded scratch,
    ordered (di major, dj minor) to match the flattened HWIO weights."""
    NB, Hp, Wp, C = src_ref.shape
    H, W = Hp - 2, Wp - PAD - 1
    return [src_ref[:, di:di + H, PAD - 1 + dj:PAD - 1 + dj + W, :]
            for di in range(3) for dj in range(3)]


def resblock_kernel(x_ref, w1_ref, sh1_ref, wb_ref, shb_ref, o_ref,
                    xpad_ref, mid_ref):
    # x_ref  : (NB, H, W, C1)        unpadded NHWC input block
    # w1_ref : (9*C1, C2)  bf16      conv1 weights, BN1 scale folded in
    # sh1_ref: (1, C2)     f32       conv1 bias + BN1 shift
    # wb_ref : (9*C2+C1, C2) bf16    [conv2 (BN2-scaled) ; 1x1 downsample] fused
    # shb_ref: (1, C2)     f32       conv2/BN2 shift + downsample bias
    # o_ref  : (NB, H*W, C2)         output block
    # xpad_ref/mid_ref: padded VMEM staging scratches
    NB, H, W, C1 = x_ref.shape
    C2 = o_ref.shape[2]
    M = NB * H * W

    # ---- stage input with in-kernel halo (replaces wrapper-side jnp.pad) ----
    _stage_padded(xpad_ref, x_ref[...])

    # ---- conv1 as a single MXU matmul over K = 9*C1 (im2col-in-K) ----------
    taps1 = _taps_3x3(xpad_ref)
    pat1 = jnp.concatenate(taps1, axis=-1).reshape(M, 9 * C1)
    y1 = jnp.dot(pat1.astype(jnp.bfloat16), w1_ref[...],
                 preferred_element_type=jnp.float32)
    y1 = jnp.maximum(y1 + sh1_ref[...], 0.0)                 # BN1 + ReLU

    # ---- stage intermediate, then conv2 + downsample as ONE matmul ---------
    _stage_padded(mid_ref, y1.reshape(NB, H, W, C2))
    taps2 = _taps_3x3(mid_ref)
    # K = 9*C2 (conv2 taps) + C1 (center tap of the input, reused for the 1x1
    # downsample branch -> hoisted, loaded once).
    patb = jnp.concatenate(taps2 + [taps1[4]], axis=-1).reshape(M, 9 * C2 + C1)
    out = jnp.dot(patb.astype(jnp.bfloat16), wb_ref[...],
                  preferred_element_type=jnp.float32)
    out = jnp.maximum(out + shb_ref[...], 0.0)               # BN2 + residual + ReLU

    o_ref[...] = out.reshape(NB, H * W, C2).astype(o_ref.dtype)


def fold_kernel_params(params):
    """Fold BN (inference) + biases into 2 bf16 weight matrices and 2 f32 biases."""
    (w1, sc1, sh1, w2, sc2, sh2, wd, bd) = params
    c1, c2 = w1.shape[2], w1.shape[3]
    # conv1: y1 = relu(pat1 @ (W1*sc1) + sh1), taps flattened (di, dj, ci)-major
    w1s = (w1.reshape(9 * c1, c2) * sc1).astype(jnp.bfloat16)
    # conv2 + downsample fused: out = relu(patB @ [W2*sc2 ; Wd] + (sh2 + bd))
    w2s = w2.reshape(9 * c2, c2) * sc2
    wb = jnp.concatenate([w2s, wd], axis=0).astype(jnp.bfloat16)
    shb = (sh2 + bd).astype(jnp.float32)
    return w1s, sh1.astype(jnp.float32), wb, shb


def resblock_pallas(x_nchw, params):
    N, C1, H, W = x_nchw.shape
    w1s, sh1, wb, shb = fold_kernel_params(params)
    C2 = w1s.shape[-1]
    NB = math.gcd(N, 8)  # images per grid step (full batch when N <= 8)

    # NCHW -> NHWC so channels sit on the lane axis for the im2col matmuls.
    # TODO(synk): this boundary relayout (and the inverse on the output) is left
    #             to XLA; a 4D in-kernel transpose has no robust Mosaic lowering.
    x = jnp.transpose(x_nchw, (0, 2, 3, 1))

    grid_spec = pltpu.PrefetchScalarGridSpec(
        num_scalar_prefetch=0,
        grid=(N // NB,),
        in_specs=[
            pl.BlockSpec((NB, H, W, C1), lambda n: (n, 0, 0, 0)),
            pl.BlockSpec((9 * C1, C2), lambda n: (0, 0)),
            pl.BlockSpec((1, C2), lambda n: (0, 0)),
            pl.BlockSpec((9 * C2 + C1, C2), lambda n: (0, 0)),
            pl.BlockSpec((1, C2), lambda n: (0, 0)),
        ],
        out_specs=pl.BlockSpec((NB, H * W, C2), lambda n: (n, 0, 0)),
        scratch_shapes=[
            pltpu.VMEM((NB, H + 2, W + PAD + 1, C1), jnp.float32),  # padded input
            pltpu.VMEM((NB, H + 2, W + PAD + 1, C2), jnp.float32),  # padded conv1 out
        ],
    )
    out_flat = pl.pallas_call(
        resblock_kernel,
        out_shape=jax.ShapeDtypeStruct((N, H * W, C2), jnp.float32),
        grid_spec=grid_spec,
        compiler_params=pltpu.CompilerParams(dimension_semantics=("parallel",)),
    )(x, w1s, sh1, wb, shb)

    out = out_flat.reshape(N, H, W, C2)
    return jnp.transpose(out, (0, 3, 1, 2))  # NHWC -> NCHW


def init_params(key, c1, c2, eps=1e-5):
    """Deterministic synthetic parameters. BN (inference mode) + conv bias are
    folded into per-channel scale/shift: y = conv(x) * scale + shift."""
    ks = jax.random.split(key, 14)

    def fold(b, gamma, beta, mean, var):
        s = gamma / jnp.sqrt(var + eps)
        return s.reshape(1, c2), ((b - mean) * s + beta).reshape(1, c2)

    w1 = 0.2 * jax.random.normal(ks[0], (3, 3, c1, c2), jnp.float32)
    b1 = 0.1 * jax.random.normal(ks[1], (c2,), jnp.float32)
    g1 = 1.0 + 0.1 * jax.random.normal(ks[2], (c2,), jnp.float32)
    be1 = 0.1 * jax.random.normal(ks[3], (c2,), jnp.float32)
    rm1 = 0.1 * jax.random.normal(ks[4], (c2,), jnp.float32)
    rv1 = 0.5 + jnp.abs(jax.random.normal(ks[5], (c2,), jnp.float32))
    sc1, sh1 = fold(b1, g1, be1, rm1, rv1)

    w2 = 0.2 * jax.random.normal(ks[6], (3, 3, c2, c2), jnp.float32)
    b2 = 0.1 * jax.random.normal(ks[7], (c2,), jnp.float32)
    g2 = 1.0 + 0.1 * jax.random.normal(ks[8], (c2,), jnp.float32)
    be2 = 0.1 * jax.random.normal(ks[9], (c2,), jnp.float32)
    rm2 = 0.1 * jax.random.normal(ks[10], (c2,), jnp.float32)
    rv2 = 0.5 + jnp.abs(jax.random.normal(ks[11], (c2,), jnp.float32))
    sc2, sh2 = fold(b2, g2, be2, rm2, rv2)

    if c1 == c2:   # Identity downsample expressed as eye
        wd = jnp.eye(c1, dtype=jnp.float32)
        bd = jnp.zeros((1, c2), jnp.float32)
    else:
        wd = 0.2 * jax.random.normal(ks[12], (c1, c2), jnp.float32)
        bd = 0.1 * jax.random.normal(ks[13], (c2,), jnp.float32).reshape(1, c2)

    return (w1, sc1, sh1, w2, sc2, sh2, wd, bd)


def resblock_ref(x_nchw, params):
    """Pure-JAX reference for correctness checking (full f32, HIGHEST precision)."""
    (w1, sc1, sh1, w2, sc2, sh2, wd, bd) = params
    x = jnp.transpose(x_nchw, (0, 2, 3, 1))
    dn = ('NHWC', 'HWIO', 'NHWC')
    y = lax.conv_general_dilated(x, w1, (1, 1), 'SAME', dimension_numbers=dn,
                                 precision=lax.Precision.HIGHEST)
    y = jnp.maximum(y * sc1[0] + sh1[0], 0.0)
    y = lax.conv_general_dilated(y, w2, (1, 1), 'SAME', dimension_numbers=dn,
                                 precision=lax.Precision.HIGHEST)
    y = y * sc2[0] + sh2[0]
    ds = jnp.einsum('nhwc,cd->nhwd', x, wd,
                    precision=lax.Precision.HIGHEST) + bd[0]
    return jnp.transpose(jnp.maximum(y + ds, 0.0), (0, 3, 1, 2))


if __name__ == "__main__":
    N, C1, C2, H, W = 2, 4, 8, 16, 16
    key = jax.random.PRNGKey(0)
    kx, kp = jax.random.split(key)
    x = jax.random.normal(kx, (N, C1, H, W), jnp.float32)
    params = init_params(kp, C1, C2)

    out = jax.jit(resblock_pallas)(x, params)
    jax.block_until_ready(out)
    assert out.shape == (N, C2, H, W)

    ref = resblock_ref(x, params)
    max_err = float(jnp.max(jnp.abs(out - ref)))
    # bf16 MXU inputs (f32 accumulation) vs the HIGHEST-precision f32 reference
    # give ~1e-2-scale rounding error; real bugs produce O(1) errors.
    if max_err > 1e-1:
        raise AssertionError(f"Pallas/reference mismatch, max abs err = {max_err}")

    print("KERNEL_OK")
</pallas_src>

<mosaic_0001>
module attributes {stable_mosaic.version = 11 : i64} {
  func.func @resblock_kernel(%arg0: i32, %arg1: memref<2x16x16x4xf32, #tpu.memory_space<vmem>>, %arg2: memref<36x8xbf16, #tpu.memory_space<vmem>>, %arg3: memref<1x8xf32, #tpu.memory_space<vmem>>, %arg4: memref<76x8xbf16, #tpu.memory_space<vmem>>, %arg5: memref<1x8xf32, #tpu.memory_space<vmem>>, %arg6: memref<2x256x8xf32, #tpu.memory_space<vmem>>, %arg7: memref<2x18x25x4xf32, #tpu.memory_space<vmem>>, %arg8: memref<2x18x25x8xf32, #tpu.memory_space<vmem>>) attributes {dimension_semantics = [#tpu.dimension_semantics<parallel>], iteration_bounds = array<i64: 1>, scalar_prefetch = 0 : i64, scratch_operands = 2 : i64, tpu.core_type = #tpu.core_type<tc>, window_params = [{transform_indices = @transform_0, window_bounds = array<i64: 2, 16, 16, 4>}, {pipeline_mode = #tpu.pipeline_mode<synchronous>, transform_indices = @transform_1, window_bounds = array<i64: 36, 8>}, {pipeline_mode = #tpu.pipeline_mode<synchronous>, transform_indices = @transform_2, window_bounds = array<i64: 1, 8>}, {pipeline_mode = #tpu.pipeline_mode<synchronous>, transform_indices = @transform_3, window_bounds = array<i64: 76, 8>}, {pipeline_mode = #tpu.pipeline_mode<synchronous>, transform_indices = @transform_4, window_bounds = array<i64: 1, 8>}, {transform_indices = @transform_5, window_bounds = array<i64: 2, 256, 8>}]} {
    %c0 = arith.constant 0 : index
    %c0_0 = arith.constant 0 : index
    %c0_1 = arith.constant 0 : index
    %c0_2 = arith.constant 0 : index
    %0 = vector.load %arg1[%c0, %c0_0, %c0_1, %c0_2] : memref<2x16x16x4xf32, #tpu.memory_space<vmem>>, vector<2x16x16x4xf32>
    %cst = arith.constant 0.000000e+00 : f32
    %1 = vector.broadcast %cst : f32 to vector<2x1x18x4xf32>
    %cst_3 = arith.constant 0.000000e+00 : f32
    %2 = vector.broadcast %cst_3 : f32 to vector<2x16x1x4xf32>
    %c0_4 = arith.constant 0 : index
    %c0_5 = arith.constant 0 : index
    %c7 = arith.constant 7 : index
    %c0_6 = arith.constant 0 : index
    %3 = vector.load %arg7[%c0_4, %c0_5, %c7, %c0_6] : memref<2x18x25x4xf32, #tpu.memory_space<vmem>>, vector<2x1x18x4xf32>
    tpu.vector_store %arg7[%c0_4, %c0_5, %c7, %c0_6], %1 {strides = array<i32>} : memref<2x18x25x4xf32, #tpu.memory_space<vmem>>, vector<2x1x18x4xf32>,
    %c0_7 = arith.constant 0 : index
    %c17 = arith.constant 17 : index
    %c7_8 = arith.constant 7 : index
    %c0_9 = arith.constant 0 : index
    %4 = vector.load %arg7[%c0_7, %c17, %c7_8, %c0_9] : memref<2x18x25x4xf32, #tpu.memory_space<vmem>>, vector<2x1x18x4xf32>
    tpu.vector_store %arg7[%c0_7, %c17, %c7_8, %c0_9], %1 {strides = array<i32>} : memref<2x18x25x4xf32, #tpu.memory_space<vmem>>, vector<2x1x18x4xf32>,
    %c0_10 = arith.constant 0 : index
    %c1 = arith.constant 1 : index
    %c7_11 = arith.constant 7 : index
    %c0_12 = arith.constant 0 : index
    %5 = vector.load %arg7[%c0_10, %c1, %c7_11, %c0_12] : memref<2x18x25x4xf32, #tpu.memory_space<vmem>>, vector<2x16x1x4xf32>
    tpu.vector_store %arg7[%c0_10, %c1, %c7_11, %c0_12], %2 {strides = array<i32>} : memref<2x18x25x4xf32, #tpu.memory_space<vmem>>, vector<2x16x1x4xf32>,
    %c0_13 = arith.constant 0 : index
    %c1_14 = arith.constant 1 : index
    %c24 = arith.constant 24 : index
    %c0_15 = arith.constant 0 : index
    %6 = vector.load %arg7[%c0_13, %c1_14, %c24, %c0_15] : memref<2x18x25x4xf32, #tpu.memory_space<vmem>>, vector<2x16x1x4xf32>
    tpu.vector_store %arg7[%c0_13, %c1_14, %c24, %c0_15], %2 {strides = array<i32>} : memref<2x18x25x4xf32, #tpu.memory_space<vmem>>, vector<2x16x1x4xf32>,
    %c0_16 = arith.constant 0 : index
    %c1_17 = arith.constant 1 : index
    %c8 = arith.constant 8 : index
    %c0_18 = arith.constant 0 : index
    %7 = vector.load %arg7[%c0_16, %c1_17, %c8, %c0_18] : memref<2x18x25x4xf32, #tpu.memory_space<vmem>>, vector<2x16x16x4xf32>
    tpu.vector_store %arg7[%c0_16, %c1_17, %c8, %c0_18], %0 {strides = array<i32>} : memref<2x18x25x4xf32, #tpu.memory_space<vmem>>, vector<2x16x16x4xf32>,
    %c0_19 = arith.constant 0 : index
    %c0_20 = arith.constant 0 : index
    %c7_21 = arith.constant 7 : index
    %c0_22 = arith.constant 0 : index
    %8 = vector.load %arg7[%c0_19, %c0_20, %c7_21, %c0_22] : memref<2x18x25x4xf32, #tpu.memory_space<vmem>>, vector<2x16x16x4xf32>
    %c0_23 = arith.constant 0 : index
    %c0_24 = arith.constant 0 : index
    %c8_25 = arith.constant 8 : index
    %c0_26 = arith.constant 0 : index
    %9 = vector.load %arg7[%c0_23, %c0_24, %c8_25, %c0_26] : memref<2x18x25x4xf32, #tpu.memory_space<vmem>>, vector<2x16x16x4xf32>
    %c0_27 = arith.constant 0 : index
    %c0_28 = arith.constant 0 : index
    %c9 = arith.constant 9 : index
    %c0_29 = arith.constant 0 : index
    %10 = vector.load %arg7[%c0_27, %c0_28, %c9, %c0_29] : memref<2x18x25x4xf32, #tpu.memory_space<vmem>>, vector<2x16x16x4xf32>
    %c0_30 = arith.constant 0 : index
    %c1_31 = arith.constant 1 : index
    %c7_32 = arith.constant 7 : index
    %c0_33 = arith.constant 0 : index
    %11 = vector.load %arg7[%c0_30, %c1_31, %c7_32, %c0_33] : memref<2x18x25x4xf32, #tpu.memory_space<vmem>>, vector<2x16x16x4xf32>
    %c0_34 = arith.constant 0 : index
    %c1_35 = arith.constant 1 : index
    %c8_36 = arith.constant 8 : index
    %c0_37 = arith.constant 0 : index
    %12 = vector.load %arg7[%c0_34, %c1_35, %c8_36, %c0_37] : memref<2x18x25x4xf32, #tpu.memory_space<vmem>>, vector<2x16x16x4xf32>
    %c0_38 = arith.constant 0 : index
    %c1_39 = arith.constant 1 : index
    %c9_40 = arith.constant 9 : index
    %c0_41 = arith.constant 0 : index
    %13 = vector.load %arg7[%c0_38, %c1_39, %c9_40, %c0_41] : memref<2x18x25x4xf32, #tpu.memory_space<vmem>>, vector<2x16x16x4xf32>
    %c0_42 = arith.constant 0 : index
    %c2 = arith.constant 2 : index
    %c7_43 = arith.constant 7 : index
    %c0_44 = arith.constant 0 : index
    %14 = vector.load %arg7[%c0_42, %c2, %c7_43, %c0_44] : memref<2x18x25x4xf32, #tpu.memory_space<vmem>>, vector<2x16x16x4xf32>
    %c0_45 = arith.constant 0 : index
    %c2_46 = arith.constant 2 : index
    %c8_47 = arith.constant 8 : index
    %c0_48 = arith.constant 0 : index
    %15 = vector.load %arg7[%c0_45, %c2_46, %c8_47, %c0_48] : memref<2x18x25x4xf32, #tpu.memory_space<vmem>>, vector<2x16x16x4xf32>
    %c0_49 = arith.constant 0 : index
    %c2_50 = arith.constant 2 : index
    %c9_51 = arith.constant 9 : index
    %c0_52 = arith.constant 0 : index
    %16 = vector.load %arg7[%c0_49, %c2_50, %c9_51, %c0_52] : memref<2x18x25x4xf32, #tpu.memory_space<vmem>>, vector<2x16x16x4xf32>
    %17 = tpu.concatenate %8, %9, %10, %11, %12, %13, %14, %15, %16 in 3 : vector<2x16x16x4xf32>, vector<2x16x16x4xf32>, vector<2x16x16x4xf32>, vector<2x16x16x4xf32>, vector<2x16x16x4xf32>, vector<2x16x16x4xf32>, vector<2x16x16x4xf32>, vector<2x16x16x4xf32>, vector<2x16x16x4xf32> -> vector<2x16x16x36xf32>
    %18 = vector.shape_cast %17 : vector<2x16x16x36xf32> to vector<512x36xf32>
    %19 = arith.truncf %18 : vector<512x36xf32> to vector<512x36xbf16>
    %c0_53 = arith.constant 0 : index
    %c0_54 = arith.constant 0 : index
    %20 = vector.load %arg2[%c0_53, %c0_54] : memref<36x8xbf16, #tpu.memory_space<vmem>>, vector<36x8xbf16>
    %cst_55 = arith.constant dense<0.000000e+00> : vector<512x8xf32>
    %21 = tpu.matmul %19, %20, %cst_55 {dimension_numbers = #tpu.dot_dimension_numbers<[1], [0], [0], [1], [0, 0, 1, 1], [], []>} : vector<512x36xbf16>, vector<36x8xbf16>, vector<512x8xf32> -> vector<512x8xf32>
    %c0_56 = arith.constant 0 : index
    %c0_57 = arith.constant 0 : index
    %22 = vector.load %arg3[%c0_56, %c0_57] : memref<1x8xf32, #tpu.memory_space<vmem>>, vector<1x8xf32>
    %23 = vector.broadcast %22 : vector<1x8xf32> to vector<512x8xf32>
    %24 = arith.addf %21, %23 : vector<512x8xf32>
    %cst_58 = arith.constant 0.000000e+00 : f32
    %25 = vector.broadcast %cst_58 : f32 to vector<512x8xf32>
    %26 = arith.maximumf %24, %25 : vector<512x8xf32>
    %27 = vector.shape_cast %26 : vector<512x8xf32> to vector<2x16x16x8xf32>
    %cst_59 = arith.constant 0.000000e+00 : f32
    %28 = vector.broadcast %cst_59 : f32 to vector<2x1x18x8xf32>
    %cst_60 = arith.constant 0.000000e+00 : f32
    %29 = vector.broadcast %cst_60 : f32 to vector<2x16x1x8xf32>
    %c0_61 = arith.constant 0 : index
    %c0_62 = arith.constant 0 : index
    %c7_63 = arith.constant 7 : index
    %c0_64 = arith.constant 0 : index
    %30 = vector.load %arg8[%c0_61, %c0_62, %c7_63, %c0_64] : memref<2x18x25x8xf32, #tpu.memory_space<vmem>>, vector<2x1x18x8xf32>
    tpu.vector_store %arg8[%c0_61, %c0_62, %c7_63, %c0_64], %28 {strides = array<i32>} : memref<2x18x25x8xf32, #tpu.memory_space<vmem>>, vector<2x1x18x8xf32>,
    %c0_65 = arith.constant 0 : index
    %c17_66 = arith.constant 17 : index
    %c7_67 = arith.constant 7 : index
    %c0_68 = arith.constant 0 : index
    %31 = vector.load %arg8[%c0_65, %c17_66, %c7_67, %c0_68] : memref<2x18x25x8xf32, #tpu.memory_space<vmem>>, vector<2x1x18x8xf32>
    tpu.vector_store %arg8[%c0_65, %c17_66, %c7_67, %c0_68], %28 {strides = array<i32>} : memref<2x18x25x8xf32, #tpu.memory_space<vmem>>, vector<2x1x18x8xf32>,
    %c0_69 = arith.constant 0 : index
    %c1_70 = arith.constant 1 : index
    %c7_71 = arith.constant 7 : index
    %c0_72 = arith.constant 0 : index
    %32 = vector.load %arg8[%c0_69, %c1_70, %c7_71, %c0_72] : memref<2x18x25x8xf32, #tpu.memory_space<vmem>>, vector<2x16x1x8xf32>
    tpu.vector_store %arg8[%c0_69, %c1_70, %c7_71, %c0_72], %29 {strides = array<i32>} : memref<2x18x25x8xf32, #tpu.memory_space<vmem>>, vector<2x16x1x8xf32>,
    %c0_73 = arith.constant 0 : index
    %c1_74 = arith.constant 1 : index
    %c24_75 = arith.constant 24 : index
    %c0_76 = arith.constant 0 : index
    %33 = vector.load %arg8[%c0_73, %c1_74, %c24_75, %c0_76] : memref<2x18x25x8xf32, #tpu.memory_space<vmem>>, vector<2x16x1x8xf32>
    tpu.vector_store %arg8[%c0_73, %c1_74, %c24_75, %c0_76], %29 {strides = array<i32>} : memref<2x18x25x8xf32, #tpu.memory_space<vmem>>, vector<2x16x1x8xf32>,
    %c0_77 = arith.constant 0 : index
    %c1_78 = arith.constant 1 : index
    %c8_79 = arith.constant 8 : index
    %c0_80 = arith.constant 0 : index
    %34 = vector.load %arg8[%c0_77, %c1_78, %c8_79, %c0_80] : memref<2x18x25x8xf32, #tpu.memory_space<vmem>>, vector<2x16x16x8xf32>
    tpu.vector_store %arg8[%c0_77, %c1_78, %c8_79, %c0_80], %27 {strides = array<i32>} : memref<2x18x25x8xf32, #tpu.memory_space<vmem>>, vector<2x16x16x8xf32>,
    %c0_81 = arith.constant 0 : index
    %c0_82 = arith.constant 0 : index
    %c7_83 = arith.constant 7 : index
    %c0_84 = arith.constant 0 : index
    %35 = vector.load %arg8[%c0_81, %c0_82, %c7_83, %c0_84] : memref<2x18x25x8xf32, #tpu.memory_space<vmem>>, vector<2x16x16x8xf32>
    %c0_85 = arith.constant 0 : index
    %c0_86 = arith.constant 0 : index
    %c8_87 = arith.constant 8 : index
    %c0_88 = arith.constant 0 : index
    %36 = vector.load %arg8[%c0_85, %c0_86, %c8_87, %c0_88] : memref<2x18x25x8xf32, #tpu.memory_space<vmem>>, vector<2x16x16x8xf32>
    %c0_89 = arith.constant 0 : index
    %c0_90 = arith.constant 0 : index
    %c9_91 = arith.constant 9 : index
    %c0_92 = arith.constant 0 : index
    %37 = vector.load %arg8[%c0_89, %c0_90, %c9_91, %c0_92] : memref<2x18x25x8xf32, #tpu.memory_space<vmem>>, vector<2x16x16x8xf32>
    %c0_93 = arith.constant 0 : index
    %c1_94 = arith.constant 1 : index
    %c7_95 = arith.constant 7 : index
    %c0_96 = arith.constant 0 : index
    %38 = vector.load %arg8[%c0_93, %c1_94, %c7_95, %c0_96] : memref<2x18x25x8xf32, #tpu.memory_space<vmem>>, vector<2x16x16x8xf32>
    %c0_97 = arith.constant 0 : index
    %c1_98 = arith.constant 1 : index
    %c8_99 = arith.constant 8 : index
    %c0_100 = arith.constant 0 : index
    %39 = vector.load %arg8[%c0_97, %c1_98, %c8_99, %c0_100] : memref<2x18x25x8xf32, #tpu.memory_space<vmem>>, vector<2x16x16x8xf32>
    %c0_101 = arith.constant 0 : index
    %c1_102 = arith.constant 1 : index
    %c9_103 = arith.constant 9 : index
    %c0_104 = arith.constant 0 : index
    %40 = vector.load %arg8[%c0_101, %c1_102, %c9_103, %c0_104] : memref<2x18x25x8xf32, #tpu.memory_space<vmem>>, vector<2x16x16x8xf32>
    %c0_105 = arith.constant 0 : index
    %c2_106 = arith.constant 2 : index
    %c7_107 = arith.constant 7 : index
    %c0_108 = arith.constant 0 : index
    %41 = vector.load %arg8[%c0_105, %c2_106, %c7_107, %c0_108] : memref<2x18x25x8xf32, #tpu.memory_space<vmem>>, vector<2x16x16x8xf32>
    %c0_109 = arith.constant 0 : index
    %c2_110 = arith.constant 2 : index
    %c8_111 = arith.constant 8 : index
    %c0_112 = arith.constant 0 : index
    %42 = vector.load %arg8[%c0_109, %c2_110, %c8_111, %c0_112] : memref<2x18x25x8xf32, #tpu.memory_space<vmem>>, vector<2x16x16x8xf32>
    %c0_113 = arith.constant 0 : index
    %c2_114 = arith.constant 2 : index
    %c9_115 = arith.constant 9 : index
    %c0_116 = arith.constant 0 : index
    %43 = vector.load %arg8[%c0_113, %c2_114, %c9_115, %c0_116] : memref<2x18x25x8xf32, #tpu.memory_space<vmem>>, vector<2x16x16x8xf32>
    %44 = tpu.concatenate %35, %36, %37, %38, %39, %40, %41, %42, %43, %12 in 3 : vector<2x16x16x8xf32>, vector<2x16x16x8xf32>, vector<2x16x16x8xf32>, vector<2x16x16x8xf32>, vector<2x16x16x8xf32>, vector<2x16x16x8xf32>, vector<2x16x16x8xf32>, vector<2x16x16x8xf32>, vector<2x16x16x8xf32>, vector<2x16x16x4xf32> -> vector<2x16x16x76xf32>
    %45 = vector.shape_cast %44 : vector<2x16x16x76xf32> to vector<512x76xf32>
    %46 = arith.truncf %45 : vector<512x76xf32> to vector<512x76xbf16>
    %c0_117 = arith.constant 0 : index
    %c0_118 = arith.constant 0 : index
    %47 = vector.load %arg4[%c0_117, %c0_118] : memref<76x8xbf16, #tpu.memory_space<vmem>>, vector<76x8xbf16>
    %cst_119 = arith.constant dense<0.000000e+00> : vector<512x8xf32>
    %48 = tpu.matmul %46, %47, %cst_119 {dimension_numbers = #tpu.dot_dimension_numbers<[1], [0], [0], [1], [0, 0, 1, 1], [], []>} : vector<512x76xbf16>, vector<76x8xbf16>, vector<512x8xf32> -> vector<512x8xf32>
    %c0_120 = arith.constant 0 : index
    %c0_121 = arith.constant 0 : index
    %49 = vector.load %arg5[%c0_120, %c0_121] : memref<1x8xf32, #tpu.memory_space<vmem>>, vector<1x8xf32>
    %50 = vector.broadcast %49 : vector<1x8xf32> to vector<512x8xf32>
    %51 = arith.addf %48, %50 : vector<512x8xf32>
    %cst_122 = arith.constant 0.000000e+00 : f32
    %52 = vector.broadcast %cst_122 : f32 to vector<512x8xf32>
    %53 = arith.maximumf %51, %52 : vector<512x8xf32>
    %54 = vector.shape_cast %53 : vector<512x8xf32> to vector<2x256x8xf32>
    %c0_123 = arith.constant 0 : index
    %c0_124 = arith.constant 0 : index
    %c0_125 = arith.constant 0 : index
    %55 = vector.load %arg6[%c0_123, %c0_124, %c0_125] : memref<2x256x8xf32, #tpu.memory_space<vmem>>, vector<2x256x8xf32>
    tpu.vector_store %arg6[%c0_123, %c0_124, %c0_125], %54 {strides = array<i32>} : memref<2x256x8xf32, #tpu.memory_space<vmem>>, vector<2x256x8xf32>,
    return
  }
  func.func @transform_0(%arg0: i32) -> (i32, i32, i32, i32) {
    %c0_i32 = arith.constant 0 : i32
    %c0_i32_0 = arith.constant 0 : i32
    %c0_i32_1 = arith.constant 0 : i32
    %c0_i32_2 = arith.constant 0 : i32
    return %arg0, %c0_i32, %c0_i32_0, %c0_i32_1 : i32, i32, i32, i32
  }
  func.func @transform_1(%arg0: i32) -> (i32, i32) {
    %c0_i32 = arith.constant 0 : i32
    %c0_i32_0 = arith.constant 0 : i32
    %c0_i32_1 = arith.constant 0 : i32
    return %c0_i32, %c0_i32_0 : i32, i32
  }
  func.func @transform_2(%arg0: i32) -> (i32, i32) {
    %c0_i32 = arith.constant 0 : i32
    %c0_i32_0 = arith.constant 0 : i32
    %c0_i32_1 = arith.constant 0 : i32
    return %c0_i32, %c0_i32_0 : i32, i32
  }
  func.func @transform_3(%arg0: i32) -> (i32, i32) {
    %c0_i32 = arith.constant 0 : i32
    %c0_i32_0 = arith.constant 0 : i32
    %c0_i32_1 = arith.constant 0 : i32
    return %c0_i32, %c0_i32_0 : i32, i32
  }
  func.func @transform_4(%arg0: i32) -> (i32, i32) {
    %c0_i32 = arith.constant 0 : i32
    %c0_i32_0 = arith.constant 0 : i32
    %c0_i32_1 = arith.constant 0 : i32
    return %c0_i32, %c0_i32_0 : i32, i32
  }
  func.func @transform_5(%arg0: i32) -> (i32, i32, i32) {
    %c0_i32 = arith.constant 0 : i32
    %c0_i32_0 = arith.constant 0 : i32
    %c0_i32_1 = arith.constant 0 : i32
    return %arg0, %c0_i32, %c0_i32_0 : i32, i32, i32
  }
}

</mosaic_0001>

<llo_original>
// kernel: resblock_pallas.1
$region0: #{resblock_pallas.1}
  #allocation0 [shape = 'u32[]', space=smem, size = 0x4, offset = 0x4, fixed_abs, tag = 'smem constant byte address 0x4 - core index']
  #allocation1 [shape = 'u32[144,128]{1,0:T(1,128)}', space=vmem, size = 0x12000, scoped, tag = 'internal scratch']
  #allocation2 [shape = 'f32[2,18,25,4]{3,2,1,0:T(8,128)}', space=vmem, size = 0x90000, scoped, tag = 'scratch operand']
  #allocation3 [shape = 'f32[2,18,25,8]{3,2,1,0:T(8,128)}', space=vmem, size = 0x90000, scoped, tag = 'scratch operand']
  %s0 = inlined_call_operand.vmem [shape: f32[2,16,16,4], index: 0, kind: input, shape index: {}]
  %s1 = inlined_call_operand.vmem [shape: bf16[36,8], index: 1, kind: input, shape index: {}]
  %s2 = inlined_call_operand.vmem [shape: f32[1,8], index: 2, kind: input, shape index: {}]
  %s3 = inlined_call_operand.vmem [shape: bf16[76,8], index: 3, kind: input, shape index: {}]
  %s4 = inlined_call_operand.vmem [shape: f32[1,8], index: 4, kind: input, shape index: {}]
  %s5 = inlined_call_operand.vmem [shape: f32[2,256,8], index: 5, kind: output, shape index: {}]
  %s6 = sld [smem:[#allocation0]]
  $region30: #{resblock_pallas.1} parent=0
    _
  %s8 = ssub.s32 1, %s6
  %s9 = scalar_select 0, %s8, %s6
  // Predicated region
  $region2: #{resblock_pallas.1} parent=0 // pred_check
    _
  $region3: #{resblock_pallas.1} parent=0 // pred_check_branch
    %11 = sbr.rel (0) target = $region5
  $region4: #{resblock_pallas.1} parent=0 // pred_region
    _
  $region5: #{resblock_pallas.1} parent=0 // pred_fallthru
    _
  // Predicated region
  $region6: #{resblock_pallas.1} parent=0 // pred_check
    _
  $region7: #{resblock_pallas.1} parent=0 // pred_check_branch
    %13 = sbr.rel (0) target = $region9
  $region8: #{resblock_pallas.1} parent=0 // pred_region
    _
  $region9: #{resblock_pallas.1} parent=0 // pred_fallthru
    _
  // Predicated region
  $region10: #{resblock_pallas.1} parent=0 // pred_check
    _
  $region11: #{resblock_pallas.1} parent=0 // pred_check_branch
    %15 = sbr.rel (0) target = $region13
  $region12: #{resblock_pallas.1} parent=0 // pred_region
    _
  $region13: #{resblock_pallas.1} parent=0 // pred_fallthru
    _
  // Predicated region
  $region14: #{resblock_pallas.1} parent=0 // pred_check
    _
  $region15: #{resblock_pallas.1} parent=0 // pred_check_branch
    %17 = sbr.rel (0) target = $region17
  $region16: #{resblock_pallas.1} parent=0 // pred_region
    _
  $region17: #{resblock_pallas.1} parent=0 // pred_fallthru
    _
  // Predicated region
  $region18: #{resblock_pallas.1} parent=0 // pred_check
    _
  $region19: #{resblock_pallas.1} parent=0 // pred_check_branch
    %19 = sbr.rel (0) target = $region21
  $region20: #{resblock_pallas.1} parent=0 // pred_region
    _
  $region21: #{resblock_pallas.1} parent=0 // pred_fallthru
    _
  %v21 = vld [vmem:[%s0] sm:$0xff]
  %v22 = vld [vmem:[%s0 + $0x8] sm:$0xff]
  %v23 = vld [vmem:[%s0 + $0x10] sm:$0xff]
  %v24 = vld [vmem:[%s0 + $0x18] sm:$0xff]
  %v25 = vld [vmem:[%s0 + $0x20] sm:$0xff]
  %v26 = vld [vmem:[%s0 + $0x28] sm:$0xff]
  %v27 = vld [vmem:[%s0 + $0x30] sm:$0xff]
  %v28 = vld [vmem:[%s0 + $0x38] sm:$0xff]
  %v29 = vld [vmem:[%s0 + $0x40] sm:$0xff]
  %v30 = vld [vmem:[%s0 + $0x48] sm:$0xff]
  %v31 = vld [vmem:[%s0 + $0x50] sm:$0xff]
  %v32 = vld [vmem:[%s0 + $0x58] sm:$0xff]
  %v33 = vld [vmem:[%s0 + $0x60] sm:$0xff]
  %v34 = vld [vmem:[%s0 + $0x68] sm:$0xff]
  %v35 = vld [vmem:[%s0 + $0x70] sm:$0xff]
  %v36 = vld [vmem:[%s0 + $0x78] sm:$0xff]
  %v37 = vld [vmem:[%s0 + $0x80] sm:$0xff]
  %v38 = vld [vmem:[%s0 + $0x88] sm:$0xff]
  %v39 = vld [vmem:[%s0 + $0x90] sm:$0xff]
  %v40 = vld [vmem:[%s0 + $0x98] sm:$0xff]
  %v41 = vld [vmem:[%s0 + $0xa0] sm:$0xff]
  %v42 = vld [vmem:[%s0 + $0xa8] sm:$0xff]
  %v43 = vld [vmem:[%s0 + $0xb0] sm:$0xff]
  %v44 = vld [vmem:[%s0 + $0xb8] sm:$0xff]
  %v45 = vld [vmem:[%s0 + $0xc0] sm:$0xff]
  %v46 = vld [vmem:[%s0 + $0xc8] sm:$0xff]
  %v47 = vld [vmem:[%s0 + $0xd0] sm:$0xff]
  %v48 = vld [vmem:[%s0 + $0xd8] sm:$0xff]
  %v49 = vld [vmem:[%s0 + $0xe0] sm:$0xff]
  %v50 = vld [vmem:[%s0 + $0xe8] sm:$0xff]
  %v51 = vld [vmem:[%s0 + $0xf0] sm:$0xff]
  %v52 = vld [vmem:[%s0 + $0xf8] sm:$0xff]
  %v53 = vld [vmem:[%s0 + $0x100] sm:$0xff]
  %v54 = vld [vmem:[%s0 + $0x108] sm:$0xff]
  %v55 = vld [vmem:[%s0 + $0x110] sm:$0xff]
  %v56 = vld [vmem:[%s0 + $0x118] sm:$0xff]
  %v57 = vld [vmem:[%s0 + $0x120] sm:$0xff]
  %v58 = vld [vmem:[%s0 + $0x128] sm:$0xff]
  %v59 = vld [vmem:[%s0 + $0x130] sm:$0xff]
  %v60 = vld [vmem:[%s0 + $0x138] sm:$0xff]
  %v61 = vld [vmem:[%s0 + $0x140] sm:$0xff]
  %v62 = vld [vmem:[%s0 + $0x148] sm:$0xff]
  %v63 = vld [vmem:[%s0 + $0x150] sm:$0xff]
  %v64 = vld [vmem:[%s0 + $0x158] sm:$0xff]
  %v65 = vld [vmem:[%s0 + $0x160] sm:$0xff]
  %v66 = vld [vmem:[%s0 + $0x168] sm:$0xff]
  %v67 = vld [vmem:[%s0 + $0x170] sm:$0xff]
  %v68 = vld [vmem:[%s0 + $0x178] sm:$0xff]
  %v69 = vld [vmem:[%s0 + $0x180] sm:$0xff]
  %v70 = vld [vmem:[%s0 + $0x188] sm:$0xff]
  %v71 = vld [vmem:[%s0 + $0x190] sm:$0xff]
  %v72 = vld [vmem:[%s0 + $0x198] sm:$0xff]
  %v73 = vld [vmem:[%s0 + $0x1a0] sm:$0xff]
  %v74 = vld [vmem:[%s0 + $0x1a8] sm:$0xff]
  %v75 = vld [vmem:[%s0 + $0x1b0] sm:$0xff]
  %v76 = vld [vmem:[%s0 + $0x1b8] sm:$0xff]
  %v77 = vld [vmem:[%s0 + $0x1c0] sm:$0xff]
  %v78 = vld [vmem:[%s0 + $0x1c8] sm:$0xff]
  %v79 = vld [vmem:[%s0 + $0x1d0] sm:$0xff]
  %v80 = vld [vmem:[%s0 + $0x1d8] sm:$0xff]
  %v81 = vld [vmem:[%s0 + $0x1e0] sm:$0xff]
  %v82 = vld [vmem:[%s0 + $0x1e8] sm:$0xff]
  %v83 = vld [vmem:[%s0 + $0x1f0] sm:$0xff]
  %v84 = vld [vmem:[%s0 + $0x1f8] sm:$0xff]
  %vm85 = vcmask 31744
  %86 = vst.msk [vmem:[#allocation2 + $0x7] sm:$0xff] %vm85, 0.0
  %87 = vst.msk [vmem:[#allocation2 + $0xf] sm:$0xff] %vm85, 0.0
  %vm88 = vcmask 25600
  %89 = vst.msk [vmem:[#allocation2 + $0x17] sm:$0x3] %vm88, 0.0
  %90 = vst.msk [vmem:[#allocation2 + $0x247] sm:$0xff] %vm85, 0.0
  %91 = vst.msk [vmem:[#allocation2 + $0x24f] sm:$0xff] %vm85, 0.0
  %92 = vst.msk [vmem:[#allocation2 + $0x257] sm:$0x3] %vm88, 0.0
  %s93 = scalar_lea.vmem [#allocation2], 544
  %94 = vst.msk [vmem:[%s93 + $0x7] sm:$0xff] %vm85, 0.0
  %95 = vst.msk [vmem:[%s93 + $0xf] sm:$0xff] %vm85, 0.0
  %96 = vst.msk [vmem:[%s93 + $0x17] sm:$0x3] %vm88, 0.0
  %97 = vst.msk [vmem:[%s93 + $0x247] sm:$0xff] %vm85, 0.0
  %98 = vst.msk [vmem:[%s93 + $0x24f] sm:$0xff] %vm85, 0.0
  %99 = vst.msk [vmem:[%s93 + $0x257] sm:$0x3] %vm88, 0.0
  %s100 = scalar_lea.vmem [#allocation2], 32
  %vm101 = vcmask 24576
  %102 = vst.msk [vmem:[%s100 + $0x7] sm:$0x1] %vm101, 0.0
  %103 = vst.msk [vmem:[%s100 + $0x27] sm:$0x1] %vm101, 0.0
  %104 = vst.msk [vmem:[%s100 + $0x47] sm:$0x1] %vm101, 0.0
  %105 = vst.msk [vmem:[%s100 + $0x67] sm:$0x1] %vm101, 0.0
  %106 = vst.msk [vmem:[%s100 + $0x87] sm:$0x1] %vm101, 0.0
  %107 = vst.msk [vmem:[%s100 + $0xa7] sm:$0x1] %vm101, 0.0
  %108 = vst.msk [vmem:[%s100 + $0xc7] sm:$0x1] %vm101, 0.0
  %109 = vst.msk [vmem:[%s100 + $0xe7] sm:$0x1] %vm101, 0.0
  %110 = vst.msk [vmem:[%s100 + $0x107] sm:$0x1] %vm101, 0.0
  %111 = vst.msk [vmem:[%s100 + $0x127] sm:$0x1] %vm101, 0.0
  %112 = vst.msk [vmem:[%s100 + $0x147] sm:$0x1] %vm101, 0.0
  %113 = vst.msk [vmem:[%s100 + $0x167] sm:$0x1] %vm101, 0.0
  %114 = vst.msk [vmem:[%s100 + $0x187] sm:$0x1] %vm101, 0.0
  %115 = vst.msk [vmem:[%s100 + $0x1a7] sm:$0x1] %vm101, 0.0
  %116 = vst.msk [vmem:[%s100 + $0x1c7] sm:$0x1] %vm101, 0.0
  %117 = vst.msk [vmem:[%s100 + $0x1e7] sm:$0x1] %vm101, 0.0
  %118 = vst.msk [vmem:[%s100 + $0x247] sm:$0x1] %vm101, 0.0
  %119 = vst.msk [vmem:[%s100 + $0x267] sm:$0x1] %vm101, 0.0
  %120 = vst.msk [vmem:[%s100 + $0x287] sm:$0x1] %vm101, 0.0
  %121 = vst.msk [vmem:[%s100 + $0x2a7] sm:$0x1] %vm101, 0.0
  %122 = vst.msk [vmem:[%s100 + $0x2c7] sm:$0x1] %vm101, 0.0
  %123 = vst.msk [vmem:[%s100 + $0x2e7] sm:$0x1] %vm101, 0.0
  %124 = vst.msk [vmem:[%s100 + $0x307] sm:$0x1] %vm101, 0.0
  %125 = vst.msk [vmem:[%s100 + $0x327] sm:$0x1] %vm101, 0.0
  %126 = vst.msk [vmem:[%s100 + $0x347] sm:$0x1] %vm101, 0.0
  %127 = vst.msk [vmem:[%s100 + $0x367] sm:$0x1] %vm101, 0.0
  %128 = vst.msk [vmem:[%s100 + $0x387] sm:$0x1] %vm101, 0.0
  %129 = vst.msk [vmem:[%s100 + $0x3a7] sm:$0x1] %vm101, 0.0
  %130 = vst.msk [vmem:[%s100 + $0x3c7] sm:$0x1] %vm101, 0.0
  %131 = vst.msk [vmem:[%s100 + $0x3e7] sm:$0x1] %vm101, 0.0
  %132 = vst.msk [vmem:[%s100 + $0x407] sm:$0x1] %vm101, 0.0
  %133 = vst.msk [vmem:[%s100 + $0x427] sm:$0x1] %vm101, 0.0
  %134 = vst.msk [vmem:[%s100 + $0x18] sm:$0x1] %vm101, 0.0
  %135 = vst.msk [vmem:[%s100 + $0x38] sm:$0x1] %vm101, 0.0
  %136 = vst.msk [vmem:[%s100 + $0x58] sm:$0x1] %vm101, 0.0
  %137 = vst.msk [vmem:[%s100 + $0x78] sm:$0x1] %vm101, 0.0
  %138 = vst.msk [vmem:[%s100 + $0x98] sm:$0x1] %vm101, 0.0
  %139 = vst.msk [vmem:[%s100 + $0xb8] sm:$0x1] %vm101, 0.0
  %140 = vst.msk [vmem:[%s100 + $0xd8] sm:$0x1] %vm101, 0.0
  %141 = vst.msk [vmem:[%s100 + $0xf8] sm:$0x1] %vm101, 0.0
  %142 = vst.msk [vmem:[%s100 + $0x118] sm:$0x1] %vm101, 0.0
  %143 = vst.msk [vmem:[%s100 + $0x138] sm:$0x1] %vm101, 0.0
  %144 = vst.msk [vmem:[%s100 + $0x158] sm:$0x1] %vm101, 0.0
  %145 = vst.msk [vmem:[%s100 + $0x178] sm:$0x1] %vm101, 0.0
  %146 = vst.msk [vmem:[%s100 + $0x198] sm:$0x1] %vm101, 0.0
  %147 = vst.msk [vmem:[%s100 + $0x1b8] sm:$0x1] %vm101, 0.0
  %148 = vst.msk [vmem:[%s100 + $0x1d8] sm:$0x1] %vm101, 0.0
  %149 = vst.msk [vmem:[%s100 + $0x1f8] sm:$0x1] %vm101, 0.0
  %150 = vst.msk [vmem:[%s100 + $0x258] sm:$0x1] %vm101, 0.0
  %151 = vst.msk [vmem:[%s100 + $0x278] sm:$0x1] %vm101, 0.0
  %152 = vst.msk [vmem:[%s100 + $0x298] sm:$0x1] %vm101, 0.0
  %153 = vst.msk [vmem:[%s100 + $0x2b8] sm:$0x1] %vm101, 0.0
  %154 = vst.msk [vmem:[%s100 + $0x2d8] sm:$0x1] %vm101, 0.0
  %155 = vst.msk [vmem:[%s100 + $0x2f8] sm:$0x1] %vm101, 0.0
  %156 = vst.msk [vmem:[%s100 + $0x318] sm:$0x1] %vm101, 0.0
  %157 = vst.msk [vmem:[%s100 + $0x338] sm:$0x1] %vm101, 0.0
  %158 = vst.msk [vmem:[%s100 + $0x358] sm:$0x1] %vm101, 0.0
  %159 = vst.msk [vmem:[%s100 + $0x378] sm:$0x1] %vm101, 0.0
  %160 = vst.msk [vmem:[%s100 + $0x398] sm:$0x1] %vm101, 0.0
  %161 = vst.msk [vmem:[%s100 + $0x3b8] sm:$0x1] %vm101, 0.0
  %162 = vst.msk [vmem:[%s100 + $0x3d8] sm:$0x1] %vm101, 0.0
  %163 = vst.msk [vmem:[%s100 + $0x3f8] sm:$0x1] %vm101, 0.0
  %164 = vst.msk [vmem:[%s100 + $0x418] sm:$0x1] %vm101, 0.0
  %165 = vst.msk [vmem:[%s100 + $0x438] sm:$0x1] %vm101, 0.0
  %166 = vst.msk [vmem:[%s100 + $0x8] sm:$0xff] %vm85, %v21
  %167 = vst.msk [vmem:[%s100 + $0x10] sm:$0xff] %vm85, %v22
  %168 = vst.msk [vmem:[%s100 + $0x28] sm:$0xff] %vm85, %v23
  %169 = vst.msk [vmem:[%s100 + $0x30] sm:$0xff] %vm85, %v24
  %170 = vst.msk [vmem:[%s100 + $0x48] sm:$0xff] %vm85, %v25
  %171 = vst.msk [vmem:[%s100 + $0x50] sm:$0xff] %vm85, %v26
  %172 = vst.msk [vmem:[%s100 + $0x68] sm:$0xff] %vm85, %v27
  %173 = vst.msk [vmem:[%s100 + $0x70] sm:$0xff] %vm85, %v28
  %174 = vst.msk [vmem:[%s100 + $0x88] sm:$0xff] %vm85, %v29
  %175 = vst.msk [vmem:[%s100 + $0x90] sm:$0xff] %vm85, %v30
  %176 = vst.msk [vmem:[%s100 + $0xa8] sm:$0xff] %vm85, %v31
  %177 = vst.msk [vmem:[%s100 + $0xb0] sm:$0xff] %vm85, %v32
  %178 = vst.msk [vmem:[%s100 + $0xc8] sm:$0xff] %vm85, %v33
  %179 = vst.msk [vmem:[%s100 + $0xd0] sm:$0xff] %vm85, %v34
  %180 = vst.msk [vmem:[%s100 + $0xe8] sm:$0xff] %vm85, %v35
  %181 = vst.msk [vmem:[%s100 + $0xf0] sm:$0xff] %vm85, %v36
  %182 = vst.msk [vmem:[%s100 + $0x108] sm:$0xff] %vm85, %v37
  %183 = vst.msk [vmem:[%s100 + $0x110] sm:$0xff] %vm85, %v38
  %184 = vst.msk [vmem:[%s100 + $0x128] sm:$0xff] %vm85, %v39
  %185 = vst.msk [vmem:[%s100 + $0x130] sm:$0xff] %vm85, %v40
  %186 = vst.msk [vmem:[%s100 + $0x148] sm:$0xff] %vm85, %v41
  %187 = vst.msk [vmem:[%s100 + $0x150] sm:$0xff] %vm85, %v42
  %188 = vst.msk [vmem:[%s100 + $0x168] sm:$0xff] %vm85, %v43
  %189 = vst.msk [vmem:[%s100 + $0x170] sm:$0xff] %vm85, %v44
  %190 = vst.msk [vmem:[%s100 + $0x188] sm:$0xff] %vm85, %v45
  %191 = vst.msk [vmem:[%s100 + $0x190] sm:$0xff] %vm85, %v46
  %192 = vst.msk [vmem:[%s100 + $0x1a8] sm:$0xff] %vm85, %v47
  %193 = vst.msk [vmem:[%s100 + $0x1b0] sm:$0xff] %vm85, %v48
  %194 = vst.msk [vmem:[%s100 + $0x1c8] sm:$0xff] %vm85, %v49
  %195 = vst.msk [vmem:[%s100 + $0x1d0] sm:$0xff] %vm85, %v50
  %196 = vst.msk [vmem:[%s100 + $0x1e8] sm:$0xff] %vm85, %v51
  %197 = vst.msk [vmem:[%s100 + $0x1f0] sm:$0xff] %vm85, %v52
  %198 = vst.msk [vmem:[%s100 + $0x248] sm:$0xff] %vm85, %v53
  %199 = vst.msk [vmem:[%s100 + $0x250] sm:$0xff] %vm85, %v54
  %200 = vst.msk [vmem:[%s100 + $0x268] sm:$0xff] %vm85, %v55
  %201 = vst.msk [vmem:[%s100 + $0x270] sm:$0xff] %vm85, %v56
  %202 = vst.msk [vmem:[%s100 + $0x288] sm:$0xff] %vm85, %v57
  %203 = vst.msk [vmem:[%s100 + $0x290] sm:$0xff] %vm85, %v58
  %204 = vst.msk [vmem:[%s100 + $0x2a8] sm:$0xff] %vm85, %v59
  %205 = vst.msk [vmem:[%s100 + $0x2b0] sm:$0xff] %vm85, %v60
  %206 = vst.msk [vmem:[%s100 + $0x2c8] sm:$0xff] %vm85, %v61
  %207 = vst.msk [vmem:[%s100 + $0x2d0] sm:$0xff] %vm85, %v62
  %208 = vst.msk [vmem:[%s100 + $0x2e8] sm:$0xff] %vm85, %v63
  %209 = vst.msk [vmem:[%s100 + $0x2f0] sm:$0xff] %vm85, %v64
  %210 = vst.msk [vmem:[%s100 + $0x308] sm:$0xff] %vm85, %v65
  %211 = vst.msk [vmem:[%s100 + $0x310] sm:$0xff] %vm85, %v66
  %212 = vst.msk [vmem:[%s100 + $0x328] sm:$0xff] %vm85, %v67
  %213 = vst.msk [vmem:[%s100 + $0x330] sm:$0xff] %vm85, %v68
  %214 = vst.msk [vmem:[%s100 + $0x348] sm:$0xff] %vm85, %v69
  %215 = vst.msk [vmem:[%s100 + $0x350] sm:$0xff] %vm85, %v70
  %216 = vst.msk [vmem:[%s100 + $0x368] sm:$0xff] %vm85, %v71
  %217 = vst.msk [vmem:[%s100 + $0x370] sm:$0xff] %vm85, %v72
  %218 = vst.msk [vmem:[%s100 + $0x388] sm:$0xff] %vm85, %v73
  %219 = vst.msk [vmem:[%s100 + $0x390] sm:$0xff] %vm85, %v74
  %220 = vst.msk [vmem:[%s100 + $0x3a8] sm:$0xff] %vm85, %v75
  %221 = vst.msk [vmem:[%s100 + $0x3b0] sm:$0xff] %vm85, %v76
  %222 = vst.msk [vmem:[%s100 + $0x3c8] sm:$0xff] %vm85, %v77
  %223 = vst.msk [vmem:[%s100 + $0x3d0] sm:$0xff] %vm85, %v78
  %224 = vst.msk [vmem:[%s100 + $0x3e8] sm:$0xff] %vm85, %v79
  %225 = vst.msk [vmem:[%s100 + $0x3f0] sm:$0xff] %vm85, %v80
  %226 = vst.msk [vmem:[%s100 + $0x408] sm:$0xff] %vm85, %v81
  %227 = vst.msk [vmem:[%s100 + $0x410] sm:$0xff] %vm85, %v82
  %228 = vst.msk [vmem:[%s100 + $0x428] sm:$0xff] %vm85, %v83
  %229 = vst.msk [vmem:[%s100 + $0x430] sm:$0xff] %vm85, %v84
  %v230 = vld [vmem:[#allocation2 + $0x7] sm:$0xff]
  %v231 = vld [vmem:[#allocation2 + $0xf] sm:$0xff]
  %v232 = vld [vmem:[#allocation2 + $0x27] sm:$0xff]
  %v233 = vld [vmem:[#allocation2 + $0x2f] sm:$0xff]
  %v234 = vld [vmem:[#allocation2 + $0x47] sm:$0xff]
  %v235 = vld [vmem:[#allocation2 + $0x4f] sm:$0xff]
  %v236 = vld [vmem:[#allocation2 + $0x67] sm:$0xff]
  %v237 = vld [vmem:[#allocation2 + $0x6f] sm:$0xff]
  %v238 = vld [vmem:[#allocation2 + $0x87] sm:$0xff]
  %v239 = vld [vmem:[#allocation2 + $0x8f] sm:$0xff]
  %v240 = vld [vmem:[#allocation2 + $0xa7] sm:$0xff]
  %v241 = vld [vmem:[#allocation2 + $0xaf] sm:$0xff]
  %v242 = vld [vmem:[#allocation2 + $0xc7] sm:$0xff]
  %v243 = vld [vmem:[#allocation2 + $0xcf] sm:$0xff]
  %v244 = vld [vmem:[#allocation2 + $0xe7] sm:$0xff]
  %v245 = vld [vmem:[#allocation2 + $0xef] sm:$0xff]
  %v246 = vld [vmem:[#allocation2 + $0x107] sm:$0xff]
  %v247 = vld [vmem:[#allocation2 + $0x10f] sm:$0xff]
  %v248 = vld [vmem:[#allocation2 + $0x127] sm:$0xff]
  %v249 = vld [vmem:[#allocation2 + $0x12f] sm:$0xff]
  %v250 = vld [vmem:[#allocation2 + $0x147] sm:$0xff]
  %v251 = vld [vmem:[#allocation2 + $0x14f] sm:$0xff]
  %v252 = vld [vmem:[#allocation2 + $0x167] sm:$0xff]
  %v253 = vld [vmem:[#allocation2 + $0x16f] sm:$0xff]
  %v254 = vld [vmem:[#allocation2 + $0x187] sm:$0xff]
  %v255 = vld [vmem:[#allocation2 + $0x18f] sm:$0xff]
  %v256 = vld [vmem:[#allocation2 + $0x1a7] sm:$0xff]
  %v257 = vld [vmem:[#allocation2 + $0x1af] sm:$0xff]
  %v258 = vld [vmem:[#allocation2 + $0x1c7] sm:$0xff]
  %v259 = vld [vmem:[#allocation2 + $0x1cf] sm:$0xff]
  %v260 = vld [vmem:[#allocation2 + $0x1e7] sm:$0xff]
  %v261 = vld [vmem:[#allocation2 + $0x1ef] sm:$0xff]
  %v262 = vld [vmem:[#allocation2 + $0x247] sm:$0xff]
  %v263 = vld [vmem:[#allocation2 + $0x24f] sm:$0xff]
  %v264 = vld [vmem:[#allocation2 + $0x267] sm:$0xff]
  %v265 = vld [vmem:[#allocation2 + $0x26f] sm:$0xff]
  %v266 = vld [vmem:[#allocation2 + $0x287] sm:$0xff]
  %v267 = vld [vmem:[#allocation2 + $0x28f] sm:$0xff]
  %v268 = vld [vmem:[#allocation2 + $0x2a7] sm:$0xff]
  %v269 = vld [vmem:[#allocation2 + $0x2af] sm:$0xff]
  %v270 = vld [vmem:[#allocation2 + $0x2c7] sm:$0xff]
  %v271 = vld [vmem:[#allocation2 + $0x2cf] sm:$0xff]
  %v272 = vld [vmem:[#allocation2 + $0x2e7] sm:$0xff]
  %v273 = vld [vmem:[#allocation2 + $0x2ef] sm:$0xff]
  %v274 = vld [vmem:[#allocation2 + $0x307] sm:$0xff]
  %v275 = vld [vmem:[#allocation2 + $0x30f] sm:$0xff]
  %v276 = vld [vmem:[#allocation2 + $0x327] sm:$0xff]
  %v277 = vld [vmem:[#allocation2 + $0x32f] sm:$0xff]
  %v278 = vld [vmem:[#allocation2 + $0x347] sm:$0xff]
  %v279 = vld [vmem:[#allocation2 + $0x34f] sm:$0xff]
  %v280 = vld [vmem:[#allocation2 + $0x367] sm:$0xff]
  %v281 = vld [vmem:[#allocation2 + $0x36f] sm:$0xff]
  %v282 = vld [vmem:[#allocation2 + $0x387] sm:$0xff]
  %v283 = vld [vmem:[#allocation2 + $0x38f] sm:$0xff]
  %v284 = vld [vmem:[#allocation2 + $0x3a7] sm:$0xff]
  %v285 = vld [vmem:[#allocation2 + $0x3af] sm:$0xff]
  %v286 = vld [vmem:[#allocation2 + $0x3c7] sm:$0xff]
  %v287 = vld [vmem:[#allocation2 + $0x3cf] sm:$0xff]
  %v288 = vld [vmem:[#allocation2 + $0x3e7] sm:$0xff]
  %v289 = vld [vmem:[#allocation2 + $0x3ef] sm:$0xff]
  %v290 = vld [vmem:[#allocation2 + $0x407] sm:$0xff]
  %v291 = vld [vmem:[#allocation2 + $0x40f] sm:$0xff]
  %v292 = vld [vmem:[#allocation2 + $0x427] sm:$0xff]
  %v293 = vld [vmem:[#allocation2 + $0x42f] sm:$0xff]
  %v294 = vld [vmem:[#allocation2 + $0x8] sm:$0xff]
  %v295 = vld [vmem:[#allocation2 + $0x10] sm:$0xff]
  %v296 = vld [vmem:[#allocation2 + $0x28] sm:$0xff]
  %v297 = vld [vmem:[#allocation2 + $0x30] sm:$0xff]
  %v298 = vld [vmem:[#allocation2 + $0x48] sm:$0xff]
  %v299 = vld [vmem:[#allocation2 + $0x50] sm:$0xff]
  %v300 = vld [vmem:[#allocation2 + $0x68] sm:$0xff]
  %v301 = vld [vmem:[#allocation2 + $0x70] sm:$0xff]
  %v302 = vld [vmem:[#allocation2 + $0x88] sm:$0xff]
  %v303 = vld [vmem:[#allocation2 + $0x90] sm:$0xff]
  %v304 = vld [vmem:[#allocation2 + $0xa8] sm:$0xff]
  %v305 = vld [vmem:[#allocation2 + $0xb0] sm:$0xff]
  %v306 = vld [vmem:[#allocation2 + $0xc8] sm:$0xff]
  %v307 = vld [vmem:[#allocation2 + $0xd0] sm:$0xff]
  %v308 = vld [vmem:[#allocation2 + $0xe8] sm:$0xff]
  %v309 = vld [vmem:[#allocation2 + $0xf0] sm:$0xff]
  %v310 = vld [vmem:[#allocation2 + $0x108] sm:$0xff]
  %v311 = vld [vmem:[#allocation2 + $0x110] sm:$0xff]
  %v312 = vld [vmem:[#allocation2 + $0x128] sm:$0xff]
  %v313 = vld [vmem:[#allocation2 + $0x130] sm:$0xff]
  %v314 = vld [vmem:[#allocation2 + $0x148] sm:$0xff]
  %v315 = vld [vmem:[#allocation2 + $0x150] sm:$0xff]
  %v316 = vld [vmem:[#allocation2 + $0x168] sm:$0xff]
  %v317 = vld [vmem:[#allocation2 + $0x170] sm:$0xff]
  %v318 = vld [vmem:[#allocation2 + $0x188] sm:$0xff]
  %v319 = vld [vmem:[#allocation2 + $0x190] sm:$0xff]
  %v320 = vld [vmem:[#allocation2 + $0x1a8] sm:$0xff]
  %v321 = vld [vmem:[#allocation2 + $0x1b0] sm:$0xff]
  %v322 = vld [vmem:[#allocation2 + $0x1c8] sm:$0xff]
  %v323 = vld [vmem:[#allocation2 + $0x1d0] sm:$0xff]
  %v324 = vld [vmem:[#allocation2 + $0x1e8] sm:$0xff]
  %v325 = vld [vmem:[#allocation2 + $0x1f0] sm:$0xff]
  %v326 = vld [vmem:[#allocation2 + $0x248] sm:$0xff]
  %v327 = vld [vmem:[#allocation2 + $0x250] sm:$0xff]
  %v328 = vld [vmem:[#allocation2 + $0x268] sm:$0xff]
  %v329 = vld [vmem:[#allocation2 + $0x270] sm:$0xff]
  %v330 = vld [vmem:[#allocation2 + $0x288] sm:$0xff]
  %v331 = vld [vmem:[#allocation2 + $0x290] sm:$0xff]
  %v332 = vld [vmem:[#allocation2 + $0x2a8] sm:$0xff]
  %v333 = vld [vmem:[#allocation2 + $0x2b0] sm:$0xff]
  %v334 = vld [vmem:[#allocation2 + $0x2c8] sm:$0xff]
  %v335 = vld [vmem:[#allocation2 + $0x2d0] sm:$0xff]
  %v336 = vld [vmem:[#allocation2 + $0x2e8] sm:$0xff]
  %v337 = vld [vmem:[#allocation2 + $0x2f0] sm:$0xff]
  %v338 = vld [vmem:[#allocation2 + $0x308] sm:$0xff]
  %v339 = vld [vmem:[#allocation2 + $0x310] sm:$0xff]
  %v340 = vld [vmem:[#allocation2 + $0x328] sm:$0xff]
  %v341 = vld [vmem:[#allocation2 + $0x330] sm:$0xff]
  %v342 = vld [vmem:[#allocation2 + $0x348] sm:$0xff]
  %v343 = vld [vmem:[#allocation2 + $0x350] sm:$0xff]
  %v344 = vld [vmem:[#allocation2 + $0x368] sm:$0xff]
  %v345 = vld [vmem:[#allocation2 + $0x370] sm:$0xff]
  %v346 = vld [vmem:[#allocation2 + $0x388] sm:$0xff]
  %v347 = vld [vmem:[#allocation2 + $0x390] sm:$0xff]
  %v348 = vld [vmem:[#allocation2 + $0x3a8] sm:$0xff]
  %v349 = vld [vmem:[#allocation2 + $0x3b0] sm:$0xff]
  %v350 = vld [vmem:[#allocation2 + $0x3c8] sm:$0xff]
  %v351 = vld [vmem:[#allocation2 + $0x3d0] sm:$0xff]
  %v352 = vld [vmem:[#allocation2 + $0x3e8] sm:$0xff]
  %v353 = vld [vmem:[#allocation2 + $0x3f0] sm:$0xff]
  %v354 = vld [vmem:[#allocation2 + $0x408] sm:$0xff]
  %v355 = vld [vmem:[#allocation2 + $0x410] sm:$0xff]
  %v356 = vld [vmem:[#allocation2 + $0x428] sm:$0xff]
  %v357 = vld [vmem:[#allocation2 + $0x430] sm:$0xff]
  %v358 = vld [vmem:[#allocation2 + $0x9] sm:$0xff]
  %v359 = vld [vmem:[#allocation2 + $0x11] sm:$0xff]
  %v360 = vld [vmem:[#allocation2 + $0x29] sm:$0xff]
  %v361 = vld [vmem:[#allocation2 + $0x31] sm:$0xff]
  %v362 = vld [vmem:[#allocation2 + $0x49] sm:$0xff]
  %v363 = vld [vmem:[#allocation2 + $0x51] sm:$0xff]
  %v364 = vld [vmem:[#allocation2 + $0x69] sm:$0xff]
  %v365 = vld [vmem:[#allocation2 + $0x71] sm:$0xff]
  %v366 = vld [vmem:[#allocation2 + $0x89] sm:$0xff]
  %v367 = vld [vmem:[#allocation2 + $0x91] sm:$0xff]
  %v368 = vld [vmem:[#allocation2 + $0xa9] sm:$0xff]
  %v369 = vld [vmem:[#allocation2 + $0xb1] sm:$0xff]
  %v370 = vld [vmem:[#allocation2 + $0xc9] sm:$0xff]
  %v371 = vld [vmem:[#allocation2 + $0xd1] sm:$0xff]
  %v372 = vld [vmem:[#allocation2 + $0xe9] sm:$0xff]
  %v373 = vld [vmem:[#allocation2 + $0xf1] sm:$0xff]
  %v374 = vld [vmem:[#allocation2 + $0x109] sm:$0xff]
  %v375 = vld [vmem:[#allocation2 + $0x111] sm:$0xff]
  %v376 = vld [vmem:[#allocation2 + $0x129] sm:$0xff]
  %v377 = vld [vmem:[#allocation2 + $0x131] sm:$0xff]
  %v378 = vld [vmem:[#allocation2 + $0x149] sm:$0xff]
  %v379 = vld [vmem:[#allocation2 + $0x151] sm:$0xff]
  %v380 = vld [vmem:[#allocation2 + $0x169] sm:$0xff]
  %v381 = vld [vmem:[#allocation2 + $0x171] sm:$0xff]
  %v382 = vld [vmem:[#allocation2 + $0x189] sm:$0xff]
  %v383 = vld [vmem:[#allocation2 + $0x191] sm:$0xff]
  %v384 = vld [vmem:[#allocation2 + $0x1a9] sm:$0xff]
  %v385 = vld [vmem:[#allocation2 + $0x1b1] sm:$0xff]
  %v386 = vld [vmem:[#allocation2 + $0x1c9] sm:$0xff]
  %v387 = vld [vmem:[#allocation2 + $0x1d1] sm:$0xff]
  %v388 = vld [vmem:[#allocation2 + $0x1e9] sm:$0xff]
  %v389 = vld [vmem:[#allocation2 + $0x1f1] sm:$0xff]
  %v390 = vld [vmem:[#allocation2 + $0x249] sm:$0xff]
  %v391 = vld [vmem:[#allocation2 + $0x251] sm:$0xff]
  %v392 = vld [vmem:[#allocation2 + $0x269] sm:$0xff]
  %v393 = vld [vmem:[#allocation2 + $0x271] sm:$0xff]
  %v394 = vld [vmem:[#allocation2 + $0x289] sm:$0xff]
  %v395 = vld [vmem:[#allocation2 + $0x291] sm:$0xff]
  %v396 = vld [vmem:[#allocation2 + $0x2a9] sm:$0xff]
  %v397 = vld [vmem:[#allocation2 + $0x2b1] sm:$0xff]
  %v398 = vld [vmem:[#allocation2 + $0x2c9] sm:$0xff]
  %v399 = vld [vmem:[#allocation2 + $0x2d1] sm:$0xff]
  %v400 = vld [vmem:[#allocation2 + $0x2e9] sm:$0xff]
  %v401 = vld [vmem:[#allocation2 + $0x2f1] sm:$0xff]
  %v402 = vld [vmem:[#allocation2 + $0x309] sm:$0xff]
  %v403 = vld [vmem:[#allocation2 + $0x311] sm:$0xff]
  %v404 = vld [vmem:[#allocation2 + $0x329] sm:$0xff]
  %v405 = vld [vmem:[#allocation2 + $0x331] sm:$0xff]
  %v406 = vld [vmem:[#allocation2 + $0x349] sm:$0xff]
  %v407 = vld [vmem:[#allocation2 + $0x351] sm:$0xff]
  %v408 = vld [vmem:[#allocation2 + $0x369] sm:$0xff]
  %v409 = vld [vmem:[#allocation2 + $0x371] sm:$0xff]
  %v410 = vld [vmem:[#allocation2 + $0x389] sm:$0xff]
  %v411 = vld [vmem:[#allocation2 + $0x391] sm:$0xff]
  %v412 = vld [vmem:[#allocation2 + $0x3a9] sm:$0xff]
  %v413 = vld [vmem:[#allocation2 + $0x3b1] sm:$0xff]
  %v414 = vld [vmem:[#allocation2 + $0x3c9] sm:$0xff]
  %v415 = vld [vmem:[#allocation2 + $0x3d1] sm:$0xff]
  %v416 = vld [vmem:[#allocation2 + $0x3e9] sm:$0xff]
  %v417 = vld [vmem:[#allocation2 + $0x3f1] sm:$0xff]
  %v418 = vld [vmem:[#allocation2 + $0x409] sm:$0xff]
  %v419 = vld [vmem:[#allocation2 + $0x411] sm:$0xff]
  %v420 = vld [vmem:[#allocation2 + $0x429] sm:$0xff]
  %v421 = vld [vmem:[#allocation2 + $0x431] sm:$0xff]
  %v422 = vld [vmem:[%s100 + $0x7] sm:$0xff]
  %v423 = vld [vmem:[%s100 + $0xf] sm:$0xff]
  %v424 = vld [vmem:[%s100 + $0x27] sm:$0xff]
  %v425 = vld [vmem:[%s100 + $0x2f] sm:$0xff]
  %v426 = vld [vmem:[%s100 + $0x47] sm:$0xff]
  %v427 = vld [vmem:[%s100 + $0x4f] sm:$0xff]
  %v428 = vld [vmem:[%s100 + $0x67] sm:$0xff]
  %v429 = vld [vmem:[%s100 + $0x6f] sm:$0xff]
  %v430 = vld [vmem:[%s100 + $0x87] sm:$0xff]
  %v431 = vld [vmem:[%s100 + $0x8f] sm:$0xff]
  %v432 = vld [vmem:[%s100 + $0xa7] sm:$0xff]
  %v433 = vld [vmem:[%s100 + $0xaf] sm:$0xff]
  %v434 = vld [vmem:[%s100 + $0xc7] sm:$0xff]
  %v435 = vld [vmem:[%s100 + $0xcf] sm:$0xff]
  %v436 = vld [vmem:[%s100 + $0xe7] sm:$0xff]
  %v437 = vld [vmem:[%s100 + $0xef] sm:$0xff]
  %v438 = vld [vmem:[%s100 + $0x107] sm:$0xff]
  %v439 = vld [vmem:[%s100 + $0x10f] sm:$0xff]
  %v440 = vld [vmem:[%s100 + $0x127] sm:$0xff]
  %v441 = vld [vmem:[%s100 + $0x12f] sm:$0xff]
  %v442 = vld [vmem:[%s100 + $0x147] sm:$0xff]
  %v443 = vld [vmem:[%s100 + $0x14f] sm:$0xff]
  %v444 = vld [vmem:[%s100 + $0x167] sm:$0xff]
  %v445 = vld [vmem:[%s100 + $0x16f] sm:$0xff]
  %v446 = vld [vmem:[%s100 + $0x187] sm:$0xff]
  %v447 = vld [vmem:[%s100 + $0x18f] sm:$0xff]
  %v448 = vld [vmem:[%s100 + $0x1a7] sm:$0xff]
  %v449 = vld [vmem:[%s100 + $0x1af] sm:$0xff]
  %v450 = vld [vmem:[%s100 + $0x1c7] sm:$0xff]
  %v451 = vld [vmem:[%s100 + $0x1cf] sm:$0xff]
  %v452 = vld [vmem:[%s100 + $0x1e7] sm:$0xff]
  %v453 = vld [vmem:[%s100 + $0x1ef] sm:$0xff]
  %v454 = vld [vmem:[%s100 + $0x247] sm:$0xff]
  %v455 = vld [vmem:[%s100 + $0x24f] sm:$0xff]
  %v456 = vld [vmem:[%s100 + $0x267] sm:$0xff]
  %v457 = vld [vmem:[%s100 + $0x26f] sm:$0xff]
  %v458 = vld [vmem:[%s100 + $0x287] sm:$0xff]
  %v459 = vld [vmem:[%s100 + $0x28f] sm:$0xff]
  %v460 = vld [vmem:[%s100 + $0x2a7] sm:$0xff]
  %v461 = vld [vmem:[%s100 + $0x2af] sm:$0xff]
  %v462 = vld [vmem:[%s100 + $0x2c7] sm:$0xff]
  %v463 = vld [vmem:[%s100 + $0x2cf] sm:$0xff]
  %v464 = vld [vmem:[%s100 + $0x2e7] sm:$0xff]
  %v465 = vld [vmem:[%s100 + $0x2ef] sm:$0xff]
  %v466 = vld [vmem:[%s100 + $0x307] sm:$0xff]
  %v467 = vld [vmem:[%s100 + $0x30f] sm:$0xff]
  %v468 = vld [vmem:[%s100 + $0x327] sm:$0xff]
  %v469 = vld [vmem:[%s100 + $0x32f] sm:$0xff]
  %v470 = vld [vmem:[%s100 + $0x347] sm:$0xff]
  %v471 = vld [vmem:[%s100 + $0x34f] sm:$0xff]
  %v472 = vld [vmem:[%s100 + $0x367] sm:$0xff]
  %v473 = vld [vmem:[%s100 + $0x36f] sm:$0xff]
  %v474 = vld [vmem:[%s100 + $0x387] sm:$0xff]
  %v475 = vld [vmem:[%s100 + $0x38f] sm:$0xff]
  %v476 = vld [vmem:[%s100 + $0x3a7] sm:$0xff]
  %v477 = vld [vmem:[%s100 + $0x3af] sm:$0xff]
  %v478 = vld [vmem:[%s100 + $0x3c7] sm:$0xff]
  %v479 = vld [vmem:[%s100 + $0x3cf] sm:$0xff]
  %v480 = vld [vmem:[%s100 + $0x3e7] sm:$0xff]
  %v481 = vld [vmem:[%s100 + $0x3ef] sm:$0xff]
  %v482 = vld [vmem:[%s100 + $0x407] sm:$0xff]
  %v483 = vld [vmem:[%s100 + $0x40f] sm:$0xff]
  %v484 = vld [vmem:[%s100 + $0x427] sm:$0xff]
  %v485 = vld [vmem:[%s100 + $0x42f] sm:$0xff]
  %v486 = vld [vmem:[%s100 + $0x8] sm:$0xff]
  %v487 = vld [vmem:[%s100 + $0x10] sm:$0xff]
  %v488 = vld [vmem:[%s100 + $0x28] sm:$0xff]
  %v489 = vld [vmem:[%s100 + $0x30] sm:$0xff]
  %v490 = vld [vmem:[%s100 + $0x48] sm:$0xff]
  %v491 = vld [vmem:[%s100 + $0x50] sm:$0xff]
  %v492 = vld [vmem:[%s100 + $0x68] sm:$0xff]
  %v493 = vld [vmem:[%s100 + $0x70] sm:$0xff]
  %v494 = vld [vmem:[%s100 + $0x88] sm:$0xff]
  %v495 = vld [vmem:[%s100 + $0x90] sm:$0xff]
  %v496 = vld [vmem:[%s100 + $0xa8] sm:$0xff]
  %v497 = vld [vmem:[%s100 + $0xb0] sm:$0xff]
  %v498 = vld [vmem:[%s100 + $0xc8] sm:$0xff]
  %v499 = vld [vmem:[%s100 + $0xd0] sm:$0xff]
  %v500 = vld [vmem:[%s100 + $0xe8] sm:$0xff]
  %v501 = vld [vmem:[%s100 + $0xf0] sm:$0xff]
  %v502 = vld [vmem:[%s100 + $0x108] sm:$0xff]
  %v503 = vld [vmem:[%s100 + $0x110] sm:$0xff]
  %v504 = vld [vmem:[%s100 + $0x128] sm:$0xff]
  %v505 = vld [vmem:[%s100 + $0x130] sm:$0xff]
  %v506 = vld [vmem:[%s100 + $0x148] sm:$0xff]
  %v507 = vld [vmem:[%s100 + $0x150] sm:$0xff]
  %v508 = vld [vmem:[%s100 + $0x168] sm:$0xff]
  %v509 = vld [vmem:[%s100 + $0x170] sm:$0xff]
  %v510 = vld [vmem:[%s100 + $0x188] sm:$0xff]
  %v511 = vld [vmem:[%s100 + $0x190] sm:$0xff]
  %v512 = vld [vmem:[%s100 + $0x1a8] sm:$0xff]
  %v513 = vld [vmem:[%s100 + $0x1b0] sm:$0xff]
  %v514 = vld [vmem:[%s100 + $0x1c8] sm:$0xff]
  %v515 = vld [vmem:[%s100 + $0x1d0] sm:$0xff]
  %v516 = vld [vmem:[%s100 + $0x1e8] sm:$0xff]
  %v517 = vld [vmem:[%s100 + $0x1f0] sm:$0xff]
  %v518 = vld [vmem:[%s100 + $0x248] sm:$0xff]
  %v519 = vld [vmem:[%s100 + $0x250] sm:$0xff]
  %v520 = vld [vmem:[%s100 + $0x268] sm:$0xff]
  %v521 = vld [vmem:[%s100 + $0x270] sm:$0xff]
  %v522 = vld [vmem:[%s100 + $0x288] sm:$0xff]
  %v523 = vld [vmem:[%s100 + $0x290] sm:$0xff]
  %v524 = vld [vmem:[%s100 + $0x2a8] sm:$0xff]
  %v525 = vld [vmem:[%s100 + $0x2b0] sm:$0xff]
  %v526 = vld [vmem:[%s100 + $0x2c8] sm:$0xff]
  %v527 = vld [vmem:[%s100 + $0x2d0] sm:$0xff]
  %v528 = vld [vmem:[%s100 + $0x2e8] sm:$0xff]
  %v529 = vld [vmem:[%s100 + $0x2f0] sm:$0xff]
  %v530 = vld [vmem:[%s100 + $0x308] sm:$0xff]
  %v531 = vld [vmem:[%s100 + $0x310] sm:$0xff]
  %v532 = vld [vmem:[%s100 + $0x328] sm:$0xff]
  %v533 = vld [vmem:[%s100 + $0x330] sm:$0xff]
  %v534 = vld [vmem:[%s100 + $0x348] sm:$0xff]
  %v535 = vld [vmem:[%s100 + $0x350] sm:$0xff]
  %v536 = vld [vmem:[%s100 + $0x368] sm:$0xff]
  %v537 = vld [vmem:[%s100 + $0x370] sm:$0xff]
  %v538 = vld [vmem:[%s100 + $0x388] sm:$0xff]
  %v539 = vld [vmem:[%s100 + $0x390] sm:$0xff]
  %v540 = vld [vmem:[%s100 + $0x3a8] sm:$0xff]
  %v541 = vld [vmem:[%s100 + $0x3b0] sm:$0xff]
  %v542 = vld [vmem:[%s100 + $0x3c8] sm:$0xff]
  %v543 = vld [vmem:[%s100 + $0x3d0] sm:$0xff]
  %v544 = vld [vmem:[%s100 + $0x3e8] sm:$0xff]
  %v545 = vld [vmem:[%s100 + $0x3f0] sm:$0xff]
  %v546 = vld [vmem:[%s100 + $0x408] sm:$0xff]
  %v547 = vld [vmem:[%s100 + $0x410] sm:$0xff]
  %v548 = vld [vmem:[%s100 + $0x428] sm:$0xff]
  %v549 = vld [vmem:[%s100 + $0x430] sm:$0xff]
  %v550 = vld [vmem:[%s100 + $0x9] sm:$0xff]
  %v551 = vld [vmem:[%s100 + $0x11] sm:$0xff]
  %v552 = vld [vmem:[%s100 + $0x29] sm:$0xff]
  %v553 = vld [vmem:[%s100 + $0x31] sm:$0xff]
  %v554 = vld [vmem:[%s100 + $0x49] sm:$0xff]
  %v555 = vld [vmem:[%s100 + $0x51] sm:$0xff]
  %v556 = vld [vmem:[%s100 + $0x69] sm:$0xff]
  %v557 = vld [vmem:[%s100 + $0x71] sm:$0xff]
  %v558 = vld [vmem:[%s100 + $0x89] sm:$0xff]
  %v559 = vld [vmem:[%s100 + $0x91] sm:$0xff]
  %v560 = vld [vmem:[%s100 + $0xa9] sm:$0xff]
  %v561 = vld [vmem:[%s100 + $0xb1] sm:$0xff]
  %v562 = vld [vmem:[%s100 + $0xc9] sm:$0xff]
  %v563 = vld [vmem:[%s100 + $0xd1] sm:$0xff]
  %v564 = vld [vmem:[%s100 + $0xe9] sm:$0xff]
  %v565 = vld [vmem:[%s100 + $0xf1] sm:$0xff]
  %v566 = vld [vmem:[%s100 + $0x109] sm:$0xff]
  %v567 = vld [vmem:[%s100 + $0x111] sm:$0xff]
  %v568 = vld [vmem:[%s100 + $0x129] sm:$0xff]
  %v569 = vld [vmem:[%s100 + $0x131] sm:$0xff]
  %v570 = vld [vmem:[%s100 + $0x149] sm:$0xff]
  %v571 = vld [vmem:[%s100 + $0x151] sm:$0xff]
  %v572 = vld [vmem:[%s100 + $0x169] sm:$0xff]
  %v573 = vld [vmem:[%s100 + $0x171] sm:$0xff]
  %v574 = vld [vmem:[%s100 + $0x189] sm:$0xff]
  %v575 = vld [vmem:[%s100 + $0x191] sm:$0xff]
  %v576 = vld [vmem:[%s100 + $0x1a9] sm:$0xff]
  %v577 = vld [vmem:[%s100 + $0x1b1] sm:$0xff]
  %v578 = vld [vmem:[%s100 + $0x1c9] sm:$0xff]
  %v579 = vld [vmem:[%s100 + $0x1d1] sm:$0xff]
  %v580 = vld [vmem:[%s100 + $0x1e9] sm:$0xff]
  %v581 = vld [vmem:[%s100 + $0x1f1] sm:$0xff]
  %v582 = vld [vmem:[%s100 + $0x249] sm:$0xff]
  %v583 = vld [vmem:[%s100 + $0x251] sm:$0xff]
  %v584 = vld [vmem:[%s100 + $0x269] sm:$0xff]
  %v585 = vld [vmem:[%s100 + $0x271] sm:$0xff]
  %v586 = vld [vmem:[%s100 + $0x289] sm:$0xff]
  %v587 = vld [vmem:[%s100 + $0x291] sm:$0xff]
  %v588 = vld [vmem:[%s100 + $0x2a9] sm:$0xff]
  %v589 = vld [vmem:[%s100 + $0x2b1] sm:$0xff]
  %v590 = vld [vmem:[%s100 + $0x2c9] sm:$0xff]
  %v591 = vld [vmem:[%s100 + $0x2d1] sm:$0xff]
  %v592 = vld [vmem:[%s100 + $0x2e9] sm:$0xff]
  %v593 = vld [vmem:[%s100 + $0x2f1] sm:$0xff]
  %v594 = vld [vmem:[%s100 + $0x309] sm:$0xff]
  %v595 = vld [vmem:[%s100 + $0x311] sm:$0xff]
  %v596 = vld [vmem:[%s100 + $0x329] sm:$0xff]
  %v597 = vld [vmem:[%s100 + $0x331] sm:$0xff]
  %v598 = vld [vmem:[%s100 + $0x349] sm:$0xff]
  %v599 = vld [vmem:[%s100 + $0x351] sm:$0xff]
  %v600 = vld [vmem:[%s100 + $0x369] sm:$0xff]
  %v601 = vld [vmem:[%s100 + $0x371] sm:$0xff]
  %v602 = vld [vmem:[%s100 + $0x389] sm:$0xff]
  %v603 = vld [vmem:[%s100 + $0x391] sm:$0xff]
  %v604 = vld [vmem:[%s100 + $0x3a9] sm:$0xff]
  %v605 = vld [vmem:[%s100 + $0x3b1] sm:$0xff]
  %v606 = vld [vmem:[%s100 + $0x3c9] sm:$0xff]
  %v607 = vld [vmem:[%s100 + $0x3d1] sm:$0xff]
  %v608 = vld [vmem:[%s100 + $0x3e9] sm:$0xff]
  %v609 = vld [vmem:[%s100 + $0x3f1] sm:$0xff]
  %v610 = vld [vmem:[%s100 + $0x409] sm:$0xff]
  %v611 = vld [vmem:[%s100 + $0x411] sm:$0xff]
  %v612 = vld [vmem:[%s100 + $0x429] sm:$0xff]
  %v613 = vld [vmem:[%s100 + $0x431] sm:$0xff]
  %s614 = scalar_lea.vmem [#allocation2], 64
  %v615 = vld [vmem:[%s614 + $0x7] sm:$0xff]
  %v616 = vld [vmem:[%s614 + $0xf] sm:$0xff]
  %v617 = vld [vmem:[%s614 + $0x27] sm:$0xff]
  %v618 = vld [vmem:[%s614 + $0x2f] sm:$0xff]
  %v619 = vld [vmem:[%s614 + $0x47] sm:$0xff]
  %v620 = vld [vmem:[%s614 + $0x4f] sm:$0xff]
  %v621 = vld [vmem:[%s614 + $0x67] sm:$0xff]
  %v622 = vld [vmem:[%s614 + $0x6f] sm:$0xff]
  %v623 = vld [vmem:[%s614 + $0x87] sm:$0xff]
  %v624 = vld [vmem:[%s614 + $0x8f] sm:$0xff]
  %v625 = vld [vmem:[%s614 + $0xa7] sm:$0xff]
  %v626 = vld [vmem:[%s614 + $0xaf] sm:$0xff]
  %v627 = vld [vmem:[%s614 + $0xc7] sm:$0xff]
  %v628 = vld [vmem:[%s614 + $0xcf] sm:$0xff]
  %v629 = vld [vmem:[%s614 + $0xe7] sm:$0xff]
  %v630 = vld [vmem:[%s614 + $0xef] sm:$0xff]
  %v631 = vld [vmem:[%s614 + $0x107] sm:$0xff]
  %v632 = vld [vmem:[%s614 + $0x10f] sm:$0xff]
  %v633 = vld [vmem:[%s614 + $0x127] sm:$0xff]
  %v634 = vld [vmem:[%s614 + $0x12f] sm:$0xff]
  %v635 = vld [vmem:[%s614 + $0x147] sm:$0xff]
  %v636 = vld [vmem:[%s614 + $0x14f] sm:$0xff]
  %v637 = vld [vmem:[%s614 + $0x167] sm:$0xff]
  %v638 = vld [vmem:[%s614 + $0x16f] sm:$0xff]
  %v639 = vld [vmem:[%s614 + $0x187] sm:$0xff]
  %v640 = vld [vmem:[%s614 + $0x18f] sm:$0xff]
  %v641 = vld [vmem:[%s614 + $0x1a7] sm:$0xff]
  %v642 = vld [vmem:[%s614 + $0x1af] sm:$0xff]
  %v643 = vld [vmem:[%s614 + $0x1c7] sm:$0xff]
  %v644 = vld [vmem:[%s614 + $0x1cf] sm:$0xff]
  %v645 = vld [vmem:[%s614 + $0x1e7] sm:$0xff]
  %v646 = vld [vmem:[%s614 + $0x1ef] sm:$0xff]
  %v647 = vld [vmem:[%s614 + $0x247] sm:$0xff]
  %v648 = vld [vmem:[%s614 + $0x24f] sm:$0xff]
  %v649 = vld [vmem:[%s614 + $0x267] sm:$0xff]
  %v650 = vld [vmem:[%s614 + $0x26f] sm:$0xff]
  %v651 = vld [vmem:[%s614 + $0x287] sm:$0xff]
  %v652 = vld [vmem:[%s614 + $0x28f] sm:$0xff]
  %v653 = vld [vmem:[%s614 + $0x2a7] sm:$0xff]
  %v654 = vld [vmem:[%s614 + $0x2af] sm:$0xff]
  %v655 = vld [vmem:[%s614 + $0x2c7] sm:$0xff]
  %v656 = vld [vmem:[%s614 + $0x2cf] sm:$0xff]
  %v657 = vld [vmem:[%s614 + $0x2e7] sm:$0xff]
  %v658 = vld [vmem:[%s614 + $0x2ef] sm:$0xff]
  %v659 = vld [vmem:[%s614 + $0x307] sm:$0xff]
  %v660 = vld [vmem:[%s614 + $0x30f] sm:$0xff]
  %v661 = vld [vmem:[%s614 + $0x327] sm:$0xff]
  %v662 = vld [vmem:[%s614 + $0x32f] sm:$0xff]
  %v663 = vld [vmem:[%s614 + $0x347] sm:$0xff]
  %v664 = vld [vmem:[%s614 + $0x34f] sm:$0xff]
  %v665 = vld [vmem:[%s614 + $0x367] sm:$0xff]
  %v666 = vld [vmem:[%s614 + $0x36f] sm:$0xff]
  %v667 = vld [vmem:[%s614 + $0x387] sm:$0xff]
  %v668 = vld [vmem:[%s614 + $0x38f] sm:$0xff]
  %v669 = vld [vmem:[%s614 + $0x3a7] sm:$0xff]
  %v670 = vld [vmem:[%s614 + $0x3af] sm:$0xff]
  %v671 = vld [vmem:[%s614 + $0x3c7] sm:$0xff]
  %v672 = vld [vmem:[%s614 + $0x3cf] sm:$0xff]
  %v673 = vld [vmem:[%s614 + $0x3e7] sm:$0xff]
  %v674 = vld [vmem:[%s614 + $0x3ef] sm:$0xff]
  %v675 = vld [vmem:[%s614 + $0x407] sm:$0xff]
  %v676 = vld [vmem:[%s614 + $0x40f] sm:$0xff]
  %v677 = vld [vmem:[%s614 + $0x427] sm:$0xff]
  %v678 = vld [vmem:[%s614 + $0x42f] sm:$0xff]
  %v679 = vld [vmem:[%s614 + $0x8] sm:$0xff]
  %v680 = vld [vmem:[%s614 + $0x10] sm:$0xff]
  %v681 = vld [vmem:[%s614 + $0x28] sm:$0xff]
  %v682 = vld [vmem:[%s614 + $0x30] sm:$0xff]
  %v683 = vld [vmem:[%s614 + $0x48] sm:$0xff]
  %v684 = vld [vmem:[%s614 + $0x50] sm:$0xff]
  %v685 = vld [vmem:[%s614 + $0x68] sm:$0xff]
  %v686 = vld [vmem:[%s614 + $0x70] sm:$0xff]
  %v687 = vld [vmem:[%s614 + $0x88] sm:$0xff]
  %v688 = vld [vmem:[%s614 + $0x90] sm:$0xff]
  %v689 = vld [vmem:[%s614 + $0xa8] sm:$0xff]
  %v690 = vld [vmem:[%s614 + $0xb0] sm:$0xff]
  %v691 = vld [vmem:[%s614 + $0xc8] sm:$0xff]
  %v692 = vld [vmem:[%s614 + $0xd0] sm:$0xff]
  %v693 = vld [vmem:[%s614 + $0xe8] sm:$0xff]
  %v694 = vld [vmem:[%s614 + $0xf0] sm:$0xff]
  %v695 = vld [vmem:[%s614 + $0x108] sm:$0xff]
  %v696 = vld [vmem:[%s614 + $0x110] sm:$0xff]
  %v697 = vld [vmem:[%s614 + $0x128] sm:$0xff]
  %v698 = vld [vmem:[%s614 + $0x130] sm:$0xff]
  %v699 = vld [vmem:[%s614 + $0x148] sm:$0xff]
  %v700 = vld [vmem:[%s614 + $0x150] sm:$0xff]
  %v701 = vld [vmem:[%s614 + $0x168] sm:$0xff]
  %v702 = vld [vmem:[%s614 + $0x170] sm:$0xff]
  %v703 = vld [vmem:[%s614 + $0x188] sm:$0xff]
  %v704 = vld [vmem:[%s614 + $0x190] sm:$0xff]
  %v705 = vld [vmem:[%s614 + $0x1a8] sm:$0xff]
  %v706 = vld [vmem:[%s614 + $0x1b0] sm:$0xff]
  %v707 = vld [vmem:[%s614 + $0x1c8] sm:$0xff]
  %v708 = vld [vmem:[%s614 + $0x1d0] sm:$0xff]
  %v709 = vld [vmem:[%s614 + $0x1e8] sm:$0xff]
  %v710 = vld [vmem:[%s614 + $0x1f0] sm:$0xff]
  %v711 = vld [vmem:[%s614 + $0x248] sm:$0xff]
  %v712 = vld [vmem:[%s614 + $0x250] sm:$0xff]
  %v713 = vld [vmem:[%s614 + $0x268] sm:$0xff]
  %v714 = vld [vmem:[%s614 + $0x270] sm:$0xff]
  %v715 = vld [vmem:[%s614 + $0x288] sm:$0xff]
  %v716 = vld [vmem:[%s614 + $0x290] sm:$0xff]
  %v717 = vld [vmem:[%s614 + $0x2a8] sm:$0xff]
  %v718 = vld [vmem:[%s614 + $0x2b0] sm:$0xff]
  %v719 = vld [vmem:[%s614 + $0x2c8] sm:$0xff]
  %v720 = vld [vmem:[%s614 + $0x2d0] sm:$0xff]
  %v721 = vld [vmem:[%s614 + $0x2e8] sm:$0xff]
  %v722 = vld [vmem:[%s614 + $0x2f0] sm:$0xff]
  %v723 = vld [vmem:[%s614 + $0x308] sm:$0xff]
  %v724 = vld [vmem:[%s614 + $0x310] sm:$0xff]
  %v725 = vld [vmem:[%s614 + $0x328] sm:$0xff]
  %v726 = vld [vmem:[%s614 + $0x330] sm:$0xff]
  %v727 = vld [vmem:[%s614 + $0x348] sm:$0xff]
  %v728 = vld [vmem:[%s614 + $0x350] sm:$0xff]
  %v729 = vld [vmem:[%s614 + $0x368] sm:$0xff]
  %v730 = vld [vmem:[%s614 + $0x370] sm:$0xff]
  %v731 = vld [vmem:[%s614 + $0x388] sm:$0xff]
  %v732 = vld [vmem:[%s614 + $0x390] sm:$0xff]
  %v733 = vld [vmem:[%s614 + $0x3a8] sm:$0xff]
  %v734 = vld [vmem:[%s614 + $0x3b0] sm:$0xff]
  %v735 = vld [vmem:[%s614 + $0x3c8] sm:$0xff]
  %v736 = vld [vmem:[%s614 + $0x3d0] sm:$0xff]
  %v737 = vld [vmem:[%s614 + $0x3e8] sm:$0xff]
  %v738 = vld [vmem:[%s614 + $0x3f0] sm:$0xff]
  %v739 = vld [vmem:[%s614 + $0x408] sm:$0xff]
  %v740 = vld [vmem:[%s614 + $0x410] sm:$0xff]
  %v741 = vld [vmem:[%s614 + $0x428] sm:$0xff]
  %v742 = vld [vmem:[%s614 + $0x430] sm:$0xff]
  %v743 = vld [vmem:[%s614 + $0x9] sm:$0xff]
  %v744 = vld [vmem:[%s614 + $0x11] sm:$0xff]
  %v745 = vld [vmem:[%s614 + $0x29] sm:$0xff]
  %v746 = vld [vmem:[%s614 + $0x31] sm:$0xff]
  %v747 = vld [vmem:[%s614 + $0x49] sm:$0xff]
  %v748 = vld [vmem:[%s614 + $0x51] sm:$0xff]
  %v749 = vld [vmem:[%s614 + $0x69] sm:$0xff]
  %v750 = vld [vmem:[%s614 + $0x71] sm:$0xff]
  %v751 = vld [vmem:[%s614 + $0x89] sm:$0xff]
  %v752 = vld [vmem:[%s614 + $0x91] sm:$0xff]
  %v753 = vld [vmem:[%s614 + $0xa9] sm:$0xff]
  %v754 = vld [vmem:[%s614 + $0xb1] sm:$0xff]
  %v755 = vld [vmem:[%s614 + $0xc9] sm:$0xff]
  %v756 = vld [vmem:[%s614 + $0xd1] sm:$0xff]
  %v757 = vld [vmem:[%s614 + $0xe9] sm:$0xff]
  %v758 = vld [vmem:[%s614 + $0xf1] sm:$0xff]
  %v759 = vld [vmem:[%s614 + $0x109] sm:$0xff]
  %v760 = vld [vmem:[%s614 + $0x111] sm:$0xff]
  %v761 = vld [vmem:[%s614 + $0x129] sm:$0xff]
  %v762 = vld [vmem:[%s614 + $0x131] sm:$0xff]
  %v763 = vld [vmem:[%s614 + $0x149] sm:$0xff]
  %v764 = vld [vmem:[%s614 + $0x151] sm:$0xff]
  %v765 = vld [vmem:[%s614 + $0x169] sm:$0xff]
  %v766 = vld [vmem:[%s614 + $0x171] sm:$0xff]
  %v767 = vld [vmem:[%s614 + $0x189] sm:$0xff]
  %v768 = vld [vmem:[%s614 + $0x191] sm:$0xff]
  %v769 = vld [vmem:[%s614 + $0x1a9] sm:$0xff]
  %v770 = vld [vmem:[%s614 + $0x1b1] sm:$0xff]
  %v771 = vld [vmem:[%s614 + $0x1c9] sm:$0xff]
  %v772 = vld [vmem:[%s614 + $0x1d1] sm:$0xff]
  %v773 = vld [vmem:[%s614 + $0x1e9] sm:$0xff]
  %v774 = vld [vmem:[%s614 + $0x1f1] sm:$0xff]
  %v775 = vld [vmem:[%s614 + $0x249] sm:$0xff]
  %v776 = vld [vmem:[%s614 + $0x251] sm:$0xff]
  %v777 = vld [vmem:[%s614 + $0x269] sm:$0xff]
  %v778 = vld [vmem:[%s614 + $0x271] sm:$0xff]
  %v779 = vld [vmem:[%s614 + $0x289] sm:$0xff]
  %v780 = vld [vmem:[%s614 + $0x291] sm:$0xff]
  %v781 = vld [vmem:[%s614 + $0x2a9] sm:$0xff]
  %v782 = vld [vmem:[%s614 + $0x2b1] sm:$0xff]
  %v783 = vld [vmem:[%s614 + $0x2c9] sm:$0xff]
  %v784 = vld [vmem:[%s614 + $0x2d1] sm:$0xff]
  %v785 = vld [vmem:[%s614 + $0x2e9] sm:$0xff]
  %v786 = vld [vmem:[%s614 + $0x2f1] sm:$0xff]
  %v787 = vld [vmem:[%s614 + $0x309] sm:$0xff]
  %v788 = vld [vmem:[%s614 + $0x311] sm:$0xff]
  %v789 = vld [vmem:[%s614 + $0x329] sm:$0xff]
  %v790 = vld [vmem:[%s614 + $0x331] sm:$0xff]
  %v791 = vld [vmem:[%s614 + $0x349] sm:$0xff]
  %v792 = vld [vmem:[%s614 + $0x351] sm:$0xff]
  %v793 = vld [vmem:[%s614 + $0x369] sm:$0xff]
  %v794 = vld [vmem:[%s614 + $0x371] sm:$0xff]
  %v795 = vld [vmem:[%s614 + $0x389] sm:$0xff]
  %v796 = vld [vmem:[%s614 + $0x391] sm:$0xff]
  %v797 = vld [vmem:[%s614 + $0x3a9] sm:$0xff]
  %v798 = vld [vmem:[%s614 + $0x3b1] sm:$0xff]
  %v799 = vld [vmem:[%s614 + $0x3c9] sm:$0xff]
  %v800 = vld [vmem:[%s614 + $0x3d1] sm:$0xff]
  %v801 = vld [vmem:[%s614 + $0x3e9] sm:$0xff]
  %v802 = vld [vmem:[%s614 + $0x3f1] sm:$0xff]
  %v803 = vld [vmem:[%s614 + $0x409] sm:$0xff]
  %v804 = vld [vmem:[%s614 + $0x411] sm:$0xff]
  %v805 = vld [vmem:[%s614 + $0x429] sm:$0xff]
  %v806 = vld [vmem:[%s614 + $0x431] sm:$0xff]
  %871 = vrot.lane.b32.xlu0 %v294, 4
  %v872 = vpop.permute.xlu0 %871
  %873 = vrot.lane.b32.xlu0 %v295, 4
  %v874 = vpop.permute.xlu0 %873
  %875 = vrot.lane.b32.xlu0 %v296, 4
  %v876 = vpop.permute.xlu0 %875
  %877 = vrot.lane.b32.xlu0 %v297, 4
  %v878 = vpop.permute.xlu0 %877
  %879 = vrot.lane.b32.xlu0 %v298, 4
  %v880 = vpop.permute.xlu0 %879
  %881 = vrot.lane.b32.xlu0 %v299, 4
  %v882 = vpop.permute.xlu0 %881
  %883 = vrot.lane.b32.xlu0 %v300, 4
  %v884 = vpop.permute.xlu0 %883
  %885 = vrot.lane.b32.xlu0 %v301, 4
  %v886 = vpop.permute.xlu0 %885
  %887 = vrot.lane.b32.xlu0 %v302, 4
  %v888 = vpop.permute.xlu0 %887
  %889 = vrot.lane.b32.xlu0 %v303, 4
  %v890 = vpop.permute.xlu0 %889
  %891 = vrot.lane.b32.xlu0 %v304, 4
  %v892 = vpop.permute.xlu0 %891
  %893 = vrot.lane.b32.xlu0 %v305, 4
  %v894 = vpop.permute.xlu0 %893
  %895 = vrot.lane.b32.xlu0 %v306, 4
  %v896 = vpop.permute.xlu0 %895
  %897 = vrot.lane.b32.xlu0 %v307, 4
  %v898 = vpop.permute.xlu0 %897
  %899 = vrot.lane.b32.xlu0 %v308, 4
  %v900 = vpop.permute.xlu0 %899
  %901 = vrot.lane.b32.xlu0 %v309, 4
  %v902 = vpop.permute.xlu0 %901
  %903 = vrot.lane.b32.xlu0 %v310, 4
  %v904 = vpop.permute.xlu0 %903
  %905 = vrot.lane.b32.xlu0 %v311, 4
  %v906 = vpop.permute.xlu0 %905
  %907 = vrot.lane.b32.xlu0 %v312, 4
  %v908 = vpop.permute.xlu0 %907
  %909 = vrot.lane.b32.xlu0 %v313, 4
  %v910 = vpop.permute.xlu0 %909
  %911 = vrot.lane.b32.xlu0 %v314, 4
  %v912 = vpop.permute.xlu0 %911
  %913 = vrot.lane.b32.xlu0 %v315, 4
  %v914 = vpop.permute.xlu0 %913
  %915 = vrot.lane.b32.xlu0 %v316, 4
  %v916 = vpop.permute.xlu0 %915
  %917 = vrot.lane.b32.xlu0 %v317, 4
  %v918 = vpop.permute.xlu0 %917
  %919 = vrot.lane.b32.xlu0 %v318, 4
  %v920 = vpop.permute.xlu0 %919
  %921 = vrot.lane.b32.xlu0 %v319, 4
  %v922 = vpop.permute.xlu0 %921
  %923 = vrot.lane.b32.xlu0 %v320, 4
  %v924 = vpop.permute.xlu0 %923
  %925 = vrot.lane.b32.xlu0 %v321, 4
  %v926 = vpop.permute.xlu0 %925
  %927 = vrot.lane.b32.xlu0 %v322, 4
  %v928 = vpop.permute.xlu0 %927
  %929 = vrot.lane.b32.xlu0 %v323, 4
  %v930 = vpop.permute.xlu0 %929
  %931 = vrot.lane.b32.xlu0 %v324, 4
  %v932 = vpop.permute.xlu0 %931
  %933 = vrot.lane.b32.xlu0 %v325, 4
  %v934 = vpop.permute.xlu0 %933
  %935 = vrot.lane.b32.xlu0 %v326, 4
  %v936 = vpop.permute.xlu0 %935
  %937 = vrot.lane.b32.xlu0 %v327, 4
  %v938 = vpop.permute.xlu0 %937
  %939 = vrot.lane.b32.xlu0 %v328, 4
  %v940 = vpop.permute.xlu0 %939
  %941 = vrot.lane.b32.xlu0 %v329, 4
  %v942 = vpop.permute.xlu0 %941
  %943 = vrot.lane.b32.xlu0 %v330, 4
  %v944 = vpop.permute.xlu0 %943
  %945 = vrot.lane.b32.xlu0 %v331, 4
  %v946 = vpop.permute.xlu0 %945
  %947 = vrot.lane.b32.xlu0 %v332, 4
  %v948 = vpop.permute.xlu0 %947
  %949 = vrot.lane.b32.xlu0 %v333, 4
  %v950 = vpop.permute.xlu0 %949
  %951 = vrot.lane.b32.xlu0 %v334, 4
  %v952 = vpop.permute.xlu0 %951
  %953 = vrot.lane.b32.xlu0 %v335, 4
  %v954 = vpop.permute.xlu0 %953
  %955 = vrot.lane.b32.xlu0 %v336, 4
  %v956 = vpop.permute.xlu0 %955
  %957 = vrot.lane.b32.xlu0 %v337, 4
  %v958 = vpop.permute.xlu0 %957
  %959 = vrot.lane.b32.xlu0 %v338, 4
  %v960 = vpop.permute.xlu0 %959
  %961 = vrot.lane.b32.xlu0 %v339, 4
  %v962 = vpop.permute.xlu0 %961
  %963 = vrot.lane.b32.xlu0 %v340, 4
  %v964 = vpop.permute.xlu0 %963
  %965 = vrot.lane.b32.xlu0 %v341, 4
  %v966 = vpop.permute.xlu0 %965
  %967 = vrot.lane.b32.xlu0 %v342, 4
  %v968 = vpop.permute.xlu0 %967
  %969 = vrot.lane.b32.xlu0 %v343, 4
  %v970 = vpop.permute.xlu0 %969
  %971 = vrot.lane.b32.xlu0 %v344, 4
  %v972 = vpop.permute.xlu0 %971
  %973 = vrot.lane.b32.xlu0 %v345, 4
  %v974 = vpop.permute.xlu0 %973
  %975 = vrot.lane.b32.xlu0 %v346, 4
  %v976 = vpop.permute.xlu0 %975
  %977 = vrot.lane.b32.xlu0 %v347, 4
  %v978 = vpop.permute.xlu0 %977
  %979 = vrot.lane.b32.xlu0 %v348, 4
  %v980 = vpop.permute.xlu0 %979
  %981 = vrot.lane.b32.xlu0 %v349, 4
  %v982 = vpop.permute.xlu0 %981
  %983 = vrot.lane.b32.xlu0 %v350, 4
  %v984 = vpop.permute.xlu0 %983
  %985 = vrot.lane.b32.xlu0 %v351, 4
  %v986 = vpop.permute.xlu0 %985
  %987 = vrot.lane.b32.xlu0 %v352, 4
  %v988 = vpop.permute.xlu0 %987
  %989 = vrot.lane.b32.xlu0 %v353, 4
  %v990 = vpop.permute.xlu0 %989
  %991 = vrot.lane.b32.xlu0 %v354, 4
  %v992 = vpop.permute.xlu0 %991
  %993 = vrot.lane.b32.xlu0 %v355, 4
  %v994 = vpop.permute.xlu0 %993
  %995 = vrot.lane.b32.xlu0 %v356, 4
  %v996 = vpop.permute.xlu0 %995
  %997 = vrot.lane.b32.xlu0 %v357, 4
  %v998 = vpop.permute.xlu0 %997
  %1127 = vrot.lane.b32.xlu0 %v358, 8
  %v1128 = vpop.permute.xlu0 %1127
  %1129 = vrot.lane.b32.xlu0 %v359, 8
  %v1130 = vpop.permute.xlu0 %1129
  %1131 = vrot.lane.b32.xlu0 %v360, 8
  %v1132 = vpop.permute.xlu0 %1131
  %1133 = vrot.lane.b32.xlu0 %v361, 8
  %v1134 = vpop.permute.xlu0 %1133
  %1135 = vrot.lane.b32.xlu0 %v362, 8
  %v1136 = vpop.permute.xlu0 %1135
  %1137 = vrot.lane.b32.xlu0 %v363, 8
  %v1138 = vpop.permute.xlu0 %1137
  %1139 = vrot.lane.b32.xlu0 %v364, 8
  %v1140 = vpop.permute.xlu0 %1139
  %1141 = vrot.lane.b32.xlu0 %v365, 8
  %v1142 = vpop.permute.xlu0 %1141
  %1143 = vrot.lane.b32.xlu0 %v366, 8
  %v1144 = vpop.permute.xlu0 %1143
  %1145 = vrot.lane.b32.xlu0 %v367, 8
  %v1146 = vpop.permute.xlu0 %1145
  %1147 = vrot.lane.b32.xlu0 %v368, 8
  %v1148 = vpop.permute.xlu0 %1147
  %1149 = vrot.lane.b32.xlu0 %v369, 8
  %v1150 = vpop.permute.xlu0 %1149
  %1151 = vrot.lane.b32.xlu0 %v370, 8
  %v1152 = vpop.permute.xlu0 %1151
  %1153 = vrot.lane.b32.xlu0 %v371, 8
  %v1154 = vpop.permute.xlu0 %1153
  %1155 = vrot.lane.b32.xlu0 %v372, 8
  %v1156 = vpop.permute.xlu0 %1155
  %1157 = vrot.lane.b32.xlu0 %v373, 8
  %v1158 = vpop.permute.xlu0 %1157
  %1159 = vrot.lane.b32.xlu0 %v374, 8
  %v1160 = vpop.permute.xlu0 %1159
  %1161 = vrot.lane.b32.xlu0 %v375, 8
  %v1162 = vpop.permute.xlu0 %1161
  %1163 = vrot.lane.b32.xlu0 %v376, 8
  %v1164 = vpop.permute.xlu0 %1163
  %1165 = vrot.lane.b32.xlu0 %v377, 8
  %v1166 = vpop.permute.xlu0 %1165
  %1167 = vrot.lane.b32.xlu0 %v378, 8
  %v1168 = vpop.permute.xlu0 %1167
  %1169 = vrot.lane.b32.xlu0 %v379, 8
  %v1170 = vpop.permute.xlu0 %1169
  %1171 = vrot.lane.b32.xlu0 %v380, 8
  %v1172 = vpop.permute.xlu0 %1171
  %1173 = vrot.lane.b32.xlu0 %v381, 8
  %v1174 = vpop.permute.xlu0 %1173
  %1175 = vrot.lane.b32.xlu0 %v382, 8
  %v1176 = vpop.permute.xlu0 %1175
  %1177 = vrot.lane.b32.xlu0 %v383, 8
  %v1178 = vpop.permute.xlu0 %1177
  %1179 = vrot.lane.b32.xlu0 %v384, 8
  %v1180 = vpop.permute.xlu0 %1179
  %1181 = vrot.lane.b32.xlu0 %v385, 8
  %v1182 = vpop.permute.xlu0 %1181
  %1183 = vrot.lane.b32.xlu0 %v386, 8
  %v1184 = vpop.permute.xlu0 %1183
  %1185 = vrot.lane.b32.xlu0 %v387, 8
  %v1186 = vpop.permute.xlu0 %1185
  %1187 = vrot.lane.b32.xlu0 %v388, 8
  %v1188 = vpop.permute.xlu0 %1187
  %1189 = vrot.lane.b32.xlu0 %v389, 8
  %v1190 = vpop.permute.xlu0 %1189
  %1191 = vrot.lane.b32.xlu0 %v390, 8
  %v1192 = vpop.permute.xlu0 %1191
  %1193 = vrot.lane.b32.xlu0 %v391, 8
  %v1194 = vpop.permute.xlu0 %1193
  %1195 = vrot.lane.b32.xlu0 %v392, 8
  %v1196 = vpop.permute.xlu0 %1195
  %1197 = vrot.lane.b32.xlu0 %v393, 8
  %v1198 = vpop.permute.xlu0 %1197
  %1199 = vrot.lane.b32.xlu0 %v394, 8
  %v1200 = vpop.permute.xlu0 %1199
  %1201 = vrot.lane.b32.xlu0 %v395, 8
  %v1202 = vpop.permute.xlu0 %1201
  %1203 = vrot.lane.b32.xlu0 %v396, 8
  %v1204 = vpop.permute.xlu0 %1203
  %1205 = vrot.lane.b32.xlu0 %v397, 8
  %v1206 = vpop.permute.xlu0 %1205
  %1207 = vrot.lane.b32.xlu0 %v398, 8
  %v1208 = vpop.permute.xlu0 %1207
  %1209 = vrot.lane.b32.xlu0 %v399, 8
  %v1210 = vpop.permute.xlu0 %1209
  %1211 = vrot.lane.b32.xlu0 %v400, 8
  %v1212 = vpop.permute.xlu0 %1211
  %1213 = vrot.lane.b32.xlu0 %v401, 8
  %v1214 = vpop.permute.xlu0 %1213
  %1215 = vrot.lane.b32.xlu0 %v402, 8
  %v1216 = vpop.permute.xlu0 %1215
  %1217 = vrot.lane.b32.xlu0 %v403, 8
  %v1218 = vpop.permute.xlu0 %1217
  %1219 = vrot.lane.b32.xlu0 %v404, 8
  %v1220 = vpop.permute.xlu0 %1219
  %1221 = vrot.lane.b32.xlu0 %v405, 8
  %v1222 = vpop.permute.xlu0 %1221
  %1223 = vrot.lane.b32.xlu0 %v406, 8
  %v1224 = vpop.permute.xlu0 %1223
  %1225 = vrot.lane.b32.xlu0 %v407, 8
  %v1226 = vpop.permute.xlu0 %1225
  %1227 = vrot.lane.b32.xlu0 %v408, 8
  %v1228 = vpop.permute.xlu0 %1227
  %1229 = vrot.lane.b32.xlu0 %v409, 8
  %v1230 = vpop.permute.xlu0 %1229
  %1231 = vrot.lane.b32.xlu0 %v410, 8
  %v1232 = vpop.permute.xlu0 %1231
  %1233 = vrot.lane.b32.xlu0 %v411, 8
  %v1234 = vpop.permute.xlu0 %1233
  %1235 = vrot.lane.b32.xlu0 %v412, 8
  %v1236 = vpop.permute.xlu0 %1235
  %1237 = vrot.lane.b32.xlu0 %v413, 8
  %v1238 = vpop.permute.xlu0 %1237
  %1239 = vrot.lane.b32.xlu0 %v414, 8
  %v1240 = vpop.permute.xlu0 %1239
  %1241 = vrot.lane.b32.xlu0 %v415, 8
  %v1242 = vpop.permute.xlu0 %1241
  %1243 = vrot.lane.b32.xlu0 %v416, 8
  %v1244 = vpop.permute.xlu0 %1243
  %1245 = vrot.lane.b32.xlu0 %v417, 8
  %v1246 = vpop.permute.xlu0 %1245
  %1247 = vrot.lane.b32.xlu0 %v418, 8
  %v1248 = vpop.permute.xlu0 %1247
  %1249 = vrot.lane.b32.xlu0 %v419, 8
  %v1250 = vpop.permute.xlu0 %1249
  %1251 = vrot.lane.b32.xlu0 %v420, 8
  %v1252 = vpop.permute.xlu0 %1251
  %1253 = vrot.lane.b32.xlu0 %v421, 8
  %v1254 = vpop.permute.xlu0 %1253
  %1383 = vrot.lane.b32.xlu0 %v422, 12
  %v1384 = vpop.permute.xlu0 %1383
  %1385 = vrot.lane.b32.xlu0 %v423, 12
  %v1386 = vpop.permute.xlu0 %1385
  %1387 = vrot.lane.b32.xlu0 %v424, 12
  %v1388 = vpop.permute.xlu0 %1387
  %1389 = vrot.lane.b32.xlu0 %v425, 12
  %v1390 = vpop.permute.xlu0 %1389
  %1391 = vrot.lane.b32.xlu0 %v426, 12
  %v1392 = vpop.permute.xlu0 %1391
  %1393 = vrot.lane.b32.xlu0 %v427, 12
  %v1394 = vpop.permute.xlu0 %1393
  %1395 = vrot.lane.b32.xlu0 %v428, 12
  %v1396 = vpop.permute.xlu0 %1395
  %1397 = vrot.lane.b32.xlu0 %v429, 12
  %v1398 = vpop.permute.xlu0 %1397
  %1399 = vrot.lane.b32.xlu0 %v430, 12
  %v1400 = vpop.permute.xlu0 %1399
  %1401 = vrot.lane.b32.xlu0 %v431, 12
  %v1402 = vpop.permute.xlu0 %1401
  %1403 = vrot.lane.b32.xlu0 %v432, 12
  %v1404 = vpop.permute.xlu0 %1403
  %1405 = vrot.lane.b32.xlu0 %v433, 12
  %v1406 = vpop.permute.xlu0 %1405
  %1407 = vrot.lane.b32.xlu0 %v434, 12
  %v1408 = vpop.permute.xlu0 %1407
  %1409 = vrot.lane.b32.xlu0 %v435, 12
  %v1410 = vpop.permute.xlu0 %1409
  %1411 = vrot.lane.b32.xlu0 %v436, 12
  %v1412 = vpop.permute.xlu0 %1411
  %1413 = vrot.lane.b32.xlu0 %v437, 12
  %v1414 = vpop.permute.xlu0 %1413
  %1415 = vrot.lane.b32.xlu0 %v438, 12
  %v1416 = vpop.permute.xlu0 %1415
  %1417 = vrot.lane.b32.xlu0 %v439, 12
  %v1418 = vpop.permute.xlu0 %1417
  %1419 = vrot.lane.b32.xlu0 %v440, 12
  %v1420 = vpop.permute.xlu0 %1419
  %1421 = vrot.lane.b32.xlu0 %v441, 12
  %v1422 = vpop.permute.xlu0 %1421
  %1423 = vrot.lane.b32.xlu0 %v442, 12
  %v1424 = vpop.permute.xlu0 %1423
  %1425 = vrot.lane.b32.xlu0 %v443, 12
  %v1426 = vpop.permute.xlu0 %1425
  %1427 = vrot.lane.b32.xlu0 %v444, 12
  %v1428 = vpop.permute.xlu0 %1427
  %1429 = vrot.lane.b32.xlu0 %v445, 12
  %v1430 = vpop.permute.xlu0 %1429
  %1431 = vrot.lane.b32.xlu0 %v446, 12
  %v1432 = vpop.permute.xlu0 %1431
  %1433 = vrot.lane.b32.xlu0 %v447, 12
  %v1434 = vpop.permute.xlu0 %1433
  %1435 = vrot.lane.b32.xlu0 %v448, 12
  %v1436 = vpop.permute.xlu0 %1435
  %1437 = vrot.lane.b32.xlu0 %v449, 12
  %v1438 = vpop.permute.xlu0 %1437
  %1439 = vrot.lane.b32.xlu0 %v450, 12
  %v1440 = vpop.permute.xlu0 %1439
  %1441 = vrot.lane.b32.xlu0 %v451, 12
  %v1442 = vpop.permute.xlu0 %1441
  %1443 = vrot.lane.b32.xlu0 %v452, 12
  %v1444 = vpop.permute.xlu0 %1443
  %1445 = vrot.lane.b32.xlu0 %v453, 12
  %v1446 = vpop.permute.xlu0 %1445
  %1447 = vrot.lane.b32.xlu0 %v454, 12
  %v1448 = vpop.permute.xlu0 %1447
  %1449 = vrot.lane.b32.xlu0 %v455, 12
  %v1450 = vpop.permute.xlu0 %1449
  %1451 = vrot.lane.b32.xlu0 %v456, 12
  %v1452 = vpop.permute.xlu0 %1451
  %1453 = vrot.lane.b32.xlu0 %v457, 12
  %v1454 = vpop.permute.xlu0 %1453
  %1455 = vrot.lane.b32.xlu0 %v458, 12
  %v1456 = vpop.permute.xlu0 %1455
  %1457 = vrot.lane.b32.xlu0 %v459, 12
  %v1458 = vpop.permute.xlu0 %1457
  %1459 = vrot.lane.b32.xlu0 %v460, 12
  %v1460 = vpop.permute.xlu0 %1459
  %1461 = vrot.lane.b32.xlu0 %v461, 12
  %v1462 = vpop.permute.xlu0 %1461
  %1463 = vrot.lane.b32.xlu0 %v462, 12
  %v1464 = vpop.permute.xlu0 %1463
  %1465 = vrot.lane.b32.xlu0 %v463, 12
  %v1466 = vpop.permute.xlu0 %1465
  %1467 = vrot.lane.b32.xlu0 %v464, 12
  %v1468 = vpop.permute.xlu0 %1467
  %1469 = vrot.lane.b32.xlu0 %v465, 12
  %v1470 = vpop.permute.xlu0 %1469
  %1471 = vrot.lane.b32.xlu0 %v466, 12
  %v1472 = vpop.permute.xlu0 %1471
  %1473 = vrot.lane.b32.xlu0 %v467, 12
  %v1474 = vpop.permute.xlu0 %1473
  %1475 = vrot.lane.b32.xlu0 %v468, 12
  %v1476 = vpop.permute.xlu0 %1475
  %1477 = vrot.lane.b32.xlu0 %v469, 12
  %v1478 = vpop.permute.xlu0 %1477
  %1479 = vrot.lane.b32.xlu0 %v470, 12
  %v1480 = vpop.permute.xlu0 %1479
  %1481 = vrot.lane.b32.xlu0 %v471, 12
  %v1482 = vpop.permute.xlu0 %1481
  %1483 = vrot.lane.b32.xlu0 %v472, 12
  %v1484 = vpop.permute.xlu0 %1483
  %1485 = vrot.lane.b32.xlu0 %v473, 12
  %v1486 = vpop.permute.xlu0 %1485
  %1487 = vrot.lane.b32.xlu0 %v474, 12
  %v1488 = vpop.permute.xlu0 %1487
  %1489 = vrot.lane.b32.xlu0 %v475, 12
  %v1490 = vpop.permute.xlu0 %1489
  %1491 = vrot.lane.b32.xlu0 %v476, 12
  %v1492 = vpop.permute.xlu0 %1491
  %1493 = vrot.lane.b32.xlu0 %v477, 12
  %v1494 = vpop.permute.xlu0 %1493
  %1495 = vrot.lane.b32.xlu0 %v478, 12
  %v1496 = vpop.permute.xlu0 %1495
  %1497 = vrot.lane.b32.xlu0 %v479, 12
  %v1498 = vpop.permute.xlu0 %1497
  %1499 = vrot.lane.b32.xlu0 %v480, 12
  %v1500 = vpop.permute.xlu0 %1499
  %1501 = vrot.lane.b32.xlu0 %v481, 12
  %v1502 = vpop.permute.xlu0 %1501
  %1503 = vrot.lane.b32.xlu0 %v482, 12
  %v1504 = vpop.permute.xlu0 %1503
  %1505 = vrot.lane.b32.xlu0 %v483, 12
  %v1506 = vpop.permute.xlu0 %1505
  %1507 = vrot.lane.b32.xlu0 %v484, 12
  %v1508 = vpop.permute.xlu0 %1507
  %1509 = vrot.lane.b32.xlu0 %v485, 12
  %v1510 = vpop.permute.xlu0 %1509
  %1639 = vrot.lane.b32.xlu0 %v486, 16
  %v1640 = vpop.permute.xlu0 %1639
  %1641 = vrot.lane.b32.xlu0 %v487, 16
  %v1642 = vpop.permute.xlu0 %1641
  %1643 = vrot.lane.b32.xlu0 %v488, 16
  %v1644 = vpop.permute.xlu0 %1643
  %1645 = vrot.lane.b32.xlu0 %v489, 16
  %v1646 = vpop.permute.xlu0 %1645
  %1647 = vrot.lane.b32.xlu0 %v490, 16
  %v1648 = vpop.permute.xlu0 %1647
  %1649 = vrot.lane.b32.xlu0 %v491, 16
  %v1650 = vpop.permute.xlu0 %1649
  %1651 = vrot.lane.b32.xlu0 %v492, 16
  %v1652 = vpop.permute.xlu0 %1651
  %1653 = vrot.lane.b32.xlu0 %v493, 16
  %v1654 = vpop.permute.xlu0 %1653
  %1655 = vrot.lane.b32.xlu0 %v494, 16
  %v1656 = vpop.permute.xlu0 %1655
  %1657 = vrot.lane.b32.xlu0 %v495, 16
  %v1658 = vpop.permute.xlu0 %1657
  %1659 = vrot.lane.b32.xlu0 %v496, 16
  %v1660 = vpop.permute.xlu0 %1659
  %1661 = vrot.lane.b32.xlu0 %v497, 16
  %v1662 = vpop.permute.xlu0 %1661
  %1663 = vrot.lane.b32.xlu0 %v498, 16
  %v1664 = vpop.permute.xlu0 %1663
  %1665 = vrot.lane.b32.xlu0 %v499, 16
  %v1666 = vpop.permute.xlu0 %1665
  %1667 = vrot.lane.b32.xlu0 %v500, 16
  %v1668 = vpop.permute.xlu0 %1667
  %1669 = vrot.lane.b32.xlu0 %v501, 16
  %v1670 = vpop.permute.xlu0 %1669
  %1671 = vrot.lane.b32.xlu0 %v502, 16
  %v1672 = vpop.permute.xlu0 %1671
  %1673 = vrot.lane.b32.xlu0 %v503, 16
  %v1674 = vpop.permute.xlu0 %1673
  %1675 = vrot.lane.b32.xlu0 %v504, 16
  %v1676 = vpop.permute.xlu0 %1675
  %1677 = vrot.lane.b32.xlu0 %v505, 16
  %v1678 = vpop.permute.xlu0 %1677
  %1679 = vrot.lane.b32.xlu0 %v506, 16
  %v1680 = vpop.permute.xlu0 %1679
  %1681 = vrot.lane.b32.xlu0 %v507, 16
  %v1682 = vpop.permute.xlu0 %1681
  %1683 = vrot.lane.b32.xlu0 %v508, 16
  %v1684 = vpop.permute.xlu0 %1683
  %1685 = vrot.lane.b32.xlu0 %v509, 16
  %v1686 = vpop.permute.xlu0 %1685
  %1687 = vrot.lane.b32.xlu0 %v510, 16
  %v1688 = vpop.permute.xlu0 %1687
  %1689 = vrot.lane.b32.xlu0 %v511, 16
  %v1690 = vpop.permute.xlu0 %1689
  %1691 = vrot.lane.b32.xlu0 %v512, 16
  %v1692 = vpop.permute.xlu0 %1691
  %1693 = vrot.lane.b32.xlu0 %v513, 16
  %v1694 = vpop.permute.xlu0 %1693
  %1695 = vrot.lane.b32.xlu0 %v514, 16
  %v1696 = vpop.permute.xlu0 %1695
  %1697 = vrot.lane.b32.xlu0 %v515, 16
  %v1698 = vpop.permute.xlu0 %1697
  %1699 = vrot.lane.b32.xlu0 %v516, 16
  %v1700 = vpop.permute.xlu0 %1699
  %1701 = vrot.lane.b32.xlu0 %v517, 16
  %v1702 = vpop.permute.xlu0 %1701
  %1703 = vrot.lane.b32.xlu0 %v518, 16
  %v1704 = vpop.permute.xlu0 %1703
  %1705 = vrot.lane.b32.xlu0 %v519, 16
  %v1706 = vpop.permute.xlu0 %1705
  %1707 = vrot.lane.b32.xlu0 %v520, 16
  %v1708 = vpop.permute.xlu0 %1707
  %1709 = vrot.lane.b32.xlu0 %v521, 16
  %v1710 = vpop.permute.xlu0 %1709
  %1711 = vrot.lane.b32.xlu0 %v522, 16
  %v1712 = vpop.permute.xlu0 %1711
  %1713 = vrot.lane.b32.xlu0 %v523, 16
  %v1714 = vpop.permute.xlu0 %1713
  %1715 = vrot.lane.b32.xlu0 %v524, 16
  %v1716 = vpop.permute.xlu0 %1715
  %1717 = vrot.lane.b32.xlu0 %v525, 16
  %v1718 = vpop.permute.xlu0 %1717
  %1719 = vrot.lane.b32.xlu0 %v526, 16
  %v1720 = vpop.permute.xlu0 %1719
  %1721 = vrot.lane.b32.xlu0 %v527, 16
  %v1722 = vpop.permute.xlu0 %1721
  %1723 = vrot.lane.b32.xlu0 %v528, 16
  %v1724 = vpop.permute.xlu0 %1723
  %1725 = vrot.lane.b32.xlu0 %v529, 16
  %v1726 = vpop.permute.xlu0 %1725
  %1727 = vrot.lane.b32.xlu0 %v530, 16
  %v1728 = vpop.permute.xlu0 %1727
  %1729 = vrot.lane.b32.xlu0 %v531, 16
  %v1730 = vpop.permute.xlu0 %1729
  %1731 = vrot.lane.b32.xlu0 %v532, 16
  %v1732 = vpop.permute.xlu0 %1731
  %1733 = vrot.lane.b32.xlu0 %v533, 16
  %v1734 = vpop.permute.xlu0 %1733
  %1735 = vrot.lane.b32.xlu0 %v534, 16
  %v1736 = vpop.permute.xlu0 %1735
  %1737 = vrot.lane.b32.xlu0 %v535, 16
  %v1738 = vpop.permute.xlu0 %1737
  %1739 = vrot.lane.b32.xlu0 %v536, 16
  %v1740 = vpop.permute.xlu0 %1739
  %1741 = vrot.lane.b32.xlu0 %v537, 16
  %v1742 = vpop.permute.xlu0 %1741
  %1743 = vrot.lane.b32.xlu0 %v538, 16
  %v1744 = vpop.permute.xlu0 %1743
  %1745 = vrot.lane.b32.xlu0 %v539, 16
  %v1746 = vpop.permute.xlu0 %1745
  %1747 = vrot.lane.b32.xlu0 %v540, 16
  %v1748 = vpop.permute.xlu0 %1747
  %1749 = vrot.lane.b32.xlu0 %v541, 16
  %v1750 = vpop.permute.xlu0 %1749
  %1751 = vrot.lane.b32.xlu0 %v542, 16
  %v1752 = vpop.permute.xlu0 %1751
  %1753 = vrot.lane.b32.xlu0 %v543, 16
  %v1754 = vpop.permute.xlu0 %1753
  %1755 = vrot.lane.b32.xlu0 %v544, 16
  %v1756 = vpop.permute.xlu0 %1755
  %1757 = vrot.lane.b32.xlu0 %v545, 16
  %v1758 = vpop.permute.xlu0 %1757
  %1759 = vrot.lane.b32.xlu0 %v546, 16
  %v1760 = vpop.permute.xlu0 %1759
  %1761 = vrot.lane.b32.xlu0 %v547, 16
  %v1762 = vpop.permute.xlu0 %1761
  %1763 = vrot.lane.b32.xlu0 %v548, 16
  %v1764 = vpop.permute.xlu0 %1763
  %1765 = vrot.lane.b32.xlu0 %v549, 16
  %v1766 = vpop.permute.xlu0 %1765
  %1895 = vrot.lane.b32.xlu0 %v550, 20
  %v1896 = vpop.permute.xlu0 %1895
  %1897 = vrot.lane.b32.xlu0 %v551, 20
  %v1898 = vpop.permute.xlu0 %1897
  %1899 = vrot.lane.b32.xlu0 %v552, 20
  %v1900 = vpop.permute.xlu0 %1899
  %1901 = vrot.lane.b32.xlu0 %v553, 20
  %v1902 = vpop.permute.xlu0 %1901
  %1903 = vrot.lane.b32.xlu0 %v554, 20
  %v1904 = vpop.permute.xlu0 %1903
  %1905 = vrot.lane.b32.xlu0 %v555, 20
  %v1906 = vpop.permute.xlu0 %1905
  %1907 = vrot.lane.b32.xlu0 %v556, 20
  %v1908 = vpop.permute.xlu0 %1907
  %1909 = vrot.lane.b32.xlu0 %v557, 20
  %v1910 = vpop.permute.xlu0 %1909
  %1911 = vrot.lane.b32.xlu0 %v558, 20
  %v1912 = vpop.permute.xlu0 %1911
  %1913 = vrot.lane.b32.xlu0 %v559, 20
  %v1914 = vpop.permute.xlu0 %1913
  %1915 = vrot.lane.b32.xlu0 %v560, 20
  %v1916 = vpop.permute.xlu0 %1915
  %1917 = vrot.lane.b32.xlu0 %v561, 20
  %v1918 = vpop.permute.xlu0 %1917
  %1919 = vrot.lane.b32.xlu0 %v562, 20
  %v1920 = vpop.permute.xlu0 %1919
  %1921 = vrot.lane.b32.xlu0 %v563, 20
  %v1922 = vpop.permute.xlu0 %1921
  %1923 = vrot.lane.b32.xlu0 %v564, 20
  %v1924 = vpop.permute.xlu0 %1923
  %1925 = vrot.lane.b32.xlu0 %v565, 20
  %v1926 = vpop.permute.xlu0 %1925
  %1927 = vrot.lane.b32.xlu0 %v566, 20
  %v1928 = vpop.permute.xlu0 %1927
  %1929 = vrot.lane.b32.xlu0 %v567, 20
  %v1930 = vpop.permute.xlu0 %1929
  %1931 = vrot.lane.b32.xlu0 %v568, 20
  %v1932 = vpop.permute.xlu0 %1931
  %1933 = vrot.lane.b32.xlu0 %v569, 20
  %v1934 = vpop.permute.xlu0 %1933
  %1935 = vrot.lane.b32.xlu0 %v570, 20
  %v1936 = vpop.permute.xlu0 %1935
  %1937 = vrot.lane.b32.xlu0 %v571, 20
  %v1938 = vpop.permute.xlu0 %1937
  %1939 = vrot.lane.b32.xlu0 %v572, 20
  %v1940 = vpop.permute.xlu0 %1939
  %1941 = vrot.lane.b32.xlu0 %v573, 20
  %v1942 = vpop.permute.xlu0 %1941
  %1943 = vrot.lane.b32.xlu0 %v574, 20
  %v1944 = vpop.permute.xlu0 %1943
  %1945 = vrot.lane.b32.xlu0 %v575, 20
  %v1946 = vpop.permute.xlu0 %1945
  %1947 = vrot.lane.b32.xlu0 %v576, 20
  %v1948 = vpop.permute.xlu0 %1947
  %1949 = vrot.lane.b32.xlu0 %v577, 20
  %v1950 = vpop.permute.xlu0 %1949
  %1951 = vrot.lane.b32.xlu0 %v578, 20
  %v1952 = vpop.permute.xlu0 %1951
  %1953 = vrot.lane.b32.xlu0 %v579, 20
  %v1954 = vpop.permute.xlu0 %1953
  %1955 = vrot.lane.b32.xlu0 %v580, 20
  %v1956 = vpop.permute.xlu0 %1955
  %1957 = vrot.lane.b32.xlu0 %v581, 20
  %v1958 = vpop.permute.xlu0 %1957
  %1959 = vrot.lane.b32.xlu0 %v582, 20
  %v1960 = vpop.permute.xlu0 %1959
  %1961 = vrot.lane.b32.xlu0 %v583, 20
  %v1962 = vpop.permute.xlu0 %1961
  %1963 = vrot.lane.b32.xlu0 %v584, 20
  %v1964 = vpop.permute.xlu0 %1963
  %1965 = vrot.lane.b32.xlu0 %v585, 20
  %v1966 = vpop.permute.xlu0 %1965
  %1967 = vrot.lane.b32.xlu0 %v586, 20
  %v1968 = vpop.permute.xlu0 %1967
  %1969 = vrot.lane.b32.xlu0 %v587, 20
  %v1970 = vpop.permute.xlu0 %1969
  %1971 = vrot.lane.b32.xlu0 %v588, 20
  %v1972 = vpop.permute.xlu0 %1971
  %1973 = vrot.lane.b32.xlu0 %v589, 20
  %v1974 = vpop.permute.xlu0 %1973
  %1975 = vrot.lane.b32.xlu0 %v590, 20
  %v1976 = vpop.permute.xlu0 %1975
  %1977 = vrot.lane.b32.xlu0 %v591, 20
  %v1978 = vpop.permute.xlu0 %1977
  %1979 = vrot.lane.b32.xlu0 %v592, 20
  %v1980 = vpop.permute.xlu0 %1979
  %1981 = vrot.lane.b32.xlu0 %v593, 20
  %v1982 = vpop.permute.xlu0 %1981
  %1983 = vrot.lane.b32.xlu0 %v594, 20
  %v1984 = vpop.permute.xlu0 %1983
  %1985 = vrot.lane.b32.xlu0 %v595, 20
  %v1986 = vpop.permute.xlu0 %1985
  %1987 = vrot.lane.b32.xlu0 %v596, 20
  %v1988 = vpop.permute.xlu0 %1987
  %1989 = vrot.lane.b32.xlu0 %v597, 20
  %v1990 = vpop.permute.xlu0 %1989
  %1991 = vrot.lane.b32.xlu0 %v598, 20
  %v1992 = vpop.permute.xlu0 %1991
  %1993 = vrot.lane.b32.xlu0 %v599, 20
  %v1994 = vpop.permute.xlu0 %1993
  %1995 = vrot.lane.b32.xlu0 %v600, 20
  %v1996 = vpop.permute.xlu0 %1995
  %1997 = vrot.lane.b32.xlu0 %v601, 20
  %v1998 = vpop.permute.xlu0 %1997
  %1999 = vrot.lane.b32.xlu0 %v602, 20
  %v2000 = vpop.permute.xlu0 %1999
  %2001 = vrot.lane.b32.xlu0 %v603, 20
  %v2002 = vpop.permute.xlu0 %2001
  %2003 = vrot.lane.b32.xlu0 %v604, 20
  %v2004 = vpop.permute.xlu0 %2003
  %2005 = vrot.lane.b32.xlu0 %v605, 20
  %v2006 = vpop.permute.xlu0 %2005
  %2007 = vrot.lane.b32.xlu0 %v606, 20
  %v2008 = vpop.permute.xlu0 %2007
  %2009 = vrot.lane.b32.xlu0 %v607, 20
  %v2010 = vpop.permute.xlu0 %2009
  %2011 = vrot.lane.b32.xlu0 %v608, 20
  %v2012 = vpop.permute.xlu0 %2011
  %2013 = vrot.lane.b32.xlu0 %v609, 20
  %v2014 = vpop.permute.xlu0 %2013
  %2015 = vrot.lane.b32.xlu0 %v610, 20
  %v2016 = vpop.permute.xlu0 %2015
  %2017 = vrot.lane.b32.xlu0 %v611, 20
  %v2018 = vpop.permute.xlu0 %2017
  %2019 = vrot.lane.b32.xlu0 %v612, 20
  %v2020 = vpop.permute.xlu0 %2019
  %2021 = vrot.lane.b32.xlu0 %v613, 20
  %v2022 = vpop.permute.xlu0 %2021
  %2151 = vrot.lane.b32.xlu0 %v615, 24
  %v2152 = vpop.permute.xlu0 %2151
  %2153 = vrot.lane.b32.xlu0 %v616, 24
  %v2154 = vpop.permute.xlu0 %2153
  %2155 = vrot.lane.b32.xlu0 %v617, 24
  %v2156 = vpop.permute.xlu0 %2155
  %2157 = vrot.lane.b32.xlu0 %v618, 24
  %v2158 = vpop.permute.xlu0 %2157
  %2159 = vrot.lane.b32.xlu0 %v619, 24
  %v2160 = vpop.permute.xlu0 %2159
  %2161 = vrot.lane.b32.xlu0 %v620, 24
  %v2162 = vpop.permute.xlu0 %2161
  %2163 = vrot.lane.b32.xlu0 %v621, 24
  %v2164 = vpop.permute.xlu0 %2163
  %2165 = vrot.lane.b32.xlu0 %v622, 24
  %v2166 = vpop.permute.xlu0 %2165
  %2167 = vrot.lane.b32.xlu0 %v623, 24
  %v2168 = vpop.permute.xlu0 %2167
  %2169 = vrot.lane.b32.xlu0 %v624, 24
  %v2170 = vpop.permute.xlu0 %2169
  %2171 = vrot.lane.b32.xlu0 %v625, 24
  %v2172 = vpop.permute.xlu0 %2171
  %2173 = vrot.lane.b32.xlu0 %v626, 24
  %v2174 = vpop.permute.xlu0 %2173
  %2175 = vrot.lane.b32.xlu0 %v627, 24
  %v2176 = vpop.permute.xlu0 %2175
  %2177 = vrot.lane.b32.xlu0 %v628, 24
  %v2178 = vpop.permute.xlu0 %2177
  %2179 = vrot.lane.b32.xlu0 %v629, 24
  %v2180 = vpop.permute.xlu0 %2179
  %2181 = vrot.lane.b32.xlu0 %v630, 24
  %v2182 = vpop.permute.xlu0 %2181
  %2183 = vrot.lane.b32.xlu0 %v631, 24
  %v2184 = vpop.permute.xlu0 %2183
  %2185 = vrot.lane.b32.xlu0 %v632, 24
  %v2186 = vpop.permute.xlu0 %2185
  %2187 = vrot.lane.b32.xlu0 %v633, 24
  %v2188 = vpop.permute.xlu0 %2187
  %2189 = vrot.lane.b32.xlu0 %v634, 24
  %v2190 = vpop.permute.xlu0 %2189
  %2191 = vrot.lane.b32.xlu0 %v635, 24
  %v2192 = vpop.permute.xlu0 %2191
  %2193 = vrot.lane.b32.xlu0 %v636, 24
  %v2194 = vpop.permute.xlu0 %2193
  %2195 = vrot.lane.b32.xlu0 %v637, 24
  %v2196 = vpop.permute.xlu0 %2195
  %2197 = vrot.lane.b32.xlu0 %v638, 24
  %v2198 = vpop.permute.xlu0 %2197
  %2199 = vrot.lane.b32.xlu0 %v639, 24
  %v2200 = vpop.permute.xlu0 %2199
  %2201 = vrot.lane.b32.xlu0 %v640, 24
  %v2202 = vpop.permute.xlu0 %2201
  %2203 = vrot.lane.b32.xlu0 %v641, 24
  %v2204 = vpop.permute.xlu0 %2203
  %2205 = vrot.lane.b32.xlu0 %v642, 24
  %v2206 = vpop.permute.xlu0 %2205
  %2207 = vrot.lane.b32.xlu0 %v643, 24
  %v2208 = vpop.permute.xlu0 %2207
  %2209 = vrot.lane.b32.xlu0 %v644, 24
  %v2210 = vpop.permute.xlu0 %2209
  %2211 = vrot.lane.b32.xlu0 %v645, 24
  %v2212 = vpop.permute.xlu0 %2211
  %2213 = vrot.lane.b32.xlu0 %v646, 24
  %v2214 = vpop.permute.xlu0 %2213
  %2215 = vrot.lane.b32.xlu0 %v647, 24
  %v2216 = vpop.permute.xlu0 %2215
  %2217 = vrot.lane.b32.xlu0 %v648, 24
  %v2218 = vpop.permute.xlu0 %2217
  %2219 = vrot.lane.b32.xlu0 %v649, 24
  %v2220 = vpop.permute.xlu0 %2219
  %2221 = vrot.lane.b32.xlu0 %v650, 24
  %v2222 = vpop.permute.xlu0 %2221
  %2223 = vrot.lane.b32.xlu0 %v651, 24
  %v2224 = vpop.permute.xlu0 %2223
  %2225 = vrot.lane.b32.xlu0 %v652, 24
  %v2226 = vpop.permute.xlu0 %2225
  %2227 = vrot.lane.b32.xlu0 %v653, 24
  %v2228 = vpop.permute.xlu0 %2227
  %2229 = vrot.lane.b32.xlu0 %v654, 24
  %v2230 = vpop.permute.xlu0 %2229
  %2231 = vrot.lane.b32.xlu0 %v655, 24
  %v2232 = vpop.permute.xlu0 %2231
  %2233 = vrot.lane.b32.xlu0 %v656, 24
  %v2234 = vpop.permute.xlu0 %2233
  %2235 = vrot.lane.b32.xlu0 %v657, 24
  %v2236 = vpop.permute.xlu0 %2235
  %2237 = vrot.lane.b32.xlu0 %v658, 24
  %v2238 = vpop.permute.xlu0 %2237
  %2239 = vrot.lane.b32.xlu0 %v659, 24
  %v2240 = vpop.permute.xlu0 %2239
  %2241 = vrot.lane.b32.xlu0 %v660, 24
  %v2242 = vpop.permute.xlu0 %2241
  %2243 = vrot.lane.b32.xlu0 %v661, 24
  %v2244 = vpop.permute.xlu0 %2243
  %2245 = vrot.lane.b32.xlu0 %v662, 24
  %v2246 = vpop.permute.xlu0 %2245
  %2247 = vrot.lane.b32.xlu0 %v663, 24
  %v2248 = vpop.permute.xlu0 %2247
  %2249 = vrot.lane.b32.xlu0 %v664, 24
  %v2250 = vpop.permute.xlu0 %2249
  %2251 = vrot.lane.b32.xlu0 %v665, 24
  %v2252 = vpop.permute.xlu0 %2251
  %2253 = vrot.lane.b32.xlu0 %v666, 24
  %v2254 = vpop.permute.xlu0 %2253
  %2255 = vrot.lane.b32.xlu0 %v667, 24
  %v2256 = vpop.permute.xlu0 %2255
  %2257 = vrot.lane.b32.xlu0 %v668, 24
  %v2258 = vpop.permute.xlu0 %2257
  %2259 = vrot.lane.b32.xlu0 %v669, 24
  %v2260 = vpop.permute.xlu0 %2259
  %2261 = vrot.lane.b32.xlu0 %v670, 24
  %v2262 = vpop.permute.xlu0 %2261
  %2263 = vrot.lane.b32.xlu0 %v671, 24
  %v2264 = vpop.permute.xlu0 %2263
  %2265 = vrot.lane.b32.xlu0 %v672, 24
  %v2266 = vpop.permute.xlu0 %2265
  %2267 = vrot.lane.b32.xlu0 %v673, 24
  %v2268 = vpop.permute.xlu0 %2267
  %2269 = vrot.lane.b32.xlu0 %v674, 24
  %v2270 = vpop.permute.xlu0 %2269
  %2271 = vrot.lane.b32.xlu0 %v675, 24
  %v2272 = vpop.permute.xlu0 %2271
  %2273 = vrot.lane.b32.xlu0 %v676, 24
  %v2274 = vpop.permute.xlu0 %2273
  %2275 = vrot.lane.b32.xlu0 %v677, 24
  %v2276 = vpop.permute.xlu0 %2275
  %2277 = vrot.lane.b32.xlu0 %v678, 24
  %v2278 = vpop.permute.xlu0 %2277
  %2407 = vrot.lane.b32.xlu0 %v679, 28
  %v2408 = vpop.permute.xlu0 %2407
  %2409 = vrot.lane.b32.xlu0 %v680, 28
  %v2410 = vpop.permute.xlu0 %2409
  %2411 = vrot.lane.b32.xlu0 %v681, 28
  %v2412 = vpop.permute.xlu0 %2411
  %2413 = vrot.lane.b32.xlu0 %v682, 28
  %v2414 = vpop.permute.xlu0 %2413
  %2415 = vrot.lane.b32.xlu0 %v683, 28
  %v2416 = vpop.permute.xlu0 %2415
  %2417 = vrot.lane.b32.xlu0 %v684, 28
  %v2418 = vpop.permute.xlu0 %2417
  %2419 = vrot.lane.b32.xlu0 %v685, 28
  %v2420 = vpop.permute.xlu0 %2419
  %2421 = vrot.lane.b32.xlu0 %v686, 28
  %v2422 = vpop.permute.xlu0 %2421
  %2423 = vrot.lane.b32.xlu0 %v687, 28
  %v2424 = vpop.permute.xlu0 %2423
  %2425 = vrot.lane.b32.xlu0 %v688, 28
  %v2426 = vpop.permute.xlu0 %2425
  %2427 = vrot.lane.b32.xlu0 %v689, 28
  %v2428 = vpop.permute.xlu0 %2427
  %2429 = vrot.lane.b32.xlu0 %v690, 28
  %v2430 = vpop.permute.xlu0 %2429
  %2431 = vrot.lane.b32.xlu0 %v691, 28
  %v2432 = vpop.permute.xlu0 %2431
  %2433 = vrot.lane.b32.xlu0 %v692, 28
  %v2434 = vpop.permute.xlu0 %2433
  %2435 = vrot.lane.b32.xlu0 %v693, 28
  %v2436 = vpop.permute.xlu0 %2435
  %2437 = vrot.lane.b32.xlu0 %v694, 28
  %v2438 = vpop.permute.xlu0 %2437
  %2439 = vrot.lane.b32.xlu0 %v695, 28
  %v2440 = vpop.permute.xlu0 %2439
  %2441 = vrot.lane.b32.xlu0 %v696, 28
  %v2442 = vpop.permute.xlu0 %2441
  %2443 = vrot.lane.b32.xlu0 %v697, 28
  %v2444 = vpop.permute.xlu0 %2443
  %2445 = vrot.lane.b32.xlu0 %v698, 28
  %v2446 = vpop.permute.xlu0 %2445
  %2447 = vrot.lane.b32.xlu0 %v699, 28
  %v2448 = vpop.permute.xlu0 %2447
  %2449 = vrot.lane.b32.xlu0 %v700, 28
  %v2450 = vpop.permute.xlu0 %2449
  %2451 = vrot.lane.b32.xlu0 %v701, 28
  %v2452 = vpop.permute.xlu0 %2451
  %2453 = vrot.lane.b32.xlu0 %v702, 28
  %v2454 = vpop.permute.xlu0 %2453
  %2455 = vrot.lane.b32.xlu0 %v703, 28
  %v2456 = vpop.permute.xlu0 %2455
  %2457 = vrot.lane.b32.xlu0 %v704, 28
  %v2458 = vpop.permute.xlu0 %2457
  %2459 = vrot.lane.b32.xlu0 %v705, 28
  %v2460 = vpop.permute.xlu0 %2459
  %2461 = vrot.lane.b32.xlu0 %v706, 28
  %v2462 = vpop.permute.xlu0 %2461
  %2463 = vrot.lane.b32.xlu0 %v707, 28
  %v2464 = vpop.permute.xlu0 %2463
  %2465 = vrot.lane.b32.xlu0 %v708, 28
  %v2466 = vpop.permute.xlu0 %2465
  %2467 = vrot.lane.b32.xlu0 %v709, 28
  %v2468 = vpop.permute.xlu0 %2467
  %2469 = vrot.lane.b32.xlu0 %v710, 28
  %v2470 = vpop.permute.xlu0 %2469
  %2471 = vrot.lane.b32.xlu0 %v711, 28
  %v2472 = vpop.permute.xlu0 %2471
  %2473 = vrot.lane.b32.xlu0 %v712, 28
  %v2474 = vpop.permute.xlu0 %2473
  %2475 = vrot.lane.b32.xlu0 %v713, 28
  %v2476 = vpop.permute.xlu0 %2475
  %2477 = vrot.lane.b32.xlu0 %v714, 28
  %v2478 = vpop.permute.xlu0 %2477
  %2479 = vrot.lane.b32.xlu0 %v715, 28
  %v2480 = vpop.permute.xlu0 %2479
  %2481 = vrot.lane.b32.xlu0 %v716, 28
  %v2482 = vpop.permute.xlu0 %2481
  %2483 = vrot.lane.b32.xlu0 %v717, 28
  %v2484 = vpop.permute.xlu0 %2483
  %2485 = vrot.lane.b32.xlu0 %v718, 28
  %v2486 = vpop.permute.xlu0 %2485
  %2487 = vrot.lane.b32.xlu0 %v719, 28
  %v2488 = vpop.permute.xlu0 %2487
  %2489 = vrot.lane.b32.xlu0 %v720, 28
  %v2490 = vpop.permute.xlu0 %2489
  %2491 = vrot.lane.b32.xlu0 %v721, 28
  %v2492 = vpop.permute.xlu0 %2491
  %2493 = vrot.lane.b32.xlu0 %v722, 28
  %v2494 = vpop.permute.xlu0 %2493
  %2495 = vrot.lane.b32.xlu0 %v723, 28
  %v2496 = vpop.permute.xlu0 %2495
  %2497 = vrot.lane.b32.xlu0 %v724, 28
  %v2498 = vpop.permute.xlu0 %2497
  %2499 = vrot.lane.b32.xlu0 %v725, 28
  %v2500 = vpop.permute.xlu0 %2499
  %2501 = vrot.lane.b32.xlu0 %v726, 28
  %v2502 = vpop.permute.xlu0 %2501
  %2503 = vrot.lane.b32.xlu0 %v727, 28
  %v2504 = vpop.permute.xlu0 %2503
  %2505 = vrot.lane.b32.xlu0 %v728, 28
  %v2506 = vpop.permute.xlu0 %2505
  %2507 = vrot.lane.b32.xlu0 %v729, 28
  %v2508 = vpop.permute.xlu0 %2507
  %2509 = vrot.lane.b32.xlu0 %v730, 28
  %v2510 = vpop.permute.xlu0 %2509
  %2511 = vrot.lane.b32.xlu0 %v731, 28
  %v2512 = vpop.permute.xlu0 %2511
  %2513 = vrot.lane.b32.xlu0 %v732, 28
  %v2514 = vpop.permute.xlu0 %2513
  %2515 = vrot.lane.b32.xlu0 %v733, 28
  %v2516 = vpop.permute.xlu0 %2515
  %2517 = vrot.lane.b32.xlu0 %v734, 28
  %v2518 = vpop.permute.xlu0 %2517
  %2519 = vrot.lane.b32.xlu0 %v735, 28
  %v2520 = vpop.permute.xlu0 %2519
  %2521 = vrot.lane.b32.xlu0 %v736, 28
  %v2522 = vpop.permute.xlu0 %2521
  %2523 = vrot.lane.b32.xlu0 %v737, 28
  %v2524 = vpop.permute.xlu0 %2523
  %2525 = vrot.lane.b32.xlu0 %v738, 28
  %v2526 = vpop.permute.xlu0 %2525
  %2527 = vrot.lane.b32.xlu0 %v739, 28
  %v2528 = vpop.permute.xlu0 %2527
  %2529 = vrot.lane.b32.xlu0 %v740, 28
  %v2530 = vpop.permute.xlu0 %2529
  %2531 = vrot.lane.b32.xlu0 %v741, 28
  %v2532 = vpop.permute.xlu0 %2531
  %2533 = vrot.lane.b32.xlu0 %v742, 28
  %v2534 = vpop.permute.xlu0 %2533
  %2663 = vrot.lane.b32.xlu0 %v743, 32
  %v2664 = vpop.permute.xlu0 %2663
  %2665 = vrot.lane.b32.xlu0 %v744, 32
  %v2666 = vpop.permute.xlu0 %2665
  %2667 = vrot.lane.b32.xlu0 %v745, 32
  %v2668 = vpop.permute.xlu0 %2667
  %2669 = vrot.lane.b32.xlu0 %v746, 32
  %v2670 = vpop.permute.xlu0 %2669
  %2671 = vrot.lane.b32.xlu0 %v747, 32
  %v2672 = vpop.permute.xlu0 %2671
  %2673 = vrot.lane.b32.xlu0 %v748, 32
  %v2674 = vpop.permute.xlu0 %2673
  %2675 = vrot.lane.b32.xlu0 %v749, 32
  %v2676 = vpop.permute.xlu0 %2675
  %2677 = vrot.lane.b32.xlu0 %v750, 32
  %v2678 = vpop.permute.xlu0 %2677
  %2679 = vrot.lane.b32.xlu0 %v751, 32
  %v2680 = vpop.permute.xlu0 %2679
  %2681 = vrot.lane.b32.xlu0 %v752, 32
  %v2682 = vpop.permute.xlu0 %2681
  %2683 = vrot.lane.b32.xlu0 %v753, 32
  %v2684 = vpop.permute.xlu0 %2683
  %2685 = vrot.lane.b32.xlu0 %v754, 32
  %v2686 = vpop.permute.xlu0 %2685
  %2687 = vrot.lane.b32.xlu0 %v755, 32
  %v2688 = vpop.permute.xlu0 %2687
  %2689 = vrot.lane.b32.xlu0 %v756, 32
  %v2690 = vpop.permute.xlu0 %2689
  %2691 = vrot.lane.b32.xlu0 %v757, 32
  %v2692 = vpop.permute.xlu0 %2691
  %2693 = vrot.lane.b32.xlu0 %v758, 32
  %v2694 = vpop.permute.xlu0 %2693
  %2695 = vrot.lane.b32.xlu0 %v759, 32
  %v2696 = vpop.permute.xlu0 %2695
  %2697 = vrot.lane.b32.xlu0 %v760, 32
  %v2698 = vpop.permute.xlu0 %2697
  %2699 = vrot.lane.b32.xlu0 %v761, 32
  %v2700 = vpop.permute.xlu0 %2699
  %2701 = vrot.lane.b32.xlu0 %v762, 32
  %v2702 = vpop.permute.xlu0 %2701
  %2703 = vrot.lane.b32.xlu0 %v763, 32
  %v2704 = vpop.permute.xlu0 %2703
  %2705 = vrot.lane.b32.xlu0 %v764, 32
  %v2706 = vpop.permute.xlu0 %2705
  %2707 = vrot.lane.b32.xlu0 %v765, 32
  %v2708 = vpop.permute.xlu0 %2707
  %2709 = vrot.lane.b32.xlu0 %v766, 32
  %v2710 = vpop.permute.xlu0 %2709
  %2711 = vrot.lane.b32.xlu0 %v767, 32
  %v2712 = vpop.permute.xlu0 %2711
  %2713 = vrot.lane.b32.xlu0 %v768, 32
  %v2714 = vpop.permute.xlu0 %2713
  %2715 = vrot.lane.b32.xlu0 %v769, 32
  %v2716 = vpop.permute.xlu0 %2715
  %2717 = vrot.lane.b32.xlu0 %v770, 32
  %v2718 = vpop.permute.xlu0 %2717
  %2719 = vrot.lane.b32.xlu0 %v771, 32
  %v2720 = vpop.permute.xlu0 %2719
  %2721 = vrot.lane.b32.xlu0 %v772, 32
  %v2722 = vpop.permute.xlu0 %2721
  %2723 = vrot.lane.b32.xlu0 %v773, 32
  %v2724 = vpop.permute.xlu0 %2723
  %2725 = vrot.lane.b32.xlu0 %v774, 32
  %v2726 = vpop.permute.xlu0 %2725
  %2727 = vrot.lane.b32.xlu0 %v775, 32
  %v2728 = vpop.permute.xlu0 %2727
  %2729 = vrot.lane.b32.xlu0 %v776, 32
  %v2730 = vpop.permute.xlu0 %2729
  %2731 = vrot.lane.b32.xlu0 %v777, 32
  %v2732 = vpop.permute.xlu0 %2731
  %2733 = vrot.lane.b32.xlu0 %v778, 32
  %v2734 = vpop.permute.xlu0 %2733
  %2735 = vrot.lane.b32.xlu0 %v779, 32
  %v2736 = vpop.permute.xlu0 %2735
  %2737 = vrot.lane.b32.xlu0 %v780, 32
  %v2738 = vpop.permute.xlu0 %2737
  %2739 = vrot.lane.b32.xlu0 %v781, 32
  %v2740 = vpop.permute.xlu0 %2739
  %2741 = vrot.lane.b32.xlu0 %v782, 32
  %v2742 = vpop.permute.xlu0 %2741
  %2743 = vrot.lane.b32.xlu0 %v783, 32
  %v2744 = vpop.permute.xlu0 %2743
  %2745 = vrot.lane.b32.xlu0 %v784, 32
  %v2746 = vpop.permute.xlu0 %2745
  %2747 = vrot.lane.b32.xlu0 %v785, 32
  %v2748 = vpop.permute.xlu0 %2747
  %2749 = vrot.lane.b32.xlu0 %v786, 32
  %v2750 = vpop.permute.xlu0 %2749
  %2751 = vrot.lane.b32.xlu0 %v787, 32
  %v2752 = vpop.permute.xlu0 %2751
  %2753 = vrot.lane.b32.xlu0 %v788, 32
  %v2754 = vpop.permute.xlu0 %2753
  %2755 = vrot.lane.b32.xlu0 %v789, 32
  %v2756 = vpop.permute.xlu0 %2755
  %2757 = vrot.lane.b32.xlu0 %v790, 32
  %v2758 = vpop.permute.xlu0 %2757
  %2759 = vrot.lane.b32.xlu0 %v791, 32
  %v2760 = vpop.permute.xlu0 %2759
  %2761 = vrot.lane.b32.xlu0 %v792, 32
  %v2762 = vpop.permute.xlu0 %2761
  %2763 = vrot.lane.b32.xlu0 %v793, 32
  %v2764 = vpop.permute.xlu0 %2763
  %2765 = vrot.lane.b32.xlu0 %v794, 32
  %v2766 = vpop.permute.xlu0 %2765
  %2767 = vrot.lane.b32.xlu0 %v795, 32
  %v2768 = vpop.permute.xlu0 %2767
  %2769 = vrot.lane.b32.xlu0 %v796, 32
  %v2770 = vpop.permute.xlu0 %2769
  %2771 = vrot.lane.b32.xlu0 %v797, 32
  %v2772 = vpop.permute.xlu0 %2771
  %2773 = vrot.lane.b32.xlu0 %v798, 32
  %v2774 = vpop.permute.xlu0 %2773
  %2775 = vrot.lane.b32.xlu0 %v799, 32
  %v2776 = vpop.permute.xlu0 %2775
  %2777 = vrot.lane.b32.xlu0 %v800, 32
  %v2778 = vpop.permute.xlu0 %2777
  %2779 = vrot.lane.b32.xlu0 %v801, 32
  %v2780 = vpop.permute.xlu0 %2779
  %2781 = vrot.lane.b32.xlu0 %v802, 32
  %v2782 = vpop.permute.xlu0 %2781
  %2783 = vrot.lane.b32.xlu0 %v803, 32
  %v2784 = vpop.permute.xlu0 %2783
  %2785 = vrot.lane.b32.xlu0 %v804, 32
  %v2786 = vpop.permute.xlu0 %2785
  %2787 = vrot.lane.b32.xlu0 %v805, 32
  %v2788 = vpop.permute.xlu0 %2787
  %2789 = vrot.lane.b32.xlu0 %v806, 32
  %v2790 = vpop.permute.xlu0 %2789
  %v2855 = vsel %vm85, %v230, %v872
  %v2856 = vsel %vm85, %v231, %v874
  %v2857 = vsel %vm85, %v232, %v876
  %v2858 = vsel %vm85, %v233, %v878
  %v2859 = vsel %vm85, %v234, %v880
  %v2860 = vsel %vm85, %v235, %v882
  %v2861 = vsel %vm85, %v236, %v884
  %v2862 = vsel %vm85, %v237, %v886
  %v2863 = vsel %vm85, %v238, %v888
  %v2864 = vsel %vm85, %v239, %v890
  %v2865 = vsel %vm85, %v240, %v892
  %v2866 = vsel %vm85, %v241, %v894
  %v2867 = vsel %vm85, %v242, %v896
  %v2868 = vsel %vm85, %v243, %v898
  %v2869 = vsel %vm85, %v244, %v900
  %v2870 = vsel %vm85, %v245, %v902
  %v2871 = vsel %vm85, %v246, %v904
  %v2872 = vsel %vm85, %v247, %v906
  %v2873 = vsel %vm85, %v248, %v908
  %v2874 = vsel %vm85, %v249, %v910
  %v2875 = vsel %vm85, %v250, %v912
  %v2876 = vsel %vm85, %v251, %v914
  %v2877 = vsel %vm85, %v252, %v916
  %v2878 = vsel %vm85, %v253, %v918
  %v2879 = vsel %vm85, %v254, %v920
  %v2880 = vsel %vm85, %v255, %v922
  %v2881 = vsel %vm85, %v256, %v924
  %v2882 = vsel %vm85, %v257, %v926
  %v2883 = vsel %vm85, %v258, %v928
  %v2884 = vsel %vm85, %v259, %v930
  %v2885 = vsel %vm85, %v260, %v932
  %v2886 = vsel %vm85, %v261, %v934
  %v2887 = vsel %vm85, %v262, %v936
  %v2888 = vsel %vm85, %v263, %v938
  %v2889 = vsel %vm85, %v264, %v940
  %v2890 = vsel %vm85, %v265, %v942
  %v2891 = vsel %vm85, %v266, %v944
  %v2892 = vsel %vm85, %v267, %v946
  %v2893 = vsel %vm85, %v268, %v948
  %v2894 = vsel %vm85, %v269, %v950
  %v2895 = vsel %vm85, %v270, %v952
  %v2896 = vsel %vm85, %v271, %v954
  %v2897 = vsel %vm85, %v272, %v956
  %v2898 = vsel %vm85, %v273, %v958
  %v2899 = vsel %vm85, %v274, %v960
  %v2900 = vsel %vm85, %v275, %v962
  %v2901 = vsel %vm85, %v276, %v964
  %v2902 = vsel %vm85, %v277, %v966
  %v2903 = vsel %vm85, %v278, %v968
  %v2904 = vsel %vm85, %v279, %v970
  %v2905 = vsel %vm85, %v280, %v972
  %v2906 = vsel %vm85, %v281, %v974
  %v2907 = vsel %vm85, %v282, %v976
  %v2908 = vsel %vm85, %v283, %v978
  %v2909 = vsel %vm85, %v284, %v980
  %v2910 = vsel %vm85, %v285, %v982
  %v2911 = vsel %vm85, %v286, %v984
  %v2912 = vsel %vm85, %v287, %v986
  %v2913 = vsel %vm85, %v288, %v988
  %v2914 = vsel %vm85, %v289, %v990
  %v2915 = vsel %vm85, %v290, %v992
  %v2916 = vsel %vm85, %v291, %v994
  %v2917 = vsel %vm85, %v292, %v996
  %v2918 = vsel %vm85, %v293, %v998
  %vm2919 = vcmask 64512
  %v2920 = vsel %vm2919, %v2855, %v1128
  %v2921 = vsel %vm2919, %v2856, %v1130
  %v2922 = vsel %vm2919, %v2857, %v1132
  %v2923 = vsel %vm2919, %v2858, %v1134
  %v2924 = vsel %vm2919, %v2859, %v1136
  %v2925 = vsel %vm2919, %v2860, %v1138
  %v2926 = vsel %vm2919, %v2861, %v1140
  %v2927 = vsel %vm2919, %v2862, %v1142
  %v2928 = vsel %vm2919, %v2863, %v1144
  %v2929 = vsel %vm2919, %v2864, %v1146
  %v2930 = vsel %vm2919, %v2865, %v1148
  %v2931 = vsel %vm2919, %v2866, %v1150
  %v2932 = vsel %vm2919, %v2867, %v1152
  %v2933 = vsel %vm2919, %v2868, %v1154
  %v2934 = vsel %vm2919, %v2869, %v1156
  %v2935 = vsel %vm2919, %v2870, %v1158
  %v2936 = vsel %vm2919, %v2871, %v1160
  %v2937 = vsel %vm2919, %v2872, %v1162
  %v2938 = vsel %vm2919, %v2873, %v1164
  %v2939 = vsel %vm2919, %v2874, %v1166
  %v2940 = vsel %vm2919, %v2875, %v1168
  %v2941 = vsel %vm2919, %v2876, %v1170
  %v2942 = vsel %vm2919, %v2877, %v1172
  %v2943 = vsel %vm2919, %v2878, %v1174
  %v2944 = vsel %vm2919, %v2879, %v1176
  %v2945 = vsel %vm2919, %v2880, %v1178
  %v2946 = vsel %vm2919, %v2881, %v1180
  %v2947 = vsel %vm2919, %v2882, %v1182
  %v2948 = vsel %vm2919, %v2883, %v1184
  %v2949 = vsel %vm2919, %v2884, %v1186
  %v2950 = vsel %vm2919, %v2885, %v1188
  %v2951 = vsel %vm2919, %v2886, %v1190
  %v2952 = vsel %vm2919, %v2887, %v1192
  %v2953 = vsel %vm2919, %v2888, %v1194
  %v2954 = vsel %vm2919, %v2889, %v1196
  %v2955 = vsel %vm2919, %v2890, %v1198
  %v2956 = vsel %vm2919, %v2891, %v1200
  %v2957 = vsel %vm2919, %v2892, %v1202
  %v2958 = vsel %vm2919, %v2893, %v1204
  %v2959 = vsel %vm2919, %v2894, %v1206
  %v2960 = vsel %vm2919, %v2895, %v1208
  %v2961 = vsel %vm2919, %v2896, %v1210
  %v2962 = vsel %vm2919, %v2897, %v1212
  %v2963 = vsel %vm2919, %v2898, %v1214
  %v2964 = vsel %vm2919, %v2899, %v1216
  %v2965 = vsel %vm2919, %v2900, %v1218
  %v2966 = vsel %vm2919, %v2901, %v1220
  %v2967 = vsel %vm2919, %v2902, %v1222
  %v2968 = vsel %vm2919, %v2903, %v1224
  %v2969 = vsel %vm2919, %v2904, %v1226
  %v2970 = vsel %vm2919, %v2905, %v1228
  %v2971 = vsel %vm2919, %v2906, %v1230
  %v2972 = vsel %vm2919, %v2907, %v1232
  %v2973 = vsel %vm2919, %v2908, %v1234
  %v2974 = vsel %vm2919, %v2909, %v1236
  %v2975 = vsel %vm2919, %v2910, %v1238
  %v2976 = vsel %vm2919, %v2911, %v1240
  %v2977 = vsel %vm2919, %v2912, %v1242
  %v2978 = vsel %vm2919, %v2913, %v1244
  %v2979 = vsel %vm2919, %v2914, %v1246
  %v2980 = vsel %vm2919, %v2915, %v1248
  %v2981 = vsel %vm2919, %v2916, %v1250
  %v2982 = vsel %vm2919, %v2917, %v1252
  %v2983 = vsel %vm2919, %v2918, %v1254
  %vm2984 = vcmask 97280
  %v2985 = vsel %vm2984, %v2920, %v1384
  %v2986 = vsel %vm2984, %v2921, %v1386
  %v2987 = vsel %vm2984, %v2922, %v1388
  %v2988 = vsel %vm2984, %v2923, %v1390
  %v2989 = vsel %vm2984, %v2924, %v1392
  %v2990 = vsel %vm2984, %v2925, %v1394
  %v2991 = vsel %vm2984, %v2926, %v1396
  %v2992 = vsel %vm2984, %v2927, %v1398
  %v2993 = vsel %vm2984, %v2928, %v1400
  %v2994 = vsel %vm2984, %v2929, %v1402
  %v2995 = vsel %vm2984, %v2930, %v1404
  %v2996 = vsel %vm2984, %v2931, %v1406
  %v2997 = vsel %vm2984, %v2932, %v1408
  %v2998 = vsel %vm2984, %v2933, %v1410
  %v2999 = vsel %vm2984, %v2934, %v1412
  %v3000 = vsel %vm2984, %v2935, %v1414
  %v3001 = vsel %vm2984, %v2936, %v1416
  %v3002 = vsel %vm2984, %v2937, %v1418
  %v3003 = vsel %vm2984, %v2938, %v1420
  %v3004 = vsel %vm2984, %v2939, %v1422
  %v3005 = vsel %vm2984, %v2940, %v1424
  %v3006 = vsel %vm2984, %v2941, %v1426
  %v3007 = vsel %vm2984, %v2942, %v1428
  %v3008 = vsel %vm2984, %v2943, %v1430
  %v3009 = vsel %vm2984, %v2944, %v1432
  %v3010 = vsel %vm2984, %v2945, %v1434
  %v3011 = vsel %vm2984, %v2946, %v1436
  %v3012 = vsel %vm2984, %v2947, %v1438
  %v3013 = vsel %vm2984, %v2948, %v1440
  %v3014 = vsel %vm2984, %v2949, %v1442
  %v3015 = vsel %vm2984, %v2950, %v1444
  %v3016 = vsel %vm2984, %v2951, %v1446
  %v3017 = vsel %vm2984, %v2952, %v1448
  %v3018 = vsel %vm2984, %v2953, %v1450
  %v3019 = vsel %vm2984, %v2954, %v1452
  %v3020 = vsel %vm2984, %v2955, %v1454
  %v3021 = vsel %vm2984, %v2956, %v1456
  %v3022 = vsel %vm2984, %v2957, %v1458
  %v3023 = vsel %vm2984, %v2958, %v1460
  %v3024 = vsel %vm2984, %v2959, %v1462
  %v3025 = vsel %vm2984, %v2960, %v1464
  %v3026 = vsel %vm2984, %v2961, %v1466
  %v3027 = vsel %vm2984, %v2962, %v1468
  %v3028 = vsel %vm2984, %v2963, %v1470
  %v3029 = vsel %vm2984, %v2964, %v1472
  %v3030 = vsel %vm2984, %v2965, %v1474
  %v3031 = vsel %vm2984, %v2966, %v1476
  %v3032 = vsel %vm2984, %v2967, %v1478
  %v3033 = vsel %vm2984, %v2968, %v1480
  %v3034 = vsel %vm2984, %v2969, %v1482
  %v3035 = vsel %vm2984, %v2970, %v1484
  %v3036 = vsel %vm2984, %v2971, %v1486
  %v3037 = vsel %vm2984, %v2972, %v1488
  %v3038 = vsel %vm2984, %v2973, %v1490
  %v3039 = vsel %vm2984, %v2974, %v1492
  %v3040 = vsel %vm2984, %v2975, %v1494
  %v3041 = vsel %vm2984, %v2976, %v1496
  %v3042 = vsel %vm2984, %v2977, %v1498
  %v3043 = vsel %vm2984, %v2978, %v1500
  %v3044 = vsel %vm2984, %v2979, %v1502
  %v3045 = vsel %vm2984, %v2980, %v1504
  %v3046 = vsel %vm2984, %v2981, %v1506
  %v3047 = vsel %vm2984, %v2982, %v1508
  %v3048 = vsel %vm2984, %v2983, %v1510
  %vm3049 = vcmask 130048
  %v3050 = vsel %vm3049, %v2985, %v1640
  %v3051 = vsel %vm3049, %v2986, %v1642
  %v3052 = vsel %vm3049, %v2987, %v1644
  %v3053 = vsel %vm3049, %v2988, %v1646
  %v3054 = vsel %vm3049, %v2989, %v1648
  %v3055 = vsel %vm3049, %v2990, %v1650
  %v3056 = vsel %vm3049, %v2991, %v1652
  %v3057 = vsel %vm3049, %v2992, %v1654
  %v3058 = vsel %vm3049, %v2993, %v1656
  %v3059 = vsel %vm3049, %v2994, %v1658
  %v3060 = vsel %vm3049, %v2995, %v1660
  %v3061 = vsel %vm3049, %v2996, %v1662
  %v3062 = vsel %vm3049, %v2997, %v1664
  %v3063 = vsel %vm3049, %v2998, %v1666
  %v3064 = vsel %vm3049, %v2999, %v1668
  %v3065 = vsel %vm3049, %v3000, %v1670
  %v3066 = vsel %vm3049, %v3001, %v1672
  %v3067 = vsel %vm3049, %v3002, %v1674
  %v3068 = vsel %vm3049, %v3003, %v1676
  %v3069 = vsel %vm3049, %v3004, %v1678
  %v3070 = vsel %vm3049, %v3005, %v1680
  %v3071 = vsel %vm3049, %v3006, %v1682
  %v3072 = vsel %vm3049, %v3007, %v1684
  %v3073 = vsel %vm3049, %v3008, %v1686
  %v3074 = vsel %vm3049, %v3009, %v1688
  %v3075 = vsel %vm3049, %v3010, %v1690
  %v3076 = vsel %vm3049, %v3011, %v1692
  %v3077 = vsel %vm3049, %v3012, %v1694
  %v3078 = vsel %vm3049, %v3013, %v1696
  %v3079 = vsel %vm3049, %v3014, %v1698
  %v3080 = vsel %vm3049, %v3015, %v1700
  %v3081 = vsel %vm3049, %v3016, %v1702
  %v3082 = vsel %vm3049, %v3017, %v1704
  %v3083 = vsel %vm3049, %v3018, %v1706
  %v3084 = vsel %vm3049, %v3019, %v1708
  %v3085 = vsel %vm3049, %v3020, %v1710
  %v3086 = vsel %vm3049, %v3021, %v1712
  %v3087 = vsel %vm3049, %v3022, %v1714
  %v3088 = vsel %vm3049, %v3023, %v1716
  %v3089 = vsel %vm3049, %v3024, %v1718
  %v3090 = vsel %vm3049, %v3025, %v1720
  %v3091 = vsel %vm3049, %v3026, %v1722
  %v3092 = vsel %vm3049, %v3027, %v1724
  %v3093 = vsel %vm3049, %v3028, %v1726
  %v3094 = vsel %vm3049, %v3029, %v1728
  %v3095 = vsel %vm3049, %v3030, %v1730
  %v3096 = vsel %vm3049, %v3031, %v1732
  %v3097 = vsel %vm3049, %v3032, %v1734
  %v3098 = vsel %vm3049, %v3033, %v1736
  %v3099 = vsel %vm3049, %v3034, %v1738
  %v3100 = vsel %vm3049, %v3035, %v1740
  %v3101 = vsel %vm3049, %v3036, %v1742
  %v3102 = vsel %vm3049, %v3037, %v1744
  %v3103 = vsel %vm3049, %v3038, %v1746
  %v3104 = vsel %vm3049, %v3039, %v1748
  %v3105 = vsel %vm3049, %v3040, %v1750
  %v3106 = vsel %vm3049, %v3041, %v1752
  %v3107 = vsel %vm3049, %v3042, %v1754
  %v3108 = vsel %vm3049, %v3043, %v1756
  %v3109 = vsel %vm3049, %v3044, %v1758
  %v3110 = vsel %vm3049, %v3045, %v1760
  %v3111 = vsel %vm3049, %v3046, %v1762
  %v3112 = vsel %vm3049, %v3047, %v1764
  %v3113 = vsel %vm3049, %v3048, %v1766
  %vm3114 = vcmask 162816
  %v3115 = vsel %vm3114, %v3050, %v1896
  %v3116 = vsel %vm3114, %v3051, %v1898
  %v3117 = vsel %vm3114, %v3052, %v1900
  %v3118 = vsel %vm3114, %v3053, %v1902
  %v3119 = vsel %vm3114, %v3054, %v1904
  %v3120 = vsel %vm3114, %v3055, %v1906
  %v3121 = vsel %vm3114, %v3056, %v1908
  %v3122 = vsel %vm3114, %v3057, %v1910
  %v3123 = vsel %vm3114, %v3058, %v1912
  %v3124 = vsel %vm3114, %v3059, %v1914
  %v3125 = vsel %vm3114, %v3060, %v1916
  %v3126 = vsel %vm3114, %v3061, %v1918
  %v3127 = vsel %vm3114, %v3062, %v1920
  %v3128 = vsel %vm3114, %v3063, %v1922
  %v3129 = vsel %vm3114, %v3064, %v1924
  %v3130 = vsel %vm3114, %v3065, %v1926
  %v3131 = vsel %vm3114, %v3066, %v1928
  %v3132 = vsel %vm3114, %v3067, %v1930
  %v3133 = vsel %vm3114, %v3068, %v1932
  %v3134 = vsel %vm3114, %v3069, %v1934
  %v3135 = vsel %vm3114, %v3070, %v1936
  %v3136 = vsel %vm3114, %v3071, %v1938
  %v3137 = vsel %vm3114, %v3072, %v1940
  %v3138 = vsel %vm3114, %v3073, %v1942
  %v3139 = vsel %vm3114, %v3074, %v1944
  %v3140 = vsel %vm3114, %v3075, %v1946
  %v3141 = vsel %vm3114, %v3076, %v1948
  %v3142 = vsel %vm3114, %v3077, %v1950
  %v3143 = vsel %vm3114, %v3078, %v1952
  %v3144 = vsel %vm3114, %v3079, %v1954
  %v3145 = vsel %vm3114, %v3080, %v1956
  %v3146 = vsel %vm3114, %v3081, %v1958
  %v3147 = vsel %vm3114, %v3082, %v1960
  %v3148 = vsel %vm3114, %v3083, %v1962
  %v3149 = vsel %vm3114, %v3084, %v1964
  %v3150 = vsel %vm3114, %v3085, %v1966
  %v3151 = vsel %vm3114, %v3086, %v1968
  %v3152 = vsel %vm3114, %v3087, %v1970
  %v3153 = vsel %vm3114, %v3088, %v1972
  %v3154 = vsel %vm3114, %v3089, %v1974
  %v3155 = vsel %vm3114, %v3090, %v1976
  %v3156 = vsel %vm3114, %v3091, %v1978
  %v3157 = vsel %vm3114, %v3092, %v1980
  %v3158 = vsel %vm3114, %v3093, %v1982
  %v3159 = vsel %vm3114, %v3094, %v1984
  %v3160 = vsel %vm3114, %v3095, %v1986
  %v3161 = vsel %vm3114, %v3096, %v1988
  %v3162 = vsel %vm3114, %v3097, %v1990
  %v3163 = vsel %vm3114, %v3098, %v1992
  %v3164 = vsel %vm3114, %v3099, %v1994
  %v3165 = vsel %vm3114, %v3100, %v1996
  %v3166 = vsel %vm3114, %v3101, %v1998
  %v3167 = vsel %vm3114, %v3102, %v2000
  %v3168 = vsel %vm3114, %v3103, %v2002
  %v3169 = vsel %vm3114, %v3104, %v2004
  %v3170 = vsel %vm3114, %v3105, %v2006
  %v3171 = vsel %vm3114, %v3106, %v2008
  %v3172 = vsel %vm3114, %v3107, %v2010
  %v3173 = vsel %vm3114, %v3108, %v2012
  %v3174 = vsel %vm3114, %v3109, %v2014
  %v3175 = vsel %vm3114, %v3110, %v2016
  %v3176 = vsel %vm3114, %v3111, %v2018
  %v3177 = vsel %vm3114, %v3112, %v2020
  %v3178 = vsel %vm3114, %v3113, %v2022
  %vm3179 = vcmask 195584
  %v3180 = vsel %vm3179, %v3115, %v2152
  %v3181 = vsel %vm3179, %v3116, %v2154
  %v3182 = vsel %vm3179, %v3117, %v2156
  %v3183 = vsel %vm3179, %v3118, %v2158
  %v3184 = vsel %vm3179, %v3119, %v2160
  %v3185 = vsel %vm3179, %v3120, %v2162
  %v3186 = vsel %vm3179, %v3121, %v2164
  %v3187 = vsel %vm3179, %v3122, %v2166
  %v3188 = vsel %vm3179, %v3123, %v2168
  %v3189 = vsel %vm3179, %v3124, %v2170
  %v3190 = vsel %vm3179, %v3125, %v2172
  %v3191 = vsel %vm3179, %v3126, %v2174
  %v3192 = vsel %vm3179, %v3127, %v2176
  %v3193 = vsel %vm3179, %v3128, %v2178
  %v3194 = vsel %vm3179, %v3129, %v2180
  %v3195 = vsel %vm3179, %v3130, %v2182
  %v3196 = vsel %vm3179, %v3131, %v2184
  %v3197 = vsel %vm3179, %v3132, %v2186
  %v3198 = vsel %vm3179, %v3133, %v2188
  %v3199 = vsel %vm3179, %v3134, %v2190
  %v3200 = vsel %vm3179, %v3135, %v2192
  %v3201 = vsel %vm3179, %v3136, %v2194
  %v3202 = vsel %vm3179, %v3137, %v2196
  %v3203 = vsel %vm3179, %v3138, %v2198
  %v3204 = vsel %vm3179, %v3139, %v2200
  %v3205 = vsel %vm3179, %v3140, %v2202
  %v3206 = vsel %vm3179, %v3141, %v2204
  %v3207 = vsel %vm3179, %v3142, %v2206
  %v3208 = vsel %vm3179, %v3143, %v2208
  %v3209 = vsel %vm3179, %v3144, %v2210
  %v3210 = vsel %vm3179, %v3145, %v2212
  %v3211 = vsel %vm3179, %v3146, %v2214
  %v3212 = vsel %vm3179, %v3147, %v2216
  %v3213 = vsel %vm3179, %v3148, %v2218
  %v3214 = vsel %vm3179, %v3149, %v2220
  %v3215 = vsel %vm3179, %v3150, %v2222
  %v3216 = vsel %vm3179, %v3151, %v2224
  %v3217 = vsel %vm3179, %v3152, %v2226
  %v3218 = vsel %vm3179, %v3153, %v2228
  %v3219 = vsel %vm3179, %v3154, %v2230
  %v3220 = vsel %vm3179, %v3155, %v2232
  %v3221 = vsel %vm3179, %v3156, %v2234
  %v3222 = vsel %vm3179, %v3157, %v2236
  %v3223 = vsel %vm3179, %v3158, %v2238
  %v3224 = vsel %vm3179, %v3159, %v2240
  %v3225 = vsel %vm3179, %v3160, %v2242
  %v3226 = vsel %vm3179, %v3161, %v2244
  %v3227 = vsel %vm3179, %v3162, %v2246
  %v3228 = vsel %vm3179, %v3163, %v2248
  %v3229 = vsel %vm3179, %v3164, %v2250
  %v3230 = vsel %vm3179, %v3165, %v2252
  %v3231 = vsel %vm3179, %v3166, %v2254
  %v3232 = vsel %vm3179, %v3167, %v2256
  %v3233 = vsel %vm3179, %v3168, %v2258
  %v3234 = vsel %vm3179, %v3169, %v2260
  %v3235 = vsel %vm3179, %v3170, %v2262
  %v3236 = vsel %vm3179, %v3171, %v2264
  %v3237 = vsel %vm3179, %v3172, %v2266
  %v3238 = vsel %vm3179, %v3173, %v2268
  %v3239 = vsel %vm3179, %v3174, %v2270
  %v3240 = vsel %vm3179, %v3175, %v2272
  %v3241 = vsel %vm3179, %v3176, %v2274
  %v3242 = vsel %vm3179, %v3177, %v2276
  %v3243 = vsel %vm3179, %v3178, %v2278
  %vm3244 = vcmask 228352
  %v3245 = vsel %vm3244, %v3180, %v2408
  %v3246 = vsel %vm3244, %v3181, %v2410
  %v3247 = vsel %vm3244, %v3182, %v2412
  %v3248 = vsel %vm3244, %v3183, %v2414
  %v3249 = vsel %vm3244, %v3184, %v2416
  %v3250 = vsel %vm3244, %v3185, %v2418
  %v3251 = vsel %vm3244, %v3186, %v2420
  %v3252 = vsel %vm3244, %v3187, %v2422
  %v3253 = vsel %vm3244, %v3188, %v2424
  %v3254 = vsel %vm3244, %v3189, %v2426
  %v3255 = vsel %vm3244, %v3190, %v2428
  %v3256 = vsel %vm3244, %v3191, %v2430
  %v3257 = vsel %vm3244, %v3192, %v2432
  %v3258 = vsel %vm3244, %v3193, %v2434
  %v3259 = vsel %vm3244, %v3194, %v2436
  %v3260 = vsel %vm3244, %v3195, %v2438
  %v3261 = vsel %vm3244, %v3196, %v2440
  %v3262 = vsel %vm3244, %v3197, %v2442
  %v3263 = vsel %vm3244, %v3198, %v2444
  %v3264 = vsel %vm3244, %v3199, %v2446
  %v3265 = vsel %vm3244, %v3200, %v2448
  %v3266 = vsel %vm3244, %v3201, %v2450
  %v3267 = vsel %vm3244, %v3202, %v2452
  %v3268 = vsel %vm3244, %v3203, %v2454
  %v3269 = vsel %vm3244, %v3204, %v2456
  %v3270 = vsel %vm3244, %v3205, %v2458
  %v3271 = vsel %vm3244, %v3206, %v2460
  %v3272 = vsel %vm3244, %v3207, %v2462
  %v3273 = vsel %vm3244, %v3208, %v2464
  %v3274 = vsel %vm3244, %v3209, %v2466
  %v3275 = vsel %vm3244, %v3210, %v2468
  %v3276 = vsel %vm3244, %v3211, %v2470
  %v3277 = vsel %vm3244, %v3212, %v2472
  %v3278 = vsel %vm3244, %v3213, %v2474
  %v3279 = vsel %vm3244, %v3214, %v2476
  %v3280 = vsel %vm3244, %v3215, %v2478
  %v3281 = vsel %vm3244, %v3216, %v2480
  %v3282 = vsel %vm3244, %v3217, %v2482
  %v3283 = vsel %vm3244, %v3218, %v2484
  %v3284 = vsel %vm3244, %v3219, %v2486
  %v3285 = vsel %vm3244, %v3220, %v2488
  %v3286 = vsel %vm3244, %v3221, %v2490
  %v3287 = vsel %vm3244, %v3222, %v2492
  %v3288 = vsel %vm3244, %v3223, %v2494
  %v3289 = vsel %vm3244, %v3224, %v2496
  %v3290 = vsel %vm3244, %v3225, %v2498
  %v3291 = vsel %vm3244, %v3226, %v2500
  %v3292 = vsel %vm3244, %v3227, %v2502
  %v3293 = vsel %vm3244, %v3228, %v2504
  %v3294 = vsel %vm3244, %v3229, %v2506
  %v3295 = vsel %vm3244, %v3230, %v2508
  %v3296 = vsel %vm3244, %v3231, %v2510
  %v3297 = vsel %vm3244, %v3232, %v2512
  %v3298 = vsel %vm3244, %v3233, %v2514
  %v3299 = vsel %vm3244, %v3234, %v2516
  %v3300 = vsel %vm3244, %v3235, %v2518
  %v3301 = vsel %vm3244, %v3236, %v2520
  %v3302 = vsel %vm3244, %v3237, %v2522
  %v3303 = vsel %vm3244, %v3238, %v2524
  %v3304 = vsel %vm3244, %v3239, %v2526
  %v3305 = vsel %vm3244, %v3240, %v2528
  %v3306 = vsel %vm3244, %v3241, %v2530
  %v3307 = vsel %vm3244, %v3242, %v2532
  %v3308 = vsel %vm3244, %v3243, %v2534
  %vm3309 = vcmask 261120
  %v3310 = vsel %vm3309, %v3245, %v2664
  %v3311 = vsel %vm3309, %v3246, %v2666
  %v3312 = vsel %vm3309, %v3247, %v2668
  %v3313 = vsel %vm3309, %v3248, %v2670
  %v3314 = vsel %vm3309, %v3249, %v2672
  %v3315 = vsel %vm3309, %v3250, %v2674
  %v3316 = vsel %vm3309, %v3251, %v2676
  %v3317 = vsel %vm3309, %v3252, %v2678
  %v3318 = vsel %vm3309, %v3253, %v2680
  %v3319 = vsel %vm3309, %v3254, %v2682
  %v3320 = vsel %vm3309, %v3255, %v2684
  %v3321 = vsel %vm3309, %v3256, %v2686
  %v3322 = vsel %vm3309, %v3257, %v2688
  %v3323 = vsel %vm3309, %v3258, %v2690
  %v3324 = vsel %vm3309, %v3259, %v2692
  %v3325 = vsel %vm3309, %v3260, %v2694
  %v3326 = vsel %vm3309, %v3261, %v2696
  %v3327 = vsel %vm3309, %v3262, %v2698
  %v3328 = vsel %vm3309, %v3263, %v2700
  %v3329 = vsel %vm3309, %v3264, %v2702
  %v3330 = vsel %vm3309, %v3265, %v2704
  %v3331 = vsel %vm3309, %v3266, %v2706
  %v3332 = vsel %vm3309, %v3267, %v2708
  %v3333 = vsel %vm3309, %v3268, %v2710
  %v3334 = vsel %vm3309, %v3269, %v2712
  %v3335 = vsel %vm3309, %v3270, %v2714
  %v3336 = vsel %vm3309, %v3271, %v2716
  %v3337 = vsel %vm3309, %v3272, %v2718
  %v3338 = vsel %vm3309, %v3273, %v2720
  %v3339 = vsel %vm3309, %v3274, %v2722
  %v3340 = vsel %vm3309, %v3275, %v2724
  %v3341 = vsel %vm3309, %v3276, %v2726
  %v3342 = vsel %vm3309, %v3277, %v2728
  %v3343 = vsel %vm3309, %v3278, %v2730
  %v3344 = vsel %vm3309, %v3279, %v2732
  %v3345 = vsel %vm3309, %v3280, %v2734
  %v3346 = vsel %vm3309, %v3281, %v2736
  %v3347 = vsel %vm3309, %v3282, %v2738
  %v3348 = vsel %vm3309, %v3283, %v2740
  %v3349 = vsel %vm3309, %v3284, %v2742
  %v3350 = vsel %vm3309, %v3285, %v2744
  %v3351 = vsel %vm3309, %v3286, %v2746
  %v3352 = vsel %vm3309, %v3287, %v2748
  %v3353 = vsel %vm3309, %v3288, %v2750
  %v3354 = vsel %vm3309, %v3289, %v2752
  %v3355 = vsel %vm3309, %v3290, %v2754
  %v3356 = vsel %vm3309, %v3291, %v2756
  %v3357 = vsel %vm3309, %v3292, %v2758
  %v3358 = vsel %vm3309, %v3293, %v2760
  %v3359 = vsel %vm3309, %v3294, %v2762
  %v3360 = vsel %vm3309, %v3295, %v2764
  %v3361 = vsel %vm3309, %v3296, %v2766
  %v3362 = vsel %vm3309, %v3297, %v2768
  %v3363 = vsel %vm3309, %v3298, %v2770
  %v3364 = vsel %vm3309, %v3299, %v2772
  %v3365 = vsel %vm3309, %v3300, %v2774
  %v3366 = vsel %vm3309, %v3301, %v2776
  %v3367 = vsel %vm3309, %v3302, %v2778
  %v3368 = vsel %vm3309, %v3303, %v2780
  %v3369 = vsel %vm3309, %v3304, %v2782
  %v3370 = vsel %vm3309, %v3305, %v2784
  %v3371 = vsel %vm3309, %v3306, %v2786
  %v3372 = vsel %vm3309, %v3307, %v2788
  %v3373 = vsel %vm3309, %v3308, %v2790
  %v3374 = vpack.c.bf16 %v3311, %v3310
  %v3375 = vpack.c.bf16 %v3313, %v3312
  %v3376 = vpack.c.bf16 %v3315, %v3314
  %v3377 = vpack.c.bf16 %v3317, %v3316
  %v3378 = vpack.c.bf16 %v3319, %v3318
  %v3379 = vpack.c.bf16 %v3321, %v3320
  %v3380 = vpack.c.bf16 %v3323, %v3322
  %v3381 = vpack.c.bf16 %v3325, %v3324
  %v3382 = vpack.c.bf16 %v3327, %v3326
  %v3383 = vpack.c.bf16 %v3329, %v3328
  %v3384 = vpack.c.bf16 %v3331, %v3330
  %v3385 = vpack.c.bf16 %v3333, %v3332
  %v3386 = vpack.c.bf16 %v3335, %v3334
  %v3387 = vpack.c.bf16 %v3337, %v3336
  %v3388 = vpack.c.bf16 %v3339, %v3338
  %v3389 = vpack.c.bf16 %v3341, %v3340
  %v3390 = vpack.c.bf16 %v3343, %v3342
  %v3391 = vpack.c.bf16 %v3345, %v3344
  %v3392 = vpack.c.bf16 %v3347, %v3346
  %v3393 = vpack.c.bf16 %v3349, %v3348
  %v3394 = vpack.c.bf16 %v3351, %v3350
  %v3395 = vpack.c.bf16 %v3353, %v3352
  %v3396 = vpack.c.bf16 %v3355, %v3354
  %v3397 = vpack.c.bf16 %v3357, %v3356
  %v3398 = vpack.c.bf16 %v3359, %v3358
  %v3399 = vpack.c.bf16 %v3361, %v3360
  %v3400 = vpack.c.bf16 %v3363, %v3362
  %v3401 = vpack.c.bf16 %v3365, %v3364
  %v3402 = vpack.c.bf16 %v3367, %v3366
  %v3403 = vpack.c.bf16 %v3369, %v3368
  %v3404 = vpack.c.bf16 %v3371, %v3370
  %v3405 = vpack.c.bf16 %v3373, %v3372
  %v3406 = vld [vmem:[%s1] sm:$0xf]
  %v3407 = vld [vmem:[%s1 + $0x4] sm:$0xf]
  %v3408 = vld [vmem:[%s1 + $0x8] sm:$0xf]
  %v3409 = vld [vmem:[%s1 + $0xc] sm:$0xf]
  %v3410 = vld [vmem:[%s1 + $0x10] sm:$0x3]
  %v3411 = vld [vmem:[%s2] sm:$0x1]
  %v3413 = vlaneseq
  %v3414 = vshrl.u32 %v3413, 7
  %v3415 = vsub.s32 0, %v3414
  %v3416 = vrot.slane %v3411, %v3415
  %v3423 = vunpack.c.l.b16 %v3406
  %v3424 = vunpack.c.l.b16 %v3407
  %v3425 = vunpack.c.l.b16 %v3408
  %v3426 = vunpack.c.l.b16 %v3409
  %v3427 = vunpack.c.l.b16 %v3410
  %v3428 = vpack.c.b16 %v3424, %v3423
  %v3429 = vpack.c.b16 %v3426, %v3425
  %v3430 = vpack.c.b16 %v3427, %v3427
  %vm3433 = vcmask 293888
  %v3435 = vsel %vm3433, %v3374, 0
  %v3438 = vsel %vm3433, %v3375, 0
  %v3441 = vsel %vm3433, %v3376, 0
  %v3444 = vsel %vm3433, %v3377, 0
  %v3447 = vsel %vm3433, %v3378, 0
  %v3450 = vsel %vm3433, %v3379, 0
  %v3453 = vsel %vm3433, %v3380, 0
  %v3456 = vsel %vm3433, %v3381, 0
  %v3459 = vsel %vm3433, %v3382, 0
  %v3462 = vsel %vm3433, %v3383, 0
  %v3465 = vsel %vm3433, %v3384, 0
  %v3468 = vsel %vm3433, %v3385, 0
  %v3471 = vsel %vm3433, %v3386, 0
  %v3474 = vsel %vm3433, %v3387, 0
  %v3477 = vsel %vm3433, %v3388, 0
  %v3480 = vsel %vm3433, %v3389, 0
  %v3483 = vsel %vm3433, %v3390, 0
  %v3486 = vsel %vm3433, %v3391, 0
  %v3489 = vsel %vm3433, %v3392, 0
  %v3492 = vsel %vm3433, %v3393, 0
  %v3495 = vsel %vm3433, %v3394, 0
  %v3498 = vsel %vm3433, %v3395, 0
  %v3501 = vsel %vm3433, %v3396, 0
  %v3504 = vsel %vm3433, %v3397, 0
  %v3507 = vsel %vm3433, %v3398, 0
  %v3510 = vsel %vm3433, %v3399, 0
  %v3513 = vsel %vm3433, %v3400, 0
  %v3516 = vsel %vm3433, %v3401, 0
  %v3519 = vsel %vm3433, %v3402, 0
  %v3522 = vsel %vm3433, %v3403, 0
  %v3525 = vsel %vm3433, %v3404, 0
  %v3528 = vsel %vm3433, %v3405, 0
  %vm3530 = vcmask 1041408
  %v3532 = vsel %vm3530, %v3430, 0
  %3534 = vmatprep.subr.bf16.mxu0 0
  %3535 = vmatpush1.bf16.msra.mxu0 %v3428
  %3536 = vmatprep.subr.bf16.mxu0 0
  %3537 = vmatpush1.bf16.msra.mxu0 %v3429
  %3538 = vmatprep.subr.bf16.mxu0 0
  %3539 = vmatpush1.bf16.msra.mxu0 %v3532
  %3540 = vmatprep.subr.bf16.mxu0 0
  %3541 = vmatpush1.bf16.msra.mxu0 0
  %3542 = vmatprep.subr.bf16.mxu0 0
  %3543 = vmatpush1.bf16.msra.mxu0 0
  %3544 = vmatprep.subr.bf16.mxu0 0
  %3545 = vmatpush1.bf16.msra.mxu0 0
  %3546 = vmatprep.subr.bf16.mxu0 0
  %3547 = vmatpush1.bf16.msra.mxu0 0
  %3548 = vmatprep.subr.bf16.mxu0 0
  %3549 = vmatpush1.bf16.msra.mxu0 0
  %3550 = vmatprep.subr.bf16.mxu0 0
  %3551 = vmatpush1.bf16.msra.mxu0 0
  %3552 = vmatprep.subr.bf16.mxu0 0
  %3553 = vmatpush1.bf16.msra.mxu0 0
  %3554 = vmatprep.subr.bf16.mxu0 0
  %3555 = vmatpush1.bf16.msra.mxu0 0
  %3556 = vmatprep.subr.bf16.mxu0 0
  %3557 = vmatpush1.bf16.msra.mxu0 0
  %3558 = vmatprep.subr.bf16.mxu0 0
  %3559 = vmatpush1.bf16.msra.mxu0 0
  %3560 = vmatprep.subr.bf16.mxu0 0
  %3561 = vmatpush1.bf16.msra.mxu0 0
  %3562 = vmatprep.subr.bf16.mxu0 0
  %3563 = vmatpush1.bf16.msra.mxu0 0
  %3564 = vmatprep.subr.bf16.mxu0 0
  %3565 = vmatpush1.bf16.msra.mxu0 0
  %3566 = vmatprep.mubr.bf16.mxu0 0
  %3567 = vmatmul.mubr.bf16.gmra.mrb[0].mxu0 %v3435
  %v3568 = vpop.f32.mrb[0].mxu0
  %v3569 = vadd.f32 %v3416, %v3568
  %v3570 = vpop.f32.mrb[0].mxu0
  %v3571 = vpop.f32.mrb[0].mxu0
  %v3572 = vadd.f32 %v3416, %v3571
  %v3573 = vpop.f32.mrb[0].mxu0
  %3574 = vmatprep.mubr.bf16.mxu0 0
  %3575 = vmatmul.mubr.bf16.gmra.mrb[0].mxu0 %v3438
  %v3576 = vpop.f32.mrb[0].mxu0
  %v3577 = vadd.f32 %v3416, %v3576
  %v3578 = vpop.f32.mrb[0].mxu0
  %v3579 = vpop.f32.mrb[0].mxu0
  %v3580 = vadd.f32 %v3416, %v3579
  %v3581 = vpop.f32.mrb[0].mxu0
  %3582 = vmatprep.mubr.bf16.mxu0 0
  %3583 = vmatmul.mubr.bf16.gmra.mrb[0].mxu0 %v3441
  %v3584 = vpop.f32.mrb[0].mxu0
  %v3585 = vadd.f32 %v3416, %v3584
  %v3586 = vpop.f32.mrb[0].mxu0
  %v3587 = vpop.f32.mrb[0].mxu0
  %v3588 = vadd.f32 %v3416, %v3587
  %v3589 = vpop.f32.mrb[0].mxu0
  %3590 = vmatprep.mubr.bf16.mxu0 0
  %3591 = vmatmul.mubr.bf16.gmra.mrb[0].mxu0 %v3444
  %v3592 = vpop.f32.mrb[0].mxu0
  %v3593 = vadd.f32 %v3416, %v3592
  %v3594 = vpop.f32.mrb[0].mxu0
  %v3595 = vpop.f32.mrb[0].mxu0
  %v3596 = vadd.f32 %v3416, %v3595
  %v3597 = vpop.f32.mrb[0].mxu0
  %3598 = vmatprep.mubr.bf16.mxu0 0
  %3599 = vmatmul.mubr.bf16.gmra.mrb[0].mxu0 %v3447
  %v3600 = vpop.f32.mrb[0].mxu0
  %v3601 = vadd.f32 %v3416, %v3600
  %v3602 = vpop.f32.mrb[0].mxu0
  %v3603 = vpop.f32.mrb[0].mxu0
  %v3604 = vadd.f32 %v3416, %v3603
  %v3605 = vpop.f32.mrb[0].mxu0
  %3606 = vmatprep.mubr.bf16.mxu0 0
  %3607 = vmatmul.mubr.bf16.gmra.mrb[0].mxu0 %v3450
  %v3608 = vpop.f32.mrb[0].mxu0
  %v3609 = vadd.f32 %v3416, %v3608
  %v3610 = vpop.f32.mrb[0].mxu0
  %v3611 = vpop.f32.mrb[0].mxu0
  %v3612 = vadd.f32 %v3416, %v3611
  %v3613 = vpop.f32.mrb[0].mxu0
  %3614 = vmatprep.mubr.bf16.mxu0 0
  %3615 = vmatmul.mubr.bf16.gmra.mrb[0].mxu0 %v3453
  %v3616 = vpop.f32.mrb[0].mxu0
  %v3617 = vadd.f32 %v3416, %v3616
  %v3618 = vpop.f32.mrb[0].mxu0
  %v3619 = vpop.f32.mrb[0].mxu0
  %v3620 = vadd.f32 %v3416, %v3619
  %v3621 = vpop.f32.mrb[0].mxu0
  %3622 = vmatprep.mubr.bf16.mxu0 0
  %3623 = vmatmul.mubr.bf16.gmra.mrb[0].mxu0 %v3456
  %v3624 = vpop.f32.mrb[0].mxu0
  %v3625 = vadd.f32 %v3416, %v3624
  %v3626 = vpop.f32.mrb[0].mxu0
  %v3627 = vpop.f32.mrb[0].mxu0
  %v3628 = vadd.f32 %v3416, %v3627
  %v3629 = vpop.f32.mrb[0].mxu0
  %3630 = vmatprep.mubr.bf16.mxu0 0
  %3631 = vmatmul.mubr.bf16.gmra.mrb[0].mxu0 %v3459
  %v3632 = vpop.f32.mrb[0].mxu0
  %v3633 = vadd.f32 %v3416, %v3632
  %v3634 = vpop.f32.mrb[0].mxu0
  %v3635 = vpop.f32.mrb[0].mxu0
  %v3636 = vadd.f32 %v3416, %v3635
  %v3637 = vpop.f32.mrb[0].mxu0
  %3638 = vmatprep.mubr.bf16.mxu0 0
  %3639 = vmatmul.mubr.bf16.gmra.mrb[0].mxu0 %v3462
  %v3640 = vpop.f32.mrb[0].mxu0
  %v3641 = vadd.f32 %v3416, %v3640
  %v3642 = vpop.f32.mrb[0].mxu0
  %v3643 = vpop.f32.mrb[0].mxu0
  %v3644 = vadd.f32 %v3416, %v3643
  %v3645 = vpop.f32.mrb[0].mxu0
  %3646 = vmatprep.mubr.bf16.mxu0 0
  %3647 = vmatmul.mubr.bf16.gmra.mrb[0].mxu0 %v3465
  %v3648 = vpop.f32.mrb[0].mxu0
  %v3649 = vadd.f32 %v3416, %v3648
  %v3650 = vpop.f32.mrb[0].mxu0
  %v3651 = vpop.f32.mrb[0].mxu0
  %v3652 = vadd.f32 %v3416, %v3651
  %v3653 = vpop.f32.mrb[0].mxu0
  %3654 = vmatprep.mubr.bf16.mxu0 0
  %3655 = vmatmul.mubr.bf16.gmra.mrb[0].mxu0 %v3468
  %v3656 = vpop.f32.mrb[0].mxu0
  %v3657 = vadd.f32 %v3416, %v3656
  %v3658 = vpop.f32.mrb[0].mxu0
  %v3659 = vpop.f32.mrb[0].mxu0
  %v3660 = vadd.f32 %v3416, %v3659
  %v3661 = vpop.f32.mrb[0].mxu0
  %3662 = vmatprep.mubr.bf16.mxu0 0
  %3663 = vmatmul.mubr.bf16.gmra.mrb[0].mxu0 %v3471
  %v3664 = vpop.f32.mrb[0].mxu0
  %v3665 = vadd.f32 %v3416, %v3664
  %v3666 = vpop.f32.mrb[0].mxu0
  %v3667 = vpop.f32.mrb[0].mxu0
  %v3668 = vadd.f32 %v3416, %v3667
  %v3669 = vpop.f32.mrb[0].mxu0
  %3670 = vmatprep.mubr.bf16.mxu0 0
  %3671 = vmatmul.mubr.bf16.gmra.mrb[0].mxu0 %v3474
  %v3672 = vpop.f32.mrb[0].mxu0
  %v3673 = vadd.f32 %v3416, %v3672
  %v3674 = vpop.f32.mrb[0].mxu0
  %v3675 = vpop.f32.mrb[0].mxu0
  %v3676 = vadd.f32 %v3416, %v3675
  %v3677 = vpop.f32.mrb[0].mxu0
  %3678 = vmatprep.mubr.bf16.mxu0 0
  %3679 = vmatmul.mubr.bf16.gmra.mrb[0].mxu0 %v3477
  %v3680 = vpop.f32.mrb[0].mxu0
  %v3681 = vadd.f32 %v3416, %v3680
  %v3682 = vpop.f32.mrb[0].mxu0
  %v3683 = vpop.f32.mrb[0].mxu0
  %v3684 = vadd.f32 %v3416, %v3683
  %v3685 = vpop.f32.mrb[0].mxu0
  %3686 = vmatprep.mubr.bf16.mxu0 0
  %3687 = vmatmul.mubr.bf16.gmra.mrb[0].mxu0 %v3480
  %v3688 = vpop.f32.mrb[0].mxu0
  %v3689 = vadd.f32 %v3416, %v3688
  %v3690 = vpop.f32.mrb[0].mxu0
  %v3691 = vpop.f32.mrb[0].mxu0
  %v3692 = vadd.f32 %v3416, %v3691
  %v3693 = vpop.f32.mrb[0].mxu0
  %3694 = vmatprep.mubr.bf16.mxu0 0
  %3695 = vmatmul.mubr.bf16.gmra.mrb[0].mxu0 %v3483
  %v3696 = vpop.f32.mrb[0].mxu0
  %v3697 = vadd.f32 %v3416, %v3696
  %v3698 = vpop.f32.mrb[0].mxu0
  %v3699 = vpop.f32.mrb[0].mxu0
  %v3700 = vadd.f32 %v3416, %v3699
  %v3701 = vpop.f32.mrb[0].mxu0
  %3702 = vmatprep.mubr.bf16.mxu0 0
  %3703 = vmatmul.mubr.bf16.gmra.mrb[0].mxu0 %v3486
  %v3704 = vpop.f32.mrb[0].mxu0
  %v3705 = vadd.f32 %v3416, %v3704
  %v3706 = vpop.f32.mrb[0].mxu0
  %v3707 = vpop.f32.mrb[0].mxu0
  %v3708 = vadd.f32 %v3416, %v3707
  %v3709 = vpop.f32.mrb[0].mxu0
  %3710 = vmatprep.mubr.bf16.mxu0 0
  %3711 = vmatmul.mubr.bf16.gmra.mrb[0].mxu0 %v3489
  %v3712 = vpop.f32.mrb[0].mxu0
  %v3713 = vadd.f32 %v3416, %v3712
  %v3714 = vpop.f32.mrb[0].mxu0
  %v3715 = vpop.f32.mrb[0].mxu0
  %v3716 = vadd.f32 %v3416, %v3715
  %v3717 = vpop.f32.mrb[0].mxu0
  %3718 = vmatprep.mubr.bf16.mxu0 0
  %3719 = vmatmul.mubr.bf16.gmra.mrb[0].mxu0 %v3492
  %v3720 = vpop.f32.mrb[0].mxu0
  %v3721 = vadd.f32 %v3416, %v3720
  %v3722 = vpop.f32.mrb[0].mxu0
  %v3723 = vpop.f32.mrb[0].mxu0
  %v3724 = vadd.f32 %v3416, %v3723
  %v3725 = vpop.f32.mrb[0].mxu0
  %3726 = vmatprep.mubr.bf16.mxu0 0
  %3727 = vmatmul.mubr.bf16.gmra.mrb[0].mxu0 %v3495
  %v3728 = vpop.f32.mrb[0].mxu0
  %v3729 = vadd.f32 %v3416, %v3728
  %v3730 = vpop.f32.mrb[0].mxu0
  %v3731 = vpop.f32.mrb[0].mxu0
  %v3732 = vadd.f32 %v3416, %v3731
  %v3733 = vpop.f32.mrb[0].mxu0
  %3734 = vmatprep.mubr.bf16.mxu0 0
  %3735 = vmatmul.mubr.bf16.gmra.mrb[0].mxu0 %v3498
  %v3736 = vpop.f32.mrb[0].mxu0
  %v3737 = vadd.f32 %v3416, %v3736
  %v3738 = vpop.f32.mrb[0].mxu0
  %v3739 = vpop.f32.mrb[0].mxu0
  %v3740 = vadd.f32 %v3416, %v3739
  %v3741 = vpop.f32.mrb[0].mxu0
  %3742 = vmatprep.mubr.bf16.mxu0 0
  %3743 = vmatmul.mubr.bf16.gmra.mrb[0].mxu0 %v3501
  %v3744 = vpop.f32.mrb[0].mxu0
  %v3745 = vadd.f32 %v3416, %v3744
  %v3746 = vpop.f32.mrb[0].mxu0
  %v3747 = vpop.f32.mrb[0].mxu0
  %v3748 = vadd.f32 %v3416, %v3747
  %v3749 = vpop.f32.mrb[0].mxu0
  %3750 = vmatprep.mubr.bf16.mxu0 0
  %3751 = vmatmul.mubr.bf16.gmra.mrb[0].mxu0 %v3504
  %v3752 = vpop.f32.mrb[0].mxu0
  %v3753 = vadd.f32 %v3416, %v3752
  %v3754 = vpop.f32.mrb[0].mxu0
  %v3755 = vpop.f32.mrb[0].mxu0
  %v3756 = vadd.f32 %v3416, %v3755
  %v3757 = vpop.f32.mrb[0].mxu0
  %3758 = vmatprep.mubr.bf16.mxu0 0
  %3759 = vmatmul.mubr.bf16.gmra.mrb[0].mxu0 %v3507
  %v3760 = vpop.f32.mrb[0].mxu0
  %v3761 = vadd.f32 %v3416, %v3760
  %v3762 = vpop.f32.mrb[0].mxu0
  %v3763 = vpop.f32.mrb[0].mxu0
  %v3764 = vadd.f32 %v3416, %v3763
  %v3765 = vpop.f32.mrb[0].mxu0
  %3766 = vmatprep.mubr.bf16.mxu0 0
  %3767 = vmatmul.mubr.bf16.gmra.mrb[0].mxu0 %v3510
  %v3768 = vpop.f32.mrb[0].mxu0
  %v3769 = vadd.f32 %v3416, %v3768
  %v3770 = vpop.f32.mrb[0].mxu0
  %v3771 = vpop.f32.mrb[0].mxu0
  %v3772 = vadd.f32 %v3416, %v3771
  %v3773 = vpop.f32.mrb[0].mxu0
  %3774 = vmatprep.mubr.bf16.mxu0 0
  %3775 = vmatmul.mubr.bf16.gmra.mrb[0].mxu0 %v3513
  %v3776 = vpop.f32.mrb[0].mxu0
  %v3777 = vadd.f32 %v3416, %v3776
  %v3778 = vpop.f32.mrb[0].mxu0
  %v3779 = vpop.f32.mrb[0].mxu0
  %v3780 = vadd.f32 %v3416, %v3779
  %v3781 = vpop.f32.mrb[0].mxu0
  %3782 = vmatprep.mubr.bf16.mxu0 0
  %3783 = vmatmul.mubr.bf16.gmra.mrb[0].mxu0 %v3516
  %v3784 = vpop.f32.mrb[0].mxu0
  %v3785 = vadd.f32 %v3416, %v3784
  %v3786 = vpop.f32.mrb[0].mxu0
  %v3787 = vpop.f32.mrb[0].mxu0
  %v3788 = vadd.f32 %v3416, %v3787
  %v3789 = vpop.f32.mrb[0].mxu0
  %3790 = vmatprep.mubr.bf16.mxu0 0
  %3791 = vmatmul.mubr.bf16.gmra.mrb[0].mxu0 %v3519
  %v3792 = vpop.f32.mrb[0].mxu0
  %v3793 = vadd.f32 %v3416, %v3792
  %v3794 = vpop.f32.mrb[0].mxu0
  %v3795 = vpop.f32.mrb[0].mxu0
  %v3796 = vadd.f32 %v3416, %v3795
  %v3797 = vpop.f32.mrb[0].mxu0
  %3798 = vmatprep.mubr.bf16.mxu0 0
  %3799 = vmatmul.mubr.bf16.gmra.mrb[0].mxu0 %v3522
  %v3800 = vpop.f32.mrb[0].mxu0
  %v3801 = vadd.f32 %v3416, %v3800
  %v3802 = vpop.f32.mrb[0].mxu0
  %v3803 = vpop.f32.mrb[0].mxu0
  %v3804 = vadd.f32 %v3416, %v3803
  %v3805 = vpop.f32.mrb[0].mxu0
  %3806 = vmatprep.mubr.bf16.mxu0 0
  %3807 = vmatmul.mubr.bf16.gmra.mrb[0].mxu0 %v3525
  %v3808 = vpop.f32.mrb[0].mxu0
  %v3809 = vadd.f32 %v3416, %v3808
  %v3810 = vpop.f32.mrb[0].mxu0
  %v3811 = vpop.f32.mrb[0].mxu0
  %v3812 = vadd.f32 %v3416, %v3811
  %v3813 = vpop.f32.mrb[0].mxu0
  %3814 = vmatprep.mubr.bf16.mxu0 0
  %3815 = vmatmul.mubr.bf16.gmra.mrb[0].mxu0 %v3528
  %v3816 = vpop.f32.mrb[0].mxu0
  %v3817 = vadd.f32 %v3416, %v3816
  %v3818 = vpop.f32.mrb[0].mxu0
  %v3819 = vpop.f32.mrb[0].mxu0
  %v3820 = vadd.f32 %v3416, %v3819
  %v3821 = vpop.f32.mrb[0].mxu0
  %3822 = vdwg.mxu0
  %v3823 = vmax.f32 %v3569, 0.0
  %v3824 = vmax.f32 %v3572, 0.0
  %v3825 = vmax.f32 %v3577, 0.0
  %v3826 = vmax.f32 %v3580, 0.0
  %v3827 = vmax.f32 %v3585, 0.0
  %v3828 = vmax.f32 %v3588, 0.0
  %v3829 = vmax.f32 %v3593, 0.0
  %v3830 = vmax.f32 %v3596, 0.0
  %v3831 = vmax.f32 %v3601, 0.0
  %v3832 = vmax.f32 %v3604, 0.0
  %v3833 = vmax.f32 %v3609, 0.0
  %v3834 = vmax.f32 %v3612, 0.0
  %v3835 = vmax.f32 %v3617, 0.0
  %v3836 = vmax.f32 %v3620, 0.0
  %v3837 = vmax.f32 %v3625, 0.0
  %v3838 = vmax.f32 %v3628, 0.0
  %v3839 = vmax.f32 %v3633, 0.0
  %v3840 = vmax.f32 %v3636, 0.0
  %v3841 = vmax.f32 %v3641, 0.0
  %v3842 = vmax.f32 %v3644, 0.0
  %v3843 = vmax.f32 %v3649, 0.0
  %v3844 = vmax.f32 %v3652, 0.0
  %v3845 = vmax.f32 %v3657, 0.0
  %v3846 = vmax.f32 %v3660, 0.0
  %v3847 = vmax.f32 %v3665, 0.0
  %v3848 = vmax.f32 %v3668, 0.0
  %v3849 = vmax.f32 %v3673, 0.0
  %v3850 = vmax.f32 %v3676, 0.0
  %v3851 = vmax.f32 %v3681, 0.0
  %v3852 = vmax.f32 %v3684, 0.0
  %v3853 = vmax.f32 %v3689, 0.0
  %v3854 = vmax.f32 %v3692, 0.0
  %v3855 = vmax.f32 %v3697, 0.0
  %v3856 = vmax.f32 %v3700, 0.0
  %v3857 = vmax.f32 %v3705, 0.0
  %v3858 = vmax.f32 %v3708, 0.0
  %v3859 = vmax.f32 %v3713, 0.0
  %v3860 = vmax.f32 %v3716, 0.0
  %v3861 = vmax.f32 %v3721, 0.0
  %v3862 = vmax.f32 %v3724, 0.0
  %v3863 = vmax.f32 %v3729, 0.0
  %v3864 = vmax.f32 %v3732, 0.0
  %v3865 = vmax.f32 %v3737, 0.0
  %v3866 = vmax.f32 %v3740, 0.0
  %v3867 = vmax.f32 %v3745, 0.0
  %v3868 = vmax.f32 %v3748, 0.0
  %v3869 = vmax.f32 %v3753, 0.0
  %v3870 = vmax.f32 %v3756, 0.0
  %v3871 = vmax.f32 %v3761, 0.0
  %v3872 = vmax.f32 %v3764, 0.0
  %v3873 = vmax.f32 %v3769, 0.0
  %v3874 = vmax.f32 %v3772, 0.0
  %v3875 = vmax.f32 %v3777, 0.0
  %v3876 = vmax.f32 %v3780, 0.0
  %v3877 = vmax.f32 %v3785, 0.0
  %v3878 = vmax.f32 %v3788, 0.0
  %v3879 = vmax.f32 %v3793, 0.0
  %v3880 = vmax.f32 %v3796, 0.0
  %v3881 = vmax.f32 %v3801, 0.0
  %v3882 = vmax.f32 %v3804, 0.0
  %v3883 = vmax.f32 %v3809, 0.0
  %v3884 = vmax.f32 %v3812, 0.0
  %v3885 = vmax.f32 %v3817, 0.0
  %v3886 = vmax.f32 %v3820, 0.0
  %3887 = vst.msk [vmem:[#allocation3 + $0x7] sm:$0xff] %vm2919, 0.0
  %3888 = vst.msk [vmem:[#allocation3 + $0xf] sm:$0xff] %vm2919, 0.0
  %vm3889 = vcmask 58368
  %3890 = vst.msk [vmem:[#allocation3 + $0x17] sm:$0x3] %vm3889, 0.0
  %3891 = vst.msk [vmem:[#allocation3 + $0x247] sm:$0xff] %vm2919, 0.0
  %3892 = vst.msk [vmem:[#allocation3 + $0x24f] sm:$0xff] %vm2919, 0.0
  %3893 = vst.msk [vmem:[#allocation3 + $0x257] sm:$0x3] %vm3889, 0.0
  %s3894 = scalar_lea.vmem [#allocation3], 544
  %3895 = vst.msk [vmem:[%s3894 + $0x7] sm:$0xff] %vm2919, 0.0
  %3896 = vst.msk [vmem:[%s3894 + $0xf] sm:$0xff] %vm2919, 0.0
  %3897 = vst.msk [vmem:[%s3894 + $0x17] sm:$0x3] %vm3889, 0.0
  %3898 = vst.msk [vmem:[%s3894 + $0x247] sm:$0xff] %vm2919, 0.0
  %3899 = vst.msk [vmem:[%s3894 + $0x24f] sm:$0xff] %vm2919, 0.0
  %3900 = vst.msk [vmem:[%s3894 + $0x257] sm:$0x3] %vm3889, 0.0
  %s3901 = scalar_lea.vmem [#allocation3], 32
  %vm3902 = vcmask 57344
  %3903 = vst.msk [vmem:[%s3901 + $0x7] sm:$0x1] %vm3902, 0.0
  %3904 = vst.msk [vmem:[%s3901 + $0x27] sm:$0x1] %vm3902, 0.0
  %3905 = vst.msk [vmem:[%s3901 + $0x47] sm:$0x1] %vm3902, 0.0
  %3906 = vst.msk [vmem:[%s3901 + $0x67] sm:$0x1] %vm3902, 0.0
  %3907 = vst.msk [vmem:[%s3901 + $0x87] sm:$0x1] %vm3902, 0.0
  %3908 = vst.msk [vmem:[%s3901 + $0xa7] sm:$0x1] %vm3902, 0.0
  %3909 = vst.msk [vmem:[%s3901 + $0xc7] sm:$0x1] %vm3902, 0.0
  %3910 = vst.msk [vmem:[%s3901 + $0xe7] sm:$0x1] %vm3902, 0.0
  %3911 = vst.msk [vmem:[%s3901 + $0x107] sm:$0x1] %vm3902, 0.0
  %3912 = vst.msk [vmem:[%s3901 + $0x127] sm:$0x1] %vm3902, 0.0
  %3913 = vst.msk [vmem:[%s3901 + $0x147] sm:$0x1] %vm3902, 0.0
  %3914 = vst.msk [vmem:[%s3901 + $0x167] sm:$0x1] %vm3902, 0.0
  %3915 = vst.msk [vmem:[%s3901 + $0x187] sm:$0x1] %vm3902, 0.0
  %3916 = vst.msk [vmem:[%s3901 + $0x1a7] sm:$0x1] %vm3902, 0.0
  %3917 = vst.msk [vmem:[%s3901 + $0x1c7] sm:$0x1] %vm3902, 0.0
  %3918 = vst.msk [vmem:[%s3901 + $0x1e7] sm:$0x1] %vm3902, 0.0
  %3919 = vst.msk [vmem:[%s3901 + $0x247] sm:$0x1] %vm3902, 0.0
  %3920 = vst.msk [vmem:[%s3901 + $0x267] sm:$0x1] %vm3902, 0.0
  %3921 = vst.msk [vmem:[%s3901 + $0x287] sm:$0x1] %vm3902, 0.0
  %3922 = vst.msk [vmem:[%s3901 + $0x2a7] sm:$0x1] %vm3902, 0.0
  %3923 = vst.msk [vmem:[%s3901 + $0x2c7] sm:$0x1] %vm3902, 0.0
  %3924 = vst.msk [vmem:[%s3901 + $0x2e7] sm:$0x1] %vm3902, 0.0
  %3925 = vst.msk [vmem:[%s3901 + $0x307] sm:$0x1] %vm3902, 0.0
  %3926 = vst.msk [vmem:[%s3901 + $0x327] sm:$0x1] %vm3902, 0.0
  %3927 = vst.msk [vmem:[%s3901 + $0x347] sm:$0x1] %vm3902, 0.0
  %3928 = vst.msk [vmem:[%s3901 + $0x367] sm:$0x1] %vm3902, 0.0
  %3929 = vst.msk [vmem:[%s3901 + $0x387] sm:$0x1] %vm3902, 0.0
  %3930 = vst.msk [vmem:[%s3901 + $0x3a7] sm:$0x1] %vm3902, 0.0
  %3931 = vst.msk [vmem:[%s3901 + $0x3c7] sm:$0x1] %vm3902, 0.0
  %3932 = vst.msk [vmem:[%s3901 + $0x3e7] sm:$0x1] %vm3902, 0.0
  %3933 = vst.msk [vmem:[%s3901 + $0x407] sm:$0x1] %vm3902, 0.0
  %3934 = vst.msk [vmem:[%s3901 + $0x427] sm:$0x1] %vm3902, 0.0
  %3935 = vst.msk [vmem:[%s3901 + $0x18] sm:$0x1] %vm3902, 0.0
  %3936 = vst.msk [vmem:[%s3901 + $0x38] sm:$0x1] %vm3902, 0.0
  %3937 = vst.msk [vmem:[%s3901 + $0x58] sm:$0x1] %vm3902, 0.0
  %3938 = vst.msk [vmem:[%s3901 + $0x78] sm:$0x1] %vm3902, 0.0
  %3939 = vst.msk [vmem:[%s3901 + $0x98] sm:$0x1] %vm3902, 0.0
  %3940 = vst.msk [vmem:[%s3901 + $0xb8] sm:$0x1] %vm3902, 0.0
  %3941 = vst.msk [vmem:[%s3901 + $0xd8] sm:$0x1] %vm3902, 0.0
  %3942 = vst.msk [vmem:[%s3901 + $0xf8] sm:$0x1] %vm3902, 0.0
  %3943 = vst.msk [vmem:[%s3901 + $0x118] sm:$0x1] %vm3902, 0.0
  %3944 = vst.msk [vmem:[%s3901 + $0x138] sm:$0x1] %vm3902, 0.0
  %3945 = vst.msk [vmem:[%s3901 + $0x158] sm:$0x1] %vm3902, 0.0
  %3946 = vst.msk [vmem:[%s3901 + $0x178] sm:$0x1] %vm3902, 0.0
  %3947 = vst.msk [vmem:[%s3901 + $0x198] sm:$0x1] %vm3902, 0.0
  %3948 = vst.msk [vmem:[%s3901 + $0x1b8] sm:$0x1] %vm3902, 0.0
  %3949 = vst.msk [vmem:[%s3901 + $0x1d8] sm:$0x1] %vm3902, 0.0
  %3950 = vst.msk [vmem:[%s3901 + $0x1f8] sm:$0x1] %vm3902, 0.0
  %3951 = vst.msk [vmem:[%s3901 + $0x258] sm:$0x1] %vm3902, 0.0
  %3952 = vst.msk [vmem:[%s3901 + $0x278] sm:$0x1] %vm3902, 0.0
  %3953 = vst.msk [vmem:[%s3901 + $0x298] sm:$0x1] %vm3902, 0.0
  %3954 = vst.msk [vmem:[%s3901 + $0x2b8] sm:$0x1] %vm3902, 0.0
  %3955 = vst.msk [vmem:[%s3901 + $0x2d8] sm:$0x1] %vm3902, 0.0
  %3956 = vst.msk [vmem:[%s3901 + $0x2f8] sm:$0x1] %vm3902, 0.0
  %3957 = vst.msk [vmem:[%s3901 + $0x318] sm:$0x1] %vm3902, 0.0
  %3958 = vst.msk [vmem:[%s3901 + $0x338] sm:$0x1] %vm3902, 0.0
  %3959 = vst.msk [vmem:[%s3901 + $0x358] sm:$0x1] %vm3902, 0.0
  %3960 = vst.msk [vmem:[%s3901 + $0x378] sm:$0x1] %vm3902, 0.0
  %3961 = vst.msk [vmem:[%s3901 + $0x398] sm:$0x1] %vm3902, 0.0
  %3962 = vst.msk [vmem:[%s3901 + $0x3b8] sm:$0x1] %vm3902, 0.0
  %3963 = vst.msk [vmem:[%s3901 + $0x3d8] sm:$0x1] %vm3902, 0.0
  %3964 = vst.msk [vmem:[%s3901 + $0x3f8] sm:$0x1] %vm3902, 0.0
  %3965 = vst.msk [vmem:[%s3901 + $0x418] sm:$0x1] %vm3902, 0.0
  %3966 = vst.msk [vmem:[%s3901 + $0x438] sm:$0x1] %vm3902, 0.0
  %3967 = vst.msk [vmem:[%s3901 + $0x8] sm:$0xff] %vm2919, %v3823
  %3968 = vst.msk [vmem:[%s3901 + $0x10] sm:$0xff] %vm2919, %v3824
  %3969 = vst.msk [vmem:[%s3901 + $0x28] sm:$0xff] %vm2919, %v3825
  %3970 = vst.msk [vmem:[%s3901 + $0x30] sm:$0xff] %vm2919, %v3826
  %3971 = vst.msk [vmem:[%s3901 + $0x48] sm:$0xff] %vm2919, %v3827
  %3972 = vst.msk [vmem:[%s3901 + $0x50] sm:$0xff] %vm2919, %v3828
  %3973 = vst.msk [vmem:[%s3901 + $0x68] sm:$0xff] %vm2919, %v3829
  %3974 = vst.msk [vmem:[%s3901 + $0x70] sm:$0xff] %vm2919, %v3830
  %3975 = vst.msk [vmem:[%s3901 + $0x88] sm:$0xff] %vm2919, %v3831
  %3976 = vst.msk [vmem:[%s3901 + $0x90] sm:$0xff] %vm2919, %v3832
  %3977 = vst.msk [vmem:[%s3901 + $0xa8] sm:$0xff] %vm2919, %v3833
  %3978 = vst.msk [vmem:[%s3901 + $0xb0] sm:$0xff] %vm2919, %v3834
  %3979 = vst.msk [vmem:[%s3901 + $0xc8] sm:$0xff] %vm2919, %v3835
  %3980 = vst.msk [vmem:[%s3901 + $0xd0] sm:$0xff] %vm2919, %v3836
  %3981 = vst.msk [vmem:[%s3901 + $0xe8] sm:$0xff] %vm2919, %v3837
  %3982 = vst.msk [vmem:[%s3901 + $0xf0] sm:$0xff] %vm2919, %v3838
  %3983 = vst.msk [vmem:[%s3901 + $0x108] sm:$0xff] %vm2919, %v3839
  %3984 = vst.msk [vmem:[%s3901 + $0x110] sm:$0xff] %vm2919, %v3840
  %3985 = vst.msk [vmem:[%s3901 + $0x128] sm:$0xff] %vm2919, %v3841
  %3986 = vst.msk [vmem:[%s3901 + $0x130] sm:$0xff] %vm2919, %v3842
  %3987 = vst.msk [vmem:[%s3901 + $0x148] sm:$0xff] %vm2919, %v3843
  %3988 = vst.msk [vmem:[%s3901 + $0x150] sm:$0xff] %vm2919, %v3844
  %3989 = vst.msk [vmem:[%s3901 + $0x168] sm:$0xff] %vm2919, %v3845
  %3990 = vst.msk [vmem:[%s3901 + $0x170] sm:$0xff] %vm2919, %v3846
  %3991 = vst.msk [vmem:[%s3901 + $0x188] sm:$0xff] %vm2919, %v3847
  %3992 = vst.msk [vmem:[%s3901 + $0x190] sm:$0xff] %vm2919, %v3848
  %3993 = vst.msk [vmem:[%s3901 + $0x1a8] sm:$0xff] %vm2919, %v3849
  %3994 = vst.msk [vmem:[%s3901 + $0x1b0] sm:$0xff] %vm2919, %v3850
  %3995 = vst.msk [vmem:[%s3901 + $0x1c8] sm:$0xff] %vm2919, %v3851
  %3996 = vst.msk [vmem:[%s3901 + $0x1d0] sm:$0xff] %vm2919, %v3852
  %3997 = vst.msk [vmem:[%s3901 + $0x1e8] sm:$0xff] %vm2919, %v3853
  %3998 = vst.msk [vmem:[%s3901 + $0x1f0] sm:$0xff] %vm2919, %v3854
  %3999 = vst.msk [vmem:[%s3901 + $0x248] sm:$0xff] %vm2919, %v3855
  %4000 = vst.msk [vmem:[%s3901 + $0x250] sm:$0xff] %vm2919, %v3856
  %4001 = vst.msk [vmem:[%s3901 + $0x268] sm:$0xff] %vm2919, %v3857
  %4002 = vst.msk [vmem:[%s3901 + $0x270] sm:$0xff] %vm2919, %v3858
  %4003 = vst.msk [vmem:[%s3901 + $0x288] sm:$0xff] %vm2919, %v3859
  %4004 = vst.msk [vmem:[%s3901 + $0x290] sm:$0xff] %vm2919, %v3860
  %4005 = vst.msk [vmem:[%s3901 + $0x2a8] sm:$0xff] %vm2919, %v3861
  %4006 = vst.msk [vmem:[%s3901 + $0x2b0] sm:$0xff] %vm2919, %v3862
  %4007 = vst.msk [vmem:[%s3901 + $0x2c8] sm:$0xff] %vm2919, %v3863
  %4008 = vst.msk [vmem:[%s3901 + $0x2d0] sm:$0xff] %vm2919, %v3864
  %4009 = vst.msk [vmem:[%s3901 + $0x2e8] sm:$0xff] %vm2919, %v3865
  %4010 = vst.msk [vmem:[%s3901 + $0x2f0] sm:$0xff] %vm2919, %v3866
  %4011 = vst.msk [vmem:[%s3901 + $0x308] sm:$0xff] %vm2919, %v3867
  %4012 = vst.msk [vmem:[%s3901 + $0x310] sm:$0xff] %vm2919, %v3868
  %4013 = vst.msk [vmem:[%s3901 + $0x328] sm:$0xff] %vm2919, %v3869
  %4014 = vst.msk [vmem:[%s3901 + $0x330] sm:$0xff] %vm2919, %v3870
  %4015 = vst.msk [vmem:[%s3901 + $0x348] sm:$0xff] %vm2919, %v3871
  %4016 = vst.msk [vmem:[%s3901 + $0x350] sm:$0xff] %vm2919, %v3872
  %4017 = vst.msk [vmem:[%s3901 + $0x368] sm:$0xff] %vm2919, %v3873
  %4018 = vst.msk [vmem:[%s3901 + $0x370] sm:$0xff] %vm2919, %v3874
  %4019 = vst.msk [vmem:[%s3901 + $0x388] sm:$0xff] %vm2919, %v3875
  %4020 = vst.msk [vmem:[%s3901 + $0x390] sm:$0xff] %vm2919, %v3876
  %4021 = vst.msk [vmem:[%s3901 + $0x3a8] sm:$0xff] %vm2919, %v3877
  %4022 = vst.msk [vmem:[%s3901 + $0x3b0] sm:$0xff] %vm2919, %v3878
  %4023 = vst.msk [vmem:[%s3901 + $0x3c8] sm:$0xff] %vm2919, %v3879
  %4024 = vst.msk [vmem:[%s3901 + $0x3d0] sm:$0xff] %vm2919, %v3880
  %4025 = vst.msk [vmem:[%s3901 + $0x3e8] sm:$0xff] %vm2919, %v3881
  %4026 = vst.msk [vmem:[%s3901 + $0x3f0] sm:$0xff] %vm2919, %v3882
  %4027 = vst.msk [vmem:[%s3901 + $0x408] sm:$0xff] %vm2919, %v3883
  %4028 = vst.msk [vmem:[%s3901 + $0x410] sm:$0xff] %vm2919, %v3884
  %4029 = vst.msk [vmem:[%s3901 + $0x428] sm:$0xff] %vm2919, %v3885
  %4030 = vst.msk [vmem:[%s3901 + $0x430] sm:$0xff] %vm2919, %v3886
  %v4031 = vld [vmem:[#allocation3 + $0x7] sm:$0xff]
  %v4032 = vld [vmem:[#allocation3 + $0xf] sm:$0xff]
  %v4033 = vld [vmem:[#allocation3 + $0x27] sm:$0xff]
  %v4034 = vld [vmem:[#allocation3 + $0x2f] sm:$0xff]
  %v4035 = vld [vmem:[#allocation3 + $0x47] sm:$0xff]
  %v4036 = vld [vmem:[#allocation3 + $0x4f] sm:$0xff]
  %v4037 = vld [vmem:[#allocation3 + $0x67] sm:$0xff]
  %v4038 = vld [vmem:[#allocation3 + $0x6f] sm:$0xff]
  %v4039 = vld [vmem:[#allocation3 + $0x87] sm:$0xff]
  %v4040 = vld [vmem:[#allocation3 + $0x8f] sm:$0xff]
  %v4041 = vld [vmem:[#allocation3 + $0xa7] sm:$0xff]
  %v4042 = vld [vmem:[#allocation3 + $0xaf] sm:$0xff]
  %v4043 = vld [vmem:[#allocation3 + $0xc7] sm:$0xff]
  %v4044 = vld [vmem:[#allocation3 + $0xcf] sm:$0xff]
  %v4045 = vld [vmem:[#allocation3 + $0xe7] sm:$0xff]
  %v4046 = vld [vmem:[#allocation3 + $0xef] sm:$0xff]
  %v4047 = vld [vmem:[#allocation3 + $0x107] sm:$0xff]
  %v4048 = vld [vmem:[#allocation3 + $0x10f] sm:$0xff]
  %v4049 = vld [vmem:[#allocation3 + $0x127] sm:$0xff]
  %v4050 = vld [vmem:[#allocation3 + $0x12f] sm:$0xff]
  %v4051 = vld [vmem:[#allocation3 + $0x147] sm:$0xff]
  %v4052 = vld [vmem:[#allocation3 + $0x14f] sm:$0xff]
  %v4053 = vld [vmem:[#allocation3 + $0x167] sm:$0xff]
  %v4054 = vld [vmem:[#allocation3 + $0x16f] sm:$0xff]
  %v4055 = vld [vmem:[#allocation3 + $0x187] sm:$0xff]
  %v4056 = vld [vmem:[#allocation3 + $0x18f] sm:$0xff]
  %v4057 = vld [vmem:[#allocation3 + $0x1a7] sm:$0xff]
  %v4058 = vld [vmem:[#allocation3 + $0x1af] sm:$0xff]
  %v4059 = vld [vmem:[#allocation3 + $0x1c7] sm:$0xff]
  %v4060 = vld [vmem:[#allocation3 + $0x1cf] sm:$0xff]
  %v4061 = vld [vmem:[#allocation3 + $0x1e7] sm:$0xff]
  %v4062 = vld [vmem:[#allocation3 + $0x1ef] sm:$0xff]
  %v4063 = vld [vmem:[#allocation3 + $0x247] sm:$0xff]
  %v4064 = vld [vmem:[#allocation3 + $0x24f] sm:$0xff]
  %v4065 = vld [vmem:[#allocation3 + $0x267] sm:$0xff]
  %v4066 = vld [vmem:[#allocation3 + $0x26f] sm:$0xff]
  %v4067 = vld [vmem:[#allocation3 + $0x287] sm:$0xff]
  %v4068 = vld [vmem:[#allocation3 + $0x28f] sm:$0xff]
  %v4069 = vld [vmem:[#allocation3 + $0x2a7] sm:$0xff]
  %v4070 = vld [vmem:[#allocation3 + $0x2af] sm:$0xff]
  %v4071 = vld [vmem:[#allocation3 + $0x2c7] sm:$0xff]
  %v4072 = vld [vmem:[#allocation3 + $0x2cf] sm:$0xff]
  %v4073 = vld [vmem:[#allocation3 + $0x2e7] sm:$0xff]
  %v4074 = vld [vmem:[#allocation3 + $0x2ef] sm:$0xff]
  %v4075 = vld [vmem:[#allocation3 + $0x307] sm:$0xff]
  %v4076 = vld [vmem:[#allocation3 + $0x30f] sm:$0xff]
  %v4077 = vld [vmem:[#allocation3 + $0x327] sm:$0xff]
  %v4078 = vld [vmem:[#allocation3 + $0x32f] sm:$0xff]
  %v4079 = vld [vmem:[#allocation3 + $0x347] sm:$0xff]
  %v4080 = vld [vmem:[#allocation3 + $0x34f] sm:$0xff]
  %v4081 = vld [vmem:[#allocation3 + $0x367] sm:$0xff]
  %v4082 = vld [vmem:[#allocation3 + $0x36f] sm:$0xff]
  %v4083 = vld [vmem:[#allocation3 + $0x387] sm:$0xff]
  %v4084 = vld [vmem:[#allocation3 + $0x38f] sm:$0xff]
  %v4085 = vld [vmem:[#allocation3 + $0x3a7] sm:$0xff]
  %v4086 = vld [vmem:[#allocation3 + $0x3af] sm:$0xff]
  %v4087 = vld [vmem:[#allocation3 + $0x3c7] sm:$0xff]
  %v4088 = vld [vmem:[#allocation3 + $0x3cf] sm:$0xff]
  %v4089 = vld [vmem:[#allocation3 + $0x3e7] sm:$0xff]
  %v4090 = vld [vmem:[#allocation3 + $0x3ef] sm:$0xff]
  %v4091 = vld [vmem:[#allocation3 + $0x407] sm:$0xff]
  %v4092 = vld [vmem:[#allocation3 + $0x40f] sm:$0xff]
  %v4093 = vld [vmem:[#allocation3 + $0x427] sm:$0xff]
  %v4094 = vld [vmem:[#allocation3 + $0x42f] sm:$0xff]
  %v4095 = vld [vmem:[#allocation3 + $0x8] sm:$0xff]
  %v4096 = vld [vmem:[#allocation3 + $0x10] sm:$0xff]
  %v4097 = vld [vmem:[#allocation3 + $0x28] sm:$0xff]
  %v4098 = vld [vmem:[#allocation3 + $0x30] sm:$0xff]
  %v4099 = vld [vmem:[#allocation3 + $0x48] sm:$0xff]
  %v4100 = vld [vmem:[#allocation3 + $0x50] sm:$0xff]
  %v4101 = vld [vmem:[#allocation3 + $0x68] sm:$0xff]
  %v4102 = vld [vmem:[#allocation3 + $0x70] sm:$0xff]
  %v4103 = vld [vmem:[#allocation3 + $0x88] sm:$0xff]
  %v4104 = vld [vmem:[#allocation3 + $0x90] sm:$0xff]
  %v4105 = vld [vmem:[#allocation3 + $0xa8] sm:$0xff]
  %v4106 = vld [vmem:[#allocation3 + $0xb0] sm:$0xff]
  %v4107 = vld [vmem:[#allocation3 + $0xc8] sm:$0xff]
  %v4108 = vld [vmem:[#allocation3 + $0xd0] sm:$0xff]
  %v4109 = vld [vmem:[#allocation3 + $0xe8] sm:$0xff]
  %v4110 = vld [vmem:[#allocation3 + $0xf0] sm:$0xff]
  %v4111 = vld [vmem:[#allocation3 + $0x108] sm:$0xff]
  %v4112 = vld [vmem:[#allocation3 + $0x110] sm:$0xff]
  %v4113 = vld [vmem:[#allocation3 + $0x128] sm:$0xff]
  %v4114 = vld [vmem:[#allocation3 + $0x130] sm:$0xff]
  %v4115 = vld [vmem:[#allocation3 + $0x148] sm:$0xff]
  %v4116 = vld [vmem:[#allocation3 + $0x150] sm:$0xff]
  %v4117 = vld [vmem:[#allocation3 + $0x168] sm:$0xff]
  %v4118 = vld [vmem:[#allocation3 + $0x170] sm:$0xff]
  %v4119 = vld [vmem:[#allocation3 + $0x188] sm:$0xff]
  %v4120 = vld [vmem:[#allocation3 + $0x190] sm:$0xff]
  %v4121 = vld [vmem:[#allocation3 + $0x1a8] sm:$0xff]
  %v4122 = vld [vmem:[#allocation3 + $0x1b0] sm:$0xff]
  %v4123 = vld [vmem:[#allocation3 + $0x1c8] sm:$0xff]
  %v4124 = vld [vmem:[#allocation3 + $0x1d0] sm:$0xff]
  %v4125 = vld [vmem:[#allocation3 + $0x1e8] sm:$0xff]
  %v4126 = vld [vmem:[#allocation3 + $0x1f0] sm:$0xff]
  %v4127 = vld [vmem:[#allocation3 + $0x248] sm:$0xff]
  %v4128 = vld [vmem:[#allocation3 + $0x250] sm:$0xff]
  %v4129 = vld [vmem:[#allocation3 + $0x268] sm:$0xff]
  %v4130 = vld [vmem:[#allocation3 + $0x270] sm:$0xff]
  %v4131 = vld [vmem:[#allocation3 + $0x288] sm:$0xff]
  %v4132 = vld [vmem:[#allocation3 + $0x290] sm:$0xff]
  %v4133 = vld [vmem:[#allocation3 + $0x2a8] sm:$0xff]
  %v4134 = vld [vmem:[#allocation3 + $0x2b0] sm:$0xff]
  %v4135 = vld [vmem:[#allocation3 + $0x2c8] sm:$0xff]
  %v4136 = vld [vmem:[#allocation3 + $0x2d0] sm:$0xff]
  %v4137 = vld [vmem:[#allocation3 + $0x2e8] sm:$0xff]
  %v4138 = vld [vmem:[#allocation3 + $0x2f0] sm:$0xff]
  %v4139 = vld [vmem:[#allocation3 + $0x308] sm:$0xff]
  %v4140 = vld [vmem:[#allocation3 + $0x310] sm:$0xff]
  %v4141 = vld [vmem:[#allocation3 + $0x328] sm:$0xff]
  %v4142 = vld [vmem:[#allocation3 + $0x330] sm:$0xff]
  %v4143 = vld [vmem:[#allocation3 + $0x348] sm:$0xff]
  %v4144 = vld [vmem:[#allocation3 + $0x350] sm:$0xff]
  %v4145 = vld [vmem:[#allocation3 + $0x368] sm:$0xff]
  %v4146 = vld [vmem:[#allocation3 + $0x370] sm:$0xff]
  %v4147 = vld [vmem:[#allocation3 + $0x388] sm:$0xff]
  %v4148 = vld [vmem:[#allocation3 + $0x390] sm:$0xff]
  %v4149 = vld [vmem:[#allocation3 + $0x3a8] sm:$0xff]
  %v4150 = vld [vmem:[#allocation3 + $0x3b0] sm:$0xff]
  %v4151 = vld [vmem:[#allocation3 + $0x3c8] sm:$0xff]
  %v4152 = vld [vmem:[#allocation3 + $0x3d0] sm:$0xff]
  %v4153 = vld [vmem:[#allocation3 + $0x3e8] sm:$0xff]
  %v4154 = vld [vmem:[#allocation3 + $0x3f0] sm:$0xff]
  %v4155 = vld [vmem:[#allocation3 + $0x408] sm:$0xff]
  %v4156 = vld [vmem:[#allocation3 + $0x410] sm:$0xff]
  %v4157 = vld [vmem:[#allocation3 + $0x428] sm:$0xff]
  %v4158 = vld [vmem:[#allocation3 + $0x430] sm:$0xff]
  %v4159 = vld [vmem:[#allocation3 + $0x9] sm:$0xff]
  %v4160 = vld [vmem:[#allocation3 + $0x11] sm:$0xff]
  %v4161 = vld [vmem:[#allocation3 + $0x29] sm:$0xff]
  %v4162 = vld [vmem:[#allocation3 + $0x31] sm:$0xff]
  %v4163 = vld [vmem:[#allocation3 + $0x49] sm:$0xff]
  %v4164 = vld [vmem:[#allocation3 + $0x51] sm:$0xff]
  %v4165 = vld [vmem:[#allocation3 + $0x69] sm:$0xff]
  %v4166 = vld [vmem:[#allocation3 + $0x71] sm:$0xff]
  %v4167 = vld [vmem:[#allocation3 + $0x89] sm:$0xff]
  %v4168 = vld [vmem:[#allocation3 + $0x91] sm:$0xff]
  %v4169 = vld [vmem:[#allocation3 + $0xa9] sm:$0xff]
  %v4170 = vld [vmem:[#allocation3 + $0xb1] sm:$0xff]
  %v4171 = vld [vmem:[#allocation3 + $0xc9] sm:$0xff]
  %v4172 = vld [vmem:[#allocation3 + $0xd1] sm:$0xff]
  %v4173 = vld [vmem:[#allocation3 + $0xe9] sm:$0xff]
  %v4174 = vld [vmem:[#allocation3 + $0xf1] sm:$0xff]
  %v4175 = vld [vmem:[#allocation3 + $0x109] sm:$0xff]
  %v4176 = vld [vmem:[#allocation3 + $0x111] sm:$0xff]
  %v4177 = vld [vmem:[#allocation3 + $0x129] sm:$0xff]
  %v4178 = vld [vmem:[#allocation3 + $0x131] sm:$0xff]
  %v4179 = vld [vmem:[#allocation3 + $0x149] sm:$0xff]
  %v4180 = vld [vmem:[#allocation3 + $0x151] sm:$0xff]
  %v4181 = vld [vmem:[#allocation3 + $0x169] sm:$0xff]
  %v4182 = vld [vmem:[#allocation3 + $0x171] sm:$0xff]
  %v4183 = vld [vmem:[#allocation3 + $0x189] sm:$0xff]
  %v4184 = vld [vmem:[#allocation3 + $0x191] sm:$0xff]
  %v4185 = vld [vmem:[#allocation3 + $0x1a9] sm:$0xff]
  %v4186 = vld [vmem:[#allocation3 + $0x1b1] sm:$0xff]
  %v4187 = vld [vmem:[#allocation3 + $0x1c9] sm:$0xff]
  %v4188 = vld [vmem:[#allocation3 + $0x1d1] sm:$0xff]
  %v4189 = vld [vmem:[#allocation3 + $0x1e9] sm:$0xff]
  %v4190 = vld [vmem:[#allocation3 + $0x1f1] sm:$0xff]
  %v4191 = vld [vmem:[#allocation3 + $0x249] sm:$0xff]
  %v4192 = vld [vmem:[#allocation3 + $0x251] sm:$0xff]
  %v4193 = vld [vmem:[#allocation3 + $0x269] sm:$0xff]
  %v4194 = vld [vmem:[#allocation3 + $0x271] sm:$0xff]
  %v4195 = vld [vmem:[#allocation3 + $0x289] sm:$0xff]
  %v4196 = vld [vmem:[#allocation3 + $0x291] sm:$0xff]
  %v4197 = vld [vmem:[#allocation3 + $0x2a9] sm:$0xff]
  %v4198 = vld [vmem:[#allocation3 + $0x2b1] sm:$0xff]
  %v4199 = vld [vmem:[#allocation3 + $0x2c9] sm:$0xff]
  %v4200 = vld [vmem:[#allocation3 + $0x2d1] sm:$0xff]
  %v4201 = vld [vmem:[#allocation3 + $0x2e9] sm:$0xff]
  %v4202 = vld [vmem:[#allocation3 + $0x2f1] sm:$0xff]
  %v4203 = vld [vmem:[#allocation3 + $0x309] sm:$0xff]
  %v4204 = vld [vmem:[#allocation3 + $0x311] sm:$0xff]
  %v4205 = vld [vmem:[#allocation3 + $0x329] sm:$0xff]
  %v4206 = vld [vmem:[#allocation3 + $0x331] sm:$0xff]
  %v4207 = vld [vmem:[#allocation3 + $0x349] sm:$0xff]
  %v4208 = vld [vmem:[#allocation3 + $0x351] sm:$0xff]
  %v4209 = vld [vmem:[#allocation3 + $0x369] sm:$0xff]
  %v4210 = vld [vmem:[#allocation3 + $0x371] sm:$0xff]
  %v4211 = vld [vmem:[#allocation3 + $0x389] sm:$0xff]
  %v4212 = vld [vmem:[#allocation3 + $0x391] sm:$0xff]
  %v4213 = vld [vmem:[#allocation3 + $0x3a9] sm:$0xff]
  %v4214 = vld [vmem:[#allocation3 + $0x3b1] sm:$0xff]
  %v4215 = vld [vmem:[#allocation3 + $0x3c9] sm:$0xff]
  %v4216 = vld [vmem:[#allocation3 + $0x3d1] sm:$0xff]
  %v4217 = vld [vmem:[#allocation3 + $0x3e9] sm:$0xff]
  %v4218 = vld [vmem:[#allocation3 + $0x3f1] sm:$0xff]
  %v4219 = vld [vmem:[#allocation3 + $0x409] sm:$0xff]
  %v4220 = vld [vmem:[#allocation3 + $0x411] sm:$0xff]
  %v4221 = vld [vmem:[#allocation3 + $0x429] sm:$0xff]
  %v4222 = vld [vmem:[#allocation3 + $0x431] sm:$0xff]
  %v4223 = vld [vmem:[%s3901 + $0x7] sm:$0xff]
  %v4224 = vld [vmem:[%s3901 + $0xf] sm:$0xff]
  %v4225 = vld [vmem:[%s3901 + $0x27] sm:$0xff]
  %v4226 = vld [vmem:[%s3901 + $0x2f] sm:$0xff]
  %v4227 = vld [vmem:[%s3901 + $0x47] sm:$0xff]
  %v4228 = vld [vmem:[%s3901 + $0x4f] sm:$0xff]
  %v4229 = vld [vmem:[%s3901 + $0x67] sm:$0xff]
  %v4230 = vld [vmem:[%s3901 + $0x6f] sm:$0xff]
  %v4231 = vld [vmem:[%s3901 + $0x87] sm:$0xff]
  %v4232 = vld [vmem:[%s3901 + $0x8f] sm:$0xff]
  %v4233 = vld [vmem:[%s3901 + $0xa7] sm:$0xff]
  %v4234 = vld [vmem:[%s3901 + $0xaf] sm:$0xff]
  %v4235 = vld [vmem:[%s3901 + $0xc7] sm:$0xff]
  %v4236 = vld [vmem:[%s3901 + $0xcf] sm:$0xff]
  %v4237 = vld [vmem:[%s3901 + $0xe7] sm:$0xff]
  %v4238 = vld [vmem:[%s3901 + $0xef] sm:$0xff]
  %v4239 = vld [vmem:[%s3901 + $0x107] sm:$0xff]
  %v4240 = vld [vmem:[%s3901 + $0x10f] sm:$0xff]
  %v4241 = vld [vmem:[%s3901 + $0x127] sm:$0xff]
  %v4242 = vld [vmem:[%s3901 + $0x12f] sm:$0xff]
  %v4243 = vld [vmem:[%s3901 + $0x147] sm:$0xff]
  %v4244 = vld [vmem:[%s3901 + $0x14f] sm:$0xff]
  %v4245 = vld [vmem:[%s3901 + $0x167] sm:$0xff]
  %v4246 = vld [vmem:[%s3901 + $0x16f] sm:$0xff]
  %v4247 = vld [vmem:[%s3901 + $0x187] sm:$0xff]
  %v4248 = vld [vmem:[%s3901 + $0x18f] sm:$0xff]
  %v4249 = vld [vmem:[%s3901 + $0x1a7] sm:$0xff]
  %v4250 = vld [vmem:[%s3901 + $0x1af] sm:$0xff]
  %v4251 = vld [vmem:[%s3901 + $0x1c7] sm:$0xff]
  %v4252 = vld [vmem:[%s3901 + $0x1cf] sm:$0xff]
  %v4253 = vld [vmem:[%s3901 + $0x1e7] sm:$0xff]
  %v4254 = vld [vmem:[%s3901 + $0x1ef] sm:$0xff]
  %v4255 = vld [vmem:[%s3901 + $0x247] sm:$0xff]
  %v4256 = vld [vmem:[%s3901 + $0x24f] sm:$0xff]
  %v4257 = vld [vmem:[%s3901 + $0x267] sm:$0xff]
  %v4258 = vld [vmem:[%s3901 + $0x26f] sm:$0xff]
  %v4259 = vld [vmem:[%s3901 + $0x287] sm:$0xff]
  %v4260 = vld [vmem:[%s3901 + $0x28f] sm:$0xff]
  %v4261 = vld [vmem:[%s3901 + $0x2a7] sm:$0xff]
  %v4262 = vld [vmem:[%s3901 + $0x2af] sm:$0xff]
  %v4263 = vld [vmem:[%s3901 + $0x2c7] sm:$0xff]
  %v4264 = vld [vmem:[%s3901 + $0x2cf] sm:$0xff]
  %v4265 = vld [vmem:[%s3901 + $0x2e7] sm:$0xff]
  %v4266 = vld [vmem:[%s3901 + $0x2ef] sm:$0xff]
  %v4267 = vld [vmem:[%s3901 + $0x307] sm:$0xff]
  %v4268 = vld [vmem:[%s3901 + $0x30f] sm:$0xff]
  %v4269 = vld [vmem:[%s3901 + $0x327] sm:$0xff]
  %v4270 = vld [vmem:[%s3901 + $0x32f] sm:$0xff]
  %v4271 = vld [vmem:[%s3901 + $0x347] sm:$0xff]
  %v4272 = vld [vmem:[%s3901 + $0x34f] sm:$0xff]
  %v4273 = vld [vmem:[%s3901 + $0x367] sm:$0xff]
  %v4274 = vld [vmem:[%s3901 + $0x36f] sm:$0xff]
  %v4275 = vld [vmem:[%s3901 + $0x387] sm:$0xff]
  %v4276 = vld [vmem:[%s3901 + $0x38f] sm:$0xff]
  %v4277 = vld [vmem:[%s3901 + $0x3a7] sm:$0xff]
  %v4278 = vld [vmem:[%s3901 + $0x3af] sm:$0xff]
  %v4279 = vld [vmem:[%s3901 + $0x3c7] sm:$0xff]
  %v4280 = vld [vmem:[%s3901 + $0x3cf] sm:$0xff]
  %v4281 = vld [vmem:[%s3901 + $0x3e7] sm:$0xff]
  %v4282 = vld [vmem:[%s3901 + $0x3ef] sm:$0xff]
  %v4283 = vld [vmem:[%s3901 + $0x407] sm:$0xff]
  %v4284 = vld [vmem:[%s3901 + $0x40f] sm:$0xff]
  %v4285 = vld [vmem:[%s3901 + $0x427] sm:$0xff]
  %v4286 = vld [vmem:[%s3901 + $0x42f] sm:$0xff]
  %v4287 = vld [vmem:[%s3901 + $0x8] sm:$0xff]
  %v4288 = vld [vmem:[%s3901 + $0x10] sm:$0xff]
  %v4289 = vld [vmem:[%s3901 + $0x28] sm:$0xff]
  %v4290 = vld [vmem:[%s3901 + $0x30] sm:$0xff]
  %v4291 = vld [vmem:[%s3901 + $0x48] sm:$0xff]
  %v4292 = vld [vmem:[%s3901 + $0x50] sm:$0xff]
  %v4293 = vld [vmem:[%s3901 + $0x68] sm:$0xff]
  %v4294 = vld [vmem:[%s3901 + $0x70] sm:$0xff]
  %v4295 = vld [vmem:[%s3901 + $0x88] sm:$0xff]
  %v4296 = vld [vmem:[%s3901 + $0x90] sm:$0xff]
  %v4297 = vld [vmem:[%s3901 + $0xa8] sm:$0xff]
  %v4298 = vld [vmem:[%s3901 + $0xb0] sm:$0xff]
  %v4299 = vld [vmem:[%s3901 + $0xc8] sm:$0xff]
  %v4300 = vld [vmem:[%s3901 + $0xd0] sm:$0xff]
  %v4301 = vld [vmem:[%s3901 + $0xe8] sm:$0xff]
  %v4302 = vld [vmem:[%s3901 + $0xf0] sm:$0xff]
  %v4303 = vld [vmem:[%s3901 + $0x108] sm:$0xff]
  %v4304 = vld [vmem:[%s3901 + $0x110] sm:$0xff]
  %v4305 = vld [vmem:[%s3901 + $0x128] sm:$0xff]
  %v4306 = vld [vmem:[%s3901 + $0x130] sm:$0xff]
  %v4307 = vld [vmem:[%s3901 + $0x148] sm:$0xff]
  %v4308 = vld [vmem:[%s3901 + $0x150] sm:$0xff]
  %v4309 = vld [vmem:[%s3901 + $0x168] sm:$0xff]
  %v4310 = vld [vmem:[%s3901 + $0x170] sm:$0xff]
  %v4311 = vld [vmem:[%s3901 + $0x188] sm:$0xff]
  %v4312 = vld [vmem:[%s3901 + $0x190] sm:$0xff]
  %v4313 = vld [vmem:[%s3901 + $0x1a8] sm:$0xff]
  %v4314 = vld [vmem:[%s3901 + $0x1b0] sm:$0xff]
  %v4315 = vld [vmem:[%s3901 + $0x1c8] sm:$0xff]
  %v4316 = vld [vmem:[%s3901 + $0x1d0] sm:$0xff]
  %v4317 = vld [vmem:[%s3901 + $0x1e8] sm:$0xff]
  %v4318 = vld [vmem:[%s3901 + $0x1f0] sm:$0xff]
  %v4319 = vld [vmem:[%s3901 + $0x248] sm:$0xff]
  %v4320 = vld [vmem:[%s3901 + $0x250] sm:$0xff]
  %v4321 = vld [vmem:[%s3901 + $0x268] sm:$0xff]
  %v4322 = vld [vmem:[%s3901 + $0x270] sm:$0xff]
  %v4323 = vld [vmem:[%s3901 + $0x288] sm:$0xff]
  %v4324 = vld [vmem:[%s3901 + $0x290] sm:$0xff]
  %v4325 = vld [vmem:[%s3901 + $0x2a8] sm:$0xff]
  %v4326 = vld [vmem:[%s3901 + $0x2b0] sm:$0xff]
  %v4327 = vld [vmem:[%s3901 + $0x2c8] sm:$0xff]
  %v4328 = vld [vmem:[%s3901 + $0x2d0] sm:$0xff]
  %v4329 = vld [vmem:[%s3901 + $0x2e8] sm:$0xff]
  %v4330 = vld [vmem:[%s3901 + $0x2f0] sm:$0xff]
  %v4331 = vld [vmem:[%s3901 + $0x308] sm:$0xff]
  %v4332 = vld [vmem:[%s3901 + $0x310] sm:$0xff]
  %v4333 = vld [vmem:[%s3901 + $0x328] sm:$0xff]
  %v4334 = vld [vmem:[%s3901 + $0x330] sm:$0xff]
  %v4335 = vld [vmem:[%s3901 + $0x348] sm:$0xff]
  %v4336 = vld [vmem:[%s3901 + $0x350] sm:$0xff]
  %v4337 = vld [vmem:[%s3901 + $0x368] sm:$0xff]
  %v4338 = vld [vmem:[%s3901 + $0x370] sm:$0xff]
  %v4339 = vld [vmem:[%s3901 + $0x388] sm:$0xff]
  %v4340 = vld [vmem:[%s3901 + $0x390] sm:$0xff]
  %v4341 = vld [vmem:[%s3901 + $0x3a8] sm:$0xff]
  %v4342 = vld [vmem:[%s3901 + $0x3b0] sm:$0xff]
  %v4343 = vld [vmem:[%s3901 + $0x3c8] sm:$0xff]
  %v4344 = vld [vmem:[%s3901 + $0x3d0] sm:$0xff]
  %v4345 = vld [vmem:[%s3901 + $0x3e8] sm:$0xff]
  %v4346 = vld [vmem:[%s3901 + $0x3f0] sm:$0xff]
  %v4347 = vld [vmem:[%s3901 + $0x408] sm:$0xff]
  %v4348 = vld [vmem:[%s3901 + $0x410] sm:$0xff]
  %v4349 = vld [vmem:[%s3901 + $0x428] sm:$0xff]
  %v4350 = vld [vmem:[%s3901 + $0x430] sm:$0xff]
  %v4351 = vld [vmem:[%s3901 + $0x9] sm:$0xff]
  %v4352 = vld [vmem:[%s3901 + $0x11] sm:$0xff]
  %v4353 = vld [vmem:[%s3901 + $0x29] sm:$0xff]
  %v4354 = vld [vmem:[%s3901 + $0x31] sm:$0xff]
  %v4355 = vld [vmem:[%s3901 + $0x49] sm:$0xff]
  %v4356 = vld [vmem:[%s3901 + $0x51] sm:$0xff]
  %v4357 = vld [vmem:[%s3901 + $0x69] sm:$0xff]
  %v4358 = vld [vmem:[%s3901 + $0x71] sm:$0xff]
  %v4359 = vld [vmem:[%s3901 + $0x89] sm:$0xff]
  %v4360 = vld [vmem:[%s3901 + $0x91] sm:$0xff]
  %v4361 = vld [vmem:[%s3901 + $0xa9] sm:$0xff]
  %v4362 = vld [vmem:[%s3901 + $0xb1] sm:$0xff]
  %v4363 = vld [vmem:[%s3901 + $0xc9] sm:$0xff]
  %v4364 = vld [vmem:[%s3901 + $0xd1] sm:$0xff]
  %v4365 = vld [vmem:[%s3901 + $0xe9] sm:$0xff]
  %v4366 = vld [vmem:[%s3901 + $0xf1] sm:$0xff]
  %v4367 = vld [vmem:[%s3901 + $0x109] sm:$0xff]
  %v4368 = vld [vmem:[%s3901 + $0x111] sm:$0xff]
  %v4369 = vld [vmem:[%s3901 + $0x129] sm:$0xff]
  %v4370 = vld [vmem:[%s3901 + $0x131] sm:$0xff]
  %v4371 = vld [vmem:[%s3901 + $0x149] sm:$0xff]
  %v4372 = vld [vmem:[%s3901 + $0x151] sm:$0xff]
  %v4373 = vld [vmem:[%s3901 + $0x169] sm:$0xff]
  %v4374 = vld [vmem:[%s3901 + $0x171] sm:$0xff]
  %v4375 = vld [vmem:[%s3901 + $0x189] sm:$0xff]
  %v4376 = vld [vmem:[%s3901 + $0x191] sm:$0xff]
  %v4377 = vld [vmem:[%s3901 + $0x1a9] sm:$0xff]
  %v4378 = vld [vmem:[%s3901 + $0x1b1] sm:$0xff]
  %v4379 = vld [vmem:[%s3901 + $0x1c9] sm:$0xff]
  %v4380 = vld [vmem:[%s3901 + $0x1d1] sm:$0xff]
  %v4381 = vld [vmem:[%s3901 + $0x1e9] sm:$0xff]
  %v4382 = vld [vmem:[%s3901 + $0x1f1] sm:$0xff]
  %v4383 = vld [vmem:[%s3901 + $0x249] sm:$0xff]
  %v4384 = vld [vmem:[%s3901 + $0x251] sm:$0xff]
  %v4385 = vld [vmem:[%s3901 + $0x269] sm:$0xff]
  %v4386 = vld [vmem:[%s3901 + $0x271] sm:$0xff]
  %v4387 = vld [vmem:[%s3901 + $0x289] sm:$0xff]
  %v4388 = vld [vmem:[%s3901 + $0x291] sm:$0xff]
  %v4389 = vld [vmem:[%s3901 + $0x2a9] sm:$0xff]
  %v4390 = vld [vmem:[%s3901 + $0x2b1] sm:$0xff]
  %v4391 = vld [vmem:[%s3901 + $0x2c9] sm:$0xff]
  %v4392 = vld [vmem:[%s3901 + $0x2d1] sm:$0xff]
  %v4393 = vld [vmem:[%s3901 + $0x2e9] sm:$0xff]
  %v4394 = vld [vmem:[%s3901 + $0x2f1] sm:$0xff]
  %v4395 = vld [vmem:[%s3901 + $0x309] sm:$0xff]
  %v4396 = vld [vmem:[%s3901 + $0x311] sm:$0xff]
  %v4397 = vld [vmem:[%s3901 + $0x329] sm:$0xff]
  %v4398 = vld [vmem:[%s3901 + $0x331] sm:$0xff]
  %v4399 = vld [vmem:[%s3901 + $0x349] sm:$0xff]
  %v4400 = vld [vmem:[%s3901 + $0x351] sm:$0xff]
  %v4401 = vld [vmem:[%s3901 + $0x369] sm:$0xff]
  %v4402 = vld [vmem:[%s3901 + $0x371] sm:$0xff]
  %v4403 = vld [vmem:[%s3901 + $0x389] sm:$0xff]
  %v4404 = vld [vmem:[%s3901 + $0x391] sm:$0xff]
  %v4405 = vld [vmem:[%s3901 + $0x3a9] sm:$0xff]
  %v4406 = vld [vmem:[%s3901 + $0x3b1] sm:$0xff]
  %v4407 = vld [vmem:[%s3901 + $0x3c9] sm:$0xff]
  %v4408 = vld [vmem:[%s3901 + $0x3d1] sm:$0xff]
  %v4409 = vld [vmem:[%s3901 + $0x3e9] sm:$0xff]
  %v4410 = vld [vmem:[%s3901 + $0x3f1] sm:$0xff]
  %v4411 = vld [vmem:[%s3901 + $0x409] sm:$0xff]
  %v4412 = vld [vmem:[%s3901 + $0x411] sm:$0xff]
  %v4413 = vld [vmem:[%s3901 + $0x429] sm:$0xff]
  %v4414 = vld [vmem:[%s3901 + $0x431] sm:$0xff]
  %s4415 = scalar_lea.vmem [#allocation3], 64
  %v4416 = vld [vmem:[%s4415 + $0x7] sm:$0xff]
  %v4417 = vld [vmem:[%s4415 + $0xf] sm:$0xff]
  %v4418 = vld [vmem:[%s4415 + $0x27] sm:$0xff]
  %v4419 = vld [vmem:[%s4415 + $0x2f] sm:$0xff]
  %v4420 = vld [vmem:[%s4415 + $0x47] sm:$0xff]
  %v4421 = vld [vmem:[%s4415 + $0x4f] sm:$0xff]
  %v4422 = vld [vmem:[%s4415 + $0x67] sm:$0xff]
  %v4423 = vld [vmem:[%s4415 + $0x6f] sm:$0xff]
  %v4424 = vld [vmem:[%s4415 + $0x87] sm:$0xff]
  %v4425 = vld [vmem:[%s4415 + $0x8f] sm:$0xff]
  %v4426 = vld [vmem:[%s4415 + $0xa7] sm:$0xff]
  %v4427 = vld [vmem:[%s4415 + $0xaf] sm:$0xff]
  %v4428 = vld [vmem:[%s4415 + $0xc7] sm:$0xff]
  %v4429 = vld [vmem:[%s4415 + $0xcf] sm:$0xff]
  %v4430 = vld [vmem:[%s4415 + $0xe7] sm:$0xff]
  %v4431 = vld [vmem:[%s4415 + $0xef] sm:$0xff]
  %v4432 = vld [vmem:[%s4415 + $0x107] sm:$0xff]
  %v4433 = vld [vmem:[%s4415 + $0x10f] sm:$0xff]
  %v4434 = vld [vmem:[%s4415 + $0x127] sm:$0xff]
  %v4435 = vld [vmem:[%s4415 + $0x12f] sm:$0xff]
  %v4436 = vld [vmem:[%s4415 + $0x147] sm:$0xff]
  %v4437 = vld [vmem:[%s4415 + $0x14f] sm:$0xff]
  %v4438 = vld [vmem:[%s4415 + $0x167] sm:$0xff]
  %v4439 = vld [vmem:[%s4415 + $0x16f] sm:$0xff]
  %v4440 = vld [vmem:[%s4415 + $0x187] sm:$0xff]
  %v4441 = vld [vmem:[%s4415 + $0x18f] sm:$0xff]
  %v4442 = vld [vmem:[%s4415 + $0x1a7] sm:$0xff]
  %v4443 = vld [vmem:[%s4415 + $0x1af] sm:$0xff]
  %v4444 = vld [vmem:[%s4415 + $0x1c7] sm:$0xff]
  %v4445 = vld [vmem:[%s4415 + $0x1cf] sm:$0xff]
  %v4446 = vld [vmem:[%s4415 + $0x1e7] sm:$0xff]
  %v4447 = vld [vmem:[%s4415 + $0x1ef] sm:$0xff]
  %v4448 = vld [vmem:[%s4415 + $0x247] sm:$0xff]
  %v4449 = vld [vmem:[%s4415 + $0x24f] sm:$0xff]
  %v4450 = vld [vmem:[%s4415 + $0x267] sm:$0xff]
  %v4451 = vld [vmem:[%s4415 + $0x26f] sm:$0xff]
  %v4452 = vld [vmem:[%s4415 + $0x287] sm:$0xff]
  %v4453 = vld [vmem:[%s4415 + $0x28f] sm:$0xff]
  %v4454 = vld [vmem:[%s4415 + $0x2a7] sm:$0xff]
  %v4455 = vld [vmem:[%s4415 + $0x2af] sm:$0xff]
  %v4456 = vld [vmem:[%s4415 + $0x2c7] sm:$0xff]
  %v4457 = vld [vmem:[%s4415 + $0x2cf] sm:$0xff]
  %v4458 = vld [vmem:[%s4415 + $0x2e7] sm:$0xff]
  %v4459 = vld [vmem:[%s4415 + $0x2ef] sm:$0xff]
  %v4460 = vld [vmem:[%s4415 + $0x307] sm:$0xff]
  %v4461 = vld [vmem:[%s4415 + $0x30f] sm:$0xff]
  %v4462 = vld [vmem:[%s4415 + $0x327] sm:$0xff]
  %v4463 = vld [vmem:[%s4415 + $0x32f] sm:$0xff]
  %v4464 = vld [vmem:[%s4415 + $0x347] sm:$0xff]
  %v4465 = vld [vmem:[%s4415 + $0x34f] sm:$0xff]
  %v4466 = vld [vmem:[%s4415 + $0x367] sm:$0xff]
  %v4467 = vld [vmem:[%s4415 + $0x36f] sm:$0xff]
  %v4468 = vld [vmem:[%s4415 + $0x387] sm:$0xff]
  %v4469 = vld [vmem:[%s4415 + $0x38f] sm:$0xff]
  %v4470 = vld [vmem:[%s4415 + $0x3a7] sm:$0xff]
  %v4471 = vld [vmem:[%s4415 + $0x3af] sm:$0xff]
  %v4472 = vld [vmem:[%s4415 + $0x3c7] sm:$0xff]
  %v4473 = vld [vmem:[%s4415 + $0x3cf] sm:$0xff]
  %v4474 = vld [vmem:[%s4415 + $0x3e7] sm:$0xff]
  %v4475 = vld [vmem:[%s4415 + $0x3ef] sm:$0xff]
  %v4476 = vld [vmem:[%s4415 + $0x407] sm:$0xff]
  %v4477 = vld [vmem:[%s4415 + $0x40f] sm:$0xff]
  %v4478 = vld [vmem:[%s4415 + $0x427] sm:$0xff]
  %v4479 = vld [vmem:[%s4415 + $0x42f] sm:$0xff]
  %v4480 = vld [vmem:[%s4415 + $0x8] sm:$0xff]
  %v4481 = vld [vmem:[%s4415 + $0x10] sm:$0xff]
  %v4482 = vld [vmem:[%s4415 + $0x28] sm:$0xff]
  %v4483 = vld [vmem:[%s4415 + $0x30] sm:$0xff]
  %v4484 = vld [vmem:[%s4415 + $0x48] sm:$0xff]
  %v4485 = vld [vmem:[%s4415 + $0x50] sm:$0xff]
  %v4486 = vld [vmem:[%s4415 + $0x68] sm:$0xff]
  %v4487 = vld [vmem:[%s4415 + $0x70] sm:$0xff]
  %v4488 = vld [vmem:[%s4415 + $0x88] sm:$0xff]
  %v4489 = vld [vmem:[%s4415 + $0x90] sm:$0xff]
  %v4490 = vld [vmem:[%s4415 + $0xa8] sm:$0xff]
  %v4491 = vld [vmem:[%s4415 + $0xb0] sm:$0xff]
  %v4492 = vld [vmem:[%s4415 + $0xc8] sm:$0xff]
  %v4493 = vld [vmem:[%s4415 + $0xd0] sm:$0xff]
  %v4494 = vld [vmem:[%s4415 + $0xe8] sm:$0xff]
  %v4495 = vld [vmem:[%s4415 + $0xf0] sm:$0xff]
  %v4496 = vld [vmem:[%s4415 + $0x108] sm:$0xff]
  %v4497 = vld [vmem:[%s4415 + $0x110] sm:$0xff]
  %v4498 = vld [vmem:[%s4415 + $0x128] sm:$0xff]
  %v4499 = vld [vmem:[%s4415 + $0x130] sm:$0xff]
  %v4500 = vld [vmem:[%s4415 + $0x148] sm:$0xff]
  %v4501 = vld [vmem:[%s4415 + $0x150] sm:$0xff]
  %v4502 = vld [vmem:[%s4415 + $0x168] sm:$0xff]
  %v4503 = vld [vmem:[%s4415 + $0x170] sm:$0xff]
  %v4504 = vld [vmem:[%s4415 + $0x188] sm:$0xff]
  %v4505 = vld [vmem:[%s4415 + $0x190] sm:$0xff]
  %v4506 = vld [vmem:[%s4415 + $0x1a8] sm:$0xff]
  %v4507 = vld [vmem:[%s4415 + $0x1b0] sm:$0xff]
  %v4508 = vld [vmem:[%s4415 + $0x1c8] sm:$0xff]
  %v4509 = vld [vmem:[%s4415 + $0x1d0] sm:$0xff]
  %v4510 = vld [vmem:[%s4415 + $0x1e8] sm:$0xff]
  %v4511 = vld [vmem:[%s4415 + $0x1f0] sm:$0xff]
  %v4512 = vld [vmem:[%s4415 + $0x248] sm:$0xff]
  %v4513 = vld [vmem:[%s4415 + $0x250] sm:$0xff]
  %v4514 = vld [vmem:[%s4415 + $0x268] sm:$0xff]
  %v4515 = vld [vmem:[%s4415 + $0x270] sm:$0xff]
  %v4516 = vld [vmem:[%s4415 + $0x288] sm:$0xff]
  %v4517 = vld [vmem:[%s4415 + $0x290] sm:$0xff]
  %v4518 = vld [vmem:[%s4415 + $0x2a8] sm:$0xff]
  %v4519 = vld [vmem:[%s4415 + $0x2b0] sm:$0xff]
  %v4520 = vld [vmem:[%s4415 + $0x2c8] sm:$0xff]
  %v4521 = vld [vmem:[%s4415 + $0x2d0] sm:$0xff]
  %v4522 = vld [vmem:[%s4415 + $0x2e8] sm:$0xff]
  %v4523 = vld [vmem:[%s4415 + $0x2f0] sm:$0xff]
  %v4524 = vld [vmem:[%s4415 + $0x308] sm:$0xff]
  %v4525 = vld [vmem:[%s4415 + $0x310] sm:$0xff]
  %v4526 = vld [vmem:[%s4415 + $0x328] sm:$0xff]
  %v4527 = vld [vmem:[%s4415 + $0x330] sm:$0xff]
  %v4528 = vld [vmem:[%s4415 + $0x348] sm:$0xff]
  %v4529 = vld [vmem:[%s4415 + $0x350] sm:$0xff]
  %v4530 = vld [vmem:[%s4415 + $0x368] sm:$0xff]
  %v4531 = vld [vmem:[%s4415 + $0x370] sm:$0xff]
  %v4532 = vld [vmem:[%s4415 + $0x388] sm:$0xff]
  %v4533 = vld [vmem:[%s4415 + $0x390] sm:$0xff]
  %v4534 = vld [vmem:[%s4415 + $0x3a8] sm:$0xff]
  %v4535 = vld [vmem:[%s4415 + $0x3b0] sm:$0xff]
  %v4536 = vld [vmem:[%s4415 + $0x3c8] sm:$0xff]
  %v4537 = vld [vmem:[%s4415 + $0x3d0] sm:$0xff]
  %v4538 = vld [vmem:[%s4415 + $0x3e8] sm:$0xff]
  %v4539 = vld [vmem:[%s4415 + $0x3f0] sm:$0xff]
  %v4540 = vld [vmem:[%s4415 + $0x408] sm:$0xff]
  %v4541 = vld [vmem:[%s4415 + $0x410] sm:$0xff]
  %v4542 = vld [vmem:[%s4415 + $0x428] sm:$0xff]
  %v4543 = vld [vmem:[%s4415 + $0x430] sm:$0xff]
  %v4544 = vld [vmem:[%s4415 + $0x9] sm:$0xff]
  %v4545 = vld [vmem:[%s4415 + $0x11] sm:$0xff]
  %v4546 = vld [vmem:[%s4415 + $0x29] sm:$0xff]
  %v4547 = vld [vmem:[%s4415 + $0x31] sm:$0xff]
  %v4548 = vld [vmem:[%s4415 + $0x49] sm:$0xff]
  %v4549 = vld [vmem:[%s4415 + $0x51] sm:$0xff]
  %v4550 = vld [vmem:[%s4415 + $0x69] sm:$0xff]
  %v4551 = vld [vmem:[%s4415 + $0x71] sm:$0xff]
  %v4552 = vld [vmem:[%s4415 + $0x89] sm:$0xff]
  %v4553 = vld [vmem:[%s4415 + $0x91] sm:$0xff]
  %v4554 = vld [vmem:[%s4415 + $0xa9] sm:$0xff]
  %v4555 = vld [vmem:[%s4415 + $0xb1] sm:$0xff]
  %v4556 = vld [vmem:[%s4415 + $0xc9] sm:$0xff]
  %v4557 = vld [vmem:[%s4415 + $0xd1] sm:$0xff]
  %v4558 = vld [vmem:[%s4415 + $0xe9] sm:$0xff]
  %v4559 = vld [vmem:[%s4415 + $0xf1] sm:$0xff]
  %v4560 = vld [vmem:[%s4415 + $0x109] sm:$0xff]
  %v4561 = vld [vmem:[%s4415 + $0x111] sm:$0xff]
  %v4562 = vld [vmem:[%s4415 + $0x129] sm:$0xff]
  %v4563 = vld [vmem:[%s4415 + $0x131] sm:$0xff]
  %v4564 = vld [vmem:[%s4415 + $0x149] sm:$0xff]
  %v4565 = vld [vmem:[%s4415 + $0x151] sm:$0xff]
  %v4566 = vld [vmem:[%s4415 + $0x169] sm:$0xff]
  %v4567 = vld [vmem:[%s4415 + $0x171] sm:$0xff]
  %v4568 = vld [vmem:[%s4415 + $0x189] sm:$0xff]
  %v4569 = vld [vmem:[%s4415 + $0x191] sm:$0xff]
  %v4570 = vld [vmem:[%s4415 + $0x1a9] sm:$0xff]
  %v4571 = vld [vmem:[%s4415 + $0x1b1] sm:$0xff]
  %v4572 = vld [vmem:[%s4415 + $0x1c9] sm:$0xff]
  %v4573 = vld [vmem:[%s4415 + $0x1d1] sm:$0xff]
  %v4574 = vld [vmem:[%s4415 + $0x1e9] sm:$0xff]
  %v4575 = vld [vmem:[%s4415 + $0x1f1] sm:$0xff]
  %v4576 = vld [vmem:[%s4415 + $0x249] sm:$0xff]
  %v4577 = vld [vmem:[%s4415 + $0x251] sm:$0xff]
  %v4578 = vld [vmem:[%s4415 + $0x269] sm:$0xff]
  %v4579 = vld [vmem:[%s4415 + $0x271] sm:$0xff]
  %v4580 = vld [vmem:[%s4415 + $0x289] sm:$0xff]
  %v4581 = vld [vmem:[%s4415 + $0x291] sm:$0xff]
  %v4582 = vld [vmem:[%s4415 + $0x2a9] sm:$0xff]
  %v4583 = vld [vmem:[%s4415 + $0x2b1] sm:$0xff]
  %v4584 = vld [vmem:[%s4415 + $0x2c9] sm:$0xff]
  %v4585 = vld [vmem:[%s4415 + $0x2d1] sm:$0xff]
  %v4586 = vld [vmem:[%s4415 + $0x2e9] sm:$0xff]
  %v4587 = vld [vmem:[%s4415 + $0x2f1] sm:$0xff]
  %v4588 = vld [vmem:[%s4415 + $0x309] sm:$0xff]
  %v4589 = vld [vmem:[%s4415 + $0x311] sm:$0xff]
  %v4590 = vld [vmem:[%s4415 + $0x329] sm:$0xff]
  %v4591 = vld [vmem:[%s4415 + $0x331] sm:$0xff]
  %v4592 = vld [vmem:[%s4415 + $0x349] sm:$0xff]
  %v4593 = vld [vmem:[%s4415 + $0x351] sm:$0xff]
  %v4594 = vld [vmem:[%s4415 + $0x369] sm:$0xff]
  %v4595 = vld [vmem:[%s4415 + $0x371] sm:$0xff]
  %v4596 = vld [vmem:[%s4415 + $0x389] sm:$0xff]
  %v4597 = vld [vmem:[%s4415 + $0x391] sm:$0xff]
  %v4598 = vld [vmem:[%s4415 + $0x3a9] sm:$0xff]
  %v4599 = vld [vmem:[%s4415 + $0x3b1] sm:$0xff]
  %v4600 = vld [vmem:[%s4415 + $0x3c9] sm:$0xff]
  %v4601 = vld [vmem:[%s4415 + $0x3d1] sm:$0xff]
  %v4602 = vld [vmem:[%s4415 + $0x3e9] sm:$0xff]
  %v4603 = vld [vmem:[%s4415 + $0x3f1] sm:$0xff]
  %v4604 = vld [vmem:[%s4415 + $0x409] sm:$0xff]
  %v4605 = vld [vmem:[%s4415 + $0x411] sm:$0xff]
  %v4606 = vld [vmem:[%s4415 + $0x429] sm:$0xff]
  %v4607 = vld [vmem:[%s4415 + $0x431] sm:$0xff]
  %4672 = vrot.lane.b32.xlu0 %v4095, 8
  %v4673 = vpop.permute.xlu0 %4672
  %4674 = vrot.lane.b32.xlu0 %v4096, 8
  %v4675 = vpop.permute.xlu0 %4674
  %4676 = vrot.lane.b32.xlu0 %v4097, 8
  %v4677 = vpop.permute.xlu0 %4676
  %4678 = vrot.lane.b32.xlu0 %v4098, 8
  %v4679 = vpop.permute.xlu0 %4678
  %4680 = vrot.lane.b32.xlu0 %v4099, 8
  %v4681 = vpop.permute.xlu0 %4680
  %4682 = vrot.lane.b32.xlu0 %v4100, 8
  %v4683 = vpop.permute.xlu0 %4682
  %4684 = vrot.lane.b32.xlu0 %v4101, 8
  %v4685 = vpop.permute.xlu0 %4684
  %4686 = vrot.lane.b32.xlu0 %v4102, 8
  %v4687 = vpop.permute.xlu0 %4686
  %4688 = vrot.lane.b32.xlu0 %v4103, 8
  %v4689 = vpop.permute.xlu0 %4688
  %4690 = vrot.lane.b32.xlu0 %v4104, 8
  %v4691 = vpop.permute.xlu0 %4690
  %4692 = vrot.lane.b32.xlu0 %v4105, 8
  %v4693 = vpop.permute.xlu0 %4692
  %4694 = vrot.lane.b32.xlu0 %v4106, 8
  %v4695 = vpop.permute.xlu0 %4694
  %4696 = vrot.lane.b32.xlu0 %v4107, 8
  %v4697 = vpop.permute.xlu0 %4696
  %4698 = vrot.lane.b32.xlu0 %v4108, 8
  %v4699 = vpop.permute.xlu0 %4698
  %4700 = vrot.lane.b32.xlu0 %v4109, 8
  %v4701 = vpop.permute.xlu0 %4700
  %4702 = vrot.lane.b32.xlu0 %v4110, 8
  %v4703 = vpop.permute.xlu0 %4702
  %4704 = vrot.lane.b32.xlu0 %v4111, 8
  %v4705 = vpop.permute.xlu0 %4704
  %4706 = vrot.lane.b32.xlu0 %v4112, 8
  %v4707 = vpop.permute.xlu0 %4706
  %4708 = vrot.lane.b32.xlu0 %v4113, 8
  %v4709 = vpop.permute.xlu0 %4708
  %4710 = vrot.lane.b32.xlu0 %v4114, 8
  %v4711 = vpop.permute.xlu0 %4710
  %4712 = vrot.lane.b32.xlu0 %v4115, 8
  %v4713 = vpop.permute.xlu0 %4712
  %4714 = vrot.lane.b32.xlu0 %v4116, 8
  %v4715 = vpop.permute.xlu0 %4714
  %4716 = vrot.lane.b32.xlu0 %v4117, 8
  %v4717 = vpop.permute.xlu0 %4716
  %4718 = vrot.lane.b32.xlu0 %v4118, 8
  %v4719 = vpop.permute.xlu0 %4718
  %4720 = vrot.lane.b32.xlu0 %v4119, 8
  %v4721 = vpop.permute.xlu0 %4720
  %4722 = vrot.lane.b32.xlu0 %v4120, 8
  %v4723 = vpop.permute.xlu0 %4722
  %4724 = vrot.lane.b32.xlu0 %v4121, 8
  %v4725 = vpop.permute.xlu0 %4724
  %4726 = vrot.lane.b32.xlu0 %v4122, 8
  %v4727 = vpop.permute.xlu0 %4726
  %4728 = vrot.lane.b32.xlu0 %v4123, 8
  %v4729 = vpop.permute.xlu0 %4728
  %4730 = vrot.lane.b32.xlu0 %v4124, 8
  %v4731 = vpop.permute.xlu0 %4730
  %4732 = vrot.lane.b32.xlu0 %v4125, 8
  %v4733 = vpop.permute.xlu0 %4732
  %4734 = vrot.lane.b32.xlu0 %v4126, 8
  %v4735 = vpop.permute.xlu0 %4734
  %4736 = vrot.lane.b32.xlu0 %v4127, 8
  %v4737 = vpop.permute.xlu0 %4736
  %4738 = vrot.lane.b32.xlu0 %v4128, 8
  %v4739 = vpop.permute.xlu0 %4738
  %4740 = vrot.lane.b32.xlu0 %v4129, 8
  %v4741 = vpop.permute.xlu0 %4740
  %4742 = vrot.lane.b32.xlu0 %v4130, 8
  %v4743 = vpop.permute.xlu0 %4742
  %4744 = vrot.lane.b32.xlu0 %v4131, 8
  %v4745 = vpop.permute.xlu0 %4744
  %4746 = vrot.lane.b32.xlu0 %v4132, 8
  %v4747 = vpop.permute.xlu0 %4746
  %4748 = vrot.lane.b32.xlu0 %v4133, 8
  %v4749 = vpop.permute.xlu0 %4748
  %4750 = vrot.lane.b32.xlu0 %v4134, 8
  %v4751 = vpop.permute.xlu0 %4750
  %4752 = vrot.lane.b32.xlu0 %v4135, 8
  %v4753 = vpop.permute.xlu0 %4752
  %4754 = vrot.lane.b32.xlu0 %v4136, 8
  %v4755 = vpop.permute.xlu0 %4754
  %4756 = vrot.lane.b32.xlu0 %v4137, 8
  %v4757 = vpop.permute.xlu0 %4756
  %4758 = vrot.lane.b32.xlu0 %v4138, 8
  %v4759 = vpop.permute.xlu0 %4758
  %4760 = vrot.lane.b32.xlu0 %v4139, 8
  %v4761 = vpop.permute.xlu0 %4760
  %4762 = vrot.lane.b32.xlu0 %v4140, 8
  %v4763 = vpop.permute.xlu0 %4762
  %4764 = vrot.lane.b32.xlu0 %v4141, 8
  %v4765 = vpop.permute.xlu0 %4764
  %4766 = vrot.lane.b32.xlu0 %v4142, 8
  %v4767 = vpop.permute.xlu0 %4766
  %4768 = vrot.lane.b32.xlu0 %v4143, 8
  %v4769 = vpop.permute.xlu0 %4768
  %4770 = vrot.lane.b32.xlu0 %v4144, 8
  %v4771 = vpop.permute.xlu0 %4770
  %4772 = vrot.lane.b32.xlu0 %v4145, 8
  %v4773 = vpop.permute.xlu0 %4772
  %4774 = vrot.lane.b32.xlu0 %v4146, 8
  %v4775 = vpop.permute.xlu0 %4774
  %4776 = vrot.lane.b32.xlu0 %v4147, 8
  %v4777 = vpop.permute.xlu0 %4776
  %4778 = vrot.lane.b32.xlu0 %v4148, 8
  %v4779 = vpop.permute.xlu0 %4778
  %4780 = vrot.lane.b32.xlu0 %v4149, 8
  %v4781 = vpop.permute.xlu0 %4780
  %4782 = vrot.lane.b32.xlu0 %v4150, 8
  %v4783 = vpop.permute.xlu0 %4782
  %4784 = vrot.lane.b32.xlu0 %v4151, 8
  %v4785 = vpop.permute.xlu0 %4784
  %4786 = vrot.lane.b32.xlu0 %v4152, 8
  %v4787 = vpop.permute.xlu0 %4786
  %4788 = vrot.lane.b32.xlu0 %v4153, 8
  %v4789 = vpop.permute.xlu0 %4788
  %4790 = vrot.lane.b32.xlu0 %v4154, 8
  %v4791 = vpop.permute.xlu0 %4790
  %4792 = vrot.lane.b32.xlu0 %v4155, 8
  %v4793 = vpop.permute.xlu0 %4792
  %4794 = vrot.lane.b32.xlu0 %v4156, 8
  %v4795 = vpop.permute.xlu0 %4794
  %4796 = vrot.lane.b32.xlu0 %v4157, 8
  %v4797 = vpop.permute.xlu0 %4796
  %4798 = vrot.lane.b32.xlu0 %v4158, 8
  %v4799 = vpop.permute.xlu0 %4798
  %4928 = vrot.lane.b32.xlu0 %v4159, 16
  %v4929 = vpop.permute.xlu0 %4928
  %4930 = vrot.lane.b32.xlu0 %v4160, 16
  %v4931 = vpop.permute.xlu0 %4930
  %4932 = vrot.lane.b32.xlu0 %v4161, 16
  %v4933 = vpop.permute.xlu0 %4932
  %4934 = vrot.lane.b32.xlu0 %v4162, 16
  %v4935 = vpop.permute.xlu0 %4934
  %4936 = vrot.lane.b32.xlu0 %v4163, 16
  %v4937 = vpop.permute.xlu0 %4936
  %4938 = vrot.lane.b32.xlu0 %v4164, 16
  %v4939 = vpop.permute.xlu0 %4938
  %4940 = vrot.lane.b32.xlu0 %v4165, 16
  %v4941 = vpop.permute.xlu0 %4940
  %4942 = vrot.lane.b32.xlu0 %v4166, 16
  %v4943 = vpop.permute.xlu0 %4942
  %4944 = vrot.lane.b32.xlu0 %v4167, 16
  %v4945 = vpop.permute.xlu0 %4944
  %4946 = vrot.lane.b32.xlu0 %v4168, 16
  %v4947 = vpop.permute.xlu0 %4946
  %4948 = vrot.lane.b32.xlu0 %v4169, 16
  %v4949 = vpop.permute.xlu0 %4948
  %4950 = vrot.lane.b32.xlu0 %v4170, 16
  %v4951 = vpop.permute.xlu0 %4950
  %4952 = vrot.lane.b32.xlu0 %v4171, 16
  %v4953 = vpop.permute.xlu0 %4952
  %4954 = vrot.lane.b32.xlu0 %v4172, 16
  %v4955 = vpop.permute.xlu0 %4954
  %4956 = vrot.lane.b32.xlu0 %v4173, 16
  %v4957 = vpop.permute.xlu0 %4956
  %4958 = vrot.lane.b32.xlu0 %v4174, 16
  %v4959 = vpop.permute.xlu0 %4958
  %4960 = vrot.lane.b32.xlu0 %v4175, 16
  %v4961 = vpop.permute.xlu0 %4960
  %4962 = vrot.lane.b32.xlu0 %v4176, 16
  %v4963 = vpop.permute.xlu0 %4962
  %4964 = vrot.lane.b32.xlu0 %v4177, 16
  %v4965 = vpop.permute.xlu0 %4964
  %4966 = vrot.lane.b32.xlu0 %v4178, 16
  %v4967 = vpop.permute.xlu0 %4966
  %4968 = vrot.lane.b32.xlu0 %v4179, 16
  %v4969 = vpop.permute.xlu0 %4968
  %4970 = vrot.lane.b32.xlu0 %v4180, 16
  %v4971 = vpop.permute.xlu0 %4970
  %4972 = vrot.lane.b32.xlu0 %v4181, 16
  %v4973 = vpop.permute.xlu0 %4972
  %4974 = vrot.lane.b32.xlu0 %v4182, 16
  %v4975 = vpop.permute.xlu0 %4974
  %4976 = vrot.lane.b32.xlu0 %v4183, 16
  %v4977 = vpop.permute.xlu0 %4976
  %4978 = vrot.lane.b32.xlu0 %v4184, 16
  %v4979 = vpop.permute.xlu0 %4978
  %4980 = vrot.lane.b32.xlu0 %v4185, 16
  %v4981 = vpop.permute.xlu0 %4980
  %4982 = vrot.lane.b32.xlu0 %v4186, 16
  %v4983 = vpop.permute.xlu0 %4982
  %4984 = vrot.lane.b32.xlu0 %v4187, 16
  %v4985 = vpop.permute.xlu0 %4984
  %4986 = vrot.lane.b32.xlu0 %v4188, 16
  %v4987 = vpop.permute.xlu0 %4986
  %4988 = vrot.lane.b32.xlu0 %v4189, 16
  %v4989 = vpop.permute.xlu0 %4988
  %4990 = vrot.lane.b32.xlu0 %v4190, 16
  %v4991 = vpop.permute.xlu0 %4990
  %4992 = vrot.lane.b32.xlu0 %v4191, 16
  %v4993 = vpop.permute.xlu0 %4992
  %4994 = vrot.lane.b32.xlu0 %v4192, 16
  %v4995 = vpop.permute.xlu0 %4994
  %4996 = vrot.lane.b32.xlu0 %v4193, 16
  %v4997 = vpop.permute.xlu0 %4996
  %4998 = vrot.lane.b32.xlu0 %v4194, 16
  %v4999 = vpop.permute.xlu0 %4998
  %5000 = vrot.lane.b32.xlu0 %v4195, 16
  %v5001 = vpop.permute.xlu0 %5000
  %5002 = vrot.lane.b32.xlu0 %v4196, 16
  %v5003 = vpop.permute.xlu0 %5002
  %5004 = vrot.lane.b32.xlu0 %v4197, 16
  %v5005 = vpop.permute.xlu0 %5004
  %5006 = vrot.lane.b32.xlu0 %v4198, 16
  %v5007 = vpop.permute.xlu0 %5006
  %5008 = vrot.lane.b32.xlu0 %v4199, 16
  %v5009 = vpop.permute.xlu0 %5008
  %5010 = vrot.lane.b32.xlu0 %v4200, 16
  %v5011 = vpop.permute.xlu0 %5010
  %5012 = vrot.lane.b32.xlu0 %v4201, 16
  %v5013 = vpop.permute.xlu0 %5012
  %5014 = vrot.lane.b32.xlu0 %v4202, 16
  %v5015 = vpop.permute.xlu0 %5014
  %5016 = vrot.lane.b32.xlu0 %v4203, 16
  %v5017 = vpop.permute.xlu0 %5016
  %5018 = vrot.lane.b32.xlu0 %v4204, 16
  %v5019 = vpop.permute.xlu0 %5018
  %5020 = vrot.lane.b32.xlu0 %v4205, 16
  %v5021 = vpop.permute.xlu0 %5020
  %5022 = vrot.lane.b32.xlu0 %v4206, 16
  %v5023 = vpop.permute.xlu0 %5022
  %5024 = vrot.lane.b32.xlu0 %v4207, 16
  %v5025 = vpop.permute.xlu0 %5024
  %5026 = vrot.lane.b32.xlu0 %v4208, 16
  %v5027 = vpop.permute.xlu0 %5026
  %5028 = vrot.lane.b32.xlu0 %v4209, 16
  %v5029 = vpop.permute.xlu0 %5028
  %5030 = vrot.lane.b32.xlu0 %v4210, 16
  %v5031 = vpop.permute.xlu0 %5030
  %5032 = vrot.lane.b32.xlu0 %v4211, 16
  %v5033 = vpop.permute.xlu0 %5032
  %5034 = vrot.lane.b32.xlu0 %v4212, 16
  %v5035 = vpop.permute.xlu0 %5034
  %5036 = vrot.lane.b32.xlu0 %v4213, 16
  %v5037 = vpop.permute.xlu0 %5036
  %5038 = vrot.lane.b32.xlu0 %v4214, 16
  %v5039 = vpop.permute.xlu0 %5038
  %5040 = vrot.lane.b32.xlu0 %v4215, 16
  %v5041 = vpop.permute.xlu0 %5040
  %5042 = vrot.lane.b32.xlu0 %v4216, 16
  %v5043 = vpop.permute.xlu0 %5042
  %5044 = vrot.lane.b32.xlu0 %v4217, 16
  %v5045 = vpop.permute.xlu0 %5044
  %5046 = vrot.lane.b32.xlu0 %v4218, 16
  %v5047 = vpop.permute.xlu0 %5046
  %5048 = vrot.lane.b32.xlu0 %v4219, 16
  %v5049 = vpop.permute.xlu0 %5048
  %5050 = vrot.lane.b32.xlu0 %v4220, 16
  %v5051 = vpop.permute.xlu0 %5050
  %5052 = vrot.lane.b32.xlu0 %v4221, 16
  %v5053 = vpop.permute.xlu0 %5052
  %5054 = vrot.lane.b32.xlu0 %v4222, 16
  %v5055 = vpop.permute.xlu0 %5054
  %5184 = vrot.lane.b32.xlu0 %v4223, 24
  %v5185 = vpop.permute.xlu0 %5184
  %5186 = vrot.lane.b32.xlu0 %v4224, 24
  %v5187 = vpop.permute.xlu0 %5186
  %5188 = vrot.lane.b32.xlu0 %v4225, 24
  %v5189 = vpop.permute.xlu0 %5188
  %5190 = vrot.lane.b32.xlu0 %v4226, 24
  %v5191 = vpop.permute.xlu0 %5190
  %5192 = vrot.lane.b32.xlu0 %v4227, 24
  %v5193 = vpop.permute.xlu0 %5192
  %5194 = vrot.lane.b32.xlu0 %v4228, 24
  %v5195 = vpop.permute.xlu0 %5194
  %5196 = vrot.lane.b32.xlu0 %v4229, 24
  %v5197 = vpop.permute.xlu0 %5196
  %5198 = vrot.lane.b32.xlu0 %v4230, 24
  %v5199 = vpop.permute.xlu0 %5198
  %5200 = vrot.lane.b32.xlu0 %v4231, 24
  %v5201 = vpop.permute.xlu0 %5200
  %5202 = vrot.lane.b32.xlu0 %v4232, 24
  %v5203 = vpop.permute.xlu0 %5202
  %5204 = vrot.lane.b32.xlu0 %v4233, 24
  %v5205 = vpop.permute.xlu0 %5204
  %5206 = vrot.lane.b32.xlu0 %v4234, 24
  %v5207 = vpop.permute.xlu0 %5206
  %5208 = vrot.lane.b32.xlu0 %v4235, 24
  %v5209 = vpop.permute.xlu0 %5208
  %5210 = vrot.lane.b32.xlu0 %v4236, 24
  %v5211 = vpop.permute.xlu0 %5210
  %5212 = vrot.lane.b32.xlu0 %v4237, 24
  %v5213 = vpop.permute.xlu0 %5212
  %5214 = vrot.lane.b32.xlu0 %v4238, 24
  %v5215 = vpop.permute.xlu0 %5214
  %5216 = vrot.lane.b32.xlu0 %v4239, 24
  %v5217 = vpop.permute.xlu0 %5216
  %5218 = vrot.lane.b32.xlu0 %v4240, 24
  %v5219 = vpop.permute.xlu0 %5218
  %5220 = vrot.lane.b32.xlu0 %v4241, 24
  %v5221 = vpop.permute.xlu0 %5220
  %5222 = vrot.lane.b32.xlu0 %v4242, 24
  %v5223 = vpop.permute.xlu0 %5222
  %5224 = vrot.lane.b32.xlu0 %v4243, 24
  %v5225 = vpop.permute.xlu0 %5224
  %5226 = vrot.lane.b32.xlu0 %v4244, 24
  %v5227 = vpop.permute.xlu0 %5226
  %5228 = vrot.lane.b32.xlu0 %v4245, 24
  %v5229 = vpop.permute.xlu0 %5228
  %5230 = vrot.lane.b32.xlu0 %v4246, 24
  %v5231 = vpop.permute.xlu0 %5230
  %5232 = vrot.lane.b32.xlu0 %v4247, 24
  %v5233 = vpop.permute.xlu0 %5232
  %5234 = vrot.lane.b32.xlu0 %v4248, 24
  %v5235 = vpop.permute.xlu0 %5234
  %5236 = vrot.lane.b32.xlu0 %v4249, 24
  %v5237 = vpop.permute.xlu0 %5236
  %5238 = vrot.lane.b32.xlu0 %v4250, 24
  %v5239 = vpop.permute.xlu0 %5238
  %5240 = vrot.lane.b32.xlu0 %v4251, 24
  %v5241 = vpop.permute.xlu0 %5240
  %5242 = vrot.lane.b32.xlu0 %v4252, 24
  %v5243 = vpop.permute.xlu0 %5242
  %5244 = vrot.lane.b32.xlu0 %v4253, 24
  %v5245 = vpop.permute.xlu0 %5244
  %5246 = vrot.lane.b32.xlu0 %v4254, 24
  %v5247 = vpop.permute.xlu0 %5246
  %5248 = vrot.lane.b32.xlu0 %v4255, 24
  %v5249 = vpop.permute.xlu0 %5248
  %5250 = vrot.lane.b32.xlu0 %v4256, 24
  %v5251 = vpop.permute.xlu0 %5250
  %5252 = vrot.lane.b32.xlu0 %v4257, 24
  %v5253 = vpop.permute.xlu0 %5252
  %5254 = vrot.lane.b32.xlu0 %v4258, 24
  %v5255 = vpop.permute.xlu0 %5254
  %5256 = vrot.lane.b32.xlu0 %v4259, 24
  %v5257 = vpop.permute.xlu0 %5256
  %5258 = vrot.lane.b32.xlu0 %v4260, 24
  %v5259 = vpop.permute.xlu0 %5258
  %5260 = vrot.lane.b32.xlu0 %v4261, 24
  %v5261 = vpop.permute.xlu0 %5260
  %5262 = vrot.lane.b32.xlu0 %v4262, 24
  %v5263 = vpop.permute.xlu0 %5262
  %5264 = vrot.lane.b32.xlu0 %v4263, 24
  %v5265 = vpop.permute.xlu0 %5264
  %5266 = vrot.lane.b32.xlu0 %v4264, 24
  %v5267 = vpop.permute.xlu0 %5266
  %5268 = vrot.lane.b32.xlu0 %v4265, 24
  %v5269 = vpop.permute.xlu0 %5268
  %5270 = vrot.lane.b32.xlu0 %v4266, 24
  %v5271 = vpop.permute.xlu0 %5270
  %5272 = vrot.lane.b32.xlu0 %v4267, 24
  %v5273 = vpop.permute.xlu0 %5272
  %5274 = vrot.lane.b32.xlu0 %v4268, 24
  %v5275 = vpop.permute.xlu0 %5274
  %5276 = vrot.lane.b32.xlu0 %v4269, 24
  %v5277 = vpop.permute.xlu0 %5276
  %5278 = vrot.lane.b32.xlu0 %v4270, 24
  %v5279 = vpop.permute.xlu0 %5278
  %5280 = vrot.lane.b32.xlu0 %v4271, 24
  %v5281 = vpop.permute.xlu0 %5280
  %5282 = vrot.lane.b32.xlu0 %v4272, 24
  %v5283 = vpop.permute.xlu0 %5282
  %5284 = vrot.lane.b32.xlu0 %v4273, 24
  %v5285 = vpop.permute.xlu0 %5284
  %5286 = vrot.lane.b32.xlu0 %v4274, 24
  %v5287 = vpop.permute.xlu0 %5286
  %5288 = vrot.lane.b32.xlu0 %v4275, 24
  %v5289 = vpop.permute.xlu0 %5288
  %5290 = vrot.lane.b32.xlu0 %v4276, 24
  %v5291 = vpop.permute.xlu0 %5290
  %5292 = vrot.lane.b32.xlu0 %v4277, 24
  %v5293 = vpop.permute.xlu0 %5292
  %5294 = vrot.lane.b32.xlu0 %v4278, 24
  %v5295 = vpop.permute.xlu0 %5294
  %5296 = vrot.lane.b32.xlu0 %v4279, 24
  %v5297 = vpop.permute.xlu0 %5296
  %5298 = vrot.lane.b32.xlu0 %v4280, 24
  %v5299 = vpop.permute.xlu0 %5298
  %5300 = vrot.lane.b32.xlu0 %v4281, 24
  %v5301 = vpop.permute.xlu0 %5300
  %5302 = vrot.lane.b32.xlu0 %v4282, 24
  %v5303 = vpop.permute.xlu0 %5302
  %5304 = vrot.lane.b32.xlu0 %v4283, 24
  %v5305 = vpop.permute.xlu0 %5304
  %5306 = vrot.lane.b32.xlu0 %v4284, 24
  %v5307 = vpop.permute.xlu0 %5306
  %5308 = vrot.lane.b32.xlu0 %v4285, 24
  %v5309 = vpop.permute.xlu0 %5308
  %5310 = vrot.lane.b32.xlu0 %v4286, 24
  %v5311 = vpop.permute.xlu0 %5310
  %5440 = vrot.lane.b32.xlu0 %v4287, 32
  %v5441 = vpop.permute.xlu0 %5440
  %5442 = vrot.lane.b32.xlu0 %v4288, 32
  %v5443 = vpop.permute.xlu0 %5442
  %5444 = vrot.lane.b32.xlu0 %v4289, 32
  %v5445 = vpop.permute.xlu0 %5444
  %5446 = vrot.lane.b32.xlu0 %v4290, 32
  %v5447 = vpop.permute.xlu0 %5446
  %5448 = vrot.lane.b32.xlu0 %v4291, 32
  %v5449 = vpop.permute.xlu0 %5448
  %5450 = vrot.lane.b32.xlu0 %v4292, 32
  %v5451 = vpop.permute.xlu0 %5450
  %5452 = vrot.lane.b32.xlu0 %v4293, 32
  %v5453 = vpop.permute.xlu0 %5452
  %5454 = vrot.lane.b32.xlu0 %v4294, 32
  %v5455 = vpop.permute.xlu0 %5454
  %5456 = vrot.lane.b32.xlu0 %v4295, 32
  %v5457 = vpop.permute.xlu0 %5456
  %5458 = vrot.lane.b32.xlu0 %v4296, 32
  %v5459 = vpop.permute.xlu0 %5458
  %5460 = vrot.lane.b32.xlu0 %v4297, 32
  %v5461 = vpop.permute.xlu0 %5460
  %5462 = vrot.lane.b32.xlu0 %v4298, 32
  %v5463 = vpop.permute.xlu0 %5462
  %5464 = vrot.lane.b32.xlu0 %v4299, 32
  %v5465 = vpop.permute.xlu0 %5464
  %5466 = vrot.lane.b32.xlu0 %v4300, 32
  %v5467 = vpop.permute.xlu0 %5466
  %5468 = vrot.lane.b32.xlu0 %v4301, 32
  %v5469 = vpop.permute.xlu0 %5468
  %5470 = vrot.lane.b32.xlu0 %v4302, 32
  %v5471 = vpop.permute.xlu0 %5470
  %5472 = vrot.lane.b32.xlu0 %v4303, 32
  %v5473 = vpop.permute.xlu0 %5472
  %5474 = vrot.lane.b32.xlu0 %v4304, 32
  %v5475 = vpop.permute.xlu0 %5474
  %5476 = vrot.lane.b32.xlu0 %v4305, 32
  %v5477 = vpop.permute.xlu0 %5476
  %5478 = vrot.lane.b32.xlu0 %v4306, 32
  %v5479 = vpop.permute.xlu0 %5478
  %5480 = vrot.lane.b32.xlu0 %v4307, 32
  %v5481 = vpop.permute.xlu0 %5480
  %5482 = vrot.lane.b32.xlu0 %v4308, 32
  %v5483 = vpop.permute.xlu0 %5482
  %5484 = vrot.lane.b32.xlu0 %v4309, 32
  %v5485 = vpop.permute.xlu0 %5484
  %5486 = vrot.lane.b32.xlu0 %v4310, 32
  %v5487 = vpop.permute.xlu0 %5486
  %5488 = vrot.lane.b32.xlu0 %v4311, 32
  %v5489 = vpop.permute.xlu0 %5488
  %5490 = vrot.lane.b32.xlu0 %v4312, 32
  %v5491 = vpop.permute.xlu0 %5490
  %5492 = vrot.lane.b32.xlu0 %v4313, 32
  %v5493 = vpop.permute.xlu0 %5492
  %5494 = vrot.lane.b32.xlu0 %v4314, 32
  %v5495 = vpop.permute.xlu0 %5494
  %5496 = vrot.lane.b32.xlu0 %v4315, 32
  %v5497 = vpop.permute.xlu0 %5496
  %5498 = vrot.lane.b32.xlu0 %v4316, 32
  %v5499 = vpop.permute.xlu0 %5498
  %5500 = vrot.lane.b32.xlu0 %v4317, 32
  %v5501 = vpop.permute.xlu0 %5500
  %5502 = vrot.lane.b32.xlu0 %v4318, 32
  %v5503 = vpop.permute.xlu0 %5502
  %5504 = vrot.lane.b32.xlu0 %v4319, 32
  %v5505 = vpop.permute.xlu0 %5504
  %5506 = vrot.lane.b32.xlu0 %v4320, 32
  %v5507 = vpop.permute.xlu0 %5506
  %5508 = vrot.lane.b32.xlu0 %v4321, 32
  %v5509 = vpop.permute.xlu0 %5508
  %5510 = vrot.lane.b32.xlu0 %v4322, 32
  %v5511 = vpop.permute.xlu0 %5510
  %5512 = vrot.lane.b32.xlu0 %v4323, 32
  %v5513 = vpop.permute.xlu0 %5512
  %5514 = vrot.lane.b32.xlu0 %v4324, 32
  %v5515 = vpop.permute.xlu0 %5514
  %5516 = vrot.lane.b32.xlu0 %v4325, 32
  %v5517 = vpop.permute.xlu0 %5516
  %5518 = vrot.lane.b32.xlu0 %v4326, 32
  %v5519 = vpop.permute.xlu0 %5518
  %5520 = vrot.lane.b32.xlu0 %v4327, 32
  %v5521 = vpop.permute.xlu0 %5520
  %5522 = vrot.lane.b32.xlu0 %v4328, 32
  %v5523 = vpop.permute.xlu0 %5522
  %5524 = vrot.lane.b32.xlu0 %v4329, 32
  %v5525 = vpop.permute.xlu0 %5524
  %5526 = vrot.lane.b32.xlu0 %v4330, 32
  %v5527 = vpop.permute.xlu0 %5526
  %5528 = vrot.lane.b32.xlu0 %v4331, 32
  %v5529 = vpop.permute.xlu0 %5528
  %5530 = vrot.lane.b32.xlu0 %v4332, 32
  %v5531 = vpop.permute.xlu0 %5530
  %5532 = vrot.lane.b32.xlu0 %v4333, 32
  %v5533 = vpop.permute.xlu0 %5532
  %5534 = vrot.lane.b32.xlu0 %v4334, 32
  %v5535 = vpop.permute.xlu0 %5534
  %5536 = vrot.lane.b32.xlu0 %v4335, 32
  %v5537 = vpop.permute.xlu0 %5536
  %5538 = vrot.lane.b32.xlu0 %v4336, 32
  %v5539 = vpop.permute.xlu0 %5538
  %5540 = vrot.lane.b32.xlu0 %v4337, 32
  %v5541 = vpop.permute.xlu0 %5540
  %5542 = vrot.lane.b32.xlu0 %v4338, 32
  %v5543 = vpop.permute.xlu0 %5542
  %5544 = vrot.lane.b32.xlu0 %v4339, 32
  %v5545 = vpop.permute.xlu0 %5544
  %5546 = vrot.lane.b32.xlu0 %v4340, 32
  %v5547 = vpop.permute.xlu0 %5546
  %5548 = vrot.lane.b32.xlu0 %v4341, 32
  %v5549 = vpop.permute.xlu0 %5548
  %5550 = vrot.lane.b32.xlu0 %v4342, 32
  %v5551 = vpop.permute.xlu0 %5550
  %5552 = vrot.lane.b32.xlu0 %v4343, 32
  %v5553 = vpop.permute.xlu0 %5552
  %5554 = vrot.lane.b32.xlu0 %v4344, 32
  %v5555 = vpop.permute.xlu0 %5554
  %5556 = vrot.lane.b32.xlu0 %v4345, 32
  %v5557 = vpop.permute.xlu0 %5556
  %5558 = vrot.lane.b32.xlu0 %v4346, 32
  %v5559 = vpop.permute.xlu0 %5558
  %5560 = vrot.lane.b32.xlu0 %v4347, 32
  %v5561 = vpop.permute.xlu0 %5560
  %5562 = vrot.lane.b32.xlu0 %v4348, 32
  %v5563 = vpop.permute.xlu0 %5562
  %5564 = vrot.lane.b32.xlu0 %v4349, 32
  %v5565 = vpop.permute.xlu0 %5564
  %5566 = vrot.lane.b32.xlu0 %v4350, 32
  %v5567 = vpop.permute.xlu0 %5566
  %5696 = vrot.lane.b32.xlu0 %v4351, 40
  %v5697 = vpop.permute.xlu0 %5696
  %5698 = vrot.lane.b32.xlu0 %v4352, 40
  %v5699 = vpop.permute.xlu0 %5698
  %5700 = vrot.lane.b32.xlu0 %v4353, 40
  %v5701 = vpop.permute.xlu0 %5700
  %5702 = vrot.lane.b32.xlu0 %v4354, 40
  %v5703 = vpop.permute.xlu0 %5702
  %5704 = vrot.lane.b32.xlu0 %v4355, 40
  %v5705 = vpop.permute.xlu0 %5704
  %5706 = vrot.lane.b32.xlu0 %v4356, 40
  %v5707 = vpop.permute.xlu0 %5706
  %5708 = vrot.lane.b32.xlu0 %v4357, 40
  %v5709 = vpop.permute.xlu0 %5708
  %5710 = vrot.lane.b32.xlu0 %v4358, 40
  %v5711 = vpop.permute.xlu0 %5710
  %5712 = vrot.lane.b32.xlu0 %v4359, 40
  %v5713 = vpop.permute.xlu0 %5712
  %5714 = vrot.lane.b32.xlu0 %v4360, 40
  %v5715 = vpop.permute.xlu0 %5714
  %5716 = vrot.lane.b32.xlu0 %v4361, 40
  %v5717 = vpop.permute.xlu0 %5716
  %5718 = vrot.lane.b32.xlu0 %v4362, 40
  %v5719 = vpop.permute.xlu0 %5718
  %5720 = vrot.lane.b32.xlu0 %v4363, 40
  %v5721 = vpop.permute.xlu0 %5720
  %5722 = vrot.lane.b32.xlu0 %v4364, 40
  %v5723 = vpop.permute.xlu0 %5722
  %5724 = vrot.lane.b32.xlu0 %v4365, 40
  %v5725 = vpop.permute.xlu0 %5724
  %5726 = vrot.lane.b32.xlu0 %v4366, 40
  %v5727 = vpop.permute.xlu0 %5726
  %5728 = vrot.lane.b32.xlu0 %v4367, 40
  %v5729 = vpop.permute.xlu0 %5728
  %5730 = vrot.lane.b32.xlu0 %v4368, 40
  %v5731 = vpop.permute.xlu0 %5730
  %5732 = vrot.lane.b32.xlu0 %v4369, 40
  %v5733 = vpop.permute.xlu0 %5732
  %5734 = vrot.lane.b32.xlu0 %v4370, 40
  %v5735 = vpop.permute.xlu0 %5734
  %5736 = vrot.lane.b32.xlu0 %v4371, 40
  %v5737 = vpop.permute.xlu0 %5736
  %5738 = vrot.lane.b32.xlu0 %v4372, 40
  %v5739 = vpop.permute.xlu0 %5738
  %5740 = vrot.lane.b32.xlu0 %v4373, 40
  %v5741 = vpop.permute.xlu0 %5740
  %5742 = vrot.lane.b32.xlu0 %v4374, 40
  %v5743 = vpop.permute.xlu0 %5742
  %5744 = vrot.lane.b32.xlu0 %v4375, 40
  %v5745 = vpop.permute.xlu0 %5744
  %5746 = vrot.lane.b32.xlu0 %v4376, 40
  %v5747 = vpop.permute.xlu0 %5746
  %5748 = vrot.lane.b32.xlu0 %v4377, 40
  %v5749 = vpop.permute.xlu0 %5748
  %5750 = vrot.lane.b32.xlu0 %v4378, 40
  %v5751 = vpop.permute.xlu0 %5750
  %5752 = vrot.lane.b32.xlu0 %v4379, 40
  %v5753 = vpop.permute.xlu0 %5752
  %5754 = vrot.lane.b32.xlu0 %v4380, 40
  %v5755 = vpop.permute.xlu0 %5754
  %5756 = vrot.lane.b32.xlu0 %v4381, 40
  %v5757 = vpop.permute.xlu0 %5756
  %5758 = vrot.lane.b32.xlu0 %v4382, 40
  %v5759 = vpop.permute.xlu0 %5758
  %5760 = vrot.lane.b32.xlu0 %v4383, 40
  %v5761 = vpop.permute.xlu0 %5760
  %5762 = vrot.lane.b32.xlu0 %v4384, 40
  %v5763 = vpop.permute.xlu0 %5762
  %5764 = vrot.lane.b32.xlu0 %v4385, 40
  %v5765 = vpop.permute.xlu0 %5764
  %5766 = vrot.lane.b32.xlu0 %v4386, 40
  %v5767 = vpop.permute.xlu0 %5766
  %5768 = vrot.lane.b32.xlu0 %v4387, 40
  %v5769 = vpop.permute.xlu0 %5768
  %5770 = vrot.lane.b32.xlu0 %v4388, 40
  %v5771 = vpop.permute.xlu0 %5770
  %5772 = vrot.lane.b32.xlu0 %v4389, 40
  %v5773 = vpop.permute.xlu0 %5772
  %5774 = vrot.lane.b32.xlu0 %v4390, 40
  %v5775 = vpop.permute.xlu0 %5774
  %5776 = vrot.lane.b32.xlu0 %v4391, 40
  %v5777 = vpop.permute.xlu0 %5776
  %5778 = vrot.lane.b32.xlu0 %v4392, 40
  %v5779 = vpop.permute.xlu0 %5778
  %5780 = vrot.lane.b32.xlu0 %v4393, 40
  %v5781 = vpop.permute.xlu0 %5780
  %5782 = vrot.lane.b32.xlu0 %v4394, 40
  %v5783 = vpop.permute.xlu0 %5782
  %5784 = vrot.lane.b32.xlu0 %v4395, 40
  %v5785 = vpop.permute.xlu0 %5784
  %5786 = vrot.lane.b32.xlu0 %v4396, 40
  %v5787 = vpop.permute.xlu0 %5786
  %5788 = vrot.lane.b32.xlu0 %v4397, 40
  %v5789 = vpop.permute.xlu0 %5788
  %5790 = vrot.lane.b32.xlu0 %v4398, 40
  %v5791 = vpop.permute.xlu0 %5790
  %5792 = vrot.lane.b32.xlu0 %v4399, 40
  %v5793 = vpop.permute.xlu0 %5792
  %5794 = vrot.lane.b32.xlu0 %v4400, 40
  %v5795 = vpop.permute.xlu0 %5794
  %5796 = vrot.lane.b32.xlu0 %v4401, 40
  %v5797 = vpop.permute.xlu0 %5796
  %5798 = vrot.lane.b32.xlu0 %v4402, 40
  %v5799 = vpop.permute.xlu0 %5798
  %5800 = vrot.lane.b32.xlu0 %v4403, 40
  %v5801 = vpop.permute.xlu0 %5800
  %5802 = vrot.lane.b32.xlu0 %v4404, 40
  %v5803 = vpop.permute.xlu0 %5802
  %5804 = vrot.lane.b32.xlu0 %v4405, 40
  %v5805 = vpop.permute.xlu0 %5804
  %5806 = vrot.lane.b32.xlu0 %v4406, 40
  %v5807 = vpop.permute.xlu0 %5806
  %5808 = vrot.lane.b32.xlu0 %v4407, 40
  %v5809 = vpop.permute.xlu0 %5808
  %5810 = vrot.lane.b32.xlu0 %v4408, 40
  %v5811 = vpop.permute.xlu0 %5810
  %5812 = vrot.lane.b32.xlu0 %v4409, 40
  %v5813 = vpop.permute.xlu0 %5812
  %5814 = vrot.lane.b32.xlu0 %v4410, 40
  %v5815 = vpop.permute.xlu0 %5814
  %5816 = vrot.lane.b32.xlu0 %v4411, 40
  %v5817 = vpop.permute.xlu0 %5816
  %5818 = vrot.lane.b32.xlu0 %v4412, 40
  %v5819 = vpop.permute.xlu0 %5818
  %5820 = vrot.lane.b32.xlu0 %v4413, 40
  %v5821 = vpop.permute.xlu0 %5820
  %5822 = vrot.lane.b32.xlu0 %v4414, 40
  %v5823 = vpop.permute.xlu0 %5822
  %5952 = vrot.lane.b32.xlu0 %v4416, 48
  %v5953 = vpop.permute.xlu0 %5952
  %5954 = vrot.lane.b32.xlu0 %v4417, 48
  %v5955 = vpop.permute.xlu0 %5954
  %5956 = vrot.lane.b32.xlu0 %v4418, 48
  %v5957 = vpop.permute.xlu0 %5956
  %5958 = vrot.lane.b32.xlu0 %v4419, 48
  %v5959 = vpop.permute.xlu0 %5958
  %5960 = vrot.lane.b32.xlu0 %v4420, 48
  %v5961 = vpop.permute.xlu0 %5960
  %5962 = vrot.lane.b32.xlu0 %v4421, 48
  %v5963 = vpop.permute.xlu0 %5962
  %5964 = vrot.lane.b32.xlu0 %v4422, 48
  %v5965 = vpop.permute.xlu0 %5964
  %5966 = vrot.lane.b32.xlu0 %v4423, 48
  %v5967 = vpop.permute.xlu0 %5966
  %5968 = vrot.lane.b32.xlu0 %v4424, 48
  %v5969 = vpop.permute.xlu0 %5968
  %5970 = vrot.lane.b32.xlu0 %v4425, 48
  %v5971 = vpop.permute.xlu0 %5970
  %5972 = vrot.lane.b32.xlu0 %v4426, 48
  %v5973 = vpop.permute.xlu0 %5972
  %5974 = vrot.lane.b32.xlu0 %v4427, 48
  %v5975 = vpop.permute.xlu0 %5974
  %5976 = vrot.lane.b32.xlu0 %v4428, 48
  %v5977 = vpop.permute.xlu0 %5976
  %5978 = vrot.lane.b32.xlu0 %v4429, 48
  %v5979 = vpop.permute.xlu0 %5978
  %5980 = vrot.lane.b32.xlu0 %v4430, 48
  %v5981 = vpop.permute.xlu0 %5980
  %5982 = vrot.lane.b32.xlu0 %v4431, 48
  %v5983 = vpop.permute.xlu0 %5982
  %5984 = vrot.lane.b32.xlu0 %v4432, 48
  %v5985 = vpop.permute.xlu0 %5984
  %5986 = vrot.lane.b32.xlu0 %v4433, 48
  %v5987 = vpop.permute.xlu0 %5986
  %5988 = vrot.lane.b32.xlu0 %v4434, 48
  %v5989 = vpop.permute.xlu0 %5988
  %5990 = vrot.lane.b32.xlu0 %v4435, 48
  %v5991 = vpop.permute.xlu0 %5990
  %5992 = vrot.lane.b32.xlu0 %v4436, 48
  %v5993 = vpop.permute.xlu0 %5992
  %5994 = vrot.lane.b32.xlu0 %v4437, 48
  %v5995 = vpop.permute.xlu0 %5994
  %5996 = vrot.lane.b32.xlu0 %v4438, 48
  %v5997 = vpop.permute.xlu0 %5996
  %5998 = vrot.lane.b32.xlu0 %v4439, 48
  %v5999 = vpop.permute.xlu0 %5998
  %6000 = vrot.lane.b32.xlu0 %v4440, 48
  %v6001 = vpop.permute.xlu0 %6000
  %6002 = vrot.lane.b32.xlu0 %v4441, 48
  %v6003 = vpop.permute.xlu0 %6002
  %6004 = vrot.lane.b32.xlu0 %v4442, 48
  %v6005 = vpop.permute.xlu0 %6004
  %6006 = vrot.lane.b32.xlu0 %v4443, 48
  %v6007 = vpop.permute.xlu0 %6006
  %6008 = vrot.lane.b32.xlu0 %v4444, 48
  %v6009 = vpop.permute.xlu0 %6008
  %6010 = vrot.lane.b32.xlu0 %v4445, 48
  %v6011 = vpop.permute.xlu0 %6010
  %6012 = vrot.lane.b32.xlu0 %v4446, 48
  %v6013 = vpop.permute.xlu0 %6012
  %6014 = vrot.lane.b32.xlu0 %v4447, 48
  %v6015 = vpop.permute.xlu0 %6014
  %6016 = vrot.lane.b32.xlu0 %v4448, 48
  %v6017 = vpop.permute.xlu0 %6016
  %6018 = vrot.lane.b32.xlu0 %v4449, 48
  %v6019 = vpop.permute.xlu0 %6018
  %6020 = vrot.lane.b32.xlu0 %v4450, 48
  %v6021 = vpop.permute.xlu0 %6020
  %6022 = vrot.lane.b32.xlu0 %v4451, 48
  %v6023 = vpop.permute.xlu0 %6022
  %6024 = vrot.lane.b32.xlu0 %v4452, 48
  %v6025 = vpop.permute.xlu0 %6024
  %6026 = vrot.lane.b32.xlu0 %v4453, 48
  %v6027 = vpop.permute.xlu0 %6026
  %6028 = vrot.lane.b32.xlu0 %v4454, 48
  %v6029 = vpop.permute.xlu0 %6028
  %6030 = vrot.lane.b32.xlu0 %v4455, 48
  %v6031 = vpop.permute.xlu0 %6030
  %6032 = vrot.lane.b32.xlu0 %v4456, 48
  %v6033 = vpop.permute.xlu0 %6032
  %6034 = vrot.lane.b32.xlu0 %v4457, 48
  %v6035 = vpop.permute.xlu0 %6034
  %6036 = vrot.lane.b32.xlu0 %v4458, 48
  %v6037 = vpop.permute.xlu0 %6036
  %6038 = vrot.lane.b32.xlu0 %v4459, 48
  %v6039 = vpop.permute.xlu0 %6038
  %6040 = vrot.lane.b32.xlu0 %v4460, 48
  %v6041 = vpop.permute.xlu0 %6040
  %6042 = vrot.lane.b32.xlu0 %v4461, 48
  %v6043 = vpop.permute.xlu0 %6042
  %6044 = vrot.lane.b32.xlu0 %v4462, 48
  %v6045 = vpop.permute.xlu0 %6044
  %6046 = vrot.lane.b32.xlu0 %v4463, 48
  %v6047 = vpop.permute.xlu0 %6046
  %6048 = vrot.lane.b32.xlu0 %v4464, 48
  %v6049 = vpop.permute.xlu0 %6048
  %6050 = vrot.lane.b32.xlu0 %v4465, 48
  %v6051 = vpop.permute.xlu0 %6050
  %6052 = vrot.lane.b32.xlu0 %v4466, 48
  %v6053 = vpop.permute.xlu0 %6052
  %6054 = vrot.lane.b32.xlu0 %v4467, 48
  %v6055 = vpop.permute.xlu0 %6054
  %6056 = vrot.lane.b32.xlu0 %v4468, 48
  %v6057 = vpop.permute.xlu0 %6056
  %6058 = vrot.lane.b32.xlu0 %v4469, 48
  %v6059 = vpop.permute.xlu0 %6058
  %6060 = vrot.lane.b32.xlu0 %v4470, 48
  %v6061 = vpop.permute.xlu0 %6060
  %6062 = vrot.lane.b32.xlu0 %v4471, 48
  %v6063 = vpop.permute.xlu0 %6062
  %6064 = vrot.lane.b32.xlu0 %v4472, 48
  %v6065 = vpop.permute.xlu0 %6064
  %6066 = vrot.lane.b32.xlu0 %v4473, 48
  %v6067 = vpop.permute.xlu0 %6066
  %6068 = vrot.lane.b32.xlu0 %v4474, 48
  %v6069 = vpop.permute.xlu0 %6068
  %6070 = vrot.lane.b32.xlu0 %v4475, 48
  %v6071 = vpop.permute.xlu0 %6070
  %6072 = vrot.lane.b32.xlu0 %v4476, 48
  %v6073 = vpop.permute.xlu0 %6072
  %6074 = vrot.lane.b32.xlu0 %v4477, 48
  %v6075 = vpop.permute.xlu0 %6074
  %6076 = vrot.lane.b32.xlu0 %v4478, 48
  %v6077 = vpop.permute.xlu0 %6076
  %6078 = vrot.lane.b32.xlu0 %v4479, 48
  %v6079 = vpop.permute.xlu0 %6078
  %6208 = vrot.lane.b32.xlu0 %v4480, 56
  %v6209 = vpop.permute.xlu0 %6208
  %6210 = vrot.lane.b32.xlu0 %v4481, 56
  %v6211 = vpop.permute.xlu0 %6210
  %6212 = vrot.lane.b32.xlu0 %v4482, 56
  %v6213 = vpop.permute.xlu0 %6212
  %6214 = vrot.lane.b32.xlu0 %v4483, 56
  %v6215 = vpop.permute.xlu0 %6214
  %6216 = vrot.lane.b32.xlu0 %v4484, 56
  %v6217 = vpop.permute.xlu0 %6216
  %6218 = vrot.lane.b32.xlu0 %v4485, 56
  %v6219 = vpop.permute.xlu0 %6218
  %6220 = vrot.lane.b32.xlu0 %v4486, 56
  %v6221 = vpop.permute.xlu0 %6220
  %6222 = vrot.lane.b32.xlu0 %v4487, 56
  %v6223 = vpop.permute.xlu0 %6222
  %6224 = vrot.lane.b32.xlu0 %v4488, 56
  %v6225 = vpop.permute.xlu0 %6224
  %6226 = vrot.lane.b32.xlu0 %v4489, 56
  %v6227 = vpop.permute.xlu0 %6226
  %6228 = vrot.lane.b32.xlu0 %v4490, 56
  %v6229 = vpop.permute.xlu0 %6228
  %6230 = vrot.lane.b32.xlu0 %v4491, 56
  %v6231 = vpop.permute.xlu0 %6230
  %6232 = vrot.lane.b32.xlu0 %v4492, 56
  %v6233 = vpop.permute.xlu0 %6232
  %6234 = vrot.lane.b32.xlu0 %v4493, 56
  %v6235 = vpop.permute.xlu0 %6234
  %6236 = vrot.lane.b32.xlu0 %v4494, 56
  %v6237 = vpop.permute.xlu0 %6236
  %6238 = vrot.lane.b32.xlu0 %v4495, 56
  %v6239 = vpop.permute.xlu0 %6238
  %6240 = vrot.lane.b32.xlu0 %v4496, 56
  %v6241 = vpop.permute.xlu0 %6240
  %6242 = vrot.lane.b32.xlu0 %v4497, 56
  %v6243 = vpop.permute.xlu0 %6242
  %6244 = vrot.lane.b32.xlu0 %v4498, 56
  %v6245 = vpop.permute.xlu0 %6244
  %6246 = vrot.lane.b32.xlu0 %v4499, 56
  %v6247 = vpop.permute.xlu0 %6246
  %6248 = vrot.lane.b32.xlu0 %v4500, 56
  %v6249 = vpop.permute.xlu0 %6248
  %6250 = vrot.lane.b32.xlu0 %v4501, 56
  %v6251 = vpop.permute.xlu0 %6250
  %6252 = vrot.lane.b32.xlu0 %v4502, 56
  %v6253 = vpop.permute.xlu0 %6252
  %6254 = vrot.lane.b32.xlu0 %v4503, 56
  %v6255 = vpop.permute.xlu0 %6254
  %6256 = vrot.lane.b32.xlu0 %v4504, 56
  %v6257 = vpop.permute.xlu0 %6256
  %6258 = vrot.lane.b32.xlu0 %v4505, 56
  %v6259 = vpop.permute.xlu0 %6258
  %6260 = vrot.lane.b32.xlu0 %v4506, 56
  %v6261 = vpop.permute.xlu0 %6260
  %6262 = vrot.lane.b32.xlu0 %v4507, 56
  %v6263 = vpop.permute.xlu0 %6262
  %6264 = vrot.lane.b32.xlu0 %v4508, 56
  %v6265 = vpop.permute.xlu0 %6264
  %6266 = vrot.lane.b32.xlu0 %v4509, 56
  %v6267 = vpop.permute.xlu0 %6266
  %6268 = vrot.lane.b32.xlu0 %v4510, 56
  %v6269 = vpop.permute.xlu0 %6268
  %6270 = vrot.lane.b32.xlu0 %v4511, 56
  %v6271 = vpop.permute.xlu0 %6270
  %6272 = vrot.lane.b32.xlu0 %v4512, 56
  %v6273 = vpop.permute.xlu0 %6272
  %6274 = vrot.lane.b32.xlu0 %v4513, 56
  %v6275 = vpop.permute.xlu0 %6274
  %6276 = vrot.lane.b32.xlu0 %v4514, 56
  %v6277 = vpop.permute.xlu0 %6276
  %6278 = vrot.lane.b32.xlu0 %v4515, 56
  %v6279 = vpop.permute.xlu0 %6278
  %6280 = vrot.lane.b32.xlu0 %v4516, 56
  %v6281 = vpop.permute.xlu0 %6280
  %6282 = vrot.lane.b32.xlu0 %v4517, 56
  %v6283 = vpop.permute.xlu0 %6282
  %6284 = vrot.lane.b32.xlu0 %v4518, 56
  %v6285 = vpop.permute.xlu0 %6284
  %6286 = vrot.lane.b32.xlu0 %v4519, 56
  %v6287 = vpop.permute.xlu0 %6286
  %6288 = vrot.lane.b32.xlu0 %v4520, 56
  %v6289 = vpop.permute.xlu0 %6288
  %6290 = vrot.lane.b32.xlu0 %v4521, 56
  %v6291 = vpop.permute.xlu0 %6290
  %6292 = vrot.lane.b32.xlu0 %v4522, 56
  %v6293 = vpop.permute.xlu0 %6292
  %6294 = vrot.lane.b32.xlu0 %v4523, 56
  %v6295 = vpop.permute.xlu0 %6294
  %6296 = vrot.lane.b32.xlu0 %v4524, 56
  %v6297 = vpop.permute.xlu0 %6296
  %6298 = vrot.lane.b32.xlu0 %v4525, 56
  %v6299 = vpop.permute.xlu0 %6298
  %6300 = vrot.lane.b32.xlu0 %v4526, 56
  %v6301 = vpop.permute.xlu0 %6300
  %6302 = vrot.lane.b32.xlu0 %v4527, 56
  %v6303 = vpop.permute.xlu0 %6302
  %6304 = vrot.lane.b32.xlu0 %v4528, 56
  %v6305 = vpop.permute.xlu0 %6304
  %6306 = vrot.lane.b32.xlu0 %v4529, 56
  %v6307 = vpop.permute.xlu0 %6306
  %6308 = vrot.lane.b32.xlu0 %v4530, 56
  %v6309 = vpop.permute.xlu0 %6308
  %6310 = vrot.lane.b32.xlu0 %v4531, 56
  %v6311 = vpop.permute.xlu0 %6310
  %6312 = vrot.lane.b32.xlu0 %v4532, 56
  %v6313 = vpop.permute.xlu0 %6312
  %6314 = vrot.lane.b32.xlu0 %v4533, 56
  %v6315 = vpop.permute.xlu0 %6314
  %6316 = vrot.lane.b32.xlu0 %v4534, 56
  %v6317 = vpop.permute.xlu0 %6316
  %6318 = vrot.lane.b32.xlu0 %v4535, 56
  %v6319 = vpop.permute.xlu0 %6318
  %6320 = vrot.lane.b32.xlu0 %v4536, 56
  %v6321 = vpop.permute.xlu0 %6320
  %6322 = vrot.lane.b32.xlu0 %v4537, 56
  %v6323 = vpop.permute.xlu0 %6322
  %6324 = vrot.lane.b32.xlu0 %v4538, 56
  %v6325 = vpop.permute.xlu0 %6324
  %6326 = vrot.lane.b32.xlu0 %v4539, 56
  %v6327 = vpop.permute.xlu0 %6326
  %6328 = vrot.lane.b32.xlu0 %v4540, 56
  %v6329 = vpop.permute.xlu0 %6328
  %6330 = vrot.lane.b32.xlu0 %v4541, 56
  %v6331 = vpop.permute.xlu0 %6330
  %6332 = vrot.lane.b32.xlu0 %v4542, 56
  %v6333 = vpop.permute.xlu0 %6332
  %6334 = vrot.lane.b32.xlu0 %v4543, 56
  %v6335 = vpop.permute.xlu0 %6334
  %6464 = vrot.lane.b32.xlu0 %v4544, 64
  %v6465 = vpop.permute.xlu0 %6464
  %6466 = vrot.lane.b32.xlu0 %v4545, 64
  %v6467 = vpop.permute.xlu0 %6466
  %6468 = vrot.lane.b32.xlu0 %v4546, 64
  %v6469 = vpop.permute.xlu0 %6468
  %6470 = vrot.lane.b32.xlu0 %v4547, 64
  %v6471 = vpop.permute.xlu0 %6470
  %6472 = vrot.lane.b32.xlu0 %v4548, 64
  %v6473 = vpop.permute.xlu0 %6472
  %6474 = vrot.lane.b32.xlu0 %v4549, 64
  %v6475 = vpop.permute.xlu0 %6474
  %6476 = vrot.lane.b32.xlu0 %v4550, 64
  %v6477 = vpop.permute.xlu0 %6476
  %6478 = vrot.lane.b32.xlu0 %v4551, 64
  %v6479 = vpop.permute.xlu0 %6478
  %6480 = vrot.lane.b32.xlu0 %v4552, 64
  %v6481 = vpop.permute.xlu0 %6480
  %6482 = vrot.lane.b32.xlu0 %v4553, 64
  %v6483 = vpop.permute.xlu0 %6482
  %6484 = vrot.lane.b32.xlu0 %v4554, 64
  %v6485 = vpop.permute.xlu0 %6484
  %6486 = vrot.lane.b32.xlu0 %v4555, 64
  %v6487 = vpop.permute.xlu0 %6486
  %6488 = vrot.lane.b32.xlu0 %v4556, 64
  %v6489 = vpop.permute.xlu0 %6488
  %6490 = vrot.lane.b32.xlu0 %v4557, 64
  %v6491 = vpop.permute.xlu0 %6490
  %6492 = vrot.lane.b32.xlu0 %v4558, 64
  %v6493 = vpop.permute.xlu0 %6492
  %6494 = vrot.lane.b32.xlu0 %v4559, 64
  %v6495 = vpop.permute.xlu0 %6494
  %6496 = vrot.lane.b32.xlu0 %v4560, 64
  %v6497 = vpop.permute.xlu0 %6496
  %6498 = vrot.lane.b32.xlu0 %v4561, 64
  %v6499 = vpop.permute.xlu0 %6498
  %6500 = vrot.lane.b32.xlu0 %v4562, 64
  %v6501 = vpop.permute.xlu0 %6500
  %6502 = vrot.lane.b32.xlu0 %v4563, 64
  %v6503 = vpop.permute.xlu0 %6502
  %6504 = vrot.lane.b32.xlu0 %v4564, 64
  %v6505 = vpop.permute.xlu0 %6504
  %6506 = vrot.lane.b32.xlu0 %v4565, 64
  %v6507 = vpop.permute.xlu0 %6506
  %6508 = vrot.lane.b32.xlu0 %v4566, 64
  %v6509 = vpop.permute.xlu0 %6508
  %6510 = vrot.lane.b32.xlu0 %v4567, 64
  %v6511 = vpop.permute.xlu0 %6510
  %6512 = vrot.lane.b32.xlu0 %v4568, 64
  %v6513 = vpop.permute.xlu0 %6512
  %6514 = vrot.lane.b32.xlu0 %v4569, 64
  %v6515 = vpop.permute.xlu0 %6514
  %6516 = vrot.lane.b32.xlu0 %v4570, 64
  %v6517 = vpop.permute.xlu0 %6516
  %6518 = vrot.lane.b32.xlu0 %v4571, 64
  %v6519 = vpop.permute.xlu0 %6518
  %6520 = vrot.lane.b32.xlu0 %v4572, 64
  %v6521 = vpop.permute.xlu0 %6520
  %6522 = vrot.lane.b32.xlu0 %v4573, 64
  %v6523 = vpop.permute.xlu0 %6522
  %6524 = vrot.lane.b32.xlu0 %v4574, 64
  %v6525 = vpop.permute.xlu0 %6524
  %6526 = vrot.lane.b32.xlu0 %v4575, 64
  %v6527 = vpop.permute.xlu0 %6526
  %6528 = vrot.lane.b32.xlu0 %v4576, 64
  %v6529 = vpop.permute.xlu0 %6528
  %6530 = vrot.lane.b32.xlu0 %v4577, 64
  %v6531 = vpop.permute.xlu0 %6530
  %6532 = vrot.lane.b32.xlu0 %v4578, 64
  %v6533 = vpop.permute.xlu0 %6532
  %6534 = vrot.lane.b32.xlu0 %v4579, 64
  %v6535 = vpop.permute.xlu0 %6534
  %6536 = vrot.lane.b32.xlu0 %v4580, 64
  %v6537 = vpop.permute.xlu0 %6536
  %6538 = vrot.lane.b32.xlu0 %v4581, 64
  %v6539 = vpop.permute.xlu0 %6538
  %6540 = vrot.lane.b32.xlu0 %v4582, 64
  %v6541 = vpop.permute.xlu0 %6540
  %6542 = vrot.lane.b32.xlu0 %v4583, 64
  %v6543 = vpop.permute.xlu0 %6542
  %6544 = vrot.lane.b32.xlu0 %v4584, 64
  %v6545 = vpop.permute.xlu0 %6544
  %6546 = vrot.lane.b32.xlu0 %v4585, 64
  %v6547 = vpop.permute.xlu0 %6546
  %6548 = vrot.lane.b32.xlu0 %v4586, 64
  %v6549 = vpop.permute.xlu0 %6548
  %6550 = vrot.lane.b32.xlu0 %v4587, 64
  %v6551 = vpop.permute.xlu0 %6550
  %6552 = vrot.lane.b32.xlu0 %v4588, 64
  %v6553 = vpop.permute.xlu0 %6552
  %6554 = vrot.lane.b32.xlu0 %v4589, 64
  %v6555 = vpop.permute.xlu0 %6554
  %6556 = vrot.lane.b32.xlu0 %v4590, 64
  %v6557 = vpop.permute.xlu0 %6556
  %6558 = vrot.lane.b32.xlu0 %v4591, 64
  %v6559 = vpop.permute.xlu0 %6558
  %6560 = vrot.lane.b32.xlu0 %v4592, 64
  %v6561 = vpop.permute.xlu0 %6560
  %6562 = vrot.lane.b32.xlu0 %v4593, 64
  %v6563 = vpop.permute.xlu0 %6562
  %6564 = vrot.lane.b32.xlu0 %v4594, 64
  %v6565 = vpop.permute.xlu0 %6564
  %6566 = vrot.lane.b32.xlu0 %v4595, 64
  %v6567 = vpop.permute.xlu0 %6566
  %6568 = vrot.lane.b32.xlu0 %v4596, 64
  %v6569 = vpop.permute.xlu0 %6568
  %6570 = vrot.lane.b32.xlu0 %v4597, 64
  %v6571 = vpop.permute.xlu0 %6570
  %6572 = vrot.lane.b32.xlu0 %v4598, 64
  %v6573 = vpop.permute.xlu0 %6572
  %6574 = vrot.lane.b32.xlu0 %v4599, 64
  %v6575 = vpop.permute.xlu0 %6574
  %6576 = vrot.lane.b32.xlu0 %v4600, 64
  %v6577 = vpop.permute.xlu0 %6576
  %6578 = vrot.lane.b32.xlu0 %v4601, 64
  %v6579 = vpop.permute.xlu0 %6578
  %6580 = vrot.lane.b32.xlu0 %v4602, 64
  %v6581 = vpop.permute.xlu0 %6580
  %6582 = vrot.lane.b32.xlu0 %v4603, 64
  %v6583 = vpop.permute.xlu0 %6582
  %6584 = vrot.lane.b32.xlu0 %v4604, 64
  %v6585 = vpop.permute.xlu0 %6584
  %6586 = vrot.lane.b32.xlu0 %v4605, 64
  %v6587 = vpop.permute.xlu0 %6586
  %6588 = vrot.lane.b32.xlu0 %v4606, 64
  %v6589 = vpop.permute.xlu0 %6588
  %6590 = vrot.lane.b32.xlu0 %v4607, 64
  %v6591 = vpop.permute.xlu0 %6590
  %6656 = vrot.lane.b32.xlu0 %v486, 72
  %v6657 = vpop.permute.xlu0 %6656
  %6658 = vrot.lane.b32.xlu0 %v487, 72
  %v6659 = vpop.permute.xlu0 %6658
  %6660 = vrot.lane.b32.xlu0 %v488, 72
  %v6661 = vpop.permute.xlu0 %6660
  %6662 = vrot.lane.b32.xlu0 %v489, 72
  %v6663 = vpop.permute.xlu0 %6662
  %6664 = vrot.lane.b32.xlu0 %v490, 72
  %v6665 = vpop.permute.xlu0 %6664
  %6666 = vrot.lane.b32.xlu0 %v491, 72
  %v6667 = vpop.permute.xlu0 %6666
  %6668 = vrot.lane.b32.xlu0 %v492, 72
  %v6669 = vpop.permute.xlu0 %6668
  %6670 = vrot.lane.b32.xlu0 %v493, 72
  %v6671 = vpop.permute.xlu0 %6670
  %6672 = vrot.lane.b32.xlu0 %v494, 72
  %v6673 = vpop.permute.xlu0 %6672
  %6674 = vrot.lane.b32.xlu0 %v495, 72
  %v6675 = vpop.permute.xlu0 %6674
  %6676 = vrot.lane.b32.xlu0 %v496, 72
  %v6677 = vpop.permute.xlu0 %6676
  %6678 = vrot.lane.b32.xlu0 %v497, 72
  %v6679 = vpop.permute.xlu0 %6678
  %6680 = vrot.lane.b32.xlu0 %v498, 72
  %v6681 = vpop.permute.xlu0 %6680
  %6682 = vrot.lane.b32.xlu0 %v499, 72
  %v6683 = vpop.permute.xlu0 %6682
  %6684 = vrot.lane.b32.xlu0 %v500, 72
  %v6685 = vpop.permute.xlu0 %6684
  %6686 = vrot.lane.b32.xlu0 %v501, 72
  %v6687 = vpop.permute.xlu0 %6686
  %6688 = vrot.lane.b32.xlu0 %v502, 72
  %v6689 = vpop.permute.xlu0 %6688
  %6690 = vrot.lane.b32.xlu0 %v503, 72
  %v6691 = vpop.permute.xlu0 %6690
  %6692 = vrot.lane.b32.xlu0 %v504, 72
  %v6693 = vpop.permute.xlu0 %6692
  %6694 = vrot.lane.b32.xlu0 %v505, 72
  %v6695 = vpop.permute.xlu0 %6694
  %6696 = vrot.lane.b32.xlu0 %v506, 72
  %v6697 = vpop.permute.xlu0 %6696
  %6698 = vrot.lane.b32.xlu0 %v507, 72
  %v6699 = vpop.permute.xlu0 %6698
  %6700 = vrot.lane.b32.xlu0 %v508, 72
  %v6701 = vpop.permute.xlu0 %6700
  %6702 = vrot.lane.b32.xlu0 %v509, 72
  %v6703 = vpop.permute.xlu0 %6702
  %6704 = vrot.lane.b32.xlu0 %v510, 72
  %v6705 = vpop.permute.xlu0 %6704
  %6706 = vrot.lane.b32.xlu0 %v511, 72
  %v6707 = vpop.permute.xlu0 %6706
  %6708 = vrot.lane.b32.xlu0 %v512, 72
  %v6709 = vpop.permute.xlu0 %6708
  %6710 = vrot.lane.b32.xlu0 %v513, 72
  %v6711 = vpop.permute.xlu0 %6710
  %6712 = vrot.lane.b32.xlu0 %v514, 72
  %v6713 = vpop.permute.xlu0 %6712
  %6714 = vrot.lane.b32.xlu0 %v515, 72
  %v6715 = vpop.permute.xlu0 %6714
  %6716 = vrot.lane.b32.xlu0 %v516, 72
  %v6717 = vpop.permute.xlu0 %6716
  %6718 = vrot.lane.b32.xlu0 %v517, 72
  %v6719 = vpop.permute.xlu0 %6718
  %6720 = vrot.lane.b32.xlu0 %v518, 72
  %v6721 = vpop.permute.xlu0 %6720
  %6722 = vrot.lane.b32.xlu0 %v519, 72
  %v6723 = vpop.permute.xlu0 %6722
  %6724 = vrot.lane.b32.xlu0 %v520, 72
  %v6725 = vpop.permute.xlu0 %6724
  %6726 = vrot.lane.b32.xlu0 %v521, 72
  %v6727 = vpop.permute.xlu0 %6726
  %6728 = vrot.lane.b32.xlu0 %v522, 72
  %v6729 = vpop.permute.xlu0 %6728
  %6730 = vrot.lane.b32.xlu0 %v523, 72
  %v6731 = vpop.permute.xlu0 %6730
  %6732 = vrot.lane.b32.xlu0 %v524, 72
  %v6733 = vpop.permute.xlu0 %6732
  %6734 = vrot.lane.b32.xlu0 %v525, 72
  %v6735 = vpop.permute.xlu0 %6734
  %6736 = vrot.lane.b32.xlu0 %v526, 72
  %v6737 = vpop.permute.xlu0 %6736
  %6738 = vrot.lane.b32.xlu0 %v527, 72
  %v6739 = vpop.permute.xlu0 %6738
  %6740 = vrot.lane.b32.xlu0 %v528, 72
  %v6741 = vpop.permute.xlu0 %6740
  %6742 = vrot.lane.b32.xlu0 %v529, 72
  %v6743 = vpop.permute.xlu0 %6742
  %6744 = vrot.lane.b32.xlu0 %v530, 72
  %v6745 = vpop.permute.xlu0 %6744
  %6746 = vrot.lane.b32.xlu0 %v531, 72
  %v6747 = vpop.permute.xlu0 %6746
  %6748 = vrot.lane.b32.xlu0 %v532, 72
  %v6749 = vpop.permute.xlu0 %6748
  %6750 = vrot.lane.b32.xlu0 %v533, 72
  %v6751 = vpop.permute.xlu0 %6750
  %6752 = vrot.lane.b32.xlu0 %v534, 72
  %v6753 = vpop.permute.xlu0 %6752
  %6754 = vrot.lane.b32.xlu0 %v535, 72
  %v6755 = vpop.permute.xlu0 %6754
  %6756 = vrot.lane.b32.xlu0 %v536, 72
  %v6757 = vpop.permute.xlu0 %6756
  %6758 = vrot.lane.b32.xlu0 %v537, 72
  %v6759 = vpop.permute.xlu0 %6758
  %6760 = vrot.lane.b32.xlu0 %v538, 72
  %v6761 = vpop.permute.xlu0 %6760
  %6762 = vrot.lane.b32.xlu0 %v539, 72
  %v6763 = vpop.permute.xlu0 %6762
  %6764 = vrot.lane.b32.xlu0 %v540, 72
  %v6765 = vpop.permute.xlu0 %6764
  %6766 = vrot.lane.b32.xlu0 %v541, 72
  %v6767 = vpop.permute.xlu0 %6766
  %6768 = vrot.lane.b32.xlu0 %v542, 72
  %v6769 = vpop.permute.xlu0 %6768
  %6770 = vrot.lane.b32.xlu0 %v543, 72
  %v6771 = vpop.permute.xlu0 %6770
  %6772 = vrot.lane.b32.xlu0 %v544, 72
  %v6773 = vpop.permute.xlu0 %6772
  %6774 = vrot.lane.b32.xlu0 %v545, 72
  %v6775 = vpop.permute.xlu0 %6774
  %6776 = vrot.lane.b32.xlu0 %v546, 72
  %v6777 = vpop.permute.xlu0 %6776
  %6778 = vrot.lane.b32.xlu0 %v547, 72
  %v6779 = vpop.permute.xlu0 %6778
  %6780 = vrot.lane.b32.xlu0 %v548, 72
  %v6781 = vpop.permute.xlu0 %6780
  %6782 = vrot.lane.b32.xlu0 %v549, 72
  %v6783 = vpop.permute.xlu0 %6782
  %v6848 = vsel %vm2919, %v4031, %v4673
  %v6849 = vsel %vm2919, %v4032, %v4675
  %v6850 = vsel %vm2919, %v4033, %v4677
  %v6851 = vsel %vm2919, %v4034, %v4679
  %v6852 = vsel %vm2919, %v4035, %v4681
  %v6853 = vsel %vm2919, %v4036, %v4683
  %v6854 = vsel %vm2919, %v4037, %v4685
  %v6855 = vsel %vm2919, %v4038, %v4687
  %v6856 = vsel %vm2919, %v4039, %v4689
  %v6857 = vsel %vm2919, %v4040, %v4691
  %v6858 = vsel %vm2919, %v4041, %v4693
  %v6859 = vsel %vm2919, %v4042, %v4695
  %v6860 = vsel %vm2919, %v4043, %v4697
  %v6861 = vsel %vm2919, %v4044, %v4699
  %v6862 = vsel %vm2919, %v4045, %v4701
  %v6863 = vsel %vm2919, %v4046, %v4703
  %v6864 = vsel %vm2919, %v4047, %v4705
  %v6865 = vsel %vm2919, %v4048, %v4707
  %v6866 = vsel %vm2919, %v4049, %v4709
  %v6867 = vsel %vm2919, %v4050, %v4711
  %v6868 = vsel %vm2919, %v4051, %v4713
  %v6869 = vsel %vm2919, %v4052, %v4715
  %v6870 = vsel %vm2919, %v4053, %v4717
  %v6871 = vsel %vm2919, %v4054, %v4719
  %v6872 = vsel %vm2919, %v4055, %v4721
  %v6873 = vsel %vm2919, %v4056, %v4723
  %v6874 = vsel %vm2919, %v4057, %v4725
  %v6875 = vsel %vm2919, %v4058, %v4727
  %v6876 = vsel %vm2919, %v4059, %v4729
  %v6877 = vsel %vm2919, %v4060, %v4731
  %v6878 = vsel %vm2919, %v4061, %v4733
  %v6879 = vsel %vm2919, %v4062, %v4735
  %v6880 = vsel %vm2919, %v4063, %v4737
  %v6881 = vsel %vm2919, %v4064, %v4739
  %v6882 = vsel %vm2919, %v4065, %v4741
  %v6883 = vsel %vm2919, %v4066, %v4743
  %v6884 = vsel %vm2919, %v4067, %v4745
  %v6885 = vsel %vm2919, %v4068, %v4747
  %v6886 = vsel %vm2919, %v4069, %v4749
  %v6887 = vsel %vm2919, %v4070, %v4751
  %v6888 = vsel %vm2919, %v4071, %v4753
  %v6889 = vsel %vm2919, %v4072, %v4755
  %v6890 = vsel %vm2919, %v4073, %v4757
  %v6891 = vsel %vm2919, %v4074, %v4759
  %v6892 = vsel %vm2919, %v4075, %v4761
  %v6893 = vsel %vm2919, %v4076, %v4763
  %v6894 = vsel %vm2919, %v4077, %v4765
  %v6895 = vsel %vm2919, %v4078, %v4767
  %v6896 = vsel %vm2919, %v4079, %v4769
  %v6897 = vsel %vm2919, %v4080, %v4771
  %v6898 = vsel %vm2919, %v4081, %v4773
  %v6899 = vsel %vm2919, %v4082, %v4775
  %v6900 = vsel %vm2919, %v4083, %v4777
  %v6901 = vsel %vm2919, %v4084, %v4779
  %v6902 = vsel %vm2919, %v4085, %v4781
  %v6903 = vsel %vm2919, %v4086, %v4783
  %v6904 = vsel %vm2919, %v4087, %v4785
  %v6905 = vsel %vm2919, %v4088, %v4787
  %v6906 = vsel %vm2919, %v4089, %v4789
  %v6907 = vsel %vm2919, %v4090, %v4791
  %v6908 = vsel %vm2919, %v4091, %v4793
  %v6909 = vsel %vm2919, %v4092, %v4795
  %v6910 = vsel %vm2919, %v4093, %v4797
  %v6911 = vsel %vm2919, %v4094, %v4799
  %v6912 = vsel %vm3049, %v6848, %v4929
  %v6913 = vsel %vm3049, %v6849, %v4931
  %v6914 = vsel %vm3049, %v6850, %v4933
  %v6915 = vsel %vm3049, %v6851, %v4935
  %v6916 = vsel %vm3049, %v6852, %v4937
  %v6917 = vsel %vm3049, %v6853, %v4939
  %v6918 = vsel %vm3049, %v6854, %v4941
  %v6919 = vsel %vm3049, %v6855, %v4943
  %v6920 = vsel %vm3049, %v6856, %v4945
  %v6921 = vsel %vm3049, %v6857, %v4947
  %v6922 = vsel %vm3049, %v6858, %v4949
  %v6923 = vsel %vm3049, %v6859, %v4951
  %v6924 = vsel %vm3049, %v6860, %v4953
  %v6925 = vsel %vm3049, %v6861, %v4955
  %v6926 = vsel %vm3049, %v6862, %v4957
  %v6927 = vsel %vm3049, %v6863, %v4959
  %v6928 = vsel %vm3049, %v6864, %v4961
  %v6929 = vsel %vm3049, %v6865, %v4963
  %v6930 = vsel %vm3049, %v6866, %v4965
  %v6931 = vsel %vm3049, %v6867, %v4967
  %v6932 = vsel %vm3049, %v6868, %v4969
  %v6933 = vsel %vm3049, %v6869, %v4971
  %v6934 = vsel %vm3049, %v6870, %v4973
  %v6935 = vsel %vm3049, %v6871, %v4975
  %v6936 = vsel %vm3049, %v6872, %v4977
  %v6937 = vsel %vm3049, %v6873, %v4979
  %v6938 = vsel %vm3049, %v6874, %v4981
  %v6939 = vsel %vm3049, %v6875, %v4983
  %v6940 = vsel %vm3049, %v6876, %v4985
  %v6941 = vsel %vm3049, %v6877, %v4987
  %v6942 = vsel %vm3049, %v6878, %v4989
  %v6943 = vsel %vm3049, %v6879, %v4991
  %v6944 = vsel %vm3049, %v6880, %v4993
  %v6945 = vsel %vm3049, %v6881, %v4995
  %v6946 = vsel %vm3049, %v6882, %v4997
  %v6947 = vsel %vm3049, %v6883, %v4999
  %v6948 = vsel %vm3049, %v6884, %v5001
  %v6949 = vsel %vm3049, %v6885, %v5003
  %v6950 = vsel %vm3049, %v6886, %v5005
  %v6951 = vsel %vm3049, %v6887, %v5007
  %v6952 = vsel %vm3049, %v6888, %v5009
  %v6953 = vsel %vm3049, %v6889, %v5011
  %v6954 = vsel %vm3049, %v6890, %v5013
  %v6955 = vsel %vm3049, %v6891, %v5015
  %v6956 = vsel %vm3049, %v6892, %v5017
  %v6957 = vsel %vm3049, %v6893, %v5019
  %v6958 = vsel %vm3049, %v6894, %v5021
  %v6959 = vsel %vm3049, %v6895, %v5023
  %v6960 = vsel %vm3049, %v6896, %v5025
  %v6961 = vsel %vm3049, %v6897, %v5027
  %v6962 = vsel %vm3049, %v6898, %v5029
  %v6963 = vsel %vm3049, %v6899, %v5031
  %v6964 = vsel %vm3049, %v6900, %v5033
  %v6965 = vsel %vm3049, %v6901, %v5035
  %v6966 = vsel %vm3049, %v6902, %v5037
  %v6967 = vsel %vm3049, %v6903, %v5039
  %v6968 = vsel %vm3049, %v6904, %v5041
  %v6969 = vsel %vm3049, %v6905, %v5043
  %v6970 = vsel %vm3049, %v6906, %v5045
  %v6971 = vsel %vm3049, %v6907, %v5047
  %v6972 = vsel %vm3049, %v6908, %v5049
  %v6973 = vsel %vm3049, %v6909, %v5051
  %v6974 = vsel %vm3049, %v6910, %v5053
  %v6975 = vsel %vm3049, %v6911, %v5055
  %v6976 = vsel %vm3179, %v6912, %v5185
  %v6977 = vsel %vm3179, %v6913, %v5187
  %v6978 = vsel %vm3179, %v6914, %v5189
  %v6979 = vsel %vm3179, %v6915, %v5191
  %v6980 = vsel %vm3179, %v6916, %v5193
  %v6981 = vsel %vm3179, %v6917, %v5195
  %v6982 = vsel %vm3179, %v6918, %v5197
  %v6983 = vsel %vm3179, %v6919, %v5199
  %v6984 = vsel %vm3179, %v6920, %v5201
  %v6985 = vsel %vm3179, %v6921, %v5203
  %v6986 = vsel %vm3179, %v6922, %v5205
  %v6987 = vsel %vm3179, %v6923, %v5207
  %v6988 = vsel %vm3179, %v6924, %v5209
  %v6989 = vsel %vm3179, %v6925, %v5211
  %v6990 = vsel %vm3179, %v6926, %v5213
  %v6991 = vsel %vm3179, %v6927, %v5215
  %v6992 = vsel %vm3179, %v6928, %v5217
  %v6993 = vsel %vm3179, %v6929, %v5219
  %v6994 = vsel %vm3179, %v6930, %v5221
  %v6995 = vsel %vm3179, %v6931, %v5223
  %v6996 = vsel %vm3179, %v6932, %v5225
  %v6997 = vsel %vm3179, %v6933, %v5227
  %v6998 = vsel %vm3179, %v6934, %v5229
  %v6999 = vsel %vm3179, %v6935, %v5231
  %v7000 = vsel %vm3179, %v6936, %v5233
  %v7001 = vsel %vm3179, %v6937, %v5235
  %v7002 = vsel %vm3179, %v6938, %v5237
  %v7003 = vsel %vm3179, %v6939, %v5239
  %v7004 = vsel %vm3179, %v6940, %v5241
  %v7005 = vsel %vm3179, %v6941, %v5243
  %v7006 = vsel %vm3179, %v6942, %v5245
  %v7007 = vsel %vm3179, %v6943, %v5247
  %v7008 = vsel %vm3179, %v6944, %v5249
  %v7009 = vsel %vm3179, %v6945, %v5251
  %v7010 = vsel %vm3179, %v6946, %v5253
  %v7011 = vsel %vm3179, %v6947, %v5255
  %v7012 = vsel %vm3179, %v6948, %v5257
  %v7013 = vsel %vm3179, %v6949, %v5259
  %v7014 = vsel %vm3179, %v6950, %v5261
  %v7015 = vsel %vm3179, %v6951, %v5263
  %v7016 = vsel %vm3179, %v6952, %v5265
  %v7017 = vsel %vm3179, %v6953, %v5267
  %v7018 = vsel %vm3179, %v6954, %v5269
  %v7019 = vsel %vm3179, %v6955, %v5271
  %v7020 = vsel %vm3179, %v6956, %v5273
  %v7021 = vsel %vm3179, %v6957, %v5275
  %v7022 = vsel %vm3179, %v6958, %v5277
  %v7023 = vsel %vm3179, %v6959, %v5279
  %v7024 = vsel %vm3179, %v6960, %v5281
  %v7025 = vsel %vm3179, %v6961, %v5283
  %v7026 = vsel %vm3179, %v6962, %v5285
  %v7027 = vsel %vm3179, %v6963, %v5287
  %v7028 = vsel %vm3179, %v6964, %v5289
  %v7029 = vsel %vm3179, %v6965, %v5291
  %v7030 = vsel %vm3179, %v6966, %v5293
  %v7031 = vsel %vm3179, %v6967, %v5295
  %v7032 = vsel %vm3179, %v6968, %v5297
  %v7033 = vsel %vm3179, %v6969, %v5299
  %v7034 = vsel %vm3179, %v6970, %v5301
  %v7035 = vsel %vm3179, %v6971, %v5303
  %v7036 = vsel %vm3179, %v6972, %v5305
  %v7037 = vsel %vm3179, %v6973, %v5307
  %v7038 = vsel %vm3179, %v6974, %v5309
  %v7039 = vsel %vm3179, %v6975, %v5311
  %v7040 = vsel %vm3309, %v6976, %v5441
  %v7041 = vsel %vm3309, %v6977, %v5443
  %v7042 = vsel %vm3309, %v6978, %v5445
  %v7043 = vsel %vm3309, %v6979, %v5447
  %v7044 = vsel %vm3309, %v6980, %v5449
  %v7045 = vsel %vm3309, %v6981, %v5451
  %v7046 = vsel %vm3309, %v6982, %v5453
  %v7047 = vsel %vm3309, %v6983, %v5455
  %v7048 = vsel %vm3309, %v6984, %v5457
  %v7049 = vsel %vm3309, %v6985, %v5459
  %v7050 = vsel %vm3309, %v6986, %v5461
  %v7051 = vsel %vm3309, %v6987, %v5463
  %v7052 = vsel %vm3309, %v6988, %v5465
  %v7053 = vsel %vm3309, %v6989, %v5467
  %v7054 = vsel %vm3309, %v6990, %v5469
  %v7055 = vsel %vm3309, %v6991, %v5471
  %v7056 = vsel %vm3309, %v6992, %v5473
  %v7057 = vsel %vm3309, %v6993, %v5475
  %v7058 = vsel %vm3309, %v6994, %v5477
  %v7059 = vsel %vm3309, %v6995, %v5479
  %v7060 = vsel %vm3309, %v6996, %v5481
  %v7061 = vsel %vm3309, %v6997, %v5483
  %v7062 = vsel %vm3309, %v6998, %v5485
  %v7063 = vsel %vm3309, %v6999, %v5487
  %v7064 = vsel %vm3309, %v7000, %v5489
  %v7065 = vsel %vm3309, %v7001, %v5491
  %v7066 = vsel %vm3309, %v7002, %v5493
  %v7067 = vsel %vm3309, %v7003, %v5495
  %v7068 = vsel %vm3309, %v7004, %v5497
  %v7069 = vsel %vm3309, %v7005, %v5499
  %v7070 = vsel %vm3309, %v7006, %v5501
  %v7071 = vsel %vm3309, %v7007, %v5503
  %v7072 = vsel %vm3309, %v7008, %v5505
  %v7073 = vsel %vm3309, %v7009, %v5507
  %v7074 = vsel %vm3309, %v7010, %v5509
  %v7075 = vsel %vm3309, %v7011, %v5511
  %v7076 = vsel %vm3309, %v7012, %v5513
  %v7077 = vsel %vm3309, %v7013, %v5515
  %v7078 = vsel %vm3309, %v7014, %v5517
  %v7079 = vsel %vm3309, %v7015, %v5519
  %v7080 = vsel %vm3309, %v7016, %v5521
  %v7081 = vsel %vm3309, %v7017, %v5523
  %v7082 = vsel %vm3309, %v7018, %v5525
  %v7083 = vsel %vm3309, %v7019, %v5527
  %v7084 = vsel %vm3309, %v7020, %v5529
  %v7085 = vsel %vm3309, %v7021, %v5531
  %v7086 = vsel %vm3309, %v7022, %v5533
  %v7087 = vsel %vm3309, %v7023, %v5535
  %v7088 = vsel %vm3309, %v7024, %v5537
  %v7089 = vsel %vm3309, %v7025, %v5539
  %v7090 = vsel %vm3309, %v7026, %v5541
  %v7091 = vsel %vm3309, %v7027, %v5543
  %v7092 = vsel %vm3309, %v7028, %v5545
  %v7093 = vsel %vm3309, %v7029, %v5547
  %v7094 = vsel %vm3309, %v7030, %v5549
  %v7095 = vsel %vm3309, %v7031, %v5551
  %v7096 = vsel %vm3309, %v7032, %v5553
  %v7097 = vsel %vm3309, %v7033, %v5555
  %v7098 = vsel %vm3309, %v7034, %v5557
  %v7099 = vsel %vm3309, %v7035, %v5559
  %v7100 = vsel %vm3309, %v7036, %v5561
  %v7101 = vsel %vm3309, %v7037, %v5563
  %v7102 = vsel %vm3309, %v7038, %v5565
  %v7103 = vsel %vm3309, %v7039, %v5567
  %vm7104 = vcmask 326656
  %v7105 = vsel %vm7104, %v7040, %v5697
  %v7106 = vsel %vm7104, %v7041, %v5699
  %v7107 = vsel %vm7104, %v7042, %v5701
  %v7108 = vsel %vm7104, %v7043, %v5703
  %v7109 = vsel %vm7104, %v7044, %v5705
  %v7110 = vsel %vm7104, %v7045, %v5707
  %v7111 = vsel %vm7104, %v7046, %v5709
  %v7112 = vsel %vm7104, %v7047, %v5711
  %v7113 = vsel %vm7104, %v7048, %v5713
  %v7114 = vsel %vm7104, %v7049, %v5715
  %v7115 = vsel %vm7104, %v7050, %v5717
  %v7116 = vsel %vm7104, %v7051, %v5719
  %v7117 = vsel %vm7104, %v7052, %v5721
  %v7118 = vsel %vm7104, %v7053, %v5723
  %v7119 = vsel %vm7104, %v7054, %v5725
  %v7120 = vsel %vm7104, %v7055, %v5727
  %v7121 = vsel %vm7104, %v7056, %v5729
  %v7122 = vsel %vm7104, %v7057, %v5731
  %v7123 = vsel %vm7104, %v7058, %v5733
  %v7124 = vsel %vm7104, %v7059, %v5735
  %v7125 = vsel %vm7104, %v7060, %v5737
  %v7126 = vsel %vm7104, %v7061, %v5739
  %v7127 = vsel %vm7104, %v7062, %v5741
  %v7128 = vsel %vm7104, %v7063, %v5743
  %v7129 = vsel %vm7104, %v7064, %v5745
  %v7130 = vsel %vm7104, %v7065, %v5747
  %v7131 = vsel %vm7104, %v7066, %v5749
  %v7132 = vsel %vm7104, %v7067, %v5751
  %v7133 = vsel %vm7104, %v7068, %v5753
  %v7134 = vsel %vm7104, %v7069, %v5755
  %v7135 = vsel %vm7104, %v7070, %v5757
  %v7136 = vsel %vm7104, %v7071, %v5759
  %v7137 = vsel %vm7104, %v7072, %v5761
  %v7138 = vsel %vm7104, %v7073, %v5763
  %v7139 = vsel %vm7104, %v7074, %v5765
  %v7140 = vsel %vm7104, %v7075, %v5767
  %v7141 = vsel %vm7104, %v7076, %v5769
  %v7142 = vsel %vm7104, %v7077, %v5771
  %v7143 = vsel %vm7104, %v7078, %v5773
  %v7144 = vsel %vm7104, %v7079, %v5775
  %v7145 = vsel %vm7104, %v7080, %v5777
  %v7146 = vsel %vm7104, %v7081, %v5779
  %v7147 = vsel %vm7104, %v7082, %v5781
  %v7148 = vsel %vm7104, %v7083, %v5783
  %v7149 = vsel %vm7104, %v7084, %v5785
  %v7150 = vsel %vm7104, %v7085, %v5787
  %v7151 = vsel %vm7104, %v7086, %v5789
  %v7152 = vsel %vm7104, %v7087, %v5791
  %v7153 = vsel %vm7104, %v7088, %v5793
  %v7154 = vsel %vm7104, %v7089, %v5795
  %v7155 = vsel %vm7104, %v7090, %v5797
  %v7156 = vsel %vm7104, %v7091, %v5799
  %v7157 = vsel %vm7104, %v7092, %v5801
  %v7158 = vsel %vm7104, %v7093, %v5803
  %v7159 = vsel %vm7104, %v7094, %v5805
  %v7160 = vsel %vm7104, %v7095, %v5807
  %v7161 = vsel %vm7104, %v7096, %v5809
  %v7162 = vsel %vm7104, %v7097, %v5811
  %v7163 = vsel %vm7104, %v7098, %v5813
  %v7164 = vsel %vm7104, %v7099, %v5815
  %v7165 = vsel %vm7104, %v7100, %v5817
  %v7166 = vsel %vm7104, %v7101, %v5819
  %v7167 = vsel %vm7104, %v7102, %v5821
  %v7168 = vsel %vm7104, %v7103, %v5823
  %vm7169 = vcmask 392192
  %v7170 = vsel %vm7169, %v7105, %v5953
  %v7171 = vsel %vm7169, %v7106, %v5955
  %v7172 = vsel %vm7169, %v7107, %v5957
  %v7173 = vsel %vm7169, %v7108, %v5959
  %v7174 = vsel %vm7169, %v7109, %v5961
  %v7175 = vsel %vm7169, %v7110, %v5963
  %v7176 = vsel %vm7169, %v7111, %v5965
  %v7177 = vsel %vm7169, %v7112, %v5967
  %v7178 = vsel %vm7169, %v7113, %v5969
  %v7179 = vsel %vm7169, %v7114, %v5971
  %v7180 = vsel %vm7169, %v7115, %v5973
  %v7181 = vsel %vm7169, %v7116, %v5975
  %v7182 = vsel %vm7169, %v7117, %v5977
  %v7183 = vsel %vm7169, %v7118, %v5979
  %v7184 = vsel %vm7169, %v7119, %v5981
  %v7185 = vsel %vm7169, %v7120, %v5983
  %v7186 = vsel %vm7169, %v7121, %v5985
  %v7187 = vsel %vm7169, %v7122, %v5987
  %v7188 = vsel %vm7169, %v7123, %v5989
  %v7189 = vsel %vm7169, %v7124, %v5991
  %v7190 = vsel %vm7169, %v7125, %v5993
  %v7191 = vsel %vm7169, %v7126, %v5995
  %v7192 = vsel %vm7169, %v7127, %v5997
  %v7193 = vsel %vm7169, %v7128, %v5999
  %v7194 = vsel %vm7169, %v7129, %v6001
  %v7195 = vsel %vm7169, %v7130, %v6003
  %v7196 = vsel %vm7169, %v7131, %v6005
  %v7197 = vsel %vm7169, %v7132, %v6007
  %v7198 = vsel %vm7169, %v7133, %v6009
  %v7199 = vsel %vm7169, %v7134, %v6011
  %v7200 = vsel %vm7169, %v7135, %v6013
  %v7201 = vsel %vm7169, %v7136, %v6015
  %v7202 = vsel %vm7169, %v7137, %v6017
  %v7203 = vsel %vm7169, %v7138, %v6019
  %v7204 = vsel %vm7169, %v7139, %v6021
  %v7205 = vsel %vm7169, %v7140, %v6023
  %v7206 = vsel %vm7169, %v7141, %v6025
  %v7207 = vsel %vm7169, %v7142, %v6027
  %v7208 = vsel %vm7169, %v7143, %v6029
  %v7209 = vsel %vm7169, %v7144, %v6031
  %v7210 = vsel %vm7169, %v7145, %v6033
  %v7211 = vsel %vm7169, %v7146, %v6035
  %v7212 = vsel %vm7169, %v7147, %v6037
  %v7213 = vsel %vm7169, %v7148, %v6039
  %v7214 = vsel %vm7169, %v7149, %v6041
  %v7215 = vsel %vm7169, %v7150, %v6043
  %v7216 = vsel %vm7169, %v7151, %v6045
  %v7217 = vsel %vm7169, %v7152, %v6047
  %v7218 = vsel %vm7169, %v7153, %v6049
  %v7219 = vsel %vm7169, %v7154, %v6051
  %v7220 = vsel %vm7169, %v7155, %v6053
  %v7221 = vsel %vm7169, %v7156, %v6055
  %v7222 = vsel %vm7169, %v7157, %v6057
  %v7223 = vsel %vm7169, %v7158, %v6059
  %v7224 = vsel %vm7169, %v7159, %v6061
  %v7225 = vsel %vm7169, %v7160, %v6063
  %v7226 = vsel %vm7169, %v7161, %v6065
  %v7227 = vsel %vm7169, %v7162, %v6067
  %v7228 = vsel %vm7169, %v7163, %v6069
  %v7229 = vsel %vm7169, %v7164, %v6071
  %v7230 = vsel %vm7169, %v7165, %v6073
  %v7231 = vsel %vm7169, %v7166, %v6075
  %v7232 = vsel %vm7169, %v7167, %v6077
  %v7233 = vsel %vm7169, %v7168, %v6079
  %vm7234 = vcmask 457728
  %v7235 = vsel %vm7234, %v7170, %v6209
  %v7236 = vsel %vm7234, %v7171, %v6211
  %v7237 = vsel %vm7234, %v7172, %v6213
  %v7238 = vsel %vm7234, %v7173, %v6215
  %v7239 = vsel %vm7234, %v7174, %v6217
  %v7240 = vsel %vm7234, %v7175, %v6219
  %v7241 = vsel %vm7234, %v7176, %v6221
  %v7242 = vsel %vm7234, %v7177, %v6223
  %v7243 = vsel %vm7234, %v7178, %v6225
  %v7244 = vsel %vm7234, %v7179, %v6227
  %v7245 = vsel %vm7234, %v7180, %v6229
  %v7246 = vsel %vm7234, %v7181, %v6231
  %v7247 = vsel %vm7234, %v7182, %v6233
  %v7248 = vsel %vm7234, %v7183, %v6235
  %v7249 = vsel %vm7234, %v7184, %v6237
  %v7250 = vsel %vm7234, %v7185, %v6239
  %v7251 = vsel %vm7234, %v7186, %v6241
  %v7252 = vsel %vm7234, %v7187, %v6243
  %v7253 = vsel %vm7234, %v7188, %v6245
  %v7254 = vsel %vm7234, %v7189, %v6247
  %v7255 = vsel %vm7234, %v7190, %v6249
  %v7256 = vsel %vm7234, %v7191, %v6251
  %v7257 = vsel %vm7234, %v7192, %v6253
  %v7258 = vsel %vm7234, %v7193, %v6255
  %v7259 = vsel %vm7234, %v7194, %v6257
  %v7260 = vsel %vm7234, %v7195, %v6259
  %v7261 = vsel %vm7234, %v7196, %v6261
  %v7262 = vsel %vm7234, %v7197, %v6263
  %v7263 = vsel %vm7234, %v7198, %v6265
  %v7264 = vsel %vm7234, %v7199, %v6267
  %v7265 = vsel %vm7234, %v7200, %v6269
  %v7266 = vsel %vm7234, %v7201, %v6271
  %v7267 = vsel %vm7234, %v7202, %v6273
  %v7268 = vsel %vm7234, %v7203, %v6275
  %v7269 = vsel %vm7234, %v7204, %v6277
  %v7270 = vsel %vm7234, %v7205, %v6279
  %v7271 = vsel %vm7234, %v7206, %v6281
  %v7272 = vsel %vm7234, %v7207, %v6283
  %v7273 = vsel %vm7234, %v7208, %v6285
  %v7274 = vsel %vm7234, %v7209, %v6287
  %v7275 = vsel %vm7234, %v7210, %v6289
  %v7276 = vsel %vm7234, %v7211, %v6291
  %v7277 = vsel %vm7234, %v7212, %v6293
  %v7278 = vsel %vm7234, %v7213, %v6295
  %v7279 = vsel %vm7234, %v7214, %v6297
  %v7280 = vsel %vm7234, %v7215, %v6299
  %v7281 = vsel %vm7234, %v7216, %v6301
  %v7282 = vsel %vm7234, %v7217, %v6303
  %v7283 = vsel %vm7234, %v7218, %v6305
  %v7284 = vsel %vm7234, %v7219, %v6307
  %v7285 = vsel %vm7234, %v7220, %v6309
  %v7286 = vsel %vm7234, %v7221, %v6311
  %v7287 = vsel %vm7234, %v7222, %v6313
  %v7288 = vsel %vm7234, %v7223, %v6315
  %v7289 = vsel %vm7234, %v7224, %v6317
  %v7290 = vsel %vm7234, %v7225, %v6319
  %v7291 = vsel %vm7234, %v7226, %v6321
  %v7292 = vsel %vm7234, %v7227, %v6323
  %v7293 = vsel %vm7234, %v7228, %v6325
  %v7294 = vsel %vm7234, %v7229, %v6327
  %v7295 = vsel %vm7234, %v7230, %v6329
  %v7296 = vsel %vm7234, %v7231, %v6331
  %v7297 = vsel %vm7234, %v7232, %v6333
  %v7298 = vsel %vm7234, %v7233, %v6335
  %vm7299 = vcmask 523264
  %v7300 = vsel %vm7299, %v7235, %v6465
  %v7301 = vsel %vm7299, %v7236, %v6467
  %v7302 = vsel %vm7299, %v7237, %v6469
  %v7303 = vsel %vm7299, %v7238, %v6471
  %v7304 = vsel %vm7299, %v7239, %v6473
  %v7305 = vsel %vm7299, %v7240, %v6475
  %v7306 = vsel %vm7299, %v7241, %v6477
  %v7307 = vsel %vm7299, %v7242, %v6479
  %v7308 = vsel %vm7299, %v7243, %v6481
  %v7309 = vsel %vm7299, %v7244, %v6483
  %v7310 = vsel %vm7299, %v7245, %v6485
  %v7311 = vsel %vm7299, %v7246, %v6487
  %v7312 = vsel %vm7299, %v7247, %v6489
  %v7313 = vsel %vm7299, %v7248, %v6491
  %v7314 = vsel %vm7299, %v7249, %v6493
  %v7315 = vsel %vm7299, %v7250, %v6495
  %v7316 = vsel %vm7299, %v7251, %v6497
  %v7317 = vsel %vm7299, %v7252, %v6499
  %v7318 = vsel %vm7299, %v7253, %v6501
  %v7319 = vsel %vm7299, %v7254, %v6503
  %v7320 = vsel %vm7299, %v7255, %v6505
  %v7321 = vsel %vm7299, %v7256, %v6507
  %v7322 = vsel %vm7299, %v7257, %v6509
  %v7323 = vsel %vm7299, %v7258, %v6511
  %v7324 = vsel %vm7299, %v7259, %v6513
  %v7325 = vsel %vm7299, %v7260, %v6515
  %v7326 = vsel %vm7299, %v7261, %v6517
  %v7327 = vsel %vm7299, %v7262, %v6519
  %v7328 = vsel %vm7299, %v7263, %v6521
  %v7329 = vsel %vm7299, %v7264, %v6523
  %v7330 = vsel %vm7299, %v7265, %v6525
  %v7331 = vsel %vm7299, %v7266, %v6527
  %v7332 = vsel %vm7299, %v7267, %v6529
  %v7333 = vsel %vm7299, %v7268, %v6531
  %v7334 = vsel %vm7299, %v7269, %v6533
  %v7335 = vsel %vm7299, %v7270, %v6535
  %v7336 = vsel %vm7299, %v7271, %v6537
  %v7337 = vsel %vm7299, %v7272, %v6539
  %v7338 = vsel %vm7299, %v7273, %v6541
  %v7339 = vsel %vm7299, %v7274, %v6543
  %v7340 = vsel %vm7299, %v7275, %v6545
  %v7341 = vsel %vm7299, %v7276, %v6547
  %v7342 = vsel %vm7299, %v7277, %v6549
  %v7343 = vsel %vm7299, %v7278, %v6551
  %v7344 = vsel %vm7299, %v7279, %v6553
  %v7345 = vsel %vm7299, %v7280, %v6555
  %v7346 = vsel %vm7299, %v7281, %v6557
  %v7347 = vsel %vm7299, %v7282, %v6559
  %v7348 = vsel %vm7299, %v7283, %v6561
  %v7349 = vsel %vm7299, %v7284, %v6563
  %v7350 = vsel %vm7299, %v7285, %v6565
  %v7351 = vsel %vm7299, %v7286, %v6567
  %v7352 = vsel %vm7299, %v7287, %v6569
  %v7353 = vsel %vm7299, %v7288, %v6571
  %v7354 = vsel %vm7299, %v7289, %v6573
  %v7355 = vsel %vm7299, %v7290, %v6575
  %v7356 = vsel %vm7299, %v7291, %v6577
  %v7357 = vsel %vm7299, %v7292, %v6579
  %v7358 = vsel %vm7299, %v7293, %v6581
  %v7359 = vsel %vm7299, %v7294, %v6583
  %v7360 = vsel %vm7299, %v7295, %v6585
  %v7361 = vsel %vm7299, %v7296, %v6587
  %v7362 = vsel %vm7299, %v7297, %v6589
  %v7363 = vsel %vm7299, %v7298, %v6591
  %vm7364 = vcmask 588800
  %v7365 = vsel %vm7364, %v7300, %v6657
  %v7366 = vsel %vm7364, %v7301, %v6659
  %v7367 = vsel %vm7364, %v7302, %v6661
  %v7368 = vsel %vm7364, %v7303, %v6663
  %v7369 = vsel %vm7364, %v7304, %v6665
  %v7370 = vsel %vm7364, %v7305, %v6667
  %v7371 = vsel %vm7364, %v7306, %v6669
  %v7372 = vsel %vm7364, %v7307, %v6671
  %v7373 = vsel %vm7364, %v7308, %v6673
  %v7374 = vsel %vm7364, %v7309, %v6675
  %v7375 = vsel %vm7364, %v7310, %v6677
  %v7376 = vsel %vm7364, %v7311, %v6679
  %v7377 = vsel %vm7364, %v7312, %v6681
  %v7378 = vsel %vm7364, %v7313, %v6683
  %v7379 = vsel %vm7364, %v7314, %v6685
  %v7380 = vsel %vm7364, %v7315, %v6687
  %v7381 = vsel %vm7364, %v7316, %v6689
  %v7382 = vsel %vm7364, %v7317, %v6691
  %v7383 = vsel %vm7364, %v7318, %v6693
  %v7384 = vsel %vm7364, %v7319, %v6695
  %v7385 = vsel %vm7364, %v7320, %v6697
  %v7386 = vsel %vm7364, %v7321, %v6699
  %v7387 = vsel %vm7364, %v7322, %v6701
  %v7388 = vsel %vm7364, %v7323, %v6703
  %v7389 = vsel %vm7364, %v7324, %v6705
  %v7390 = vsel %vm7364, %v7325, %v6707
  %v7391 = vsel %vm7364, %v7326, %v6709
  %v7392 = vsel %vm7364, %v7327, %v6711
  %v7393 = vsel %vm7364, %v7328, %v6713
  %v7394 = vsel %vm7364, %v7329, %v6715
  %v7395 = vsel %vm7364, %v7330, %v6717
  %v7396 = vsel %vm7364, %v7331, %v6719
  %v7397 = vsel %vm7364, %v7332, %v6721
  %v7398 = vsel %vm7364, %v7333, %v6723
  %v7399 = vsel %vm7364, %v7334, %v6725
  %v7400 = vsel %vm7364, %v7335, %v6727
  %v7401 = vsel %vm7364, %v7336, %v6729
  %v7402 = vsel %vm7364, %v7337, %v6731
  %v7403 = vsel %vm7364, %v7338, %v6733
  %v7404 = vsel %vm7364, %v7339, %v6735
  %v7405 = vsel %vm7364, %v7340, %v6737
  %v7406 = vsel %vm7364, %v7341, %v6739
  %v7407 = vsel %vm7364, %v7342, %v6741
  %v7408 = vsel %vm7364, %v7343, %v6743
  %v7409 = vsel %vm7364, %v7344, %v6745
  %v7410 = vsel %vm7364, %v7345, %v6747
  %v7411 = vsel %vm7364, %v7346, %v6749
  %v7412 = vsel %vm7364, %v7347, %v6751
  %v7413 = vsel %vm7364, %v7348, %v6753
  %v7414 = vsel %vm7364, %v7349, %v6755
  %v7415 = vsel %vm7364, %v7350, %v6757
  %v7416 = vsel %vm7364, %v7351, %v6759
  %v7417 = vsel %vm7364, %v7352, %v6761
  %v7418 = vsel %vm7364, %v7353, %v6763
  %v7419 = vsel %vm7364, %v7354, %v6765
  %v7420 = vsel %vm7364, %v7355, %v6767
  %v7421 = vsel %vm7364, %v7356, %v6769
  %v7422 = vsel %vm7364, %v7357, %v6771
  %v7423 = vsel %vm7364, %v7358, %v6773
  %v7424 = vsel %vm7364, %v7359, %v6775
  %v7425 = vsel %vm7364, %v7360, %v6777
  %v7426 = vsel %vm7364, %v7361, %v6779
  %v7427 = vsel %vm7364, %v7362, %v6781
  %v7428 = vsel %vm7364, %v7363, %v6783
  %v7429 = vpack.c.bf16 %v7366, %v7365
  %v7430 = vpack.c.bf16 %v7368, %v7367
  %v7431 = vpack.c.bf16 %v7370, %v7369
  %v7432 = vpack.c.bf16 %v7372, %v7371
  %v7433 = vpack.c.bf16 %v7374, %v7373
  %v7434 = vpack.c.bf16 %v7376, %v7375
  %v7435 = vpack.c.bf16 %v7378, %v7377
  %v7436 = vpack.c.bf16 %v7380, %v7379
  %v7437 = vpack.c.bf16 %v7382, %v7381
  %v7438 = vpack.c.bf16 %v7384, %v7383
  %v7439 = vpack.c.bf16 %v7386, %v7385
  %v7440 = vpack.c.bf16 %v7388, %v7387
  %v7441 = vpack.c.bf16 %v7390, %v7389
  %v7442 = vpack.c.bf16 %v7392, %v7391
  %v7443 = vpack.c.bf16 %v7394, %v7393
  %v7444 = vpack.c.bf16 %v7396, %v7395
  %v7445 = vpack.c.bf16 %v7398, %v7397
  %v7446 = vpack.c.bf16 %v7400, %v7399
  %v7447 = vpack.c.bf16 %v7402, %v7401
  %v7448 = vpack.c.bf16 %v7404, %v7403
  %v7449 = vpack.c.bf16 %v7406, %v7405
  %v7450 = vpack.c.bf16 %v7408, %v7407
  %v7451 = vpack.c.bf16 %v7410, %v7409
  %v7452 = vpack.c.bf16 %v7412, %v7411
  %v7453 = vpack.c.bf16 %v7414, %v7413
  %v7454 = vpack.c.bf16 %v7416, %v7415
  %v7455 = vpack.c.bf16 %v7418, %v7417
  %v7456 = vpack.c.bf16 %v7420, %v7419
  %v7457 = vpack.c.bf16 %v7422, %v7421
  %v7458 = vpack.c.bf16 %v7424, %v7423
  %v7459 = vpack.c.bf16 %v7426, %v7425
  %v7460 = vpack.c.bf16 %v7428, %v7427
  %v7461 = vld [vmem:[%s3] sm:$0xf]
  %v7462 = vld [vmem:[%s3 + $0x4] sm:$0xf]
  %v7463 = vld [vmem:[%s3 + $0x8] sm:$0xf]
  %v7464 = vld [vmem:[%s3 + $0xc] sm:$0xf]
  %v7465 = vld [vmem:[%s3 + $0x10] sm:$0xf]
  %v7466 = vld [vmem:[%s3 + $0x14] sm:$0xf]
  %v7467 = vld [vmem:[%s3 + $0x18] sm:$0xf]
  %v7468 = vld [vmem:[%s3 + $0x1c] sm:$0xf]
  %v7469 = vld [vmem:[%s3 + $0x20] sm:$0xf]
  %v7470 = vld [vmem:[%s3 + $0x24] sm:$0x3]
  %v7471 = vld [vmem:[%s4] sm:$0x1]
  %v7473 = vlaneseq
  %v7474 = vshrl.u32 %v7473, 7
  %v7475 = vsub.s32 0, %v7474
  %v7476 = vrot.slane %v7471, %v7475
  %v7488 = vunpack.c.l.b16 %v7461
  %v7489 = vunpack.c.l.b16 %v7462
  %v7490 = vunpack.c.l.b16 %v7463
  %v7491 = vunpack.c.l.b16 %v7464
  %v7492 = vunpack.c.l.b16 %v7465
  %v7493 = vunpack.c.l.b16 %v7466
  %v7494 = vunpack.c.l.b16 %v7467
  %v7495 = vunpack.c.l.b16 %v7468
  %v7496 = vunpack.c.l.b16 %v7469
  %v7497 = vunpack.c.l.b16 %v7470
  %v7498 = vpack.c.b16 %v7489, %v7488
  %v7499 = vpack.c.b16 %v7491, %v7490
  %v7500 = vpack.c.b16 %v7493, %v7492
  %v7501 = vpack.c.b16 %v7495, %v7494
  %v7502 = vpack.c.b16 %v7497, %v7496
  %vm7507 = vcmask 621568
  %v7509 = vsel %vm7507, %v7429, 0
  %v7512 = vsel %vm7507, %v7430, 0
  %v7515 = vsel %vm7507, %v7431, 0
  %v7518 = vsel %vm7507, %v7432, 0
  %v7521 = vsel %vm7507, %v7433, 0
  %v7524 = vsel %vm7507, %v7434, 0
  %v7527 = vsel %vm7507, %v7435, 0
  %v7530 = vsel %vm7507, %v7436, 0
  %v7533 = vsel %vm7507, %v7437, 0
  %v7536 = vsel %vm7507, %v7438, 0
  %v7539 = vsel %vm7507, %v7439, 0
  %v7542 = vsel %vm7507, %v7440, 0
  %v7545 = vsel %vm7507, %v7441, 0
  %v7548 = vsel %vm7507, %v7442, 0
  %v7551 = vsel %vm7507, %v7443, 0
  %v7554 = vsel %vm7507, %v7444, 0
  %v7557 = vsel %vm7507, %v7445, 0
  %v7560 = vsel %vm7507, %v7446, 0
  %v7563 = vsel %vm7507, %v7447, 0
  %v7566 = vsel %vm7507, %v7448, 0
  %v7569 = vsel %vm7507, %v7449, 0
  %v7572 = vsel %vm7507, %v7450, 0
  %v7575 = vsel %vm7507, %v7451, 0
  %v7578 = vsel %vm7507, %v7452, 0
  %v7581 = vsel %vm7507, %v7453, 0
  %v7584 = vsel %vm7507, %v7454, 0
  %v7587 = vsel %vm7507, %v7455, 0
  %v7590 = vsel %vm7507, %v7456, 0
  %v7593 = vsel %vm7507, %v7457, 0
  %v7596 = vsel %vm7507, %v7458, 0
  %v7599 = vsel %vm7507, %v7459, 0
  %v7602 = vsel %vm7507, %v7460, 0
  %vm7604 = vcmask 1045504
  %v7606 = vsel %vm7604, %v7502, 0
  %7608 = vmatprep.subr.bf16.mxu0 0
  %7609 = vmatpush1.bf16.msra.mxu0 %v7498
  %7610 = vmatprep.subr.bf16.mxu0 0
  %7611 = vmatpush1.bf16.msra.mxu0 %v7499
  %7612 = vmatprep.subr.bf16.mxu0 0
  %7613 = vmatpush1.bf16.msra.mxu0 %v7500
  %7614 = vmatprep.subr.bf16.mxu0 0
  %7615 = vmatpush1.bf16.msra.mxu0 %v7501
  %7616 = vmatprep.subr.bf16.mxu0 0
  %7617 = vmatpush1.bf16.msra.mxu0 %v7606
  %7618 = vmatprep.subr.bf16.mxu0 0
  %7619 = vmatpush1.bf16.msra.mxu0 0
  %7620 = vmatprep.subr.bf16.mxu0 0
  %7621 = vmatpush1.bf16.msra.mxu0 0
  %7622 = vmatprep.subr.bf16.mxu0 0
  %7623 = vmatpush1.bf16.msra.mxu0 0
  %7624 = vmatprep.subr.bf16.mxu0 0
  %7625 = vmatpush1.bf16.msra.mxu0 0
  %7626 = vmatprep.subr.bf16.mxu0 0
  %7627 = vmatpush1.bf16.msra.mxu0 0
  %7628 = vmatprep.subr.bf16.mxu0 0
  %7629 = vmatpush1.bf16.msra.mxu0 0
  %7630 = vmatprep.subr.bf16.mxu0 0
  %7631 = vmatpush1.bf16.msra.mxu0 0
  %7632 = vmatprep.subr.bf16.mxu0 0
  %7633 = vmatpush1.bf16.msra.mxu0 0
  %7634 = vmatprep.subr.bf16.mxu0 0
  %7635 = vmatpush1.bf16.msra.mxu0 0
  %7636 = vmatprep.subr.bf16.mxu0 0
  %7637 = vmatpush1.bf16.msra.mxu0 0
  %7638 = vmatprep.subr.bf16.mxu0 0
  %7639 = vmatpush1.bf16.msra.mxu0 0
  %7640 = vmatprep.mubr.bf16.mxu0 0
  %7641 = vmatmul.mubr.bf16.gmra.mrb[0].mxu0 %v7509
  %v7642 = vpop.f32.mrb[0].mxu0
  %v7643 = vadd.f32 %v7476, %v7642
  %v7644 = vpop.f32.mrb[0].mxu0
  %v7645 = vpop.f32.mrb[0].mxu0
  %v7646 = vadd.f32 %v7476, %v7645
  %v7647 = vpop.f32.mrb[0].mxu0
  %7648 = vmatprep.mubr.bf16.mxu0 0
  %7649 = vmatmul.mubr.bf16.gmra.mrb[0].mxu0 %v7512
  %v7650 = vpop.f32.mrb[0].mxu0
  %v7651 = vadd.f32 %v7476, %v7650
  %v7652 = vpop.f32.mrb[0].mxu0
  %v7653 = vpop.f32.mrb[0].mxu0
  %v7654 = vadd.f32 %v7476, %v7653
  %v7655 = vpop.f32.mrb[0].mxu0
  %7656 = vmatprep.mubr.bf16.mxu0 0
  %7657 = vmatmul.mubr.bf16.gmra.mrb[0].mxu0 %v7515
  %v7658 = vpop.f32.mrb[0].mxu0
  %v7659 = vadd.f32 %v7476, %v7658
  %v7660 = vpop.f32.mrb[0].mxu0
  %v7661 = vpop.f32.mrb[0].mxu0
  %v7662 = vadd.f32 %v7476, %v7661
  %v7663 = vpop.f32.mrb[0].mxu0
  %7664 = vmatprep.mubr.bf16.mxu0 0
  %7665 = vmatmul.mubr.bf16.gmra.mrb[0].mxu0 %v7518
  %v7666 = vpop.f32.mrb[0].mxu0
  %v7667 = vadd.f32 %v7476, %v7666
  %v7668 = vpop.f32.mrb[0].mxu0
  %v7669 = vpop.f32.mrb[0].mxu0
  %v7670 = vadd.f32 %v7476, %v7669
  %v7671 = vpop.f32.mrb[0].mxu0
  %7672 = vmatprep.mubr.bf16.mxu0 0
  %7673 = vmatmul.mubr.bf16.gmra.mrb[0].mxu0 %v7521
  %v7674 = vpop.f32.mrb[0].mxu0
  %v7675 = vadd.f32 %v7476, %v7674
  %v7676 = vpop.f32.mrb[0].mxu0
  %v7677 = vpop.f32.mrb[0].mxu0
  %v7678 = vadd.f32 %v7476, %v7677
  %v7679 = vpop.f32.mrb[0].mxu0
  %7680 = vmatprep.mubr.bf16.mxu0 0
  %7681 = vmatmul.mubr.bf16.gmra.mrb[0].mxu0 %v7524
  %v7682 = vpop.f32.mrb[0].mxu0
  %v7683 = vadd.f32 %v7476, %v7682
  %v7684 = vpop.f32.mrb[0].mxu0
  %v7685 = vpop.f32.mrb[0].mxu0
  %v7686 = vadd.f32 %v7476, %v7685
  %v7687 = vpop.f32.mrb[0].mxu0
  %7688 = vmatprep.mubr.bf16.mxu0 0
  %7689 = vmatmul.mubr.bf16.gmra.mrb[0].mxu0 %v7527
  %v7690 = vpop.f32.mrb[0].mxu0
  %v7691 = vadd.f32 %v7476, %v7690
  %v7692 = vpop.f32.mrb[0].mxu0
  %v7693 = vpop.f32.mrb[0].mxu0
  %v7694 = vadd.f32 %v7476, %v7693
  %v7695 = vpop.f32.mrb[0].mxu0
  %7696 = vmatprep.mubr.bf16.mxu0 0
  %7697 = vmatmul.mubr.bf16.gmra.mrb[0].mxu0 %v7530
  %v7698 = vpop.f32.mrb[0].mxu0
  %v7699 = vadd.f32 %v7476, %v7698
  %v7700 = vpop.f32.mrb[0].mxu0
  %v7701 = vpop.f32.mrb[0].mxu0
  %v7702 = vadd.f32 %v7476, %v7701
  %v7703 = vpop.f32.mrb[0].mxu0
  %7704 = vmatprep.mubr.bf16.mxu0 0
  %7705 = vmatmul.mubr.bf16.gmra.mrb[0].mxu0 %v7533
  %v7706 = vpop.f32.mrb[0].mxu0
  %v7707 = vadd.f32 %v7476, %v7706
  %v7708 = vpop.f32.mrb[0].mxu0
  %v7709 = vpop.f32.mrb[0].mxu0
  %v7710 = vadd.f32 %v7476, %v7709
  %v7711 = vpop.f32.mrb[0].mxu0
  %7712 = vmatprep.mubr.bf16.mxu0 0
  %7713 = vmatmul.mubr.bf16.gmra.mrb[0].mxu0 %v7536
  %v7714 = vpop.f32.mrb[0].mxu0
  %v7715 = vadd.f32 %v7476, %v7714
  %v7716 = vpop.f32.mrb[0].mxu0
  %v7717 = vpop.f32.mrb[0].mxu0
  %v7718 = vadd.f32 %v7476, %v7717
  %v7719 = vpop.f32.mrb[0].mxu0
  %7720 = vmatprep.mubr.bf16.mxu0 0
  %7721 = vmatmul.mubr.bf16.gmra.mrb[0].mxu0 %v7539
  %v7722 = vpop.f32.mrb[0].mxu0
  %v7723 = vadd.f32 %v7476, %v7722
  %v7724 = vpop.f32.mrb[0].mxu0
  %v7725 = vpop.f32.mrb[0].mxu0
  %v7726 = vadd.f32 %v7476, %v7725
  %v7727 = vpop.f32.mrb[0].mxu0
  %7728 = vmatprep.mubr.bf16.mxu0 0
  %7729 = vmatmul.mubr.bf16.gmra.mrb[0].mxu0 %v7542
  %v7730 = vpop.f32.mrb[0].mxu0
  %v7731 = vadd.f32 %v7476, %v7730
  %v7732 = vpop.f32.mrb[0].mxu0
  %v7733 = vpop.f32.mrb[0].mxu0
  %v7734 = vadd.f32 %v7476, %v7733
  %v7735 = vpop.f32.mrb[0].mxu0
  %7736 = vmatprep.mubr.bf16.mxu0 0
  %7737 = vmatmul.mubr.bf16.gmra.mrb[0].mxu0 %v7545
  %v7738 = vpop.f32.mrb[0].mxu0
  %v7739 = vadd.f32 %v7476, %v7738
  %v7740 = vpop.f32.mrb[0].mxu0
  %v7741 = vpop.f32.mrb[0].mxu0
  %v7742 = vadd.f32 %v7476, %v7741
  %v7743 = vpop.f32.mrb[0].mxu0
  %7744 = vmatprep.mubr.bf16.mxu0 0
  %7745 = vmatmul.mubr.bf16.gmra.mrb[0].mxu0 %v7548
  %v7746 = vpop.f32.mrb[0].mxu0
  %v7747 = vadd.f32 %v7476, %v7746
  %v7748 = vpop.f32.mrb[0].mxu0
  %v7749 = vpop.f32.mrb[0].mxu0
  %v7750 = vadd.f32 %v7476, %v7749
  %v7751 = vpop.f32.mrb[0].mxu0
  %7752 = vmatprep.mubr.bf16.mxu0 0
  %7753 = vmatmul.mubr.bf16.gmra.mrb[0].mxu0 %v7551
  %v7754 = vpop.f32.mrb[0].mxu0
  %v7755 = vadd.f32 %v7476, %v7754
  %v7756 = vpop.f32.mrb[0].mxu0
  %v7757 = vpop.f32.mrb[0].mxu0
  %v7758 = vadd.f32 %v7476, %v7757
  %v7759 = vpop.f32.mrb[0].mxu0
  %7760 = vmatprep.mubr.bf16.mxu0 0
  %7761 = vmatmul.mubr.bf16.gmra.mrb[0].mxu0 %v7554
  %v7762 = vpop.f32.mrb[0].mxu0
  %v7763 = vadd.f32 %v7476, %v7762
  %v7764 = vpop.f32.mrb[0].mxu0
  %v7765 = vpop.f32.mrb[0].mxu0
  %v7766 = vadd.f32 %v7476, %v7765
  %v7767 = vpop.f32.mrb[0].mxu0
  %7768 = vmatprep.mubr.bf16.mxu0 0
  %7769 = vmatmul.mubr.bf16.gmra.mrb[0].mxu0 %v7557
  %v7770 = vpop.f32.mrb[0].mxu0
  %v7771 = vadd.f32 %v7476, %v7770
  %v7772 = vpop.f32.mrb[0].mxu0
  %v7773 = vpop.f32.mrb[0].mxu0
  %v7774 = vadd.f32 %v7476, %v7773
  %v7775 = vpop.f32.mrb[0].mxu0
  %7776 = vmatprep.mubr.bf16.mxu0 0
  %7777 = vmatmul.mubr.bf16.gmra.mrb[0].mxu0 %v7560
  %v7778 = vpop.f32.mrb[0].mxu0
  %v7779 = vadd.f32 %v7476, %v7778
  %v7780 = vpop.f32.mrb[0].mxu0
  %v7781 = vpop.f32.mrb[0].mxu0
  %v7782 = vadd.f32 %v7476, %v7781
  %v7783 = vpop.f32.mrb[0].mxu0
  %7784 = vmatprep.mubr.bf16.mxu0 0
  %7785 = vmatmul.mubr.bf16.gmra.mrb[0].mxu0 %v7563
  %v7786 = vpop.f32.mrb[0].mxu0
  %v7787 = vadd.f32 %v7476, %v7786
  %v7788 = vpop.f32.mrb[0].mxu0
  %v7789 = vpop.f32.mrb[0].mxu0
  %v7790 = vadd.f32 %v7476, %v7789
  %v7791 = vpop.f32.mrb[0].mxu0
  %7792 = vmatprep.mubr.bf16.mxu0 0
  %7793 = vmatmul.mubr.bf16.gmra.mrb[0].mxu0 %v7566
  %v7794 = vpop.f32.mrb[0].mxu0
  %v7795 = vadd.f32 %v7476, %v7794
  %v7796 = vpop.f32.mrb[0].mxu0
  %v7797 = vpop.f32.mrb[0].mxu0
  %v7798 = vadd.f32 %v7476, %v7797
  %v7799 = vpop.f32.mrb[0].mxu0
  %7800 = vmatprep.mubr.bf16.mxu0 0
  %7801 = vmatmul.mubr.bf16.gmra.mrb[0].mxu0 %v7569
  %v7802 = vpop.f32.mrb[0].mxu0
  %v7803 = vadd.f32 %v7476, %v7802
  %v7804 = vpop.f32.mrb[0].mxu0
  %v7805 = vpop.f32.mrb[0].mxu0
  %v7806 = vadd.f32 %v7476, %v7805
  %v7807 = vpop.f32.mrb[0].mxu0
  %7808 = vmatprep.mubr.bf16.mxu0 0
  %7809 = vmatmul.mubr.bf16.gmra.mrb[0].mxu0 %v7572
  %v7810 = vpop.f32.mrb[0].mxu0
  %v7811 = vadd.f32 %v7476, %v7810
  %v7812 = vpop.f32.mrb[0].mxu0
  %v7813 = vpop.f32.mrb[0].mxu0
  %v7814 = vadd.f32 %v7476, %v7813
  %v7815 = vpop.f32.mrb[0].mxu0
  %7816 = vmatprep.mubr.bf16.mxu0 0
  %7817 = vmatmul.mubr.bf16.gmra.mrb[0].mxu0 %v7575
  %v7818 = vpop.f32.mrb[0].mxu0
  %v7819 = vadd.f32 %v7476, %v7818
  %v7820 = vpop.f32.mrb[0].mxu0
  %v7821 = vpop.f32.mrb[0].mxu0
  %v7822 = vadd.f32 %v7476, %v7821
  %v7823 = vpop.f32.mrb[0].mxu0
  %7824 = vmatprep.mubr.bf16.mxu0 0
  %7825 = vmatmul.mubr.bf16.gmra.mrb[0].mxu0 %v7578
  %v7826 = vpop.f32.mrb[0].mxu0
  %v7827 = vadd.f32 %v7476, %v7826
  %v7828 = vpop.f32.mrb[0].mxu0
  %v7829 = vpop.f32.mrb[0].mxu0
  %v7830 = vadd.f32 %v7476, %v7829
  %v7831 = vpop.f32.mrb[0].mxu0
  %7832 = vmatprep.mubr.bf16.mxu0 0
  %7833 = vmatmul.mubr.bf16.gmra.mrb[0].mxu0 %v7581
  %v7834 = vpop.f32.mrb[0].mxu0
  %v7835 = vadd.f32 %v7476, %v7834
  %v7836 = vpop.f32.mrb[0].mxu0
  %v7837 = vpop.f32.mrb[0].mxu0
  %v7838 = vadd.f32 %v7476, %v7837
  %v7839 = vpop.f32.mrb[0].mxu0
  %7840 = vmatprep.mubr.bf16.mxu0 0
  %7841 = vmatmul.mubr.bf16.gmra.mrb[0].mxu0 %v7584
  %v7842 = vpop.f32.mrb[0].mxu0
  %v7843 = vadd.f32 %v7476, %v7842
  %v7844 = vpop.f32.mrb[0].mxu0
  %v7845 = vpop.f32.mrb[0].mxu0
  %v7846 = vadd.f32 %v7476, %v7845
  %v7847 = vpop.f32.mrb[0].mxu0
  %7848 = vmatprep.mubr.bf16.mxu0 0
  %7849 = vmatmul.mubr.bf16.gmra.mrb[0].mxu0 %v7587
  %v7850 = vpop.f32.mrb[0].mxu0
  %v7851 = vadd.f32 %v7476, %v7850
  %v7852 = vpop.f32.mrb[0].mxu0
  %v7853 = vpop.f32.mrb[0].mxu0
  %v7854 = vadd.f32 %v7476, %v7853
  %v7855 = vpop.f32.mrb[0].mxu0
  %7856 = vmatprep.mubr.bf16.mxu0 0
  %7857 = vmatmul.mubr.bf16.gmra.mrb[0].mxu0 %v7590
  %v7858 = vpop.f32.mrb[0].mxu0
  %v7859 = vadd.f32 %v7476, %v7858
  %v7860 = vpop.f32.mrb[0].mxu0
  %v7861 = vpop.f32.mrb[0].mxu0
  %v7862 = vadd.f32 %v7476, %v7861
  %v7863 = vpop.f32.mrb[0].mxu0
  %7864 = vmatprep.mubr.bf16.mxu0 0
  %7865 = vmatmul.mubr.bf16.gmra.mrb[0].mxu0 %v7593
  %v7866 = vpop.f32.mrb[0].mxu0
  %v7867 = vadd.f32 %v7476, %v7866
  %v7868 = vpop.f32.mrb[0].mxu0
  %v7869 = vpop.f32.mrb[0].mxu0
  %v7870 = vadd.f32 %v7476, %v7869
  %v7871 = vpop.f32.mrb[0].mxu0
  %7872 = vmatprep.mubr.bf16.mxu0 0
  %7873 = vmatmul.mubr.bf16.gmra.mrb[0].mxu0 %v7596
  %v7874 = vpop.f32.mrb[0].mxu0
  %v7875 = vadd.f32 %v7476, %v7874
  %v7876 = vpop.f32.mrb[0].mxu0
  %v7877 = vpop.f32.mrb[0].mxu0
  %v7878 = vadd.f32 %v7476, %v7877
  %v7879 = vpop.f32.mrb[0].mxu0
  %7880 = vmatprep.mubr.bf16.mxu0 0
  %7881 = vmatmul.mubr.bf16.gmra.mrb[0].mxu0 %v7599
  %v7882 = vpop.f32.mrb[0].mxu0
  %v7883 = vadd.f32 %v7476, %v7882
  %v7884 = vpop.f32.mrb[0].mxu0
  %v7885 = vpop.f32.mrb[0].mxu0
  %v7886 = vadd.f32 %v7476, %v7885
  %v7887 = vpop.f32.mrb[0].mxu0
  %7888 = vmatprep.mubr.bf16.mxu0 0
  %7889 = vmatmul.mubr.bf16.gmra.mrb[0].mxu0 %v7602
  %v7890 = vpop.f32.mrb[0].mxu0
  %v7891 = vadd.f32 %v7476, %v7890
  %v7892 = vpop.f32.mrb[0].mxu0
  %v7893 = vpop.f32.mrb[0].mxu0
  %v7894 = vadd.f32 %v7476, %v7893
  %v7895 = vpop.f32.mrb[0].mxu0
  %7896 = vdwg.mxu0
  %v7897 = vmax.f32 %v7643, 0.0
  %v7898 = vmax.f32 %v7646, 0.0
  %v7899 = vmax.f32 %v7651, 0.0
  %v7900 = vmax.f32 %v7654, 0.0
  %v7901 = vmax.f32 %v7659, 0.0
  %v7902 = vmax.f32 %v7662, 0.0
  %v7903 = vmax.f32 %v7667, 0.0
  %v7904 = vmax.f32 %v7670, 0.0
  %v7905 = vmax.f32 %v7675, 0.0
  %v7906 = vmax.f32 %v7678, 0.0
  %v7907 = vmax.f32 %v7683, 0.0
  %v7908 = vmax.f32 %v7686, 0.0
  %v7909 = vmax.f32 %v7691, 0.0
  %v7910 = vmax.f32 %v7694, 0.0
  %v7911 = vmax.f32 %v7699, 0.0
  %v7912 = vmax.f32 %v7702, 0.0
  %v7913 = vmax.f32 %v7707, 0.0
  %v7914 = vmax.f32 %v7710, 0.0
  %v7915 = vmax.f32 %v7715, 0.0
  %v7916 = vmax.f32 %v7718, 0.0
  %v7917 = vmax.f32 %v7723, 0.0
  %v7918 = vmax.f32 %v7726, 0.0
  %v7919 = vmax.f32 %v7731, 0.0
  %v7920 = vmax.f32 %v7734, 0.0
  %v7921 = vmax.f32 %v7739, 0.0
  %v7922 = vmax.f32 %v7742, 0.0
  %v7923 = vmax.f32 %v7747, 0.0
  %v7924 = vmax.f32 %v7750, 0.0
  %v7925 = vmax.f32 %v7755, 0.0
  %v7926 = vmax.f32 %v7758, 0.0
  %v7927 = vmax.f32 %v7763, 0.0
  %v7928 = vmax.f32 %v7766, 0.0
  %v7929 = vmax.f32 %v7771, 0.0
  %v7930 = vmax.f32 %v7774, 0.0
  %v7931 = vmax.f32 %v7779, 0.0
  %v7932 = vmax.f32 %v7782, 0.0
  %v7933 = vmax.f32 %v7787, 0.0
  %v7934 = vmax.f32 %v7790, 0.0
  %v7935 = vmax.f32 %v7795, 0.0
  %v7936 = vmax.f32 %v7798, 0.0
  %v7937 = vmax.f32 %v7803, 0.0
  %v7938 = vmax.f32 %v7806, 0.0
  %v7939 = vmax.f32 %v7811, 0.0
  %v7940 = vmax.f32 %v7814, 0.0
  %v7941 = vmax.f32 %v7819, 0.0
  %v7942 = vmax.f32 %v7822, 0.0
  %v7943 = vmax.f32 %v7827, 0.0
  %v7944 = vmax.f32 %v7830, 0.0
  %v7945 = vmax.f32 %v7835, 0.0
  %v7946 = vmax.f32 %v7838, 0.0
  %v7947 = vmax.f32 %v7843, 0.0
  %v7948 = vmax.f32 %v7846, 0.0
  %v7949 = vmax.f32 %v7851, 0.0
  %v7950 = vmax.f32 %v7854, 0.0
  %v7951 = vmax.f32 %v7859, 0.0
  %v7952 = vmax.f32 %v7862, 0.0
  %v7953 = vmax.f32 %v7867, 0.0
  %v7954 = vmax.f32 %v7870, 0.0
  %v7955 = vmax.f32 %v7875, 0.0
  %v7956 = vmax.f32 %v7878, 0.0
  %v7957 = vmax.f32 %v7883, 0.0
  %v7958 = vmax.f32 %v7886, 0.0
  %v7959 = vmax.f32 %v7891, 0.0
  %v7960 = vmax.f32 %v7894, 0.0
  %7961 = vst.msk [vmem:[%s5] sm:$0xff] %vm2919, %v7897
  %7962 = vst.msk [vmem:[%s5 + $0x8] sm:$0xff] %vm2919, %v7898
  %7963 = vst.msk [vmem:[%s5 + $0x10] sm:$0xff] %vm2919, %v7899
  %7964 = vst.msk [vmem:[%s5 + $0x18] sm:$0xff] %vm2919, %v7900
  %7965 = vst.msk [vmem:[%s5 + $0x20] sm:$0xff] %vm2919, %v7901
  %7966 = vst.msk [vmem:[%s5 + $0x28] sm:$0xff] %vm2919, %v7902
  %7967 = vst.msk [vmem:[%s5 + $0x30] sm:$0xff] %vm2919, %v7903
  %7968 = vst.msk [vmem:[%s5 + $0x38] sm:$0xff] %vm2919, %v7904
  %7969 = vst.msk [vmem:[%s5 + $0x40] sm:$0xff] %vm2919, %v7905
  %7970 = vst.msk [vmem:[%s5 + $0x48] sm:$0xff] %vm2919, %v7906
  %7971 = vst.msk [vmem:[%s5 + $0x50] sm:$0xff] %vm2919, %v7907
  %7972 = vst.msk [vmem:[%s5 + $0x58] sm:$0xff] %vm2919, %v7908
  %7973 = vst.msk [vmem:[%s5 + $0x60] sm:$0xff] %vm2919, %v7909
  %7974 = vst.msk [vmem:[%s5 + $0x68] sm:$0xff] %vm2919, %v7910
  %7975 = vst.msk [vmem:[%s5 + $0x70] sm:$0xff] %vm2919, %v7911
  %7976 = vst.msk [vmem:[%s5 + $0x78] sm:$0xff] %vm2919, %v7912
  %7977 = vst.msk [vmem:[%s5 + $0x80] sm:$0xff] %vm2919, %v7913
  %7978 = vst.msk [vmem:[%s5 + $0x88] sm:$0xff] %vm2919, %v7914
  %7979 = vst.msk [vmem:[%s5 + $0x90] sm:$0xff] %vm2919, %v7915
  %7980 = vst.msk [vmem:[%s5 + $0x98] sm:$0xff] %vm2919, %v7916
  %7981 = vst.msk [vmem:[%s5 + $0xa0] sm:$0xff] %vm2919, %v7917
  %7982 = vst.msk [vmem:[%s5 + $0xa8] sm:$0xff] %vm2919, %v7918
  %7983 = vst.msk [vmem:[%s5 + $0xb0] sm:$0xff] %vm2919, %v7919
  %7984 = vst.msk [vmem:[%s5 + $0xb8] sm:$0xff] %vm2919, %v7920
  %7985 = vst.msk [vmem:[%s5 + $0xc0] sm:$0xff] %vm2919, %v7921
  %7986 = vst.msk [vmem:[%s5 + $0xc8] sm:$0xff] %vm2919, %v7922
  %7987 = vst.msk [vmem:[%s5 + $0xd0] sm:$0xff] %vm2919, %v7923
  %7988 = vst.msk [vmem:[%s5 + $0xd8] sm:$0xff] %vm2919, %v7924
  %7989 = vst.msk [vmem:[%s5 + $0xe0] sm:$0xff] %vm2919, %v7925
  %7990 = vst.msk [vmem:[%s5 + $0xe8] sm:$0xff] %vm2919, %v7926
  %7991 = vst.msk [vmem:[%s5 + $0xf0] sm:$0xff] %vm2919, %v7927
  %7992 = vst.msk [vmem:[%s5 + $0xf8] sm:$0xff] %vm2919, %v7928
  %7993 = vst.msk [vmem:[%s5 + $0x100] sm:$0xff] %vm2919, %v7929
  %7994 = vst.msk [vmem:[%s5 + $0x108] sm:$0xff] %vm2919, %v7930
  %7995 = vst.msk [vmem:[%s5 + $0x110] sm:$0xff] %vm2919, %v7931
  %7996 = vst.msk [vmem:[%s5 + $0x118] sm:$0xff] %vm2919, %v7932
  %7997 = vst.msk [vmem:[%s5 + $0x120] sm:$0xff] %vm2919, %v7933
  %7998 = vst.msk [vmem:[%s5 + $0x128] sm:$0xff] %vm2919, %v7934
  %7999 = vst.msk [vmem:[%s5 + $0x130] sm:$0xff] %vm2919, %v7935
  %8000 = vst.msk [vmem:[%s5 + $0x138] sm:$0xff] %vm2919, %v7936
  %8001 = vst.msk [vmem:[%s5 + $0x140] sm:$0xff] %vm2919, %v7937
  %8002 = vst.msk [vmem:[%s5 + $0x148] sm:$0xff] %vm2919, %v7938
  %8003 = vst.msk [vmem:[%s5 + $0x150] sm:$0xff] %vm2919, %v7939
  %8004 = vst.msk [vmem:[%s5 + $0x158] sm:$0xff] %vm2919, %v7940
  %8005 = vst.msk [vmem:[%s5 + $0x160] sm:$0xff] %vm2919, %v7941
  %8006 = vst.msk [vmem:[%s5 + $0x168] sm:$0xff] %vm2919, %v7942
  %8007 = vst.msk [vmem:[%s5 + $0x170] sm:$0xff] %vm2919, %v7943
  %8008 = vst.msk [vmem:[%s5 + $0x178] sm:$0xff] %vm2919, %v7944
  %8009 = vst.msk [vmem:[%s5 + $0x180] sm:$0xff] %vm2919, %v7945
  %8010 = vst.msk [vmem:[%s5 + $0x188] sm:$0xff] %vm2919, %v7946
  %8011 = vst.msk [vmem:[%s5 + $0x190] sm:$0xff] %vm2919, %v7947
  %8012 = vst.msk [vmem:[%s5 + $0x198] sm:$0xff] %vm2919, %v7948
  %8013 = vst.msk [vmem:[%s5 + $0x1a0] sm:$0xff] %vm2919, %v7949
  %8014 = vst.msk [vmem:[%s5 + $0x1a8] sm:$0xff] %vm2919, %v7950
  %8015 = vst.msk [vmem:[%s5 + $0x1b0] sm:$0xff] %vm2919, %v7951
  %8016 = vst.msk [vmem:[%s5 + $0x1b8] sm:$0xff] %vm2919, %v7952
  %8017 = vst.msk [vmem:[%s5 + $0x1c0] sm:$0xff] %vm2919, %v7953
  %8018 = vst.msk [vmem:[%s5 + $0x1c8] sm:$0xff] %vm2919, %v7954
  %8019 = vst.msk [vmem:[%s5 + $0x1d0] sm:$0xff] %vm2919, %v7955
  %8020 = vst.msk [vmem:[%s5 + $0x1d8] sm:$0xff] %vm2919, %v7956
  %8021 = vst.msk [vmem:[%s5 + $0x1e0] sm:$0xff] %vm2919, %v7957
  %8022 = vst.msk [vmem:[%s5 + $0x1e8] sm:$0xff] %vm2919, %v7958
  %8023 = vst.msk [vmem:[%s5 + $0x1f0] sm:$0xff] %vm2919, %v7959
  %8024 = vst.msk [vmem:[%s5 + $0x1f8] sm:$0xff] %vm2919, %v7960
  // Predicated region
  $region22: #{resblock_pallas.1} parent=0 // pred_check
    _
  $region23: #{resblock_pallas.1} parent=0 // pred_check_branch
    %8026 = sbr.rel (0) target = $region25
  $region24: #{resblock_pallas.1} parent=0 // pred_region
    _
  $region25: #{resblock_pallas.1} parent=0 // pred_fallthru
    _
  // Predicated region
  $region26: #{resblock_pallas.1} parent=0 // pred_check
    _
  $region27: #{resblock_pallas.1} parent=0 // pred_check_branch
    %8028 = sbr.rel (0) target = $region29
  $region28: #{resblock_pallas.1} parent=0 // pred_region
    _
  $region29: #{resblock_pallas.1} parent=0 // pred_fallthru
    _

</llo_original>
